<compile_context>
chip_gen: v5e
topology: v5e:2x2
jax: 0.10.0
libtpu: 0.0.40
codegen_flags: <defaults>
</compile_context>

<pallas_src>
import jax
import jax.numpy as jnp
from jax.experimental import pallas as pl
from jax.experimental.pallas import tpu as pltpu


def _round_up(x, m):
    return ((x + m - 1) // m) * m


# --------------------------------------------------------------------------
# Kernel 1: per-tile attention fusion + accumulation of bd = sum_b(out_att)
# --------------------------------------------------------------------------
def bd_accum_kernel(rob_ref, vit1_ref, vit2_ref, wa2_ref, waq_ref, ba_ref,
                    bd_ref):
    @pl.when(pl.program_id(0) == 0)
    def _():
        bd_ref[...] = jnp.zeros_like(bd_ref)

    rob = rob_ref[...]                       # [BS, DH] f32
    vit1 = vit1_ref[...]                     # [BS, DH] f32
    vit2 = vit2_ref[...]                     # [BS, DH] f32

    # ques_part_out = out_roberta * out_vit1   (f32 on the VPU)
    ques = rob * vit1

    # self.att: Linear(2048, 1024) + Tanh on cat(out_vit2, ques).
    # Split into two bf16 matmuls with f32 accumulation (single MXU pass each).
    att = (jnp.dot(vit2.astype(jnp.bfloat16), wa2_ref[...],
                   preferred_element_type=jnp.float32)
           + jnp.dot(ques.astype(jnp.bfloat16), waq_ref[...],
                     preferred_element_type=jnp.float32)
           + ba_ref[...])
    att = jnp.tanh(att)                      # f32 (EUP)

    # out_att = att * out_vit2 ; partial sum over this tile's rows
    out_att = att * vit2                     # [BS, DH] f32
    bd_ref[...] += jnp.sum(out_att, axis=0, keepdims=True)   # [1, DH]


# --------------------------------------------------------------------------
# Kernel 2: logits = ((bd * ques) . wc) + bc   (VPU multiply + lane reduction)
# --------------------------------------------------------------------------
def logits_kernel(rob_ref, vit1_ref, bd_ref, wct_ref, bc_ref, out_ref):
    ques = rob_ref[...] * vit1_ref[...]              # [BS, DH] f32 (recompute, cheap)
    final = bd_ref[...] * ques                       # broadcast [1,DH] * [BS,DH]
    logit = jnp.sum(final * wct_ref[...], axis=-1, keepdims=True) + bc_ref[...]
    out_ref[...] = logit                             # [BS, 1]


# --------------------------------------------------------------------------
# Wrapper
# --------------------------------------------------------------------------
def vit_bd_head(rob, vit1, vit2, params, *, block_b=None):
    """rob/vit1/vit2: [B, DH] f32  ->  logits [B, 1] f32."""
    B, DH = rob.shape

    # Samples per grid step: big enough to feed MXU rows, capped at 256.
    # (On v7x, pick block_b so B/block_b >= 2 if there is enough work.)
    if block_b is None:
        block_b = min(256, _round_up(B, 8))
    Bp = _round_up(B, block_b)
    if Bp != B:
        pad = ((0, Bp - B), (0, 0))
        rob = jnp.pad(rob, pad)
        vit1 = jnp.pad(vit1, pad)
        vit2 = jnp.pad(vit2, pad)       # zero rows -> out_att == 0 -> exact
    nt = Bp // block_b

    # bf16 weights for the MXU (halves DMA + VMEM residency); f32 elsewhere.
    wa2 = params["wa_vit2"].astype(jnp.bfloat16)     # [DH, DH]  vit2 half
    waq = params["wa_ques"].astype(jnp.bfloat16)     # [DH, DH]  ques half
    ba = params["ba"]                                # [1, DH]   f32
    wct = params["wc_t"]                             # [1, DH]   f32 (classifier W^T)
    bc = params["bc"]                                # [1, 1]    f32

    row_spec = pl.BlockSpec((block_b, DH), lambda t: (t, 0))
    full_dh = pl.BlockSpec((1, DH), lambda t: (0, 0))

    # ---- pass 1: accumulate bd = sum over the whole (flattened) batch ----
    bd = pl.pallas_call(
        bd_accum_kernel,
        out_shape=jax.ShapeDtypeStruct((1, DH), jnp.float32),
        grid_spec=pltpu.PrefetchScalarGridSpec(
            num_scalar_prefetch=0,
            grid=(nt,),
            in_specs=[
                row_spec, row_spec, row_spec,                     # rob, vit1, vit2
                pl.BlockSpec((DH, DH), lambda t: (0, 0)),         # wa_vit2 (bf16)
                pl.BlockSpec((DH, DH), lambda t: (0, 0)),         # wa_ques (bf16)
                full_dh,                                          # ba
            ],
            out_specs=full_dh,                                    # bd accumulator
        ),
        compiler_params=pltpu.CompilerParams(
            dimension_semantics=("arbitrary",),                   # cross-grid accumulator
            vmem_limit_bytes=32 * 1024 * 1024,                    # v7x-safe budget
        ),
    )(rob, vit1, vit2, wa2, waq, ba)

    # ---- pass 2: per-sample logits (parallel / megacore-shardable) ----
    logits = pl.pallas_call(
        logits_kernel,
        out_shape=jax.ShapeDtypeStruct((Bp, 1), jnp.float32),
        grid_spec=pltpu.PrefetchScalarGridSpec(
            num_scalar_prefetch=0,
            grid=(nt,),
            in_specs=[
                row_spec, row_spec,                               # rob, vit1
                full_dh,                                          # bd
                full_dh,                                          # wc^T
                pl.BlockSpec((1, 1), lambda t: (0, 0)),           # bc
            ],
            out_specs=pl.BlockSpec((block_b, 1), lambda t: (t, 0)),
        ),
        compiler_params=pltpu.CompilerParams(
            dimension_semantics=("parallel",),
            vmem_limit_bytes=32 * 1024 * 1024,
        ),
    )(rob, vit1, bd, wct, bc)

    return logits[:B]


# --------------------------------------------------------------------------
# Params / reference
# --------------------------------------------------------------------------
def init_params(key, DH=1024):
    k1, k2, k3 = jax.random.split(key, 3)
    s = 0.02
    f32 = jnp.float32
    return dict(
        # self.att = Linear(2048, 1024): weight split into vit2-half / ques-half
        # (cat order in the module is cat((out_vit2, ques_part_out), 1)).
        wa_vit2=jax.random.normal(k1, (DH, DH), f32) * s,
        wa_ques=jax.random.normal(k2, (DH, DH), f32) * s,
        ba=jnp.zeros((1, DH), f32),
        # self.classifier = Linear(1024, 1): weight stored transposed [1, DH]
        wc_t=jax.random.normal(k3, (1, DH), f32) * s,
        bc=jnp.zeros((1, 1), f32),
    )


def reference(rob, vit1, vit2, p):
    """Pure-JAX reference of the VIT_bd head (mirrors the torch forward).

    Matmuls use bf16 operands with f32 accumulation — the same (deliberate)
    precision choice as the kernel's MXU matmuls; everything else is f32.
    """
    def bmm(a, w):
        return jnp.dot(a.astype(jnp.bfloat16), w.astype(jnp.bfloat16),
                       preferred_element_type=jnp.float32)

    ques = rob * vit1                                                 # [B, DH]
    cat_x = jnp.concatenate([vit2, ques], axis=1)                     # [B, 2DH]
    cat_w = jnp.concatenate([p["wa_vit2"], p["wa_ques"]], axis=0)     # [2DH, DH]
    att = jnp.tanh(bmm(cat_x, cat_w) + p["ba"])                       # [B, DH]
    out_att = att * vit2
    bd = jnp.sum(out_att, axis=0, keepdims=True)                      # [1, DH]
    final = bd * ques                                                 # [B, DH]
    return jnp.sum(final * p["wc_t"], axis=-1, keepdims=True) + p["bc"]  # [B, 1]


# --------------------------------------------------------------------------
# Test
# --------------------------------------------------------------------------
if __name__ == "__main__":
    key = jax.random.PRNGKey(0)
    k1, k2, k3, k4, kp = jax.random.split(key, 5)

    batch, num_choices, DH = 2, 4, 1024      # DH fixed at 1024 by the module
    B = batch * num_choices

    # Synthetic backbone outputs (stand-ins for roberta-large / ViT-large).
    rob_pooled = jax.random.normal(k1, (batch, num_choices, DH), jnp.float32)
    vit1_cls = jax.random.normal(k2, (batch, num_choices, DH), jnp.float32)
    vit2_cls = jax.random.normal(k3, (batch, num_choices, DH), jnp.float32)
    labels = jax.random.randint(k4, (batch,), 0, num_choices)

    params = init_params(kp, DH)

    # flatten (batch, num_choices) -> B, mirroring input_ids.view(-1, ...)
    rob_f = rob_pooled.reshape(B, DH)
    vit1_f = vit1_cls.reshape(B, DH)
    vit2_f = vit2_cls.reshape(B, DH)

    logits = vit_bd_head(rob_f, vit1_f, vit2_f, params)               # [B, 1]
    reshaped_logits = logits.reshape(-1, num_choices)                 # [batch, num_choices]

    # CrossEntropyLoss on reshaped_logits (glue, plain JAX)
    logp = jax.nn.log_softmax(reshaped_logits, axis=-1)
    loss = -jnp.mean(jnp.take_along_axis(logp, labels[:, None], axis=-1))
    reshaped_logits, loss = jax.block_until_ready((reshaped_logits, loss))

    # correctness check against the pure-JAX reference
    ref = reference(rob_f, vit1_f, vit2_f, params).reshape(-1, num_choices)
    err = float(jnp.max(jnp.abs(reshaped_logits - ref)))
    assert err < 1e-2, f"kernel/reference mismatch: max abs err = {err}"

    print("KERNEL_OK")
</pallas_src>

<mosaic_0001>
module attributes {stable_mosaic.version = 11 : i64} {
  func.func @bd_accum_kernel(%arg0: i32, %arg1: memref<8x1024xf32, #tpu.memory_space<vmem>>, %arg2: memref<8x1024xf32, #tpu.memory_space<vmem>>, %arg3: memref<8x1024xf32, #tpu.memory_space<vmem>>, %arg4: memref<1024x1024xbf16, #tpu.memory_space<vmem>>, %arg5: memref<1024x1024xbf16, #tpu.memory_space<vmem>>, %arg6: memref<1x1024xf32, #tpu.memory_space<vmem>>, %arg7: memref<1x1024xf32, #tpu.memory_space<vmem>>) attributes {dimension_semantics = [#tpu.dimension_semantics<arbitrary>], iteration_bounds = array<i64: 1>, scalar_prefetch = 0 : i64, scratch_operands = 0 : i64, tpu.core_type = #tpu.core_type<tc>, window_params = [{transform_indices = @transform_0, window_bounds = array<i64: 8, 1024>}, {transform_indices = @transform_1, window_bounds = array<i64: 8, 1024>}, {transform_indices = @transform_2, window_bounds = array<i64: 8, 1024>}, {pipeline_mode = #tpu.pipeline_mode<synchronous>, transform_indices = @transform_3, window_bounds = array<i64: 1024, 1024>}, {pipeline_mode = #tpu.pipeline_mode<synchronous>, transform_indices = @transform_4, window_bounds = array<i64: 1024, 1024>}, {pipeline_mode = #tpu.pipeline_mode<synchronous>, transform_indices = @transform_5, window_bounds = array<i64: 1, 1024>}, {pipeline_mode = #tpu.pipeline_mode<synchronous>, transform_indices = @transform_6, window_bounds = array<i64: 1, 1024>}]} {
    %c0_i32 = arith.constant 0 : i32
    %0 = arith.cmpi eq, %arg0, %c0_i32 : i32
    %1 = arith.extui %0 : i1 to i32
    %c0_i32_0 = arith.constant 0 : i32
    %2 = arith.cmpi ne, %1, %c0_i32_0 : i32
    scf.if %2 {
      %cst_18 = arith.constant 0.000000e+00 : f32
      %24 = vector.broadcast %cst_18 : f32 to vector<1x1024xf32>
      %c0_19 = arith.constant 0 : index
      %c0_20 = arith.constant 0 : index
      %25 = vector.load %arg7[%c0_19, %c0_20] : memref<1x1024xf32, #tpu.memory_space<vmem>>, vector<1x1024xf32>
      tpu.vector_store %arg7[%c0_19, %c0_20], %24 {strides = array<i32>} : memref<1x1024xf32, #tpu.memory_space<vmem>>, vector<1x1024xf32>,
    } else {
    }
    %c0 = arith.constant 0 : index
    %c0_1 = arith.constant 0 : index
    %3 = vector.load %arg1[%c0, %c0_1] : memref<8x1024xf32, #tpu.memory_space<vmem>>, vector<8x1024xf32>
    %c0_2 = arith.constant 0 : index
    %c0_3 = arith.constant 0 : index
    %4 = vector.load %arg2[%c0_2, %c0_3] : memref<8x1024xf32, #tpu.memory_space<vmem>>, vector<8x1024xf32>
    %c0_4 = arith.constant 0 : index
    %c0_5 = arith.constant 0 : index
    %5 = vector.load %arg3[%c0_4, %c0_5] : memref<8x1024xf32, #tpu.memory_space<vmem>>, vector<8x1024xf32>
    %6 = arith.mulf %3, %4 : vector<8x1024xf32>
    %7 = arith.truncf %5 : vector<8x1024xf32> to vector<8x1024xbf16>
    %c0_6 = arith.constant 0 : index
    %c0_7 = arith.constant 0 : index
    %8 = vector.load %arg4[%c0_6, %c0_7] : memref<1024x1024xbf16, #tpu.memory_space<vmem>>, vector<1024x1024xbf16>
    %cst = arith.constant dense<0.000000e+00> : vector<8x1024xf32>
    %9 = tpu.matmul %7, %8, %cst {dimension_numbers = #tpu.dot_dimension_numbers<[1], [0], [0], [1], [0, 0, 1, 1], [], []>} : vector<8x1024xbf16>, vector<1024x1024xbf16>, vector<8x1024xf32> -> vector<8x1024xf32>
    %10 = arith.truncf %6 : vector<8x1024xf32> to vector<8x1024xbf16>
    %c0_8 = arith.constant 0 : index
    %c0_9 = arith.constant 0 : index
    %11 = vector.load %arg5[%c0_8, %c0_9] : memref<1024x1024xbf16, #tpu.memory_space<vmem>>, vector<1024x1024xbf16>
    %cst_10 = arith.constant dense<0.000000e+00> : vector<8x1024xf32>
    %12 = tpu.matmul %10, %11, %cst_10 {dimension_numbers = #tpu.dot_dimension_numbers<[1], [0], [0], [1], [0, 0, 1, 1], [], []>} : vector<8x1024xbf16>, vector<1024x1024xbf16>, vector<8x1024xf32> -> vector<8x1024xf32>
    %13 = arith.addf %9, %12 : vector<8x1024xf32>
    %c0_11 = arith.constant 0 : index
    %c0_12 = arith.constant 0 : index
    %14 = vector.load %arg6[%c0_11, %c0_12] : memref<1x1024xf32, #tpu.memory_space<vmem>>, vector<1x1024xf32>
    %15 = vector.broadcast %14 : vector<1x1024xf32> to vector<8x1024xf32>
    %16 = arith.addf %13, %15 : vector<8x1024xf32>
    %17 = math.tanh %16 : vector<8x1024xf32>
    %18 = arith.mulf %17, %5 : vector<8x1024xf32>
    %c0_13 = arith.constant 0 : index
    %c0_14 = arith.constant 0 : index
    %19 = vector.load %arg7[%c0_13, %c0_14] : memref<1x1024xf32, #tpu.memory_space<vmem>>, vector<1x1024xf32>
    %cst_15 = arith.constant dense<0.000000e+00> : vector<1024xf32>
    %20 = vector.multi_reduction <add>, %18, %cst_15 [0] : vector<8x1024xf32> to vector<1024xf32>
    %21 = vector.shape_cast %20 : vector<1024xf32> to vector<1x1024xf32>
    %22 = arith.addf %19, %21 : vector<1x1024xf32>
    %c0_16 = arith.constant 0 : index
    %c0_17 = arith.constant 0 : index
    %23 = vector.load %arg7[%c0_16, %c0_17] : memref<1x1024xf32, #tpu.memory_space<vmem>>, vector<1x1024xf32>
    tpu.vector_store %arg7[%c0_16, %c0_17], %22 {strides = array<i32>} : memref<1x1024xf32, #tpu.memory_space<vmem>>, vector<1x1024xf32>,
    return
  }
  func.func @transform_0(%arg0: i32) -> (i32, i32) {
    %c0_i32 = arith.constant 0 : i32
    %c0_i32_0 = arith.constant 0 : i32
    return %arg0, %c0_i32 : i32, i32
  }
  func.func @transform_1(%arg0: i32) -> (i32, i32) {
    %c0_i32 = arith.constant 0 : i32
    %c0_i32_0 = arith.constant 0 : i32
    return %arg0, %c0_i32 : i32, i32
  }
  func.func @transform_2(%arg0: i32) -> (i32, i32) {
    %c0_i32 = arith.constant 0 : i32
    %c0_i32_0 = arith.constant 0 : i32
    return %arg0, %c0_i32 : i32, i32
  }
  func.func @transform_3(%arg0: i32) -> (i32, i32) {
    %c0_i32 = arith.constant 0 : i32
    %c0_i32_0 = arith.constant 0 : i32
    %c0_i32_1 = arith.constant 0 : i32
    return %c0_i32, %c0_i32_0 : i32, i32
  }
  func.func @transform_4(%arg0: i32) -> (i32, i32) {
    %c0_i32 = arith.constant 0 : i32
    %c0_i32_0 = arith.constant 0 : i32
    %c0_i32_1 = arith.constant 0 : i32
    return %c0_i32, %c0_i32_0 : i32, i32
  }
  func.func @transform_5(%arg0: i32) -> (i32, i32) {
    %c0_i32 = arith.constant 0 : i32
    %c0_i32_0 = arith.constant 0 : i32
    %c0_i32_1 = arith.constant 0 : i32
    return %c0_i32, %c0_i32_0 : i32, i32
  }
  func.func @transform_6(%arg0: i32) -> (i32, i32) {
    %c0_i32 = arith.constant 0 : i32
    %c0_i32_0 = arith.constant 0 : i32
    %c0_i32_1 = arith.constant 0 : i32
    return %c0_i32, %c0_i32_0 : i32, i32
  }
}

</mosaic_0001>

<llo_original>
// kernel: tpu_custom_call.1
$region0: #{tpu_custom_call.1}
  #allocation0 [shape = 'u32[]', space=smem, size = 0x4, offset = 0x4, fixed_abs, tag = 'smem constant byte address 0x4 - core index']
  #allocation1 [shape = 'u32[72,128]{1,0:T(1,128)}', space=vmem, size = 0x9000, scoped, tag = 'internal scratch']
  %s0 = inlined_call_operand.hbm [shape: f32[8,1024], index: 0, kind: input, shape index: {}]
  %s1 = inlined_call_operand.hbm [shape: f32[8,1024], index: 1, kind: input, shape index: {}]
  %s2 = inlined_call_operand.hbm [shape: f32[8,1024], index: 2, kind: input, shape index: {}]
  %s3 = inlined_call_operand.hbm [shape: bf16[1024,1024], index: 3, kind: input, shape index: {}]
  %s4 = inlined_call_operand.hbm [shape: bf16[1024,1024], index: 4, kind: input, shape index: {}]
  %s5 = inlined_call_operand.hbm [shape: f32[1,1024], index: 5, kind: input, shape index: {}]
  %s6 = inlined_call_operand.hbm [shape: f32[1,1024], index: 6, kind: output, shape index: {}]
  %s7 = sld [smem:[#allocation0]]
  $region62: #{tpu_custom_call.1} parent=0
    _
  %s9 = ssub.s32 1, %s7
  %s10 = scalar_select 0, %s9, %s7
  $region1: #{tpu_custom_call.1} parent=0
    #allocation2 [shape = 'u8[32768]{0}', space=vmem, size = 0x8000, scoped, tag = 'input window, operand 0, single buffered']
    #allocation3 [shape = 's32[1]{0}', space=sflag, size = 0x4, scoped, tag = 'scoped memory for tpu_custom_call.1']
    #allocation4 [shape = 's32[1]{0}', space=sflag, size = 0x4, scoped, tag = 'scoped memory for tpu_custom_call.1']
    #allocation5 [shape = 'u8[32768]{0}', space=vmem, size = 0x8000, scoped, tag = 'input window, operand 1, single buffered']
    #allocation6 [shape = 's32[1]{0}', space=sflag, size = 0x4, scoped, tag = 'scoped memory for tpu_custom_call.1']
    #allocation7 [shape = 'u8[32768]{0}', space=vmem, size = 0x8000, scoped, tag = 'input window, operand 2, single buffered']
    #allocation8 [shape = 'u8[2097152]{0}', space=vmem, size = 0x200000, scoped, tag = 'input window, operand 3, single buffered']
    #allocation9 [shape = 's32[1]{0}', space=sflag, size = 0x4, scoped, tag = 'scoped memory for tpu_custom_call.1']
    #allocation10 [shape = 'u8[2097152]{0}', space=vmem, size = 0x200000, scoped, tag = 'input window, operand 4, single buffered']
    #allocation11 [shape = 'u8[4096]{0}', space=vmem, size = 0x1000, scoped, tag = 'input window, operand 5, single buffered']
    #allocation12 [shape = 's32[1]{0}', space=sflag, size = 0x4, scoped, tag = 'scoped memory for tpu_custom_call.1']
    #allocation13 [shape = 'u8[4096]{0}', space=vmem, size = 0x1000, scoped, tag = 'output window, operand 0, single buffered']
    %11 = vsyncpa [#allocation3], 0
    %12 = vsyncpa [#allocation6], 0
    %13 = vsyncpa [#allocation9], 0
    %14 = vsyncpa [#allocation12], 0
    %15 = vsyncpa [#allocation4], 0
    // Predicated region
    $region2: #{tpu_custom_call.1} parent=1 // pred_check
      _
    $region3: #{tpu_custom_call.1} parent=1 // pred_check_branch
      %17 = sbr.rel (0) target = $region5
    $region4: #{tpu_custom_call.1} parent=1 // pred_region
      %19 = vsyncadd [#allocation3], 0
      %s21 = sshll.u32 %s0, 4
      %s22 = int_to_ptr.hbm [resolvable:$true] %s21
      %s23 = sshll.u32 [#allocation2], 4
      %s24 = int_to_ptr.vmem [resolvable:$true] %s23
      %26 = dma.hbm_to_vmem [thread:$0]  %s22, 1024, %s24, [#allocation3]
    $region5: #{tpu_custom_call.1} parent=1 // pred_fallthru
      _
    // Predicated region
    $region6: #{tpu_custom_call.1} parent=1 // pred_check
      _
    $region7: #{tpu_custom_call.1} parent=1 // pred_check_branch
      %28 = sbr.rel (0) target = $region9
    $region8: #{tpu_custom_call.1} parent=1 // pred_region
      %30 = vsyncadd [#allocation6], 0
      %s32 = sshll.u32 %s1, 4
      %s33 = int_to_ptr.hbm [resolvable:$true] %s32
      %s34 = sshll.u32 [#allocation5], 4
      %s35 = int_to_ptr.vmem [resolvable:$true] %s34
      %37 = dma.hbm_to_vmem [thread:$0]  %s33, 1024, %s35, [#allocation6]
    $region9: #{tpu_custom_call.1} parent=1 // pred_fallthru
      _
    // Predicated region
    $region10: #{tpu_custom_call.1} parent=1 // pred_check
      _
    $region11: #{tpu_custom_call.1} parent=1 // pred_check_branch
      %39 = sbr.rel (0) target = $region13
    $region12: #{tpu_custom_call.1} parent=1 // pred_region
      %41 = vsyncadd [#allocation6], 0
      %s43 = sshll.u32 %s2, 4
      %s44 = int_to_ptr.hbm [resolvable:$true] %s43
      %s45 = sshll.u32 [#allocation7], 4
      %s46 = int_to_ptr.vmem [resolvable:$true] %s45
      %48 = dma.hbm_to_vmem [thread:$0]  %s44, 1024, %s46, [#allocation6]
    $region13: #{tpu_custom_call.1} parent=1 // pred_fallthru
      _
    // Predicated region
    $region14: #{tpu_custom_call.1} parent=1 // pred_check
      _
    $region15: #{tpu_custom_call.1} parent=1 // pred_check_branch
      %50 = sbr.rel (0) target = $region17
    $region16: #{tpu_custom_call.1} parent=1 // pred_region
      %52 = vsyncadd [#allocation9], 0
      %s53 = sshll.u32 %s3, 4
      %s54 = int_to_ptr.hbm [resolvable:$true] %s53
      %s55 = sshll.u32 [#allocation8], 4
      %s56 = int_to_ptr.vmem [resolvable:$true] %s55
      %61 = dma.hbm_to_vmem [thread:$0]  %s54, 65536, %s56, [#allocation9], 512, 512, 32
    $region17: #{tpu_custom_call.1} parent=1 // pred_fallthru
      _
    // Predicated region
    $region18: #{tpu_custom_call.1} parent=1 // pred_check
      _
    $region19: #{tpu_custom_call.1} parent=1 // pred_check_branch
      %63 = sbr.rel (0) target = $region21
    $region20: #{tpu_custom_call.1} parent=1 // pred_region
      %65 = vsyncadd [#allocation9], 0
      %s66 = sshll.u32 %s4, 4
      %s67 = int_to_ptr.hbm [resolvable:$true] %s66
      %s68 = sshll.u32 [#allocation10], 4
      %s69 = int_to_ptr.vmem [resolvable:$true] %s68
      %74 = dma.hbm_to_vmem [thread:$0]  %s67, 65536, %s69, [#allocation9], 512, 512, 32
    $region21: #{tpu_custom_call.1} parent=1 // pred_fallthru
      _
    // Predicated region
    $region22: #{tpu_custom_call.1} parent=1 // pred_check
      _
    $region23: #{tpu_custom_call.1} parent=1 // pred_check_branch
      %76 = sbr.rel (0) target = $region25
    $region24: #{tpu_custom_call.1} parent=1 // pred_region
      %78 = vsyncadd [#allocation12], 0
      %s80 = sshll.u32 %s5, 4
      %s81 = int_to_ptr.hbm [resolvable:$true] %s80
      %s82 = sshll.u32 [#allocation11], 4
      %s83 = int_to_ptr.vmem [resolvable:$true] %s82
      %85 = dma.hbm_to_vmem [thread:$0]  %s81, 128, %s83, [#allocation12]
    $region25: #{tpu_custom_call.1} parent=1 // pred_fallthru
      _
    // Predicated region
    $region26: #{tpu_custom_call.1} parent=1 // pred_check
      _
    $region27: #{tpu_custom_call.1} parent=1 // pred_check_branch
      %87 = sbr.rel (0) target = $region29
    $region28: #{tpu_custom_call.1} parent=1 // pred_region
      %89 = dma.done [#allocation3], 1024
    $region29: #{tpu_custom_call.1} parent=1 // pred_fallthru
      _
    // Predicated region
    $region30: #{tpu_custom_call.1} parent=1 // pred_check
      _
    $region31: #{tpu_custom_call.1} parent=1 // pred_check_branch
      %91 = sbr.rel (0) target = $region33
    $region32: #{tpu_custom_call.1} parent=1 // pred_region
      %93 = dma.done [#allocation6], 1024
    $region33: #{tpu_custom_call.1} parent=1 // pred_fallthru
      _
    // Predicated region
    $region34: #{tpu_custom_call.1} parent=1 // pred_check
      _
    $region35: #{tpu_custom_call.1} parent=1 // pred_check_branch
      %95 = sbr.rel (0) target = $region37
    $region36: #{tpu_custom_call.1} parent=1 // pred_region
      %97 = dma.done [#allocation6], 1024
    $region37: #{tpu_custom_call.1} parent=1 // pred_fallthru
      _
    // Predicated region
    $region38: #{tpu_custom_call.1} parent=1 // pred_check
      _
    $region39: #{tpu_custom_call.1} parent=1 // pred_check_branch
      %99 = sbr.rel (0) target = $region41
    $region40: #{tpu_custom_call.1} parent=1 // pred_region
      %101 = dma.done [#allocation9], 65536
    $region41: #{tpu_custom_call.1} parent=1 // pred_fallthru
      _
    // Predicated region
    $region42: #{tpu_custom_call.1} parent=1 // pred_check
      _
    $region43: #{tpu_custom_call.1} parent=1 // pred_check_branch
      %103 = sbr.rel (0) target = $region45
    $region44: #{tpu_custom_call.1} parent=1 // pred_region
      %105 = dma.done [#allocation9], 65536
    $region45: #{tpu_custom_call.1} parent=1 // pred_fallthru
      _
    // Predicated region
    $region46: #{tpu_custom_call.1} parent=1 // pred_check
      _
    $region47: #{tpu_custom_call.1} parent=1 // pred_check_branch
      %107 = sbr.rel (0) target = $region49
    $region48: #{tpu_custom_call.1} parent=1 // pred_region
      %109 = dma.done [#allocation12], 128
    $region49: #{tpu_custom_call.1} parent=1 // pred_fallthru
      _
    %p110 = scmp.eq.s32.totalorder 0, 0
    // Predicated region
    $region50: #{tpu_custom_call.1} parent=1 // pred_check
      %p111 = pneg %p110
    $region51: #{tpu_custom_call.1} parent=1 // pred_check_branch
      %113 = sbr.rel (%p111) target = $region53
    $region52: #{tpu_custom_call.1} parent=1 // pred_region
      %114 = vst [vmem:[#allocation13] sm:$0xff] 0.0
    $region53: #{tpu_custom_call.1} parent=1 // pred_fallthru
      _
    %v115 = vld [vmem:[#allocation2] sm:$0xff]
    %v116 = vld [vmem:[#allocation2 + $0x8] sm:$0xff]
    %v117 = vld [vmem:[#allocation2 + $0x10] sm:$0xff]
    %v118 = vld [vmem:[#allocation2 + $0x18] sm:$0xff]
    %v119 = vld [vmem:[#allocation2 + $0x20] sm:$0xff]
    %v120 = vld [vmem:[#allocation2 + $0x28] sm:$0xff]
    %v121 = vld [vmem:[#allocation2 + $0x30] sm:$0xff]
    %v122 = vld [vmem:[#allocation2 + $0x38] sm:$0xff]
    %v123 = vld [vmem:[#allocation5] sm:$0xff]
    %v124 = vld [vmem:[#allocation5 + $0x8] sm:$0xff]
    %v125 = vld [vmem:[#allocation5 + $0x10] sm:$0xff]
    %v126 = vld [vmem:[#allocation5 + $0x18] sm:$0xff]
    %v127 = vld [vmem:[#allocation5 + $0x20] sm:$0xff]
    %v128 = vld [vmem:[#allocation5 + $0x28] sm:$0xff]
    %v129 = vld [vmem:[#allocation5 + $0x30] sm:$0xff]
    %v130 = vld [vmem:[#allocation5 + $0x38] sm:$0xff]
    %v131 = vld [vmem:[#allocation7] sm:$0xff]
    %v132 = vld [vmem:[#allocation7 + $0x8] sm:$0xff]
    %v133 = vld [vmem:[#allocation7 + $0x10] sm:$0xff]
    %v134 = vld [vmem:[#allocation7 + $0x18] sm:$0xff]
    %v135 = vld [vmem:[#allocation7 + $0x20] sm:$0xff]
    %v136 = vld [vmem:[#allocation7 + $0x28] sm:$0xff]
    %v137 = vld [vmem:[#allocation7 + $0x30] sm:$0xff]
    %v138 = vld [vmem:[#allocation7 + $0x38] sm:$0xff]
    %v139 = vmul.f32 %v115, %v123
    %v140 = vmul.f32 %v116, %v124
    %v141 = vmul.f32 %v117, %v125
    %v142 = vmul.f32 %v118, %v126
    %v143 = vmul.f32 %v119, %v127
    %v144 = vmul.f32 %v120, %v128
    %v145 = vmul.f32 %v121, %v129
    %v146 = vmul.f32 %v122, %v130
    %v147 = vpack.c.bf16 %v131, %v131
    %v148 = vpack.c.bf16 %v132, %v132
    %v149 = vpack.c.bf16 %v133, %v133
    %v150 = vpack.c.bf16 %v134, %v134
    %v151 = vpack.c.bf16 %v135, %v135
    %v152 = vpack.c.bf16 %v136, %v136
    %v153 = vpack.c.bf16 %v137, %v137
    %v154 = vpack.c.bf16 %v138, %v138
    %v155 = vld [vmem:[#allocation8] sm:$0xff]
    %v156 = vld [vmem:[#allocation8 + $0x8] sm:$0xff]
    %v157 = vld [vmem:[#allocation8 + $0x10] sm:$0xff]
    %v158 = vld [vmem:[#allocation8 + $0x18] sm:$0xff]
    %v159 = vld [vmem:[#allocation8 + $0x20] sm:$0xff]
    %v160 = vld [vmem:[#allocation8 + $0x28] sm:$0xff]
    %v161 = vld [vmem:[#allocation8 + $0x30] sm:$0xff]
    %v162 = vld [vmem:[#allocation8 + $0x38] sm:$0xff]
    %v163 = vld [vmem:[#allocation8 + $0x40] sm:$0xff]
    %v164 = vld [vmem:[#allocation8 + $0x48] sm:$0xff]
    %v165 = vld [vmem:[#allocation8 + $0x50] sm:$0xff]
    %v166 = vld [vmem:[#allocation8 + $0x58] sm:$0xff]
    %v167 = vld [vmem:[#allocation8 + $0x60] sm:$0xff]
    %v168 = vld [vmem:[#allocation8 + $0x68] sm:$0xff]
    %v169 = vld [vmem:[#allocation8 + $0x70] sm:$0xff]
    %v170 = vld [vmem:[#allocation8 + $0x78] sm:$0xff]
    %v171 = vld [vmem:[#allocation8 + $0x80] sm:$0xff]
    %v172 = vld [vmem:[#allocation8 + $0x88] sm:$0xff]
    %v173 = vld [vmem:[#allocation8 + $0x90] sm:$0xff]
    %v174 = vld [vmem:[#allocation8 + $0x98] sm:$0xff]
    %v175 = vld [vmem:[#allocation8 + $0xa0] sm:$0xff]
    %v176 = vld [vmem:[#allocation8 + $0xa8] sm:$0xff]
    %v177 = vld [vmem:[#allocation8 + $0xb0] sm:$0xff]
    %v178 = vld [vmem:[#allocation8 + $0xb8] sm:$0xff]
    %v179 = vld [vmem:[#allocation8 + $0xc0] sm:$0xff]
    %v180 = vld [vmem:[#allocation8 + $0xc8] sm:$0xff]
    %v181 = vld [vmem:[#allocation8 + $0xd0] sm:$0xff]
    %v182 = vld [vmem:[#allocation8 + $0xd8] sm:$0xff]
    %v183 = vld [vmem:[#allocation8 + $0xe0] sm:$0xff]
    %v184 = vld [vmem:[#allocation8 + $0xe8] sm:$0xff]
    %v185 = vld [vmem:[#allocation8 + $0xf0] sm:$0xff]
    %v186 = vld [vmem:[#allocation8 + $0xf8] sm:$0xff]
    %v187 = vld [vmem:[#allocation8 + $0x100] sm:$0xff]
    %v188 = vld [vmem:[#allocation8 + $0x108] sm:$0xff]
    %v189 = vld [vmem:[#allocation8 + $0x110] sm:$0xff]
    %v190 = vld [vmem:[#allocation8 + $0x118] sm:$0xff]
    %v191 = vld [vmem:[#allocation8 + $0x120] sm:$0xff]
    %v192 = vld [vmem:[#allocation8 + $0x128] sm:$0xff]
    %v193 = vld [vmem:[#allocation8 + $0x130] sm:$0xff]
    %v194 = vld [vmem:[#allocation8 + $0x138] sm:$0xff]
    %v195 = vld [vmem:[#allocation8 + $0x140] sm:$0xff]
    %v196 = vld [vmem:[#allocation8 + $0x148] sm:$0xff]
    %v197 = vld [vmem:[#allocation8 + $0x150] sm:$0xff]
    %v198 = vld [vmem:[#allocation8 + $0x158] sm:$0xff]
    %v199 = vld [vmem:[#allocation8 + $0x160] sm:$0xff]
    %v200 = vld [vmem:[#allocation8 + $0x168] sm:$0xff]
    %v201 = vld [vmem:[#allocation8 + $0x170] sm:$0xff]
    %v202 = vld [vmem:[#allocation8 + $0x178] sm:$0xff]
    %v203 = vld [vmem:[#allocation8 + $0x180] sm:$0xff]
    %v204 = vld [vmem:[#allocation8 + $0x188] sm:$0xff]
    %v205 = vld [vmem:[#allocation8 + $0x190] sm:$0xff]
    %v206 = vld [vmem:[#allocation8 + $0x198] sm:$0xff]
    %v207 = vld [vmem:[#allocation8 + $0x1a0] sm:$0xff]
    %v208 = vld [vmem:[#allocation8 + $0x1a8] sm:$0xff]
    %v209 = vld [vmem:[#allocation8 + $0x1b0] sm:$0xff]
    %v210 = vld [vmem:[#allocation8 + $0x1b8] sm:$0xff]
    %v211 = vld [vmem:[#allocation8 + $0x1c0] sm:$0xff]
    %v212 = vld [vmem:[#allocation8 + $0x1c8] sm:$0xff]
    %v213 = vld [vmem:[#allocation8 + $0x1d0] sm:$0xff]
    %v214 = vld [vmem:[#allocation8 + $0x1d8] sm:$0xff]
    %v215 = vld [vmem:[#allocation8 + $0x1e0] sm:$0xff]
    %v216 = vld [vmem:[#allocation8 + $0x1e8] sm:$0xff]
    %v217 = vld [vmem:[#allocation8 + $0x1f0] sm:$0xff]
    %v218 = vld [vmem:[#allocation8 + $0x1f8] sm:$0xff]
    %v219 = vld [vmem:[#allocation8 + $0x200] sm:$0xff]
    %v220 = vld [vmem:[#allocation8 + $0x208] sm:$0xff]
    %v221 = vld [vmem:[#allocation8 + $0x210] sm:$0xff]
    %v222 = vld [vmem:[#allocation8 + $0x218] sm:$0xff]
    %v223 = vld [vmem:[#allocation8 + $0x220] sm:$0xff]
    %v224 = vld [vmem:[#allocation8 + $0x228] sm:$0xff]
    %v225 = vld [vmem:[#allocation8 + $0x230] sm:$0xff]
    %v226 = vld [vmem:[#allocation8 + $0x238] sm:$0xff]
    %v227 = vld [vmem:[#allocation8 + $0x240] sm:$0xff]
    %v228 = vld [vmem:[#allocation8 + $0x248] sm:$0xff]
    %v229 = vld [vmem:[#allocation8 + $0x250] sm:$0xff]
    %v230 = vld [vmem:[#allocation8 + $0x258] sm:$0xff]
    %v231 = vld [vmem:[#allocation8 + $0x260] sm:$0xff]
    %v232 = vld [vmem:[#allocation8 + $0x268] sm:$0xff]
    %v233 = vld [vmem:[#allocation8 + $0x270] sm:$0xff]
    %v234 = vld [vmem:[#allocation8 + $0x278] sm:$0xff]
    %v235 = vld [vmem:[#allocation8 + $0x280] sm:$0xff]
    %v236 = vld [vmem:[#allocation8 + $0x288] sm:$0xff]
    %v237 = vld [vmem:[#allocation8 + $0x290] sm:$0xff]
    %v238 = vld [vmem:[#allocation8 + $0x298] sm:$0xff]
    %v239 = vld [vmem:[#allocation8 + $0x2a0] sm:$0xff]
    %v240 = vld [vmem:[#allocation8 + $0x2a8] sm:$0xff]
    %v241 = vld [vmem:[#allocation8 + $0x2b0] sm:$0xff]
    %v242 = vld [vmem:[#allocation8 + $0x2b8] sm:$0xff]
    %v243 = vld [vmem:[#allocation8 + $0x2c0] sm:$0xff]
    %v244 = vld [vmem:[#allocation8 + $0x2c8] sm:$0xff]
    %v245 = vld [vmem:[#allocation8 + $0x2d0] sm:$0xff]
    %v246 = vld [vmem:[#allocation8 + $0x2d8] sm:$0xff]
    %v247 = vld [vmem:[#allocation8 + $0x2e0] sm:$0xff]
    %v248 = vld [vmem:[#allocation8 + $0x2e8] sm:$0xff]
    %v249 = vld [vmem:[#allocation8 + $0x2f0] sm:$0xff]
    %v250 = vld [vmem:[#allocation8 + $0x2f8] sm:$0xff]
    %v251 = vld [vmem:[#allocation8 + $0x300] sm:$0xff]
    %v252 = vld [vmem:[#allocation8 + $0x308] sm:$0xff]
    %v253 = vld [vmem:[#allocation8 + $0x310] sm:$0xff]
    %v254 = vld [vmem:[#allocation8 + $0x318] sm:$0xff]
    %v255 = vld [vmem:[#allocation8 + $0x320] sm:$0xff]
    %v256 = vld [vmem:[#allocation8 + $0x328] sm:$0xff]
    %v257 = vld [vmem:[#allocation8 + $0x330] sm:$0xff]
    %v258 = vld [vmem:[#allocation8 + $0x338] sm:$0xff]
    %v259 = vld [vmem:[#allocation8 + $0x340] sm:$0xff]
    %v260 = vld [vmem:[#allocation8 + $0x348] sm:$0xff]
    %v261 = vld [vmem:[#allocation8 + $0x350] sm:$0xff]
    %v262 = vld [vmem:[#allocation8 + $0x358] sm:$0xff]
    %v263 = vld [vmem:[#allocation8 + $0x360] sm:$0xff]
    %v264 = vld [vmem:[#allocation8 + $0x368] sm:$0xff]
    %v265 = vld [vmem:[#allocation8 + $0x370] sm:$0xff]
    %v266 = vld [vmem:[#allocation8 + $0x378] sm:$0xff]
    %v267 = vld [vmem:[#allocation8 + $0x380] sm:$0xff]
    %v268 = vld [vmem:[#allocation8 + $0x388] sm:$0xff]
    %v269 = vld [vmem:[#allocation8 + $0x390] sm:$0xff]
    %v270 = vld [vmem:[#allocation8 + $0x398] sm:$0xff]
    %v271 = vld [vmem:[#allocation8 + $0x3a0] sm:$0xff]
    %v272 = vld [vmem:[#allocation8 + $0x3a8] sm:$0xff]
    %v273 = vld [vmem:[#allocation8 + $0x3b0] sm:$0xff]
    %v274 = vld [vmem:[#allocation8 + $0x3b8] sm:$0xff]
    %v275 = vld [vmem:[#allocation8 + $0x3c0] sm:$0xff]
    %v276 = vld [vmem:[#allocation8 + $0x3c8] sm:$0xff]
    %v277 = vld [vmem:[#allocation8 + $0x3d0] sm:$0xff]
    %v278 = vld [vmem:[#allocation8 + $0x3d8] sm:$0xff]
    %v279 = vld [vmem:[#allocation8 + $0x3e0] sm:$0xff]
    %v280 = vld [vmem:[#allocation8 + $0x3e8] sm:$0xff]
    %v281 = vld [vmem:[#allocation8 + $0x3f0] sm:$0xff]
    %v282 = vld [vmem:[#allocation8 + $0x3f8] sm:$0xff]
    %v283 = vld [vmem:[#allocation8 + $0x400] sm:$0xff]
    %v284 = vld [vmem:[#allocation8 + $0x408] sm:$0xff]
    %v285 = vld [vmem:[#allocation8 + $0x410] sm:$0xff]
    %v286 = vld [vmem:[#allocation8 + $0x418] sm:$0xff]
    %v287 = vld [vmem:[#allocation8 + $0x420] sm:$0xff]
    %v288 = vld [vmem:[#allocation8 + $0x428] sm:$0xff]
    %v289 = vld [vmem:[#allocation8 + $0x430] sm:$0xff]
    %v290 = vld [vmem:[#allocation8 + $0x438] sm:$0xff]
    %v291 = vld [vmem:[#allocation8 + $0x440] sm:$0xff]
    %v292 = vld [vmem:[#allocation8 + $0x448] sm:$0xff]
    %v293 = vld [vmem:[#allocation8 + $0x450] sm:$0xff]
    %v294 = vld [vmem:[#allocation8 + $0x458] sm:$0xff]
    %v295 = vld [vmem:[#allocation8 + $0x460] sm:$0xff]
    %v296 = vld [vmem:[#allocation8 + $0x468] sm:$0xff]
    %v297 = vld [vmem:[#allocation8 + $0x470] sm:$0xff]
    %v298 = vld [vmem:[#allocation8 + $0x478] sm:$0xff]
    %v299 = vld [vmem:[#allocation8 + $0x480] sm:$0xff]
    %v300 = vld [vmem:[#allocation8 + $0x488] sm:$0xff]
    %v301 = vld [vmem:[#allocation8 + $0x490] sm:$0xff]
    %v302 = vld [vmem:[#allocation8 + $0x498] sm:$0xff]
    %v303 = vld [vmem:[#allocation8 + $0x4a0] sm:$0xff]
    %v304 = vld [vmem:[#allocation8 + $0x4a8] sm:$0xff]
    %v305 = vld [vmem:[#allocation8 + $0x4b0] sm:$0xff]
    %v306 = vld [vmem:[#allocation8 + $0x4b8] sm:$0xff]
    %v307 = vld [vmem:[#allocation8 + $0x4c0] sm:$0xff]
    %v308 = vld [vmem:[#allocation8 + $0x4c8] sm:$0xff]
    %v309 = vld [vmem:[#allocation8 + $0x4d0] sm:$0xff]
    %v310 = vld [vmem:[#allocation8 + $0x4d8] sm:$0xff]
    %v311 = vld [vmem:[#allocation8 + $0x4e0] sm:$0xff]
    %v312 = vld [vmem:[#allocation8 + $0x4e8] sm:$0xff]
    %v313 = vld [vmem:[#allocation8 + $0x4f0] sm:$0xff]
    %v314 = vld [vmem:[#allocation8 + $0x4f8] sm:$0xff]
    %v315 = vld [vmem:[#allocation8 + $0x500] sm:$0xff]
    %v316 = vld [vmem:[#allocation8 + $0x508] sm:$0xff]
    %v317 = vld [vmem:[#allocation8 + $0x510] sm:$0xff]
    %v318 = vld [vmem:[#allocation8 + $0x518] sm:$0xff]
    %v319 = vld [vmem:[#allocation8 + $0x520] sm:$0xff]
    %v320 = vld [vmem:[#allocation8 + $0x528] sm:$0xff]
    %v321 = vld [vmem:[#allocation8 + $0x530] sm:$0xff]
    %v322 = vld [vmem:[#allocation8 + $0x538] sm:$0xff]
    %v323 = vld [vmem:[#allocation8 + $0x540] sm:$0xff]
    %v324 = vld [vmem:[#allocation8 + $0x548] sm:$0xff]
    %v325 = vld [vmem:[#allocation8 + $0x550] sm:$0xff]
    %v326 = vld [vmem:[#allocation8 + $0x558] sm:$0xff]
    %v327 = vld [vmem:[#allocation8 + $0x560] sm:$0xff]
    %v328 = vld [vmem:[#allocation8 + $0x568] sm:$0xff]
    %v329 = vld [vmem:[#allocation8 + $0x570] sm:$0xff]
    %v330 = vld [vmem:[#allocation8 + $0x578] sm:$0xff]
    %v331 = vld [vmem:[#allocation8 + $0x580] sm:$0xff]
    %v332 = vld [vmem:[#allocation8 + $0x588] sm:$0xff]
    %v333 = vld [vmem:[#allocation8 + $0x590] sm:$0xff]
    %v334 = vld [vmem:[#allocation8 + $0x598] sm:$0xff]
    %v335 = vld [vmem:[#allocation8 + $0x5a0] sm:$0xff]
    %v336 = vld [vmem:[#allocation8 + $0x5a8] sm:$0xff]
    %v337 = vld [vmem:[#allocation8 + $0x5b0] sm:$0xff]
    %v338 = vld [vmem:[#allocation8 + $0x5b8] sm:$0xff]
    %v339 = vld [vmem:[#allocation8 + $0x5c0] sm:$0xff]
    %v340 = vld [vmem:[#allocation8 + $0x5c8] sm:$0xff]
    %v341 = vld [vmem:[#allocation8 + $0x5d0] sm:$0xff]
    %v342 = vld [vmem:[#allocation8 + $0x5d8] sm:$0xff]
    %v343 = vld [vmem:[#allocation8 + $0x5e0] sm:$0xff]
    %v344 = vld [vmem:[#allocation8 + $0x5e8] sm:$0xff]
    %v345 = vld [vmem:[#allocation8 + $0x5f0] sm:$0xff]
    %v346 = vld [vmem:[#allocation8 + $0x5f8] sm:$0xff]
    %v347 = vld [vmem:[#allocation8 + $0x600] sm:$0xff]
    %v348 = vld [vmem:[#allocation8 + $0x608] sm:$0xff]
    %v349 = vld [vmem:[#allocation8 + $0x610] sm:$0xff]
    %v350 = vld [vmem:[#allocation8 + $0x618] sm:$0xff]
    %v351 = vld [vmem:[#allocation8 + $0x620] sm:$0xff]
    %v352 = vld [vmem:[#allocation8 + $0x628] sm:$0xff]
    %v353 = vld [vmem:[#allocation8 + $0x630] sm:$0xff]
    %v354 = vld [vmem:[#allocation8 + $0x638] sm:$0xff]
    %v355 = vld [vmem:[#allocation8 + $0x640] sm:$0xff]
    %v356 = vld [vmem:[#allocation8 + $0x648] sm:$0xff]
    %v357 = vld [vmem:[#allocation8 + $0x650] sm:$0xff]
    %v358 = vld [vmem:[#allocation8 + $0x658] sm:$0xff]
    %v359 = vld [vmem:[#allocation8 + $0x660] sm:$0xff]
    %v360 = vld [vmem:[#allocation8 + $0x668] sm:$0xff]
    %v361 = vld [vmem:[#allocation8 + $0x670] sm:$0xff]
    %v362 = vld [vmem:[#allocation8 + $0x678] sm:$0xff]
    %v363 = vld [vmem:[#allocation8 + $0x680] sm:$0xff]
    %v364 = vld [vmem:[#allocation8 + $0x688] sm:$0xff]
    %v365 = vld [vmem:[#allocation8 + $0x690] sm:$0xff]
    %v366 = vld [vmem:[#allocation8 + $0x698] sm:$0xff]
    %v367 = vld [vmem:[#allocation8 + $0x6a0] sm:$0xff]
    %v368 = vld [vmem:[#allocation8 + $0x6a8] sm:$0xff]
    %v369 = vld [vmem:[#allocation8 + $0x6b0] sm:$0xff]
    %v370 = vld [vmem:[#allocation8 + $0x6b8] sm:$0xff]
    %v371 = vld [vmem:[#allocation8 + $0x6c0] sm:$0xff]
    %v372 = vld [vmem:[#allocation8 + $0x6c8] sm:$0xff]
    %v373 = vld [vmem:[#allocation8 + $0x6d0] sm:$0xff]
    %v374 = vld [vmem:[#allocation8 + $0x6d8] sm:$0xff]
    %v375 = vld [vmem:[#allocation8 + $0x6e0] sm:$0xff]
    %v376 = vld [vmem:[#allocation8 + $0x6e8] sm:$0xff]
    %v377 = vld [vmem:[#allocation8 + $0x6f0] sm:$0xff]
    %v378 = vld [vmem:[#allocation8 + $0x6f8] sm:$0xff]
    %v379 = vld [vmem:[#allocation8 + $0x700] sm:$0xff]
    %v380 = vld [vmem:[#allocation8 + $0x708] sm:$0xff]
    %v381 = vld [vmem:[#allocation8 + $0x710] sm:$0xff]
    %v382 = vld [vmem:[#allocation8 + $0x718] sm:$0xff]
    %v383 = vld [vmem:[#allocation8 + $0x720] sm:$0xff]
    %v384 = vld [vmem:[#allocation8 + $0x728] sm:$0xff]
    %v385 = vld [vmem:[#allocation8 + $0x730] sm:$0xff]
    %v386 = vld [vmem:[#allocation8 + $0x738] sm:$0xff]
    %v387 = vld [vmem:[#allocation8 + $0x740] sm:$0xff]
    %v388 = vld [vmem:[#allocation8 + $0x748] sm:$0xff]
    %v389 = vld [vmem:[#allocation8 + $0x750] sm:$0xff]
    %v390 = vld [vmem:[#allocation8 + $0x758] sm:$0xff]
    %v391 = vld [vmem:[#allocation8 + $0x760] sm:$0xff]
    %v392 = vld [vmem:[#allocation8 + $0x768] sm:$0xff]
    %v393 = vld [vmem:[#allocation8 + $0x770] sm:$0xff]
    %v394 = vld [vmem:[#allocation8 + $0x778] sm:$0xff]
    %v395 = vld [vmem:[#allocation8 + $0x780] sm:$0xff]
    %v396 = vld [vmem:[#allocation8 + $0x788] sm:$0xff]
    %v397 = vld [vmem:[#allocation8 + $0x790] sm:$0xff]
    %v398 = vld [vmem:[#allocation8 + $0x798] sm:$0xff]
    %v399 = vld [vmem:[#allocation8 + $0x7a0] sm:$0xff]
    %v400 = vld [vmem:[#allocation8 + $0x7a8] sm:$0xff]
    %v401 = vld [vmem:[#allocation8 + $0x7b0] sm:$0xff]
    %v402 = vld [vmem:[#allocation8 + $0x7b8] sm:$0xff]
    %v403 = vld [vmem:[#allocation8 + $0x7c0] sm:$0xff]
    %v404 = vld [vmem:[#allocation8 + $0x7c8] sm:$0xff]
    %v405 = vld [vmem:[#allocation8 + $0x7d0] sm:$0xff]
    %v406 = vld [vmem:[#allocation8 + $0x7d8] sm:$0xff]
    %v407 = vld [vmem:[#allocation8 + $0x7e0] sm:$0xff]
    %v408 = vld [vmem:[#allocation8 + $0x7e8] sm:$0xff]
    %v409 = vld [vmem:[#allocation8 + $0x7f0] sm:$0xff]
    %v410 = vld [vmem:[#allocation8 + $0x7f8] sm:$0xff]
    %v411 = vld [vmem:[#allocation8 + $0x800] sm:$0xff]
    %v412 = vld [vmem:[#allocation8 + $0x808] sm:$0xff]
    %v413 = vld [vmem:[#allocation8 + $0x810] sm:$0xff]
    %v414 = vld [vmem:[#allocation8 + $0x818] sm:$0xff]
    %v415 = vld [vmem:[#allocation8 + $0x820] sm:$0xff]
    %v416 = vld [vmem:[#allocation8 + $0x828] sm:$0xff]
    %v417 = vld [vmem:[#allocation8 + $0x830] sm:$0xff]
    %v418 = vld [vmem:[#allocation8 + $0x838] sm:$0xff]
    %v419 = vld [vmem:[#allocation8 + $0x840] sm:$0xff]
    %v420 = vld [vmem:[#allocation8 + $0x848] sm:$0xff]
    %v421 = vld [vmem:[#allocation8 + $0x850] sm:$0xff]
    %v422 = vld [vmem:[#allocation8 + $0x858] sm:$0xff]
    %v423 = vld [vmem:[#allocation8 + $0x860] sm:$0xff]
    %v424 = vld [vmem:[#allocation8 + $0x868] sm:$0xff]
    %v425 = vld [vmem:[#allocation8 + $0x870] sm:$0xff]
    %v426 = vld [vmem:[#allocation8 + $0x878] sm:$0xff]
    %v427 = vld [vmem:[#allocation8 + $0x880] sm:$0xff]
    %v428 = vld [vmem:[#allocation8 + $0x888] sm:$0xff]
    %v429 = vld [vmem:[#allocation8 + $0x890] sm:$0xff]
    %v430 = vld [vmem:[#allocation8 + $0x898] sm:$0xff]
    %v431 = vld [vmem:[#allocation8 + $0x8a0] sm:$0xff]
    %v432 = vld [vmem:[#allocation8 + $0x8a8] sm:$0xff]
    %v433 = vld [vmem:[#allocation8 + $0x8b0] sm:$0xff]
    %v434 = vld [vmem:[#allocation8 + $0x8b8] sm:$0xff]
    %v435 = vld [vmem:[#allocation8 + $0x8c0] sm:$0xff]
    %v436 = vld [vmem:[#allocation8 + $0x8c8] sm:$0xff]
    %v437 = vld [vmem:[#allocation8 + $0x8d0] sm:$0xff]
    %v438 = vld [vmem:[#allocation8 + $0x8d8] sm:$0xff]
    %v439 = vld [vmem:[#allocation8 + $0x8e0] sm:$0xff]
    %v440 = vld [vmem:[#allocation8 + $0x8e8] sm:$0xff]
    %v441 = vld [vmem:[#allocation8 + $0x8f0] sm:$0xff]
    %v442 = vld [vmem:[#allocation8 + $0x8f8] sm:$0xff]
    %v443 = vld [vmem:[#allocation8 + $0x900] sm:$0xff]
    %v444 = vld [vmem:[#allocation8 + $0x908] sm:$0xff]
    %v445 = vld [vmem:[#allocation8 + $0x910] sm:$0xff]
    %v446 = vld [vmem:[#allocation8 + $0x918] sm:$0xff]
    %v447 = vld [vmem:[#allocation8 + $0x920] sm:$0xff]
    %v448 = vld [vmem:[#allocation8 + $0x928] sm:$0xff]
    %v449 = vld [vmem:[#allocation8 + $0x930] sm:$0xff]
    %v450 = vld [vmem:[#allocation8 + $0x938] sm:$0xff]
    %v451 = vld [vmem:[#allocation8 + $0x940] sm:$0xff]
    %v452 = vld [vmem:[#allocation8 + $0x948] sm:$0xff]
    %v453 = vld [vmem:[#allocation8 + $0x950] sm:$0xff]
    %v454 = vld [vmem:[#allocation8 + $0x958] sm:$0xff]
    %v455 = vld [vmem:[#allocation8 + $0x960] sm:$0xff]
    %v456 = vld [vmem:[#allocation8 + $0x968] sm:$0xff]
    %v457 = vld [vmem:[#allocation8 + $0x970] sm:$0xff]
    %v458 = vld [vmem:[#allocation8 + $0x978] sm:$0xff]
    %v459 = vld [vmem:[#allocation8 + $0x980] sm:$0xff]
    %v460 = vld [vmem:[#allocation8 + $0x988] sm:$0xff]
    %v461 = vld [vmem:[#allocation8 + $0x990] sm:$0xff]
    %v462 = vld [vmem:[#allocation8 + $0x998] sm:$0xff]
    %v463 = vld [vmem:[#allocation8 + $0x9a0] sm:$0xff]
    %v464 = vld [vmem:[#allocation8 + $0x9a8] sm:$0xff]
    %v465 = vld [vmem:[#allocation8 + $0x9b0] sm:$0xff]
    %v466 = vld [vmem:[#allocation8 + $0x9b8] sm:$0xff]
    %v467 = vld [vmem:[#allocation8 + $0x9c0] sm:$0xff]
    %v468 = vld [vmem:[#allocation8 + $0x9c8] sm:$0xff]
    %v469 = vld [vmem:[#allocation8 + $0x9d0] sm:$0xff]
    %v470 = vld [vmem:[#allocation8 + $0x9d8] sm:$0xff]
    %v471 = vld [vmem:[#allocation8 + $0x9e0] sm:$0xff]
    %v472 = vld [vmem:[#allocation8 + $0x9e8] sm:$0xff]
    %v473 = vld [vmem:[#allocation8 + $0x9f0] sm:$0xff]
    %v474 = vld [vmem:[#allocation8 + $0x9f8] sm:$0xff]
    %v475 = vld [vmem:[#allocation8 + $0xa00] sm:$0xff]
    %v476 = vld [vmem:[#allocation8 + $0xa08] sm:$0xff]
    %v477 = vld [vmem:[#allocation8 + $0xa10] sm:$0xff]
    %v478 = vld [vmem:[#allocation8 + $0xa18] sm:$0xff]
    %v479 = vld [vmem:[#allocation8 + $0xa20] sm:$0xff]
    %v480 = vld [vmem:[#allocation8 + $0xa28] sm:$0xff]
    %v481 = vld [vmem:[#allocation8 + $0xa30] sm:$0xff]
    %v482 = vld [vmem:[#allocation8 + $0xa38] sm:$0xff]
    %v483 = vld [vmem:[#allocation8 + $0xa40] sm:$0xff]
    %v484 = vld [vmem:[#allocation8 + $0xa48] sm:$0xff]
    %v485 = vld [vmem:[#allocation8 + $0xa50] sm:$0xff]
    %v486 = vld [vmem:[#allocation8 + $0xa58] sm:$0xff]
    %v487 = vld [vmem:[#allocation8 + $0xa60] sm:$0xff]
    %v488 = vld [vmem:[#allocation8 + $0xa68] sm:$0xff]
    %v489 = vld [vmem:[#allocation8 + $0xa70] sm:$0xff]
    %v490 = vld [vmem:[#allocation8 + $0xa78] sm:$0xff]
    %v491 = vld [vmem:[#allocation8 + $0xa80] sm:$0xff]
    %v492 = vld [vmem:[#allocation8 + $0xa88] sm:$0xff]
    %v493 = vld [vmem:[#allocation8 + $0xa90] sm:$0xff]
    %v494 = vld [vmem:[#allocation8 + $0xa98] sm:$0xff]
    %v495 = vld [vmem:[#allocation8 + $0xaa0] sm:$0xff]
    %v496 = vld [vmem:[#allocation8 + $0xaa8] sm:$0xff]
    %v497 = vld [vmem:[#allocation8 + $0xab0] sm:$0xff]
    %v498 = vld [vmem:[#allocation8 + $0xab8] sm:$0xff]
    %v499 = vld [vmem:[#allocation8 + $0xac0] sm:$0xff]
    %v500 = vld [vmem:[#allocation8 + $0xac8] sm:$0xff]
    %v501 = vld [vmem:[#allocation8 + $0xad0] sm:$0xff]
    %v502 = vld [vmem:[#allocation8 + $0xad8] sm:$0xff]
    %v503 = vld [vmem:[#allocation8 + $0xae0] sm:$0xff]
    %v504 = vld [vmem:[#allocation8 + $0xae8] sm:$0xff]
    %v505 = vld [vmem:[#allocation8 + $0xaf0] sm:$0xff]
    %v506 = vld [vmem:[#allocation8 + $0xaf8] sm:$0xff]
    %v507 = vld [vmem:[#allocation8 + $0xb00] sm:$0xff]
    %v508 = vld [vmem:[#allocation8 + $0xb08] sm:$0xff]
    %v509 = vld [vmem:[#allocation8 + $0xb10] sm:$0xff]
    %v510 = vld [vmem:[#allocation8 + $0xb18] sm:$0xff]
    %v511 = vld [vmem:[#allocation8 + $0xb20] sm:$0xff]
    %v512 = vld [vmem:[#allocation8 + $0xb28] sm:$0xff]
    %v513 = vld [vmem:[#allocation8 + $0xb30] sm:$0xff]
    %v514 = vld [vmem:[#allocation8 + $0xb38] sm:$0xff]
    %v515 = vld [vmem:[#allocation8 + $0xb40] sm:$0xff]
    %v516 = vld [vmem:[#allocation8 + $0xb48] sm:$0xff]
    %v517 = vld [vmem:[#allocation8 + $0xb50] sm:$0xff]
    %v518 = vld [vmem:[#allocation8 + $0xb58] sm:$0xff]
    %v519 = vld [vmem:[#allocation8 + $0xb60] sm:$0xff]
    %v520 = vld [vmem:[#allocation8 + $0xb68] sm:$0xff]
    %v521 = vld [vmem:[#allocation8 + $0xb70] sm:$0xff]
    %v522 = vld [vmem:[#allocation8 + $0xb78] sm:$0xff]
    %v523 = vld [vmem:[#allocation8 + $0xb80] sm:$0xff]
    %v524 = vld [vmem:[#allocation8 + $0xb88] sm:$0xff]
    %v525 = vld [vmem:[#allocation8 + $0xb90] sm:$0xff]
    %v526 = vld [vmem:[#allocation8 + $0xb98] sm:$0xff]
    %v527 = vld [vmem:[#allocation8 + $0xba0] sm:$0xff]
    %v528 = vld [vmem:[#allocation8 + $0xba8] sm:$0xff]
    %v529 = vld [vmem:[#allocation8 + $0xbb0] sm:$0xff]
    %v530 = vld [vmem:[#allocation8 + $0xbb8] sm:$0xff]
    %v531 = vld [vmem:[#allocation8 + $0xbc0] sm:$0xff]
    %v532 = vld [vmem:[#allocation8 + $0xbc8] sm:$0xff]
    %v533 = vld [vmem:[#allocation8 + $0xbd0] sm:$0xff]
    %v534 = vld [vmem:[#allocation8 + $0xbd8] sm:$0xff]
    %v535 = vld [vmem:[#allocation8 + $0xbe0] sm:$0xff]
    %v536 = vld [vmem:[#allocation8 + $0xbe8] sm:$0xff]
    %v537 = vld [vmem:[#allocation8 + $0xbf0] sm:$0xff]
    %v538 = vld [vmem:[#allocation8 + $0xbf8] sm:$0xff]
    %v539 = vld [vmem:[#allocation8 + $0xc00] sm:$0xff]
    %v540 = vld [vmem:[#allocation8 + $0xc08] sm:$0xff]
    %v541 = vld [vmem:[#allocation8 + $0xc10] sm:$0xff]
    %v542 = vld [vmem:[#allocation8 + $0xc18] sm:$0xff]
    %v543 = vld [vmem:[#allocation8 + $0xc20] sm:$0xff]
    %v544 = vld [vmem:[#allocation8 + $0xc28] sm:$0xff]
    %v545 = vld [vmem:[#allocation8 + $0xc30] sm:$0xff]
    %v546 = vld [vmem:[#allocation8 + $0xc38] sm:$0xff]
    %v547 = vld [vmem:[#allocation8 + $0xc40] sm:$0xff]
    %v548 = vld [vmem:[#allocation8 + $0xc48] sm:$0xff]
    %v549 = vld [vmem:[#allocation8 + $0xc50] sm:$0xff]
    %v550 = vld [vmem:[#allocation8 + $0xc58] sm:$0xff]
    %v551 = vld [vmem:[#allocation8 + $0xc60] sm:$0xff]
    %v552 = vld [vmem:[#allocation8 + $0xc68] sm:$0xff]
    %v553 = vld [vmem:[#allocation8 + $0xc70] sm:$0xff]
    %v554 = vld [vmem:[#allocation8 + $0xc78] sm:$0xff]
    %v555 = vld [vmem:[#allocation8 + $0xc80] sm:$0xff]
    %v556 = vld [vmem:[#allocation8 + $0xc88] sm:$0xff]
    %v557 = vld [vmem:[#allocation8 + $0xc90] sm:$0xff]
    %v558 = vld [vmem:[#allocation8 + $0xc98] sm:$0xff]
    %v559 = vld [vmem:[#allocation8 + $0xca0] sm:$0xff]
    %v560 = vld [vmem:[#allocation8 + $0xca8] sm:$0xff]
    %v561 = vld [vmem:[#allocation8 + $0xcb0] sm:$0xff]
    %v562 = vld [vmem:[#allocation8 + $0xcb8] sm:$0xff]
    %v563 = vld [vmem:[#allocation8 + $0xcc0] sm:$0xff]
    %v564 = vld [vmem:[#allocation8 + $0xcc8] sm:$0xff]
    %v565 = vld [vmem:[#allocation8 + $0xcd0] sm:$0xff]
    %v566 = vld [vmem:[#allocation8 + $0xcd8] sm:$0xff]
    %v567 = vld [vmem:[#allocation8 + $0xce0] sm:$0xff]
    %v568 = vld [vmem:[#allocation8 + $0xce8] sm:$0xff]
    %v569 = vld [vmem:[#allocation8 + $0xcf0] sm:$0xff]
    %v570 = vld [vmem:[#allocation8 + $0xcf8] sm:$0xff]
    %v571 = vld [vmem:[#allocation8 + $0xd00] sm:$0xff]
    %v572 = vld [vmem:[#allocation8 + $0xd08] sm:$0xff]
    %v573 = vld [vmem:[#allocation8 + $0xd10] sm:$0xff]
    %v574 = vld [vmem:[#allocation8 + $0xd18] sm:$0xff]
    %v575 = vld [vmem:[#allocation8 + $0xd20] sm:$0xff]
    %v576 = vld [vmem:[#allocation8 + $0xd28] sm:$0xff]
    %v577 = vld [vmem:[#allocation8 + $0xd30] sm:$0xff]
    %v578 = vld [vmem:[#allocation8 + $0xd38] sm:$0xff]
    %v579 = vld [vmem:[#allocation8 + $0xd40] sm:$0xff]
    %v580 = vld [vmem:[#allocation8 + $0xd48] sm:$0xff]
    %v581 = vld [vmem:[#allocation8 + $0xd50] sm:$0xff]
    %v582 = vld [vmem:[#allocation8 + $0xd58] sm:$0xff]
    %v583 = vld [vmem:[#allocation8 + $0xd60] sm:$0xff]
    %v584 = vld [vmem:[#allocation8 + $0xd68] sm:$0xff]
    %v585 = vld [vmem:[#allocation8 + $0xd70] sm:$0xff]
    %v586 = vld [vmem:[#allocation8 + $0xd78] sm:$0xff]
    %v587 = vld [vmem:[#allocation8 + $0xd80] sm:$0xff]
    %v588 = vld [vmem:[#allocation8 + $0xd88] sm:$0xff]
    %v589 = vld [vmem:[#allocation8 + $0xd90] sm:$0xff]
    %v590 = vld [vmem:[#allocation8 + $0xd98] sm:$0xff]
    %v591 = vld [vmem:[#allocation8 + $0xda0] sm:$0xff]
    %v592 = vld [vmem:[#allocation8 + $0xda8] sm:$0xff]
    %v593 = vld [vmem:[#allocation8 + $0xdb0] sm:$0xff]
    %v594 = vld [vmem:[#allocation8 + $0xdb8] sm:$0xff]
    %v595 = vld [vmem:[#allocation8 + $0xdc0] sm:$0xff]
    %v596 = vld [vmem:[#allocation8 + $0xdc8] sm:$0xff]
    %v597 = vld [vmem:[#allocation8 + $0xdd0] sm:$0xff]
    %v598 = vld [vmem:[#allocation8 + $0xdd8] sm:$0xff]
    %v599 = vld [vmem:[#allocation8 + $0xde0] sm:$0xff]
    %v600 = vld [vmem:[#allocation8 + $0xde8] sm:$0xff]
    %v601 = vld [vmem:[#allocation8 + $0xdf0] sm:$0xff]
    %v602 = vld [vmem:[#allocation8 + $0xdf8] sm:$0xff]
    %v603 = vld [vmem:[#allocation8 + $0xe00] sm:$0xff]
    %v604 = vld [vmem:[#allocation8 + $0xe08] sm:$0xff]
    %v605 = vld [vmem:[#allocation8 + $0xe10] sm:$0xff]
    %v606 = vld [vmem:[#allocation8 + $0xe18] sm:$0xff]
    %v607 = vld [vmem:[#allocation8 + $0xe20] sm:$0xff]
    %v608 = vld [vmem:[#allocation8 + $0xe28] sm:$0xff]
    %v609 = vld [vmem:[#allocation8 + $0xe30] sm:$0xff]
    %v610 = vld [vmem:[#allocation8 + $0xe38] sm:$0xff]
    %v611 = vld [vmem:[#allocation8 + $0xe40] sm:$0xff]
    %v612 = vld [vmem:[#allocation8 + $0xe48] sm:$0xff]
    %v613 = vld [vmem:[#allocation8 + $0xe50] sm:$0xff]
    %v614 = vld [vmem:[#allocation8 + $0xe58] sm:$0xff]
    %v615 = vld [vmem:[#allocation8 + $0xe60] sm:$0xff]
    %v616 = vld [vmem:[#allocation8 + $0xe68] sm:$0xff]
    %v617 = vld [vmem:[#allocation8 + $0xe70] sm:$0xff]
    %v618 = vld [vmem:[#allocation8 + $0xe78] sm:$0xff]
    %v619 = vld [vmem:[#allocation8 + $0xe80] sm:$0xff]
    %v620 = vld [vmem:[#allocation8 + $0xe88] sm:$0xff]
    %v621 = vld [vmem:[#allocation8 + $0xe90] sm:$0xff]
    %v622 = vld [vmem:[#allocation8 + $0xe98] sm:$0xff]
    %v623 = vld [vmem:[#allocation8 + $0xea0] sm:$0xff]
    %v624 = vld [vmem:[#allocation8 + $0xea8] sm:$0xff]
    %v625 = vld [vmem:[#allocation8 + $0xeb0] sm:$0xff]
    %v626 = vld [vmem:[#allocation8 + $0xeb8] sm:$0xff]
    %v627 = vld [vmem:[#allocation8 + $0xec0] sm:$0xff]
    %v628 = vld [vmem:[#allocation8 + $0xec8] sm:$0xff]
    %v629 = vld [vmem:[#allocation8 + $0xed0] sm:$0xff]
    %v630 = vld [vmem:[#allocation8 + $0xed8] sm:$0xff]
    %v631 = vld [vmem:[#allocation8 + $0xee0] sm:$0xff]
    %v632 = vld [vmem:[#allocation8 + $0xee8] sm:$0xff]
    %v633 = vld [vmem:[#allocation8 + $0xef0] sm:$0xff]
    %v634 = vld [vmem:[#allocation8 + $0xef8] sm:$0xff]
    %v635 = vld [vmem:[#allocation8 + $0xf00] sm:$0xff]
    %v636 = vld [vmem:[#allocation8 + $0xf08] sm:$0xff]
    %v637 = vld [vmem:[#allocation8 + $0xf10] sm:$0xff]
    %v638 = vld [vmem:[#allocation8 + $0xf18] sm:$0xff]
    %v639 = vld [vmem:[#allocation8 + $0xf20] sm:$0xff]
    %v640 = vld [vmem:[#allocation8 + $0xf28] sm:$0xff]
    %v641 = vld [vmem:[#allocation8 + $0xf30] sm:$0xff]
    %v642 = vld [vmem:[#allocation8 + $0xf38] sm:$0xff]
    %v643 = vld [vmem:[#allocation8 + $0xf40] sm:$0xff]
    %v644 = vld [vmem:[#allocation8 + $0xf48] sm:$0xff]
    %v645 = vld [vmem:[#allocation8 + $0xf50] sm:$0xff]
    %v646 = vld [vmem:[#allocation8 + $0xf58] sm:$0xff]
    %v647 = vld [vmem:[#allocation8 + $0xf60] sm:$0xff]
    %v648 = vld [vmem:[#allocation8 + $0xf68] sm:$0xff]
    %v649 = vld [vmem:[#allocation8 + $0xf70] sm:$0xff]
    %v650 = vld [vmem:[#allocation8 + $0xf78] sm:$0xff]
    %v651 = vld [vmem:[#allocation8 + $0xf80] sm:$0xff]
    %v652 = vld [vmem:[#allocation8 + $0xf88] sm:$0xff]
    %v653 = vld [vmem:[#allocation8 + $0xf90] sm:$0xff]
    %v654 = vld [vmem:[#allocation8 + $0xf98] sm:$0xff]
    %v655 = vld [vmem:[#allocation8 + $0xfa0] sm:$0xff]
    %v656 = vld [vmem:[#allocation8 + $0xfa8] sm:$0xff]
    %v657 = vld [vmem:[#allocation8 + $0xfb0] sm:$0xff]
    %v658 = vld [vmem:[#allocation8 + $0xfb8] sm:$0xff]
    %v659 = vld [vmem:[#allocation8 + $0xfc0] sm:$0xff]
    %v660 = vld [vmem:[#allocation8 + $0xfc8] sm:$0xff]
    %v661 = vld [vmem:[#allocation8 + $0xfd0] sm:$0xff]
    %v662 = vld [vmem:[#allocation8 + $0xfd8] sm:$0xff]
    %v663 = vld [vmem:[#allocation8 + $0xfe0] sm:$0xff]
    %v664 = vld [vmem:[#allocation8 + $0xfe8] sm:$0xff]
    %v665 = vld [vmem:[#allocation8 + $0xff0] sm:$0xff]
    %v666 = vld [vmem:[#allocation8 + $0xff8] sm:$0xff]
    %v667 = vpack.c.bf16 %v139, %v139
    %v668 = vpack.c.bf16 %v140, %v140
    %v669 = vpack.c.bf16 %v141, %v141
    %v670 = vpack.c.bf16 %v142, %v142
    %v671 = vpack.c.bf16 %v143, %v143
    %v672 = vpack.c.bf16 %v144, %v144
    %v673 = vpack.c.bf16 %v145, %v145
    %v674 = vpack.c.bf16 %v146, %v146
    %v675 = vld [vmem:[#allocation10] sm:$0xff]
    %v676 = vld [vmem:[#allocation10 + $0x8] sm:$0xff]
    %v677 = vld [vmem:[#allocation10 + $0x10] sm:$0xff]
    %v678 = vld [vmem:[#allocation10 + $0x18] sm:$0xff]
    %v679 = vld [vmem:[#allocation10 + $0x20] sm:$0xff]
    %v680 = vld [vmem:[#allocation10 + $0x28] sm:$0xff]
    %v681 = vld [vmem:[#allocation10 + $0x30] sm:$0xff]
    %v682 = vld [vmem:[#allocation10 + $0x38] sm:$0xff]
    %v683 = vld [vmem:[#allocation10 + $0x40] sm:$0xff]
    %v684 = vld [vmem:[#allocation10 + $0x48] sm:$0xff]
    %v685 = vld [vmem:[#allocation10 + $0x50] sm:$0xff]
    %v686 = vld [vmem:[#allocation10 + $0x58] sm:$0xff]
    %v687 = vld [vmem:[#allocation10 + $0x60] sm:$0xff]
    %v688 = vld [vmem:[#allocation10 + $0x68] sm:$0xff]
    %v689 = vld [vmem:[#allocation10 + $0x70] sm:$0xff]
    %v690 = vld [vmem:[#allocation10 + $0x78] sm:$0xff]
    %v691 = vld [vmem:[#allocation10 + $0x80] sm:$0xff]
    %v692 = vld [vmem:[#allocation10 + $0x88] sm:$0xff]
    %v693 = vld [vmem:[#allocation10 + $0x90] sm:$0xff]
    %v694 = vld [vmem:[#allocation10 + $0x98] sm:$0xff]
    %v695 = vld [vmem:[#allocation10 + $0xa0] sm:$0xff]
    %v696 = vld [vmem:[#allocation10 + $0xa8] sm:$0xff]
    %v697 = vld [vmem:[#allocation10 + $0xb0] sm:$0xff]
    %v698 = vld [vmem:[#allocation10 + $0xb8] sm:$0xff]
    %v699 = vld [vmem:[#allocation10 + $0xc0] sm:$0xff]
    %v700 = vld [vmem:[#allocation10 + $0xc8] sm:$0xff]
    %v701 = vld [vmem:[#allocation10 + $0xd0] sm:$0xff]
    %v702 = vld [vmem:[#allocation10 + $0xd8] sm:$0xff]
    %v703 = vld [vmem:[#allocation10 + $0xe0] sm:$0xff]
    %v704 = vld [vmem:[#allocation10 + $0xe8] sm:$0xff]
    %v705 = vld [vmem:[#allocation10 + $0xf0] sm:$0xff]
    %v706 = vld [vmem:[#allocation10 + $0xf8] sm:$0xff]
    %v707 = vld [vmem:[#allocation10 + $0x100] sm:$0xff]
    %v708 = vld [vmem:[#allocation10 + $0x108] sm:$0xff]
    %v709 = vld [vmem:[#allocation10 + $0x110] sm:$0xff]
    %v710 = vld [vmem:[#allocation10 + $0x118] sm:$0xff]
    %v711 = vld [vmem:[#allocation10 + $0x120] sm:$0xff]
    %v712 = vld [vmem:[#allocation10 + $0x128] sm:$0xff]
    %v713 = vld [vmem:[#allocation10 + $0x130] sm:$0xff]
    %v714 = vld [vmem:[#allocation10 + $0x138] sm:$0xff]
    %v715 = vld [vmem:[#allocation10 + $0x140] sm:$0xff]
    %v716 = vld [vmem:[#allocation10 + $0x148] sm:$0xff]
    %v717 = vld [vmem:[#allocation10 + $0x150] sm:$0xff]
    %v718 = vld [vmem:[#allocation10 + $0x158] sm:$0xff]
    %v719 = vld [vmem:[#allocation10 + $0x160] sm:$0xff]
    %v720 = vld [vmem:[#allocation10 + $0x168] sm:$0xff]
    %v721 = vld [vmem:[#allocation10 + $0x170] sm:$0xff]
    %v722 = vld [vmem:[#allocation10 + $0x178] sm:$0xff]
    %v723 = vld [vmem:[#allocation10 + $0x180] sm:$0xff]
    %v724 = vld [vmem:[#allocation10 + $0x188] sm:$0xff]
    %v725 = vld [vmem:[#allocation10 + $0x190] sm:$0xff]
    %v726 = vld [vmem:[#allocation10 + $0x198] sm:$0xff]
    %v727 = vld [vmem:[#allocation10 + $0x1a0] sm:$0xff]
    %v728 = vld [vmem:[#allocation10 + $0x1a8] sm:$0xff]
    %v729 = vld [vmem:[#allocation10 + $0x1b0] sm:$0xff]
    %v730 = vld [vmem:[#allocation10 + $0x1b8] sm:$0xff]
    %v731 = vld [vmem:[#allocation10 + $0x1c0] sm:$0xff]
    %v732 = vld [vmem:[#allocation10 + $0x1c8] sm:$0xff]
    %v733 = vld [vmem:[#allocation10 + $0x1d0] sm:$0xff]
    %v734 = vld [vmem:[#allocation10 + $0x1d8] sm:$0xff]
    %v735 = vld [vmem:[#allocation10 + $0x1e0] sm:$0xff]
    %v736 = vld [vmem:[#allocation10 + $0x1e8] sm:$0xff]
    %v737 = vld [vmem:[#allocation10 + $0x1f0] sm:$0xff]
    %v738 = vld [vmem:[#allocation10 + $0x1f8] sm:$0xff]
    %v739 = vld [vmem:[#allocation10 + $0x200] sm:$0xff]
    %v740 = vld [vmem:[#allocation10 + $0x208] sm:$0xff]
    %v741 = vld [vmem:[#allocation10 + $0x210] sm:$0xff]
    %v742 = vld [vmem:[#allocation10 + $0x218] sm:$0xff]
    %v743 = vld [vmem:[#allocation10 + $0x220] sm:$0xff]
    %v744 = vld [vmem:[#allocation10 + $0x228] sm:$0xff]
    %v745 = vld [vmem:[#allocation10 + $0x230] sm:$0xff]
    %v746 = vld [vmem:[#allocation10 + $0x238] sm:$0xff]
    %v747 = vld [vmem:[#allocation10 + $0x240] sm:$0xff]
    %v748 = vld [vmem:[#allocation10 + $0x248] sm:$0xff]
    %v749 = vld [vmem:[#allocation10 + $0x250] sm:$0xff]
    %v750 = vld [vmem:[#allocation10 + $0x258] sm:$0xff]
    %v751 = vld [vmem:[#allocation10 + $0x260] sm:$0xff]
    %v752 = vld [vmem:[#allocation10 + $0x268] sm:$0xff]
    %v753 = vld [vmem:[#allocation10 + $0x270] sm:$0xff]
    %v754 = vld [vmem:[#allocation10 + $0x278] sm:$0xff]
    %v755 = vld [vmem:[#allocation10 + $0x280] sm:$0xff]
    %v756 = vld [vmem:[#allocation10 + $0x288] sm:$0xff]
    %v757 = vld [vmem:[#allocation10 + $0x290] sm:$0xff]
    %v758 = vld [vmem:[#allocation10 + $0x298] sm:$0xff]
    %v759 = vld [vmem:[#allocation10 + $0x2a0] sm:$0xff]
    %v760 = vld [vmem:[#allocation10 + $0x2a8] sm:$0xff]
    %v761 = vld [vmem:[#allocation10 + $0x2b0] sm:$0xff]
    %v762 = vld [vmem:[#allocation10 + $0x2b8] sm:$0xff]
    %v763 = vld [vmem:[#allocation10 + $0x2c0] sm:$0xff]
    %v764 = vld [vmem:[#allocation10 + $0x2c8] sm:$0xff]
    %v765 = vld [vmem:[#allocation10 + $0x2d0] sm:$0xff]
    %v766 = vld [vmem:[#allocation10 + $0x2d8] sm:$0xff]
    %v767 = vld [vmem:[#allocation10 + $0x2e0] sm:$0xff]
    %v768 = vld [vmem:[#allocation10 + $0x2e8] sm:$0xff]
    %v769 = vld [vmem:[#allocation10 + $0x2f0] sm:$0xff]
    %v770 = vld [vmem:[#allocation10 + $0x2f8] sm:$0xff]
    %v771 = vld [vmem:[#allocation10 + $0x300] sm:$0xff]
    %v772 = vld [vmem:[#allocation10 + $0x308] sm:$0xff]
    %v773 = vld [vmem:[#allocation10 + $0x310] sm:$0xff]
    %v774 = vld [vmem:[#allocation10 + $0x318] sm:$0xff]
    %v775 = vld [vmem:[#allocation10 + $0x320] sm:$0xff]
    %v776 = vld [vmem:[#allocation10 + $0x328] sm:$0xff]
    %v777 = vld [vmem:[#allocation10 + $0x330] sm:$0xff]
    %v778 = vld [vmem:[#allocation10 + $0x338] sm:$0xff]
    %v779 = vld [vmem:[#allocation10 + $0x340] sm:$0xff]
    %v780 = vld [vmem:[#allocation10 + $0x348] sm:$0xff]
    %v781 = vld [vmem:[#allocation10 + $0x350] sm:$0xff]
    %v782 = vld [vmem:[#allocation10 + $0x358] sm:$0xff]
    %v783 = vld [vmem:[#allocation10 + $0x360] sm:$0xff]
    %v784 = vld [vmem:[#allocation10 + $0x368] sm:$0xff]
    %v785 = vld [vmem:[#allocation10 + $0x370] sm:$0xff]
    %v786 = vld [vmem:[#allocation10 + $0x378] sm:$0xff]
    %v787 = vld [vmem:[#allocation10 + $0x380] sm:$0xff]
    %v788 = vld [vmem:[#allocation10 + $0x388] sm:$0xff]
    %v789 = vld [vmem:[#allocation10 + $0x390] sm:$0xff]
    %v790 = vld [vmem:[#allocation10 + $0x398] sm:$0xff]
    %v791 = vld [vmem:[#allocation10 + $0x3a0] sm:$0xff]
    %v792 = vld [vmem:[#allocation10 + $0x3a8] sm:$0xff]
    %v793 = vld [vmem:[#allocation10 + $0x3b0] sm:$0xff]
    %v794 = vld [vmem:[#allocation10 + $0x3b8] sm:$0xff]
    %v795 = vld [vmem:[#allocation10 + $0x3c0] sm:$0xff]
    %v796 = vld [vmem:[#allocation10 + $0x3c8] sm:$0xff]
    %v797 = vld [vmem:[#allocation10 + $0x3d0] sm:$0xff]
    %v798 = vld [vmem:[#allocation10 + $0x3d8] sm:$0xff]
    %v799 = vld [vmem:[#allocation10 + $0x3e0] sm:$0xff]
    %v800 = vld [vmem:[#allocation10 + $0x3e8] sm:$0xff]
    %v801 = vld [vmem:[#allocation10 + $0x3f0] sm:$0xff]
    %v802 = vld [vmem:[#allocation10 + $0x3f8] sm:$0xff]
    %v803 = vld [vmem:[#allocation10 + $0x400] sm:$0xff]
    %v804 = vld [vmem:[#allocation10 + $0x408] sm:$0xff]
    %v805 = vld [vmem:[#allocation10 + $0x410] sm:$0xff]
    %v806 = vld [vmem:[#allocation10 + $0x418] sm:$0xff]
    %v807 = vld [vmem:[#allocation10 + $0x420] sm:$0xff]
    %v808 = vld [vmem:[#allocation10 + $0x428] sm:$0xff]
    %v809 = vld [vmem:[#allocation10 + $0x430] sm:$0xff]
    %v810 = vld [vmem:[#allocation10 + $0x438] sm:$0xff]
    %v811 = vld [vmem:[#allocation10 + $0x440] sm:$0xff]
    %v812 = vld [vmem:[#allocation10 + $0x448] sm:$0xff]
    %v813 = vld [vmem:[#allocation10 + $0x450] sm:$0xff]
    %v814 = vld [vmem:[#allocation10 + $0x458] sm:$0xff]
    %v815 = vld [vmem:[#allocation10 + $0x460] sm:$0xff]
    %v816 = vld [vmem:[#allocation10 + $0x468] sm:$0xff]
    %v817 = vld [vmem:[#allocation10 + $0x470] sm:$0xff]
    %v818 = vld [vmem:[#allocation10 + $0x478] sm:$0xff]
    %v819 = vld [vmem:[#allocation10 + $0x480] sm:$0xff]
    %v820 = vld [vmem:[#allocation10 + $0x488] sm:$0xff]
    %v821 = vld [vmem:[#allocation10 + $0x490] sm:$0xff]
    %v822 = vld [vmem:[#allocation10 + $0x498] sm:$0xff]
    %v823 = vld [vmem:[#allocation10 + $0x4a0] sm:$0xff]
    %v824 = vld [vmem:[#allocation10 + $0x4a8] sm:$0xff]
    %v825 = vld [vmem:[#allocation10 + $0x4b0] sm:$0xff]
    %v826 = vld [vmem:[#allocation10 + $0x4b8] sm:$0xff]
    %v827 = vld [vmem:[#allocation10 + $0x4c0] sm:$0xff]
    %v828 = vld [vmem:[#allocation10 + $0x4c8] sm:$0xff]
    %v829 = vld [vmem:[#allocation10 + $0x4d0] sm:$0xff]
    %v830 = vld [vmem:[#allocation10 + $0x4d8] sm:$0xff]
    %v831 = vld [vmem:[#allocation10 + $0x4e0] sm:$0xff]
    %v832 = vld [vmem:[#allocation10 + $0x4e8] sm:$0xff]
    %v833 = vld [vmem:[#allocation10 + $0x4f0] sm:$0xff]
    %v834 = vld [vmem:[#allocation10 + $0x4f8] sm:$0xff]
    %v835 = vld [vmem:[#allocation10 + $0x500] sm:$0xff]
    %v836 = vld [vmem:[#allocation10 + $0x508] sm:$0xff]
    %v837 = vld [vmem:[#allocation10 + $0x510] sm:$0xff]
    %v838 = vld [vmem:[#allocation10 + $0x518] sm:$0xff]
    %v839 = vld [vmem:[#allocation10 + $0x520] sm:$0xff]
    %v840 = vld [vmem:[#allocation10 + $0x528] sm:$0xff]
    %v841 = vld [vmem:[#allocation10 + $0x530] sm:$0xff]
    %v842 = vld [vmem:[#allocation10 + $0x538] sm:$0xff]
    %v843 = vld [vmem:[#allocation10 + $0x540] sm:$0xff]
    %v844 = vld [vmem:[#allocation10 + $0x548] sm:$0xff]
    %v845 = vld [vmem:[#allocation10 + $0x550] sm:$0xff]
    %v846 = vld [vmem:[#allocation10 + $0x558] sm:$0xff]
    %v847 = vld [vmem:[#allocation10 + $0x560] sm:$0xff]
    %v848 = vld [vmem:[#allocation10 + $0x568] sm:$0xff]
    %v849 = vld [vmem:[#allocation10 + $0x570] sm:$0xff]
    %v850 = vld [vmem:[#allocation10 + $0x578] sm:$0xff]
    %v851 = vld [vmem:[#allocation10 + $0x580] sm:$0xff]
    %v852 = vld [vmem:[#allocation10 + $0x588] sm:$0xff]
    %v853 = vld [vmem:[#allocation10 + $0x590] sm:$0xff]
    %v854 = vld [vmem:[#allocation10 + $0x598] sm:$0xff]
    %v855 = vld [vmem:[#allocation10 + $0x5a0] sm:$0xff]
    %v856 = vld [vmem:[#allocation10 + $0x5a8] sm:$0xff]
    %v857 = vld [vmem:[#allocation10 + $0x5b0] sm:$0xff]
    %v858 = vld [vmem:[#allocation10 + $0x5b8] sm:$0xff]
    %v859 = vld [vmem:[#allocation10 + $0x5c0] sm:$0xff]
    %v860 = vld [vmem:[#allocation10 + $0x5c8] sm:$0xff]
    %v861 = vld [vmem:[#allocation10 + $0x5d0] sm:$0xff]
    %v862 = vld [vmem:[#allocation10 + $0x5d8] sm:$0xff]
    %v863 = vld [vmem:[#allocation10 + $0x5e0] sm:$0xff]
    %v864 = vld [vmem:[#allocation10 + $0x5e8] sm:$0xff]
    %v865 = vld [vmem:[#allocation10 + $0x5f0] sm:$0xff]
    %v866 = vld [vmem:[#allocation10 + $0x5f8] sm:$0xff]
    %v867 = vld [vmem:[#allocation10 + $0x600] sm:$0xff]
    %v868 = vld [vmem:[#allocation10 + $0x608] sm:$0xff]
    %v869 = vld [vmem:[#allocation10 + $0x610] sm:$0xff]
    %v870 = vld [vmem:[#allocation10 + $0x618] sm:$0xff]
    %v871 = vld [vmem:[#allocation10 + $0x620] sm:$0xff]
    %v872 = vld [vmem:[#allocation10 + $0x628] sm:$0xff]
    %v873 = vld [vmem:[#allocation10 + $0x630] sm:$0xff]
    %v874 = vld [vmem:[#allocation10 + $0x638] sm:$0xff]
    %v875 = vld [vmem:[#allocation10 + $0x640] sm:$0xff]
    %v876 = vld [vmem:[#allocation10 + $0x648] sm:$0xff]
    %v877 = vld [vmem:[#allocation10 + $0x650] sm:$0xff]
    %v878 = vld [vmem:[#allocation10 + $0x658] sm:$0xff]
    %v879 = vld [vmem:[#allocation10 + $0x660] sm:$0xff]
    %v880 = vld [vmem:[#allocation10 + $0x668] sm:$0xff]
    %v881 = vld [vmem:[#allocation10 + $0x670] sm:$0xff]
    %v882 = vld [vmem:[#allocation10 + $0x678] sm:$0xff]
    %v883 = vld [vmem:[#allocation10 + $0x680] sm:$0xff]
    %v884 = vld [vmem:[#allocation10 + $0x688] sm:$0xff]
    %v885 = vld [vmem:[#allocation10 + $0x690] sm:$0xff]
    %v886 = vld [vmem:[#allocation10 + $0x698] sm:$0xff]
    %v887 = vld [vmem:[#allocation10 + $0x6a0] sm:$0xff]
    %v888 = vld [vmem:[#allocation10 + $0x6a8] sm:$0xff]
    %v889 = vld [vmem:[#allocation10 + $0x6b0] sm:$0xff]
    %v890 = vld [vmem:[#allocation10 + $0x6b8] sm:$0xff]
    %v891 = vld [vmem:[#allocation10 + $0x6c0] sm:$0xff]
    %v892 = vld [vmem:[#allocation10 + $0x6c8] sm:$0xff]
    %v893 = vld [vmem:[#allocation10 + $0x6d0] sm:$0xff]
    %v894 = vld [vmem:[#allocation10 + $0x6d8] sm:$0xff]
    %v895 = vld [vmem:[#allocation10 + $0x6e0] sm:$0xff]
    %v896 = vld [vmem:[#allocation10 + $0x6e8] sm:$0xff]
    %v897 = vld [vmem:[#allocation10 + $0x6f0] sm:$0xff]
    %v898 = vld [vmem:[#allocation10 + $0x6f8] sm:$0xff]
    %v899 = vld [vmem:[#allocation10 + $0x700] sm:$0xff]
    %v900 = vld [vmem:[#allocation10 + $0x708] sm:$0xff]
    %v901 = vld [vmem:[#allocation10 + $0x710] sm:$0xff]
    %v902 = vld [vmem:[#allocation10 + $0x718] sm:$0xff]
    %v903 = vld [vmem:[#allocation10 + $0x720] sm:$0xff]
    %v904 = vld [vmem:[#allocation10 + $0x728] sm:$0xff]
    %v905 = vld [vmem:[#allocation10 + $0x730] sm:$0xff]
    %v906 = vld [vmem:[#allocation10 + $0x738] sm:$0xff]
    %v907 = vld [vmem:[#allocation10 + $0x740] sm:$0xff]
    %v908 = vld [vmem:[#allocation10 + $0x748] sm:$0xff]
    %v909 = vld [vmem:[#allocation10 + $0x750] sm:$0xff]
    %v910 = vld [vmem:[#allocation10 + $0x758] sm:$0xff]
    %v911 = vld [vmem:[#allocation10 + $0x760] sm:$0xff]
    %v912 = vld [vmem:[#allocation10 + $0x768] sm:$0xff]
    %v913 = vld [vmem:[#allocation10 + $0x770] sm:$0xff]
    %v914 = vld [vmem:[#allocation10 + $0x778] sm:$0xff]
    %v915 = vld [vmem:[#allocation10 + $0x780] sm:$0xff]
    %v916 = vld [vmem:[#allocation10 + $0x788] sm:$0xff]
    %v917 = vld [vmem:[#allocation10 + $0x790] sm:$0xff]
    %v918 = vld [vmem:[#allocation10 + $0x798] sm:$0xff]
    %v919 = vld [vmem:[#allocation10 + $0x7a0] sm:$0xff]
    %v920 = vld [vmem:[#allocation10 + $0x7a8] sm:$0xff]
    %v921 = vld [vmem:[#allocation10 + $0x7b0] sm:$0xff]
    %v922 = vld [vmem:[#allocation10 + $0x7b8] sm:$0xff]
    %v923 = vld [vmem:[#allocation10 + $0x7c0] sm:$0xff]
    %v924 = vld [vmem:[#allocation10 + $0x7c8] sm:$0xff]
    %v925 = vld [vmem:[#allocation10 + $0x7d0] sm:$0xff]
    %v926 = vld [vmem:[#allocation10 + $0x7d8] sm:$0xff]
    %v927 = vld [vmem:[#allocation10 + $0x7e0] sm:$0xff]
    %v928 = vld [vmem:[#allocation10 + $0x7e8] sm:$0xff]
    %v929 = vld [vmem:[#allocation10 + $0x7f0] sm:$0xff]
    %v930 = vld [vmem:[#allocation10 + $0x7f8] sm:$0xff]
    %v931 = vld [vmem:[#allocation10 + $0x800] sm:$0xff]
    %v932 = vld [vmem:[#allocation10 + $0x808] sm:$0xff]
    %v933 = vld [vmem:[#allocation10 + $0x810] sm:$0xff]
    %v934 = vld [vmem:[#allocation10 + $0x818] sm:$0xff]
    %v935 = vld [vmem:[#allocation10 + $0x820] sm:$0xff]
    %v936 = vld [vmem:[#allocation10 + $0x828] sm:$0xff]
    %v937 = vld [vmem:[#allocation10 + $0x830] sm:$0xff]
    %v938 = vld [vmem:[#allocation10 + $0x838] sm:$0xff]
    %v939 = vld [vmem:[#allocation10 + $0x840] sm:$0xff]
    %v940 = vld [vmem:[#allocation10 + $0x848] sm:$0xff]
    %v941 = vld [vmem:[#allocation10 + $0x850] sm:$0xff]
    %v942 = vld [vmem:[#allocation10 + $0x858] sm:$0xff]
    %v943 = vld [vmem:[#allocation10 + $0x860] sm:$0xff]
    %v944 = vld [vmem:[#allocation10 + $0x868] sm:$0xff]
    %v945 = vld [vmem:[#allocation10 + $0x870] sm:$0xff]
    %v946 = vld [vmem:[#allocation10 + $0x878] sm:$0xff]
    %v947 = vld [vmem:[#allocation10 + $0x880] sm:$0xff]
    %v948 = vld [vmem:[#allocation10 + $0x888] sm:$0xff]
    %v949 = vld [vmem:[#allocation10 + $0x890] sm:$0xff]
    %v950 = vld [vmem:[#allocation10 + $0x898] sm:$0xff]
    %v951 = vld [vmem:[#allocation10 + $0x8a0] sm:$0xff]
    %v952 = vld [vmem:[#allocation10 + $0x8a8] sm:$0xff]
    %v953 = vld [vmem:[#allocation10 + $0x8b0] sm:$0xff]
    %v954 = vld [vmem:[#allocation10 + $0x8b8] sm:$0xff]
    %v955 = vld [vmem:[#allocation10 + $0x8c0] sm:$0xff]
    %v956 = vld [vmem:[#allocation10 + $0x8c8] sm:$0xff]
    %v957 = vld [vmem:[#allocation10 + $0x8d0] sm:$0xff]
    %v958 = vld [vmem:[#allocation10 + $0x8d8] sm:$0xff]
    %v959 = vld [vmem:[#allocation10 + $0x8e0] sm:$0xff]
    %v960 = vld [vmem:[#allocation10 + $0x8e8] sm:$0xff]
    %v961 = vld [vmem:[#allocation10 + $0x8f0] sm:$0xff]
    %v962 = vld [vmem:[#allocation10 + $0x8f8] sm:$0xff]
    %v963 = vld [vmem:[#allocation10 + $0x900] sm:$0xff]
    %v964 = vld [vmem:[#allocation10 + $0x908] sm:$0xff]
    %v965 = vld [vmem:[#allocation10 + $0x910] sm:$0xff]
    %v966 = vld [vmem:[#allocation10 + $0x918] sm:$0xff]
    %v967 = vld [vmem:[#allocation10 + $0x920] sm:$0xff]
    %v968 = vld [vmem:[#allocation10 + $0x928] sm:$0xff]
    %v969 = vld [vmem:[#allocation10 + $0x930] sm:$0xff]
    %v970 = vld [vmem:[#allocation10 + $0x938] sm:$0xff]
    %v971 = vld [vmem:[#allocation10 + $0x940] sm:$0xff]
    %v972 = vld [vmem:[#allocation10 + $0x948] sm:$0xff]
    %v973 = vld [vmem:[#allocation10 + $0x950] sm:$0xff]
    %v974 = vld [vmem:[#allocation10 + $0x958] sm:$0xff]
    %v975 = vld [vmem:[#allocation10 + $0x960] sm:$0xff]
    %v976 = vld [vmem:[#allocation10 + $0x968] sm:$0xff]
    %v977 = vld [vmem:[#allocation10 + $0x970] sm:$0xff]
    %v978 = vld [vmem:[#allocation10 + $0x978] sm:$0xff]
    %v979 = vld [vmem:[#allocation10 + $0x980] sm:$0xff]
    %v980 = vld [vmem:[#allocation10 + $0x988] sm:$0xff]
    %v981 = vld [vmem:[#allocation10 + $0x990] sm:$0xff]
    %v982 = vld [vmem:[#allocation10 + $0x998] sm:$0xff]
    %v983 = vld [vmem:[#allocation10 + $0x9a0] sm:$0xff]
    %v984 = vld [vmem:[#allocation10 + $0x9a8] sm:$0xff]
    %v985 = vld [vmem:[#allocation10 + $0x9b0] sm:$0xff]
    %v986 = vld [vmem:[#allocation10 + $0x9b8] sm:$0xff]
    %v987 = vld [vmem:[#allocation10 + $0x9c0] sm:$0xff]
    %v988 = vld [vmem:[#allocation10 + $0x9c8] sm:$0xff]
    %v989 = vld [vmem:[#allocation10 + $0x9d0] sm:$0xff]
    %v990 = vld [vmem:[#allocation10 + $0x9d8] sm:$0xff]
    %v991 = vld [vmem:[#allocation10 + $0x9e0] sm:$0xff]
    %v992 = vld [vmem:[#allocation10 + $0x9e8] sm:$0xff]
    %v993 = vld [vmem:[#allocation10 + $0x9f0] sm:$0xff]
    %v994 = vld [vmem:[#allocation10 + $0x9f8] sm:$0xff]
    %v995 = vld [vmem:[#allocation10 + $0xa00] sm:$0xff]
    %v996 = vld [vmem:[#allocation10 + $0xa08] sm:$0xff]
    %v997 = vld [vmem:[#allocation10 + $0xa10] sm:$0xff]
    %v998 = vld [vmem:[#allocation10 + $0xa18] sm:$0xff]
    %v999 = vld [vmem:[#allocation10 + $0xa20] sm:$0xff]
    %v1000 = vld [vmem:[#allocation10 + $0xa28] sm:$0xff]
    %v1001 = vld [vmem:[#allocation10 + $0xa30] sm:$0xff]
    %v1002 = vld [vmem:[#allocation10 + $0xa38] sm:$0xff]
    %v1003 = vld [vmem:[#allocation10 + $0xa40] sm:$0xff]
    %v1004 = vld [vmem:[#allocation10 + $0xa48] sm:$0xff]
    %v1005 = vld [vmem:[#allocation10 + $0xa50] sm:$0xff]
    %v1006 = vld [vmem:[#allocation10 + $0xa58] sm:$0xff]
    %v1007 = vld [vmem:[#allocation10 + $0xa60] sm:$0xff]
    %v1008 = vld [vmem:[#allocation10 + $0xa68] sm:$0xff]
    %v1009 = vld [vmem:[#allocation10 + $0xa70] sm:$0xff]
    %v1010 = vld [vmem:[#allocation10 + $0xa78] sm:$0xff]
    %v1011 = vld [vmem:[#allocation10 + $0xa80] sm:$0xff]
    %v1012 = vld [vmem:[#allocation10 + $0xa88] sm:$0xff]
    %v1013 = vld [vmem:[#allocation10 + $0xa90] sm:$0xff]
    %v1014 = vld [vmem:[#allocation10 + $0xa98] sm:$0xff]
    %v1015 = vld [vmem:[#allocation10 + $0xaa0] sm:$0xff]
    %v1016 = vld [vmem:[#allocation10 + $0xaa8] sm:$0xff]
    %v1017 = vld [vmem:[#allocation10 + $0xab0] sm:$0xff]
    %v1018 = vld [vmem:[#allocation10 + $0xab8] sm:$0xff]
    %v1019 = vld [vmem:[#allocation10 + $0xac0] sm:$0xff]
    %v1020 = vld [vmem:[#allocation10 + $0xac8] sm:$0xff]
    %v1021 = vld [vmem:[#allocation10 + $0xad0] sm:$0xff]
    %v1022 = vld [vmem:[#allocation10 + $0xad8] sm:$0xff]
    %v1023 = vld [vmem:[#allocation10 + $0xae0] sm:$0xff]
    %v1024 = vld [vmem:[#allocation10 + $0xae8] sm:$0xff]
    %v1025 = vld [vmem:[#allocation10 + $0xaf0] sm:$0xff]
    %v1026 = vld [vmem:[#allocation10 + $0xaf8] sm:$0xff]
    %v1027 = vld [vmem:[#allocation10 + $0xb00] sm:$0xff]
    %v1028 = vld [vmem:[#allocation10 + $0xb08] sm:$0xff]
    %v1029 = vld [vmem:[#allocation10 + $0xb10] sm:$0xff]
    %v1030 = vld [vmem:[#allocation10 + $0xb18] sm:$0xff]
    %v1031 = vld [vmem:[#allocation10 + $0xb20] sm:$0xff]
    %v1032 = vld [vmem:[#allocation10 + $0xb28] sm:$0xff]
    %v1033 = vld [vmem:[#allocation10 + $0xb30] sm:$0xff]
    %v1034 = vld [vmem:[#allocation10 + $0xb38] sm:$0xff]
    %v1035 = vld [vmem:[#allocation10 + $0xb40] sm:$0xff]
    %v1036 = vld [vmem:[#allocation10 + $0xb48] sm:$0xff]
    %v1037 = vld [vmem:[#allocation10 + $0xb50] sm:$0xff]
    %v1038 = vld [vmem:[#allocation10 + $0xb58] sm:$0xff]
    %v1039 = vld [vmem:[#allocation10 + $0xb60] sm:$0xff]
    %v1040 = vld [vmem:[#allocation10 + $0xb68] sm:$0xff]
    %v1041 = vld [vmem:[#allocation10 + $0xb70] sm:$0xff]
    %v1042 = vld [vmem:[#allocation10 + $0xb78] sm:$0xff]
    %v1043 = vld [vmem:[#allocation10 + $0xb80] sm:$0xff]
    %v1044 = vld [vmem:[#allocation10 + $0xb88] sm:$0xff]
    %v1045 = vld [vmem:[#allocation10 + $0xb90] sm:$0xff]
    %v1046 = vld [vmem:[#allocation10 + $0xb98] sm:$0xff]
    %v1047 = vld [vmem:[#allocation10 + $0xba0] sm:$0xff]
    %v1048 = vld [vmem:[#allocation10 + $0xba8] sm:$0xff]
    %v1049 = vld [vmem:[#allocation10 + $0xbb0] sm:$0xff]
    %v1050 = vld [vmem:[#allocation10 + $0xbb8] sm:$0xff]
    %v1051 = vld [vmem:[#allocation10 + $0xbc0] sm:$0xff]
    %v1052 = vld [vmem:[#allocation10 + $0xbc8] sm:$0xff]
    %v1053 = vld [vmem:[#allocation10 + $0xbd0] sm:$0xff]
    %v1054 = vld [vmem:[#allocation10 + $0xbd8] sm:$0xff]
    %v1055 = vld [vmem:[#allocation10 + $0xbe0] sm:$0xff]
    %v1056 = vld [vmem:[#allocation10 + $0xbe8] sm:$0xff]
    %v1057 = vld [vmem:[#allocation10 + $0xbf0] sm:$0xff]
    %v1058 = vld [vmem:[#allocation10 + $0xbf8] sm:$0xff]
    %v1059 = vld [vmem:[#allocation10 + $0xc00] sm:$0xff]
    %v1060 = vld [vmem:[#allocation10 + $0xc08] sm:$0xff]
    %v1061 = vld [vmem:[#allocation10 + $0xc10] sm:$0xff]
    %v1062 = vld [vmem:[#allocation10 + $0xc18] sm:$0xff]
    %v1063 = vld [vmem:[#allocation10 + $0xc20] sm:$0xff]
    %v1064 = vld [vmem:[#allocation10 + $0xc28] sm:$0xff]
    %v1065 = vld [vmem:[#allocation10 + $0xc30] sm:$0xff]
    %v1066 = vld [vmem:[#allocation10 + $0xc38] sm:$0xff]
    %v1067 = vld [vmem:[#allocation10 + $0xc40] sm:$0xff]
    %v1068 = vld [vmem:[#allocation10 + $0xc48] sm:$0xff]
    %v1069 = vld [vmem:[#allocation10 + $0xc50] sm:$0xff]
    %v1070 = vld [vmem:[#allocation10 + $0xc58] sm:$0xff]
    %v1071 = vld [vmem:[#allocation10 + $0xc60] sm:$0xff]
    %v1072 = vld [vmem:[#allocation10 + $0xc68] sm:$0xff]
    %v1073 = vld [vmem:[#allocation10 + $0xc70] sm:$0xff]
    %v1074 = vld [vmem:[#allocation10 + $0xc78] sm:$0xff]
    %v1075 = vld [vmem:[#allocation10 + $0xc80] sm:$0xff]
    %v1076 = vld [vmem:[#allocation10 + $0xc88] sm:$0xff]
    %v1077 = vld [vmem:[#allocation10 + $0xc90] sm:$0xff]
    %v1078 = vld [vmem:[#allocation10 + $0xc98] sm:$0xff]
    %v1079 = vld [vmem:[#allocation10 + $0xca0] sm:$0xff]
    %v1080 = vld [vmem:[#allocation10 + $0xca8] sm:$0xff]
    %v1081 = vld [vmem:[#allocation10 + $0xcb0] sm:$0xff]
    %v1082 = vld [vmem:[#allocation10 + $0xcb8] sm:$0xff]
    %v1083 = vld [vmem:[#allocation10 + $0xcc0] sm:$0xff]
    %v1084 = vld [vmem:[#allocation10 + $0xcc8] sm:$0xff]
    %v1085 = vld [vmem:[#allocation10 + $0xcd0] sm:$0xff]
    %v1086 = vld [vmem:[#allocation10 + $0xcd8] sm:$0xff]
    %v1087 = vld [vmem:[#allocation10 + $0xce0] sm:$0xff]
    %v1088 = vld [vmem:[#allocation10 + $0xce8] sm:$0xff]
    %v1089 = vld [vmem:[#allocation10 + $0xcf0] sm:$0xff]
    %v1090 = vld [vmem:[#allocation10 + $0xcf8] sm:$0xff]
    %v1091 = vld [vmem:[#allocation10 + $0xd00] sm:$0xff]
    %v1092 = vld [vmem:[#allocation10 + $0xd08] sm:$0xff]
    %v1093 = vld [vmem:[#allocation10 + $0xd10] sm:$0xff]
    %v1094 = vld [vmem:[#allocation10 + $0xd18] sm:$0xff]
    %v1095 = vld [vmem:[#allocation10 + $0xd20] sm:$0xff]
    %v1096 = vld [vmem:[#allocation10 + $0xd28] sm:$0xff]
    %v1097 = vld [vmem:[#allocation10 + $0xd30] sm:$0xff]
    %v1098 = vld [vmem:[#allocation10 + $0xd38] sm:$0xff]
    %v1099 = vld [vmem:[#allocation10 + $0xd40] sm:$0xff]
    %v1100 = vld [vmem:[#allocation10 + $0xd48] sm:$0xff]
    %v1101 = vld [vmem:[#allocation10 + $0xd50] sm:$0xff]
    %v1102 = vld [vmem:[#allocation10 + $0xd58] sm:$0xff]
    %v1103 = vld [vmem:[#allocation10 + $0xd60] sm:$0xff]
    %v1104 = vld [vmem:[#allocation10 + $0xd68] sm:$0xff]
    %v1105 = vld [vmem:[#allocation10 + $0xd70] sm:$0xff]
    %v1106 = vld [vmem:[#allocation10 + $0xd78] sm:$0xff]
    %v1107 = vld [vmem:[#allocation10 + $0xd80] sm:$0xff]
    %v1108 = vld [vmem:[#allocation10 + $0xd88] sm:$0xff]
    %v1109 = vld [vmem:[#allocation10 + $0xd90] sm:$0xff]
    %v1110 = vld [vmem:[#allocation10 + $0xd98] sm:$0xff]
    %v1111 = vld [vmem:[#allocation10 + $0xda0] sm:$0xff]
    %v1112 = vld [vmem:[#allocation10 + $0xda8] sm:$0xff]
    %v1113 = vld [vmem:[#allocation10 + $0xdb0] sm:$0xff]
    %v1114 = vld [vmem:[#allocation10 + $0xdb8] sm:$0xff]
    %v1115 = vld [vmem:[#allocation10 + $0xdc0] sm:$0xff]
    %v1116 = vld [vmem:[#allocation10 + $0xdc8] sm:$0xff]
    %v1117 = vld [vmem:[#allocation10 + $0xdd0] sm:$0xff]
    %v1118 = vld [vmem:[#allocation10 + $0xdd8] sm:$0xff]
    %v1119 = vld [vmem:[#allocation10 + $0xde0] sm:$0xff]
    %v1120 = vld [vmem:[#allocation10 + $0xde8] sm:$0xff]
    %v1121 = vld [vmem:[#allocation10 + $0xdf0] sm:$0xff]
    %v1122 = vld [vmem:[#allocation10 + $0xdf8] sm:$0xff]
    %v1123 = vld [vmem:[#allocation10 + $0xe00] sm:$0xff]
    %v1124 = vld [vmem:[#allocation10 + $0xe08] sm:$0xff]
    %v1125 = vld [vmem:[#allocation10 + $0xe10] sm:$0xff]
    %v1126 = vld [vmem:[#allocation10 + $0xe18] sm:$0xff]
    %v1127 = vld [vmem:[#allocation10 + $0xe20] sm:$0xff]
    %v1128 = vld [vmem:[#allocation10 + $0xe28] sm:$0xff]
    %v1129 = vld [vmem:[#allocation10 + $0xe30] sm:$0xff]
    %v1130 = vld [vmem:[#allocation10 + $0xe38] sm:$0xff]
    %v1131 = vld [vmem:[#allocation10 + $0xe40] sm:$0xff]
    %v1132 = vld [vmem:[#allocation10 + $0xe48] sm:$0xff]
    %v1133 = vld [vmem:[#allocation10 + $0xe50] sm:$0xff]
    %v1134 = vld [vmem:[#allocation10 + $0xe58] sm:$0xff]
    %v1135 = vld [vmem:[#allocation10 + $0xe60] sm:$0xff]
    %v1136 = vld [vmem:[#allocation10 + $0xe68] sm:$0xff]
    %v1137 = vld [vmem:[#allocation10 + $0xe70] sm:$0xff]
    %v1138 = vld [vmem:[#allocation10 + $0xe78] sm:$0xff]
    %v1139 = vld [vmem:[#allocation10 + $0xe80] sm:$0xff]
    %v1140 = vld [vmem:[#allocation10 + $0xe88] sm:$0xff]
    %v1141 = vld [vmem:[#allocation10 + $0xe90] sm:$0xff]
    %v1142 = vld [vmem:[#allocation10 + $0xe98] sm:$0xff]
    %v1143 = vld [vmem:[#allocation10 + $0xea0] sm:$0xff]
    %v1144 = vld [vmem:[#allocation10 + $0xea8] sm:$0xff]
    %v1145 = vld [vmem:[#allocation10 + $0xeb0] sm:$0xff]
    %v1146 = vld [vmem:[#allocation10 + $0xeb8] sm:$0xff]
    %v1147 = vld [vmem:[#allocation10 + $0xec0] sm:$0xff]
    %v1148 = vld [vmem:[#allocation10 + $0xec8] sm:$0xff]
    %v1149 = vld [vmem:[#allocation10 + $0xed0] sm:$0xff]
    %v1150 = vld [vmem:[#allocation10 + $0xed8] sm:$0xff]
    %v1151 = vld [vmem:[#allocation10 + $0xee0] sm:$0xff]
    %v1152 = vld [vmem:[#allocation10 + $0xee8] sm:$0xff]
    %v1153 = vld [vmem:[#allocation10 + $0xef0] sm:$0xff]
    %v1154 = vld [vmem:[#allocation10 + $0xef8] sm:$0xff]
    %v1155 = vld [vmem:[#allocation10 + $0xf00] sm:$0xff]
    %v1156 = vld [vmem:[#allocation10 + $0xf08] sm:$0xff]
    %v1157 = vld [vmem:[#allocation10 + $0xf10] sm:$0xff]
    %v1158 = vld [vmem:[#allocation10 + $0xf18] sm:$0xff]
    %v1159 = vld [vmem:[#allocation10 + $0xf20] sm:$0xff]
    %v1160 = vld [vmem:[#allocation10 + $0xf28] sm:$0xff]
    %v1161 = vld [vmem:[#allocation10 + $0xf30] sm:$0xff]
    %v1162 = vld [vmem:[#allocation10 + $0xf38] sm:$0xff]
    %v1163 = vld [vmem:[#allocation10 + $0xf40] sm:$0xff]
    %v1164 = vld [vmem:[#allocation10 + $0xf48] sm:$0xff]
    %v1165 = vld [vmem:[#allocation10 + $0xf50] sm:$0xff]
    %v1166 = vld [vmem:[#allocation10 + $0xf58] sm:$0xff]
    %v1167 = vld [vmem:[#allocation10 + $0xf60] sm:$0xff]
    %v1168 = vld [vmem:[#allocation10 + $0xf68] sm:$0xff]
    %v1169 = vld [vmem:[#allocation10 + $0xf70] sm:$0xff]
    %v1170 = vld [vmem:[#allocation10 + $0xf78] sm:$0xff]
    %v1171 = vld [vmem:[#allocation10 + $0xf80] sm:$0xff]
    %v1172 = vld [vmem:[#allocation10 + $0xf88] sm:$0xff]
    %v1173 = vld [vmem:[#allocation10 + $0xf90] sm:$0xff]
    %v1174 = vld [vmem:[#allocation10 + $0xf98] sm:$0xff]
    %v1175 = vld [vmem:[#allocation10 + $0xfa0] sm:$0xff]
    %v1176 = vld [vmem:[#allocation10 + $0xfa8] sm:$0xff]
    %v1177 = vld [vmem:[#allocation10 + $0xfb0] sm:$0xff]
    %v1178 = vld [vmem:[#allocation10 + $0xfb8] sm:$0xff]
    %v1179 = vld [vmem:[#allocation10 + $0xfc0] sm:$0xff]
    %v1180 = vld [vmem:[#allocation10 + $0xfc8] sm:$0xff]
    %v1181 = vld [vmem:[#allocation10 + $0xfd0] sm:$0xff]
    %v1182 = vld [vmem:[#allocation10 + $0xfd8] sm:$0xff]
    %v1183 = vld [vmem:[#allocation10 + $0xfe0] sm:$0xff]
    %v1184 = vld [vmem:[#allocation10 + $0xfe8] sm:$0xff]
    %v1185 = vld [vmem:[#allocation10 + $0xff0] sm:$0xff]
    %v1186 = vld [vmem:[#allocation10 + $0xff8] sm:$0xff]
    %v1699 = vunpack.c.l.b16 %v675
    %v1700 = vunpack.c.h.b16 %v675
    %v1701 = vunpack.c.l.b16 %v676
    %v1702 = vunpack.c.h.b16 %v676
    %v1703 = vunpack.c.l.b16 %v677
    %v1704 = vunpack.c.h.b16 %v677
    %v1705 = vunpack.c.l.b16 %v678
    %v1706 = vunpack.c.h.b16 %v678
    %v1707 = vunpack.c.l.b16 %v679
    %v1708 = vunpack.c.h.b16 %v679
    %v1709 = vunpack.c.l.b16 %v680
    %v1710 = vunpack.c.h.b16 %v680
    %v1711 = vunpack.c.l.b16 %v681
    %v1712 = vunpack.c.h.b16 %v681
    %v1713 = vunpack.c.l.b16 %v682
    %v1714 = vunpack.c.h.b16 %v682
    %v1715 = vunpack.c.l.b16 %v683
    %v1716 = vunpack.c.h.b16 %v683
    %v1717 = vunpack.c.l.b16 %v684
    %v1718 = vunpack.c.h.b16 %v684
    %v1719 = vunpack.c.l.b16 %v685
    %v1720 = vunpack.c.h.b16 %v685
    %v1721 = vunpack.c.l.b16 %v686
    %v1722 = vunpack.c.h.b16 %v686
    %v1723 = vunpack.c.l.b16 %v687
    %v1724 = vunpack.c.h.b16 %v687
    %v1725 = vunpack.c.l.b16 %v688
    %v1726 = vunpack.c.h.b16 %v688
    %v1727 = vunpack.c.l.b16 %v689
    %v1728 = vunpack.c.h.b16 %v689
    %v1729 = vunpack.c.l.b16 %v690
    %v1730 = vunpack.c.h.b16 %v690
    %v1731 = vunpack.c.l.b16 %v691
    %v1732 = vunpack.c.h.b16 %v691
    %v1733 = vunpack.c.l.b16 %v692
    %v1734 = vunpack.c.h.b16 %v692
    %v1735 = vunpack.c.l.b16 %v693
    %v1736 = vunpack.c.h.b16 %v693
    %v1737 = vunpack.c.l.b16 %v694
    %v1738 = vunpack.c.h.b16 %v694
    %v1739 = vunpack.c.l.b16 %v695
    %v1740 = vunpack.c.h.b16 %v695
    %v1741 = vunpack.c.l.b16 %v696
    %v1742 = vunpack.c.h.b16 %v696
    %v1743 = vunpack.c.l.b16 %v697
    %v1744 = vunpack.c.h.b16 %v697
    %v1745 = vunpack.c.l.b16 %v698
    %v1746 = vunpack.c.h.b16 %v698
    %v1747 = vunpack.c.l.b16 %v699
    %v1748 = vunpack.c.h.b16 %v699
    %v1749 = vunpack.c.l.b16 %v700
    %v1750 = vunpack.c.h.b16 %v700
    %v1751 = vunpack.c.l.b16 %v701
    %v1752 = vunpack.c.h.b16 %v701
    %v1753 = vunpack.c.l.b16 %v702
    %v1754 = vunpack.c.h.b16 %v702
    %v1755 = vunpack.c.l.b16 %v703
    %v1756 = vunpack.c.h.b16 %v703
    %v1757 = vunpack.c.l.b16 %v704
    %v1758 = vunpack.c.h.b16 %v704
    %v1759 = vunpack.c.l.b16 %v705
    %v1760 = vunpack.c.h.b16 %v705
    %v1761 = vunpack.c.l.b16 %v706
    %v1762 = vunpack.c.h.b16 %v706
    %v1763 = vunpack.c.l.b16 %v707
    %v1764 = vunpack.c.h.b16 %v707
    %v1765 = vunpack.c.l.b16 %v708
    %v1766 = vunpack.c.h.b16 %v708
    %v1767 = vunpack.c.l.b16 %v709
    %v1768 = vunpack.c.h.b16 %v709
    %v1769 = vunpack.c.l.b16 %v710
    %v1770 = vunpack.c.h.b16 %v710
    %v1771 = vunpack.c.l.b16 %v711
    %v1772 = vunpack.c.h.b16 %v711
    %v1773 = vunpack.c.l.b16 %v712
    %v1774 = vunpack.c.h.b16 %v712
    %v1775 = vunpack.c.l.b16 %v713
    %v1776 = vunpack.c.h.b16 %v713
    %v1777 = vunpack.c.l.b16 %v714
    %v1778 = vunpack.c.h.b16 %v714
    %v1779 = vunpack.c.l.b16 %v715
    %v1780 = vunpack.c.h.b16 %v715
    %v1781 = vunpack.c.l.b16 %v716
    %v1782 = vunpack.c.h.b16 %v716
    %v1783 = vunpack.c.l.b16 %v717
    %v1784 = vunpack.c.h.b16 %v717
    %v1785 = vunpack.c.l.b16 %v718
    %v1786 = vunpack.c.h.b16 %v718
    %v1787 = vunpack.c.l.b16 %v719
    %v1788 = vunpack.c.h.b16 %v719
    %v1789 = vunpack.c.l.b16 %v720
    %v1790 = vunpack.c.h.b16 %v720
    %v1791 = vunpack.c.l.b16 %v721
    %v1792 = vunpack.c.h.b16 %v721
    %v1793 = vunpack.c.l.b16 %v722
    %v1794 = vunpack.c.h.b16 %v722
    %v1795 = vunpack.c.l.b16 %v723
    %v1796 = vunpack.c.h.b16 %v723
    %v1797 = vunpack.c.l.b16 %v724
    %v1798 = vunpack.c.h.b16 %v724
    %v1799 = vunpack.c.l.b16 %v725
    %v1800 = vunpack.c.h.b16 %v725
    %v1801 = vunpack.c.l.b16 %v726
    %v1802 = vunpack.c.h.b16 %v726
    %v1803 = vunpack.c.l.b16 %v727
    %v1804 = vunpack.c.h.b16 %v727
    %v1805 = vunpack.c.l.b16 %v728
    %v1806 = vunpack.c.h.b16 %v728
    %v1807 = vunpack.c.l.b16 %v729
    %v1808 = vunpack.c.h.b16 %v729
    %v1809 = vunpack.c.l.b16 %v730
    %v1810 = vunpack.c.h.b16 %v730
    %v1811 = vunpack.c.l.b16 %v731
    %v1812 = vunpack.c.h.b16 %v731
    %v1813 = vunpack.c.l.b16 %v732
    %v1814 = vunpack.c.h.b16 %v732
    %v1815 = vunpack.c.l.b16 %v733
    %v1816 = vunpack.c.h.b16 %v733
    %v1817 = vunpack.c.l.b16 %v734
    %v1818 = vunpack.c.h.b16 %v734
    %v1819 = vunpack.c.l.b16 %v735
    %v1820 = vunpack.c.h.b16 %v735
    %v1821 = vunpack.c.l.b16 %v736
    %v1822 = vunpack.c.h.b16 %v736
    %v1823 = vunpack.c.l.b16 %v737
    %v1824 = vunpack.c.h.b16 %v737
    %v1825 = vunpack.c.l.b16 %v738
    %v1826 = vunpack.c.h.b16 %v738
    %v1827 = vunpack.c.l.b16 %v739
    %v1828 = vunpack.c.h.b16 %v739
    %v1829 = vunpack.c.l.b16 %v740
    %v1830 = vunpack.c.h.b16 %v740
    %v1831 = vunpack.c.l.b16 %v741
    %v1832 = vunpack.c.h.b16 %v741
    %v1833 = vunpack.c.l.b16 %v742
    %v1834 = vunpack.c.h.b16 %v742
    %v1835 = vunpack.c.l.b16 %v743
    %v1836 = vunpack.c.h.b16 %v743
    %v1837 = vunpack.c.l.b16 %v744
    %v1838 = vunpack.c.h.b16 %v744
    %v1839 = vunpack.c.l.b16 %v745
    %v1840 = vunpack.c.h.b16 %v745
    %v1841 = vunpack.c.l.b16 %v746
    %v1842 = vunpack.c.h.b16 %v746
    %v1843 = vunpack.c.l.b16 %v747
    %v1844 = vunpack.c.h.b16 %v747
    %v1845 = vunpack.c.l.b16 %v748
    %v1846 = vunpack.c.h.b16 %v748
    %v1847 = vunpack.c.l.b16 %v749
    %v1848 = vunpack.c.h.b16 %v749
    %v1849 = vunpack.c.l.b16 %v750
    %v1850 = vunpack.c.h.b16 %v750
    %v1851 = vunpack.c.l.b16 %v751
    %v1852 = vunpack.c.h.b16 %v751
    %v1853 = vunpack.c.l.b16 %v752
    %v1854 = vunpack.c.h.b16 %v752
    %v1855 = vunpack.c.l.b16 %v753
    %v1856 = vunpack.c.h.b16 %v753
    %v1857 = vunpack.c.l.b16 %v754
    %v1858 = vunpack.c.h.b16 %v754
    %v1859 = vunpack.c.l.b16 %v755
    %v1860 = vunpack.c.h.b16 %v755
    %v1861 = vunpack.c.l.b16 %v756
    %v1862 = vunpack.c.h.b16 %v756
    %v1863 = vunpack.c.l.b16 %v757
    %v1864 = vunpack.c.h.b16 %v757
    %v1865 = vunpack.c.l.b16 %v758
    %v1866 = vunpack.c.h.b16 %v758
    %v1867 = vunpack.c.l.b16 %v759
    %v1868 = vunpack.c.h.b16 %v759
    %v1869 = vunpack.c.l.b16 %v760
    %v1870 = vunpack.c.h.b16 %v760
    %v1871 = vunpack.c.l.b16 %v761
    %v1872 = vunpack.c.h.b16 %v761
    %v1873 = vunpack.c.l.b16 %v762
    %v1874 = vunpack.c.h.b16 %v762
    %v1875 = vunpack.c.l.b16 %v763
    %v1876 = vunpack.c.h.b16 %v763
    %v1877 = vunpack.c.l.b16 %v764
    %v1878 = vunpack.c.h.b16 %v764
    %v1879 = vunpack.c.l.b16 %v765
    %v1880 = vunpack.c.h.b16 %v765
    %v1881 = vunpack.c.l.b16 %v766
    %v1882 = vunpack.c.h.b16 %v766
    %v1883 = vunpack.c.l.b16 %v767
    %v1884 = vunpack.c.h.b16 %v767
    %v1885 = vunpack.c.l.b16 %v768
    %v1886 = vunpack.c.h.b16 %v768
    %v1887 = vunpack.c.l.b16 %v769
    %v1888 = vunpack.c.h.b16 %v769
    %v1889 = vunpack.c.l.b16 %v770
    %v1890 = vunpack.c.h.b16 %v770
    %v1891 = vunpack.c.l.b16 %v771
    %v1892 = vunpack.c.h.b16 %v771
    %v1893 = vunpack.c.l.b16 %v772
    %v1894 = vunpack.c.h.b16 %v772
    %v1895 = vunpack.c.l.b16 %v773
    %v1896 = vunpack.c.h.b16 %v773
    %v1897 = vunpack.c.l.b16 %v774
    %v1898 = vunpack.c.h.b16 %v774
    %v1899 = vunpack.c.l.b16 %v775
    %v1900 = vunpack.c.h.b16 %v775
    %v1901 = vunpack.c.l.b16 %v776
    %v1902 = vunpack.c.h.b16 %v776
    %v1903 = vunpack.c.l.b16 %v777
    %v1904 = vunpack.c.h.b16 %v777
    %v1905 = vunpack.c.l.b16 %v778
    %v1906 = vunpack.c.h.b16 %v778
    %v1907 = vunpack.c.l.b16 %v779
    %v1908 = vunpack.c.h.b16 %v779
    %v1909 = vunpack.c.l.b16 %v780
    %v1910 = vunpack.c.h.b16 %v780
    %v1911 = vunpack.c.l.b16 %v781
    %v1912 = vunpack.c.h.b16 %v781
    %v1913 = vunpack.c.l.b16 %v782
    %v1914 = vunpack.c.h.b16 %v782
    %v1915 = vunpack.c.l.b16 %v783
    %v1916 = vunpack.c.h.b16 %v783
    %v1917 = vunpack.c.l.b16 %v784
    %v1918 = vunpack.c.h.b16 %v784
    %v1919 = vunpack.c.l.b16 %v785
    %v1920 = vunpack.c.h.b16 %v785
    %v1921 = vunpack.c.l.b16 %v786
    %v1922 = vunpack.c.h.b16 %v786
    %v1923 = vunpack.c.l.b16 %v787
    %v1924 = vunpack.c.h.b16 %v787
    %v1925 = vunpack.c.l.b16 %v788
    %v1926 = vunpack.c.h.b16 %v788
    %v1927 = vunpack.c.l.b16 %v789
    %v1928 = vunpack.c.h.b16 %v789
    %v1929 = vunpack.c.l.b16 %v790
    %v1930 = vunpack.c.h.b16 %v790
    %v1931 = vunpack.c.l.b16 %v791
    %v1932 = vunpack.c.h.b16 %v791
    %v1933 = vunpack.c.l.b16 %v792
    %v1934 = vunpack.c.h.b16 %v792
    %v1935 = vunpack.c.l.b16 %v793
    %v1936 = vunpack.c.h.b16 %v793
    %v1937 = vunpack.c.l.b16 %v794
    %v1938 = vunpack.c.h.b16 %v794
    %v1939 = vunpack.c.l.b16 %v795
    %v1940 = vunpack.c.h.b16 %v795
    %v1941 = vunpack.c.l.b16 %v796
    %v1942 = vunpack.c.h.b16 %v796
    %v1943 = vunpack.c.l.b16 %v797
    %v1944 = vunpack.c.h.b16 %v797
    %v1945 = vunpack.c.l.b16 %v798
    %v1946 = vunpack.c.h.b16 %v798
    %v1947 = vunpack.c.l.b16 %v799
    %v1948 = vunpack.c.h.b16 %v799
    %v1949 = vunpack.c.l.b16 %v800
    %v1950 = vunpack.c.h.b16 %v800
    %v1951 = vunpack.c.l.b16 %v801
    %v1952 = vunpack.c.h.b16 %v801
    %v1953 = vunpack.c.l.b16 %v802
    %v1954 = vunpack.c.h.b16 %v802
    %v1955 = vunpack.c.l.b16 %v803
    %v1956 = vunpack.c.h.b16 %v803
    %v1957 = vunpack.c.l.b16 %v804
    %v1958 = vunpack.c.h.b16 %v804
    %v1959 = vunpack.c.l.b16 %v805
    %v1960 = vunpack.c.h.b16 %v805
    %v1961 = vunpack.c.l.b16 %v806
    %v1962 = vunpack.c.h.b16 %v806
    %v1963 = vunpack.c.l.b16 %v807
    %v1964 = vunpack.c.h.b16 %v807
    %v1965 = vunpack.c.l.b16 %v808
    %v1966 = vunpack.c.h.b16 %v808
    %v1967 = vunpack.c.l.b16 %v809
    %v1968 = vunpack.c.h.b16 %v809
    %v1969 = vunpack.c.l.b16 %v810
    %v1970 = vunpack.c.h.b16 %v810
    %v1971 = vunpack.c.l.b16 %v811
    %v1972 = vunpack.c.h.b16 %v811
    %v1973 = vunpack.c.l.b16 %v812
    %v1974 = vunpack.c.h.b16 %v812
    %v1975 = vunpack.c.l.b16 %v813
    %v1976 = vunpack.c.h.b16 %v813
    %v1977 = vunpack.c.l.b16 %v814
    %v1978 = vunpack.c.h.b16 %v814
    %v1979 = vunpack.c.l.b16 %v815
    %v1980 = vunpack.c.h.b16 %v815
    %v1981 = vunpack.c.l.b16 %v816
    %v1982 = vunpack.c.h.b16 %v816
    %v1983 = vunpack.c.l.b16 %v817
    %v1984 = vunpack.c.h.b16 %v817
    %v1985 = vunpack.c.l.b16 %v818
    %v1986 = vunpack.c.h.b16 %v818
    %v1987 = vunpack.c.l.b16 %v819
    %v1988 = vunpack.c.h.b16 %v819
    %v1989 = vunpack.c.l.b16 %v820
    %v1990 = vunpack.c.h.b16 %v820
    %v1991 = vunpack.c.l.b16 %v821
    %v1992 = vunpack.c.h.b16 %v821
    %v1993 = vunpack.c.l.b16 %v822
    %v1994 = vunpack.c.h.b16 %v822
    %v1995 = vunpack.c.l.b16 %v823
    %v1996 = vunpack.c.h.b16 %v823
    %v1997 = vunpack.c.l.b16 %v824
    %v1998 = vunpack.c.h.b16 %v824
    %v1999 = vunpack.c.l.b16 %v825
    %v2000 = vunpack.c.h.b16 %v825
    %v2001 = vunpack.c.l.b16 %v826
    %v2002 = vunpack.c.h.b16 %v826
    %v2003 = vunpack.c.l.b16 %v827
    %v2004 = vunpack.c.h.b16 %v827
    %v2005 = vunpack.c.l.b16 %v828
    %v2006 = vunpack.c.h.b16 %v828
    %v2007 = vunpack.c.l.b16 %v829
    %v2008 = vunpack.c.h.b16 %v829
    %v2009 = vunpack.c.l.b16 %v830
    %v2010 = vunpack.c.h.b16 %v830
    %v2011 = vunpack.c.l.b16 %v831
    %v2012 = vunpack.c.h.b16 %v831
    %v2013 = vunpack.c.l.b16 %v832
    %v2014 = vunpack.c.h.b16 %v832
    %v2015 = vunpack.c.l.b16 %v833
    %v2016 = vunpack.c.h.b16 %v833
    %v2017 = vunpack.c.l.b16 %v834
    %v2018 = vunpack.c.h.b16 %v834
    %v2019 = vunpack.c.l.b16 %v835
    %v2020 = vunpack.c.h.b16 %v835
    %v2021 = vunpack.c.l.b16 %v836
    %v2022 = vunpack.c.h.b16 %v836
    %v2023 = vunpack.c.l.b16 %v837
    %v2024 = vunpack.c.h.b16 %v837
    %v2025 = vunpack.c.l.b16 %v838
    %v2026 = vunpack.c.h.b16 %v838
    %v2027 = vunpack.c.l.b16 %v839
    %v2028 = vunpack.c.h.b16 %v839
    %v2029 = vunpack.c.l.b16 %v840
    %v2030 = vunpack.c.h.b16 %v840
    %v2031 = vunpack.c.l.b16 %v841
    %v2032 = vunpack.c.h.b16 %v841
    %v2033 = vunpack.c.l.b16 %v842
    %v2034 = vunpack.c.h.b16 %v842
    %v2035 = vunpack.c.l.b16 %v843
    %v2036 = vunpack.c.h.b16 %v843
    %v2037 = vunpack.c.l.b16 %v844
    %v2038 = vunpack.c.h.b16 %v844
    %v2039 = vunpack.c.l.b16 %v845
    %v2040 = vunpack.c.h.b16 %v845
    %v2041 = vunpack.c.l.b16 %v846
    %v2042 = vunpack.c.h.b16 %v846
    %v2043 = vunpack.c.l.b16 %v847
    %v2044 = vunpack.c.h.b16 %v847
    %v2045 = vunpack.c.l.b16 %v848
    %v2046 = vunpack.c.h.b16 %v848
    %v2047 = vunpack.c.l.b16 %v849
    %v2048 = vunpack.c.h.b16 %v849
    %v2049 = vunpack.c.l.b16 %v850
    %v2050 = vunpack.c.h.b16 %v850
    %v2051 = vunpack.c.l.b16 %v851
    %v2052 = vunpack.c.h.b16 %v851
    %v2053 = vunpack.c.l.b16 %v852
    %v2054 = vunpack.c.h.b16 %v852
    %v2055 = vunpack.c.l.b16 %v853
    %v2056 = vunpack.c.h.b16 %v853
    %v2057 = vunpack.c.l.b16 %v854
    %v2058 = vunpack.c.h.b16 %v854
    %v2059 = vunpack.c.l.b16 %v855
    %v2060 = vunpack.c.h.b16 %v855
    %v2061 = vunpack.c.l.b16 %v856
    %v2062 = vunpack.c.h.b16 %v856
    %v2063 = vunpack.c.l.b16 %v857
    %v2064 = vunpack.c.h.b16 %v857
    %v2065 = vunpack.c.l.b16 %v858
    %v2066 = vunpack.c.h.b16 %v858
    %v2067 = vunpack.c.l.b16 %v859
    %v2068 = vunpack.c.h.b16 %v859
    %v2069 = vunpack.c.l.b16 %v860
    %v2070 = vunpack.c.h.b16 %v860
    %v2071 = vunpack.c.l.b16 %v861
    %v2072 = vunpack.c.h.b16 %v861
    %v2073 = vunpack.c.l.b16 %v862
    %v2074 = vunpack.c.h.b16 %v862
    %v2075 = vunpack.c.l.b16 %v863
    %v2076 = vunpack.c.h.b16 %v863
    %v2077 = vunpack.c.l.b16 %v864
    %v2078 = vunpack.c.h.b16 %v864
    %v2079 = vunpack.c.l.b16 %v865
    %v2080 = vunpack.c.h.b16 %v865
    %v2081 = vunpack.c.l.b16 %v866
    %v2082 = vunpack.c.h.b16 %v866
    %v2083 = vunpack.c.l.b16 %v867
    %v2084 = vunpack.c.h.b16 %v867
    %v2085 = vunpack.c.l.b16 %v868
    %v2086 = vunpack.c.h.b16 %v868
    %v2087 = vunpack.c.l.b16 %v869
    %v2088 = vunpack.c.h.b16 %v869
    %v2089 = vunpack.c.l.b16 %v870
    %v2090 = vunpack.c.h.b16 %v870
    %v2091 = vunpack.c.l.b16 %v871
    %v2092 = vunpack.c.h.b16 %v871
    %v2093 = vunpack.c.l.b16 %v872
    %v2094 = vunpack.c.h.b16 %v872
    %v2095 = vunpack.c.l.b16 %v873
    %v2096 = vunpack.c.h.b16 %v873
    %v2097 = vunpack.c.l.b16 %v874
    %v2098 = vunpack.c.h.b16 %v874
    %v2099 = vunpack.c.l.b16 %v875
    %v2100 = vunpack.c.h.b16 %v875
    %v2101 = vunpack.c.l.b16 %v876
    %v2102 = vunpack.c.h.b16 %v876
    %v2103 = vunpack.c.l.b16 %v877
    %v2104 = vunpack.c.h.b16 %v877
    %v2105 = vunpack.c.l.b16 %v878
    %v2106 = vunpack.c.h.b16 %v878
    %v2107 = vunpack.c.l.b16 %v879
    %v2108 = vunpack.c.h.b16 %v879
    %v2109 = vunpack.c.l.b16 %v880
    %v2110 = vunpack.c.h.b16 %v880
    %v2111 = vunpack.c.l.b16 %v881
    %v2112 = vunpack.c.h.b16 %v881
    %v2113 = vunpack.c.l.b16 %v882
    %v2114 = vunpack.c.h.b16 %v882
    %v2115 = vunpack.c.l.b16 %v883
    %v2116 = vunpack.c.h.b16 %v883
    %v2117 = vunpack.c.l.b16 %v884
    %v2118 = vunpack.c.h.b16 %v884
    %v2119 = vunpack.c.l.b16 %v885
    %v2120 = vunpack.c.h.b16 %v885
    %v2121 = vunpack.c.l.b16 %v886
    %v2122 = vunpack.c.h.b16 %v886
    %v2123 = vunpack.c.l.b16 %v887
    %v2124 = vunpack.c.h.b16 %v887
    %v2125 = vunpack.c.l.b16 %v888
    %v2126 = vunpack.c.h.b16 %v888
    %v2127 = vunpack.c.l.b16 %v889
    %v2128 = vunpack.c.h.b16 %v889
    %v2129 = vunpack.c.l.b16 %v890
    %v2130 = vunpack.c.h.b16 %v890
    %v2131 = vunpack.c.l.b16 %v891
    %v2132 = vunpack.c.h.b16 %v891
    %v2133 = vunpack.c.l.b16 %v892
    %v2134 = vunpack.c.h.b16 %v892
    %v2135 = vunpack.c.l.b16 %v893
    %v2136 = vunpack.c.h.b16 %v893
    %v2137 = vunpack.c.l.b16 %v894
    %v2138 = vunpack.c.h.b16 %v894
    %v2139 = vunpack.c.l.b16 %v895
    %v2140 = vunpack.c.h.b16 %v895
    %v2141 = vunpack.c.l.b16 %v896
    %v2142 = vunpack.c.h.b16 %v896
    %v2143 = vunpack.c.l.b16 %v897
    %v2144 = vunpack.c.h.b16 %v897
    %v2145 = vunpack.c.l.b16 %v898
    %v2146 = vunpack.c.h.b16 %v898
    %v2147 = vunpack.c.l.b16 %v899
    %v2148 = vunpack.c.h.b16 %v899
    %v2149 = vunpack.c.l.b16 %v900
    %v2150 = vunpack.c.h.b16 %v900
    %v2151 = vunpack.c.l.b16 %v901
    %v2152 = vunpack.c.h.b16 %v901
    %v2153 = vunpack.c.l.b16 %v902
    %v2154 = vunpack.c.h.b16 %v902
    %v2155 = vunpack.c.l.b16 %v903
    %v2156 = vunpack.c.h.b16 %v903
    %v2157 = vunpack.c.l.b16 %v904
    %v2158 = vunpack.c.h.b16 %v904
    %v2159 = vunpack.c.l.b16 %v905
    %v2160 = vunpack.c.h.b16 %v905
    %v2161 = vunpack.c.l.b16 %v906
    %v2162 = vunpack.c.h.b16 %v906
    %v2163 = vunpack.c.l.b16 %v907
    %v2164 = vunpack.c.h.b16 %v907
    %v2165 = vunpack.c.l.b16 %v908
    %v2166 = vunpack.c.h.b16 %v908
    %v2167 = vunpack.c.l.b16 %v909
    %v2168 = vunpack.c.h.b16 %v909
    %v2169 = vunpack.c.l.b16 %v910
    %v2170 = vunpack.c.h.b16 %v910
    %v2171 = vunpack.c.l.b16 %v911
    %v2172 = vunpack.c.h.b16 %v911
    %v2173 = vunpack.c.l.b16 %v912
    %v2174 = vunpack.c.h.b16 %v912
    %v2175 = vunpack.c.l.b16 %v913
    %v2176 = vunpack.c.h.b16 %v913
    %v2177 = vunpack.c.l.b16 %v914
    %v2178 = vunpack.c.h.b16 %v914
    %v2179 = vunpack.c.l.b16 %v915
    %v2180 = vunpack.c.h.b16 %v915
    %v2181 = vunpack.c.l.b16 %v916
    %v2182 = vunpack.c.h.b16 %v916
    %v2183 = vunpack.c.l.b16 %v917
    %v2184 = vunpack.c.h.b16 %v917
    %v2185 = vunpack.c.l.b16 %v918
    %v2186 = vunpack.c.h.b16 %v918
    %v2187 = vunpack.c.l.b16 %v919
    %v2188 = vunpack.c.h.b16 %v919
    %v2189 = vunpack.c.l.b16 %v920
    %v2190 = vunpack.c.h.b16 %v920
    %v2191 = vunpack.c.l.b16 %v921
    %v2192 = vunpack.c.h.b16 %v921
    %v2193 = vunpack.c.l.b16 %v922
    %v2194 = vunpack.c.h.b16 %v922
    %v2195 = vunpack.c.l.b16 %v923
    %v2196 = vunpack.c.h.b16 %v923
    %v2197 = vunpack.c.l.b16 %v924
    %v2198 = vunpack.c.h.b16 %v924
    %v2199 = vunpack.c.l.b16 %v925
    %v2200 = vunpack.c.h.b16 %v925
    %v2201 = vunpack.c.l.b16 %v926
    %v2202 = vunpack.c.h.b16 %v926
    %v2203 = vunpack.c.l.b16 %v927
    %v2204 = vunpack.c.h.b16 %v927
    %v2205 = vunpack.c.l.b16 %v928
    %v2206 = vunpack.c.h.b16 %v928
    %v2207 = vunpack.c.l.b16 %v929
    %v2208 = vunpack.c.h.b16 %v929
    %v2209 = vunpack.c.l.b16 %v930
    %v2210 = vunpack.c.h.b16 %v930
    %v2211 = vunpack.c.l.b16 %v931
    %v2212 = vunpack.c.h.b16 %v931
    %v2213 = vunpack.c.l.b16 %v932
    %v2214 = vunpack.c.h.b16 %v932
    %v2215 = vunpack.c.l.b16 %v933
    %v2216 = vunpack.c.h.b16 %v933
    %v2217 = vunpack.c.l.b16 %v934
    %v2218 = vunpack.c.h.b16 %v934
    %v2219 = vunpack.c.l.b16 %v935
    %v2220 = vunpack.c.h.b16 %v935
    %v2221 = vunpack.c.l.b16 %v936
    %v2222 = vunpack.c.h.b16 %v936
    %v2223 = vunpack.c.l.b16 %v937
    %v2224 = vunpack.c.h.b16 %v937
    %v2225 = vunpack.c.l.b16 %v938
    %v2226 = vunpack.c.h.b16 %v938
    %v2227 = vunpack.c.l.b16 %v939
    %v2228 = vunpack.c.h.b16 %v939
    %v2229 = vunpack.c.l.b16 %v940
    %v2230 = vunpack.c.h.b16 %v940
    %v2231 = vunpack.c.l.b16 %v941
    %v2232 = vunpack.c.h.b16 %v941
    %v2233 = vunpack.c.l.b16 %v942
    %v2234 = vunpack.c.h.b16 %v942
    %v2235 = vunpack.c.l.b16 %v943
    %v2236 = vunpack.c.h.b16 %v943
    %v2237 = vunpack.c.l.b16 %v944
    %v2238 = vunpack.c.h.b16 %v944
    %v2239 = vunpack.c.l.b16 %v945
    %v2240 = vunpack.c.h.b16 %v945
    %v2241 = vunpack.c.l.b16 %v946
    %v2242 = vunpack.c.h.b16 %v946
    %v2243 = vunpack.c.l.b16 %v947
    %v2244 = vunpack.c.h.b16 %v947
    %v2245 = vunpack.c.l.b16 %v948
    %v2246 = vunpack.c.h.b16 %v948
    %v2247 = vunpack.c.l.b16 %v949
    %v2248 = vunpack.c.h.b16 %v949
    %v2249 = vunpack.c.l.b16 %v950
    %v2250 = vunpack.c.h.b16 %v950
    %v2251 = vunpack.c.l.b16 %v951
    %v2252 = vunpack.c.h.b16 %v951
    %v2253 = vunpack.c.l.b16 %v952
    %v2254 = vunpack.c.h.b16 %v952
    %v2255 = vunpack.c.l.b16 %v953
    %v2256 = vunpack.c.h.b16 %v953
    %v2257 = vunpack.c.l.b16 %v954
    %v2258 = vunpack.c.h.b16 %v954
    %v2259 = vunpack.c.l.b16 %v955
    %v2260 = vunpack.c.h.b16 %v955
    %v2261 = vunpack.c.l.b16 %v956
    %v2262 = vunpack.c.h.b16 %v956
    %v2263 = vunpack.c.l.b16 %v957
    %v2264 = vunpack.c.h.b16 %v957
    %v2265 = vunpack.c.l.b16 %v958
    %v2266 = vunpack.c.h.b16 %v958
    %v2267 = vunpack.c.l.b16 %v959
    %v2268 = vunpack.c.h.b16 %v959
    %v2269 = vunpack.c.l.b16 %v960
    %v2270 = vunpack.c.h.b16 %v960
    %v2271 = vunpack.c.l.b16 %v961
    %v2272 = vunpack.c.h.b16 %v961
    %v2273 = vunpack.c.l.b16 %v962
    %v2274 = vunpack.c.h.b16 %v962
    %v2275 = vunpack.c.l.b16 %v963
    %v2276 = vunpack.c.h.b16 %v963
    %v2277 = vunpack.c.l.b16 %v964
    %v2278 = vunpack.c.h.b16 %v964
    %v2279 = vunpack.c.l.b16 %v965
    %v2280 = vunpack.c.h.b16 %v965
    %v2281 = vunpack.c.l.b16 %v966
    %v2282 = vunpack.c.h.b16 %v966
    %v2283 = vunpack.c.l.b16 %v967
    %v2284 = vunpack.c.h.b16 %v967
    %v2285 = vunpack.c.l.b16 %v968
    %v2286 = vunpack.c.h.b16 %v968
    %v2287 = vunpack.c.l.b16 %v969
    %v2288 = vunpack.c.h.b16 %v969
    %v2289 = vunpack.c.l.b16 %v970
    %v2290 = vunpack.c.h.b16 %v970
    %v2291 = vunpack.c.l.b16 %v971
    %v2292 = vunpack.c.h.b16 %v971
    %v2293 = vunpack.c.l.b16 %v972
    %v2294 = vunpack.c.h.b16 %v972
    %v2295 = vunpack.c.l.b16 %v973
    %v2296 = vunpack.c.h.b16 %v973
    %v2297 = vunpack.c.l.b16 %v974
    %v2298 = vunpack.c.h.b16 %v974
    %v2299 = vunpack.c.l.b16 %v975
    %v2300 = vunpack.c.h.b16 %v975
    %v2301 = vunpack.c.l.b16 %v976
    %v2302 = vunpack.c.h.b16 %v976
    %v2303 = vunpack.c.l.b16 %v977
    %v2304 = vunpack.c.h.b16 %v977
    %v2305 = vunpack.c.l.b16 %v978
    %v2306 = vunpack.c.h.b16 %v978
    %v2307 = vunpack.c.l.b16 %v979
    %v2308 = vunpack.c.h.b16 %v979
    %v2309 = vunpack.c.l.b16 %v980
    %v2310 = vunpack.c.h.b16 %v980
    %v2311 = vunpack.c.l.b16 %v981
    %v2312 = vunpack.c.h.b16 %v981
    %v2313 = vunpack.c.l.b16 %v982
    %v2314 = vunpack.c.h.b16 %v982
    %v2315 = vunpack.c.l.b16 %v983
    %v2316 = vunpack.c.h.b16 %v983
    %v2317 = vunpack.c.l.b16 %v984
    %v2318 = vunpack.c.h.b16 %v984
    %v2319 = vunpack.c.l.b16 %v985
    %v2320 = vunpack.c.h.b16 %v985
    %v2321 = vunpack.c.l.b16 %v986
    %v2322 = vunpack.c.h.b16 %v986
    %v2323 = vunpack.c.l.b16 %v987
    %v2324 = vunpack.c.h.b16 %v987
    %v2325 = vunpack.c.l.b16 %v988
    %v2326 = vunpack.c.h.b16 %v988
    %v2327 = vunpack.c.l.b16 %v989
    %v2328 = vunpack.c.h.b16 %v989
    %v2329 = vunpack.c.l.b16 %v990
    %v2330 = vunpack.c.h.b16 %v990
    %v2331 = vunpack.c.l.b16 %v991
    %v2332 = vunpack.c.h.b16 %v991
    %v2333 = vunpack.c.l.b16 %v992
    %v2334 = vunpack.c.h.b16 %v992
    %v2335 = vunpack.c.l.b16 %v993
    %v2336 = vunpack.c.h.b16 %v993
    %v2337 = vunpack.c.l.b16 %v994
    %v2338 = vunpack.c.h.b16 %v994
    %v2339 = vunpack.c.l.b16 %v995
    %v2340 = vunpack.c.h.b16 %v995
    %v2341 = vunpack.c.l.b16 %v996
    %v2342 = vunpack.c.h.b16 %v996
    %v2343 = vunpack.c.l.b16 %v997
    %v2344 = vunpack.c.h.b16 %v997
    %v2345 = vunpack.c.l.b16 %v998
    %v2346 = vunpack.c.h.b16 %v998
    %v2347 = vunpack.c.l.b16 %v999
    %v2348 = vunpack.c.h.b16 %v999
    %v2349 = vunpack.c.l.b16 %v1000
    %v2350 = vunpack.c.h.b16 %v1000
    %v2351 = vunpack.c.l.b16 %v1001
    %v2352 = vunpack.c.h.b16 %v1001
    %v2353 = vunpack.c.l.b16 %v1002
    %v2354 = vunpack.c.h.b16 %v1002
    %v2355 = vunpack.c.l.b16 %v1003
    %v2356 = vunpack.c.h.b16 %v1003
    %v2357 = vunpack.c.l.b16 %v1004
    %v2358 = vunpack.c.h.b16 %v1004
    %v2359 = vunpack.c.l.b16 %v1005
    %v2360 = vunpack.c.h.b16 %v1005
    %v2361 = vunpack.c.l.b16 %v1006
    %v2362 = vunpack.c.h.b16 %v1006
    %v2363 = vunpack.c.l.b16 %v1007
    %v2364 = vunpack.c.h.b16 %v1007
    %v2365 = vunpack.c.l.b16 %v1008
    %v2366 = vunpack.c.h.b16 %v1008
    %v2367 = vunpack.c.l.b16 %v1009
    %v2368 = vunpack.c.h.b16 %v1009
    %v2369 = vunpack.c.l.b16 %v1010
    %v2370 = vunpack.c.h.b16 %v1010
    %v2371 = vunpack.c.l.b16 %v1011
    %v2372 = vunpack.c.h.b16 %v1011
    %v2373 = vunpack.c.l.b16 %v1012
    %v2374 = vunpack.c.h.b16 %v1012
    %v2375 = vunpack.c.l.b16 %v1013
    %v2376 = vunpack.c.h.b16 %v1013
    %v2377 = vunpack.c.l.b16 %v1014
    %v2378 = vunpack.c.h.b16 %v1014
    %v2379 = vunpack.c.l.b16 %v1015
    %v2380 = vunpack.c.h.b16 %v1015
    %v2381 = vunpack.c.l.b16 %v1016
    %v2382 = vunpack.c.h.b16 %v1016
    %v2383 = vunpack.c.l.b16 %v1017
    %v2384 = vunpack.c.h.b16 %v1017
    %v2385 = vunpack.c.l.b16 %v1018
    %v2386 = vunpack.c.h.b16 %v1018
    %v2387 = vunpack.c.l.b16 %v1019
    %v2388 = vunpack.c.h.b16 %v1019
    %v2389 = vunpack.c.l.b16 %v1020
    %v2390 = vunpack.c.h.b16 %v1020
    %v2391 = vunpack.c.l.b16 %v1021
    %v2392 = vunpack.c.h.b16 %v1021
    %v2393 = vunpack.c.l.b16 %v1022
    %v2394 = vunpack.c.h.b16 %v1022
    %v2395 = vunpack.c.l.b16 %v1023
    %v2396 = vunpack.c.h.b16 %v1023
    %v2397 = vunpack.c.l.b16 %v1024
    %v2398 = vunpack.c.h.b16 %v1024
    %v2399 = vunpack.c.l.b16 %v1025
    %v2400 = vunpack.c.h.b16 %v1025
    %v2401 = vunpack.c.l.b16 %v1026
    %v2402 = vunpack.c.h.b16 %v1026
    %v2403 = vunpack.c.l.b16 %v1027
    %v2404 = vunpack.c.h.b16 %v1027
    %v2405 = vunpack.c.l.b16 %v1028
    %v2406 = vunpack.c.h.b16 %v1028
    %v2407 = vunpack.c.l.b16 %v1029
    %v2408 = vunpack.c.h.b16 %v1029
    %v2409 = vunpack.c.l.b16 %v1030
    %v2410 = vunpack.c.h.b16 %v1030
    %v2411 = vunpack.c.l.b16 %v1031
    %v2412 = vunpack.c.h.b16 %v1031
    %v2413 = vunpack.c.l.b16 %v1032
    %v2414 = vunpack.c.h.b16 %v1032
    %v2415 = vunpack.c.l.b16 %v1033
    %v2416 = vunpack.c.h.b16 %v1033
    %v2417 = vunpack.c.l.b16 %v1034
    %v2418 = vunpack.c.h.b16 %v1034
    %v2419 = vunpack.c.l.b16 %v1035
    %v2420 = vunpack.c.h.b16 %v1035
    %v2421 = vunpack.c.l.b16 %v1036
    %v2422 = vunpack.c.h.b16 %v1036
    %v2423 = vunpack.c.l.b16 %v1037
    %v2424 = vunpack.c.h.b16 %v1037
    %v2425 = vunpack.c.l.b16 %v1038
    %v2426 = vunpack.c.h.b16 %v1038
    %v2427 = vunpack.c.l.b16 %v1039
    %v2428 = vunpack.c.h.b16 %v1039
    %v2429 = vunpack.c.l.b16 %v1040
    %v2430 = vunpack.c.h.b16 %v1040
    %v2431 = vunpack.c.l.b16 %v1041
    %v2432 = vunpack.c.h.b16 %v1041
    %v2433 = vunpack.c.l.b16 %v1042
    %v2434 = vunpack.c.h.b16 %v1042
    %v2435 = vunpack.c.l.b16 %v1043
    %v2436 = vunpack.c.h.b16 %v1043
    %v2437 = vunpack.c.l.b16 %v1044
    %v2438 = vunpack.c.h.b16 %v1044
    %v2439 = vunpack.c.l.b16 %v1045
    %v2440 = vunpack.c.h.b16 %v1045
    %v2441 = vunpack.c.l.b16 %v1046
    %v2442 = vunpack.c.h.b16 %v1046
    %v2443 = vunpack.c.l.b16 %v1047
    %v2444 = vunpack.c.h.b16 %v1047
    %v2445 = vunpack.c.l.b16 %v1048
    %v2446 = vunpack.c.h.b16 %v1048
    %v2447 = vunpack.c.l.b16 %v1049
    %v2448 = vunpack.c.h.b16 %v1049
    %v2449 = vunpack.c.l.b16 %v1050
    %v2450 = vunpack.c.h.b16 %v1050
    %v2451 = vunpack.c.l.b16 %v1051
    %v2452 = vunpack.c.h.b16 %v1051
    %v2453 = vunpack.c.l.b16 %v1052
    %v2454 = vunpack.c.h.b16 %v1052
    %v2455 = vunpack.c.l.b16 %v1053
    %v2456 = vunpack.c.h.b16 %v1053
    %v2457 = vunpack.c.l.b16 %v1054
    %v2458 = vunpack.c.h.b16 %v1054
    %v2459 = vunpack.c.l.b16 %v1055
    %v2460 = vunpack.c.h.b16 %v1055
    %v2461 = vunpack.c.l.b16 %v1056
    %v2462 = vunpack.c.h.b16 %v1056
    %v2463 = vunpack.c.l.b16 %v1057
    %v2464 = vunpack.c.h.b16 %v1057
    %v2465 = vunpack.c.l.b16 %v1058
    %v2466 = vunpack.c.h.b16 %v1058
    %v2467 = vunpack.c.l.b16 %v1059
    %v2468 = vunpack.c.h.b16 %v1059
    %v2469 = vunpack.c.l.b16 %v1060
    %v2470 = vunpack.c.h.b16 %v1060
    %v2471 = vunpack.c.l.b16 %v1061
    %v2472 = vunpack.c.h.b16 %v1061
    %v2473 = vunpack.c.l.b16 %v1062
    %v2474 = vunpack.c.h.b16 %v1062
    %v2475 = vunpack.c.l.b16 %v1063
    %v2476 = vunpack.c.h.b16 %v1063
    %v2477 = vunpack.c.l.b16 %v1064
    %v2478 = vunpack.c.h.b16 %v1064
    %v2479 = vunpack.c.l.b16 %v1065
    %v2480 = vunpack.c.h.b16 %v1065
    %v2481 = vunpack.c.l.b16 %v1066
    %v2482 = vunpack.c.h.b16 %v1066
    %v2483 = vunpack.c.l.b16 %v1067
    %v2484 = vunpack.c.h.b16 %v1067
    %v2485 = vunpack.c.l.b16 %v1068
    %v2486 = vunpack.c.h.b16 %v1068
    %v2487 = vunpack.c.l.b16 %v1069
    %v2488 = vunpack.c.h.b16 %v1069
    %v2489 = vunpack.c.l.b16 %v1070
    %v2490 = vunpack.c.h.b16 %v1070
    %v2491 = vunpack.c.l.b16 %v1071
    %v2492 = vunpack.c.h.b16 %v1071
    %v2493 = vunpack.c.l.b16 %v1072
    %v2494 = vunpack.c.h.b16 %v1072
    %v2495 = vunpack.c.l.b16 %v1073
    %v2496 = vunpack.c.h.b16 %v1073
    %v2497 = vunpack.c.l.b16 %v1074
    %v2498 = vunpack.c.h.b16 %v1074
    %v2499 = vunpack.c.l.b16 %v1075
    %v2500 = vunpack.c.h.b16 %v1075
    %v2501 = vunpack.c.l.b16 %v1076
    %v2502 = vunpack.c.h.b16 %v1076
    %v2503 = vunpack.c.l.b16 %v1077
    %v2504 = vunpack.c.h.b16 %v1077
    %v2505 = vunpack.c.l.b16 %v1078
    %v2506 = vunpack.c.h.b16 %v1078
    %v2507 = vunpack.c.l.b16 %v1079
    %v2508 = vunpack.c.h.b16 %v1079
    %v2509 = vunpack.c.l.b16 %v1080
    %v2510 = vunpack.c.h.b16 %v1080
    %v2511 = vunpack.c.l.b16 %v1081
    %v2512 = vunpack.c.h.b16 %v1081
    %v2513 = vunpack.c.l.b16 %v1082
    %v2514 = vunpack.c.h.b16 %v1082
    %v2515 = vunpack.c.l.b16 %v1083
    %v2516 = vunpack.c.h.b16 %v1083
    %v2517 = vunpack.c.l.b16 %v1084
    %v2518 = vunpack.c.h.b16 %v1084
    %v2519 = vunpack.c.l.b16 %v1085
    %v2520 = vunpack.c.h.b16 %v1085
    %v2521 = vunpack.c.l.b16 %v1086
    %v2522 = vunpack.c.h.b16 %v1086
    %v2523 = vunpack.c.l.b16 %v1087
    %v2524 = vunpack.c.h.b16 %v1087
    %v2525 = vunpack.c.l.b16 %v1088
    %v2526 = vunpack.c.h.b16 %v1088
    %v2527 = vunpack.c.l.b16 %v1089
    %v2528 = vunpack.c.h.b16 %v1089
    %v2529 = vunpack.c.l.b16 %v1090
    %v2530 = vunpack.c.h.b16 %v1090
    %v2531 = vunpack.c.l.b16 %v1091
    %v2532 = vunpack.c.h.b16 %v1091
    %v2533 = vunpack.c.l.b16 %v1092
    %v2534 = vunpack.c.h.b16 %v1092
    %v2535 = vunpack.c.l.b16 %v1093
    %v2536 = vunpack.c.h.b16 %v1093
    %v2537 = vunpack.c.l.b16 %v1094
    %v2538 = vunpack.c.h.b16 %v1094
    %v2539 = vunpack.c.l.b16 %v1095
    %v2540 = vunpack.c.h.b16 %v1095
    %v2541 = vunpack.c.l.b16 %v1096
    %v2542 = vunpack.c.h.b16 %v1096
    %v2543 = vunpack.c.l.b16 %v1097
    %v2544 = vunpack.c.h.b16 %v1097
    %v2545 = vunpack.c.l.b16 %v1098
    %v2546 = vunpack.c.h.b16 %v1098
    %v2547 = vunpack.c.l.b16 %v1099
    %v2548 = vunpack.c.h.b16 %v1099
    %v2549 = vunpack.c.l.b16 %v1100
    %v2550 = vunpack.c.h.b16 %v1100
    %v2551 = vunpack.c.l.b16 %v1101
    %v2552 = vunpack.c.h.b16 %v1101
    %v2553 = vunpack.c.l.b16 %v1102
    %v2554 = vunpack.c.h.b16 %v1102
    %v2555 = vunpack.c.l.b16 %v1103
    %v2556 = vunpack.c.h.b16 %v1103
    %v2557 = vunpack.c.l.b16 %v1104
    %v2558 = vunpack.c.h.b16 %v1104
    %v2559 = vunpack.c.l.b16 %v1105
    %v2560 = vunpack.c.h.b16 %v1105
    %v2561 = vunpack.c.l.b16 %v1106
    %v2562 = vunpack.c.h.b16 %v1106
    %v2563 = vunpack.c.l.b16 %v1107
    %v2564 = vunpack.c.h.b16 %v1107
    %v2565 = vunpack.c.l.b16 %v1108
    %v2566 = vunpack.c.h.b16 %v1108
    %v2567 = vunpack.c.l.b16 %v1109
    %v2568 = vunpack.c.h.b16 %v1109
    %v2569 = vunpack.c.l.b16 %v1110
    %v2570 = vunpack.c.h.b16 %v1110
    %v2571 = vunpack.c.l.b16 %v1111
    %v2572 = vunpack.c.h.b16 %v1111
    %v2573 = vunpack.c.l.b16 %v1112
    %v2574 = vunpack.c.h.b16 %v1112
    %v2575 = vunpack.c.l.b16 %v1113
    %v2576 = vunpack.c.h.b16 %v1113
    %v2577 = vunpack.c.l.b16 %v1114
    %v2578 = vunpack.c.h.b16 %v1114
    %v2579 = vunpack.c.l.b16 %v1115
    %v2580 = vunpack.c.h.b16 %v1115
    %v2581 = vunpack.c.l.b16 %v1116
    %v2582 = vunpack.c.h.b16 %v1116
    %v2583 = vunpack.c.l.b16 %v1117
    %v2584 = vunpack.c.h.b16 %v1117
    %v2585 = vunpack.c.l.b16 %v1118
    %v2586 = vunpack.c.h.b16 %v1118
    %v2587 = vunpack.c.l.b16 %v1119
    %v2588 = vunpack.c.h.b16 %v1119
    %v2589 = vunpack.c.l.b16 %v1120
    %v2590 = vunpack.c.h.b16 %v1120
    %v2591 = vunpack.c.l.b16 %v1121
    %v2592 = vunpack.c.h.b16 %v1121
    %v2593 = vunpack.c.l.b16 %v1122
    %v2594 = vunpack.c.h.b16 %v1122
    %v2595 = vunpack.c.l.b16 %v1123
    %v2596 = vunpack.c.h.b16 %v1123
    %v2597 = vunpack.c.l.b16 %v1124
    %v2598 = vunpack.c.h.b16 %v1124
    %v2599 = vunpack.c.l.b16 %v1125
    %v2600 = vunpack.c.h.b16 %v1125
    %v2601 = vunpack.c.l.b16 %v1126
    %v2602 = vunpack.c.h.b16 %v1126
    %v2603 = vunpack.c.l.b16 %v1127
    %v2604 = vunpack.c.h.b16 %v1127
    %v2605 = vunpack.c.l.b16 %v1128
    %v2606 = vunpack.c.h.b16 %v1128
    %v2607 = vunpack.c.l.b16 %v1129
    %v2608 = vunpack.c.h.b16 %v1129
    %v2609 = vunpack.c.l.b16 %v1130
    %v2610 = vunpack.c.h.b16 %v1130
    %v2611 = vunpack.c.l.b16 %v1131
    %v2612 = vunpack.c.h.b16 %v1131
    %v2613 = vunpack.c.l.b16 %v1132
    %v2614 = vunpack.c.h.b16 %v1132
    %v2615 = vunpack.c.l.b16 %v1133
    %v2616 = vunpack.c.h.b16 %v1133
    %v2617 = vunpack.c.l.b16 %v1134
    %v2618 = vunpack.c.h.b16 %v1134
    %v2619 = vunpack.c.l.b16 %v1135
    %v2620 = vunpack.c.h.b16 %v1135
    %v2621 = vunpack.c.l.b16 %v1136
    %v2622 = vunpack.c.h.b16 %v1136
    %v2623 = vunpack.c.l.b16 %v1137
    %v2624 = vunpack.c.h.b16 %v1137
    %v2625 = vunpack.c.l.b16 %v1138
    %v2626 = vunpack.c.h.b16 %v1138
    %v2627 = vunpack.c.l.b16 %v1139
    %v2628 = vunpack.c.h.b16 %v1139
    %v2629 = vunpack.c.l.b16 %v1140
    %v2630 = vunpack.c.h.b16 %v1140
    %v2631 = vunpack.c.l.b16 %v1141
    %v2632 = vunpack.c.h.b16 %v1141
    %v2633 = vunpack.c.l.b16 %v1142
    %v2634 = vunpack.c.h.b16 %v1142
    %v2635 = vunpack.c.l.b16 %v1143
    %v2636 = vunpack.c.h.b16 %v1143
    %v2637 = vunpack.c.l.b16 %v1144
    %v2638 = vunpack.c.h.b16 %v1144
    %v2639 = vunpack.c.l.b16 %v1145
    %v2640 = vunpack.c.h.b16 %v1145
    %v2641 = vunpack.c.l.b16 %v1146
    %v2642 = vunpack.c.h.b16 %v1146
    %v2643 = vunpack.c.l.b16 %v1147
    %v2644 = vunpack.c.h.b16 %v1147
    %v2645 = vunpack.c.l.b16 %v1148
    %v2646 = vunpack.c.h.b16 %v1148
    %v2647 = vunpack.c.l.b16 %v1149
    %v2648 = vunpack.c.h.b16 %v1149
    %v2649 = vunpack.c.l.b16 %v1150
    %v2650 = vunpack.c.h.b16 %v1150
    %v2651 = vunpack.c.l.b16 %v1151
    %v2652 = vunpack.c.h.b16 %v1151
    %v2653 = vunpack.c.l.b16 %v1152
    %v2654 = vunpack.c.h.b16 %v1152
    %v2655 = vunpack.c.l.b16 %v1153
    %v2656 = vunpack.c.h.b16 %v1153
    %v2657 = vunpack.c.l.b16 %v1154
    %v2658 = vunpack.c.h.b16 %v1154
    %v2659 = vunpack.c.l.b16 %v1155
    %v2660 = vunpack.c.h.b16 %v1155
    %v2661 = vunpack.c.l.b16 %v1156
    %v2662 = vunpack.c.h.b16 %v1156
    %v2663 = vunpack.c.l.b16 %v1157
    %v2664 = vunpack.c.h.b16 %v1157
    %v2665 = vunpack.c.l.b16 %v1158
    %v2666 = vunpack.c.h.b16 %v1158
    %v2667 = vunpack.c.l.b16 %v1159
    %v2668 = vunpack.c.h.b16 %v1159
    %v2669 = vunpack.c.l.b16 %v1160
    %v2670 = vunpack.c.h.b16 %v1160
    %v2671 = vunpack.c.l.b16 %v1161
    %v2672 = vunpack.c.h.b16 %v1161
    %v2673 = vunpack.c.l.b16 %v1162
    %v2674 = vunpack.c.h.b16 %v1162
    %v2675 = vunpack.c.l.b16 %v1163
    %v2676 = vunpack.c.h.b16 %v1163
    %v2677 = vunpack.c.l.b16 %v1164
    %v2678 = vunpack.c.h.b16 %v1164
    %v2679 = vunpack.c.l.b16 %v1165
    %v2680 = vunpack.c.h.b16 %v1165
    %v2681 = vunpack.c.l.b16 %v1166
    %v2682 = vunpack.c.h.b16 %v1166
    %v2683 = vunpack.c.l.b16 %v1167
    %v2684 = vunpack.c.h.b16 %v1167
    %v2685 = vunpack.c.l.b16 %v1168
    %v2686 = vunpack.c.h.b16 %v1168
    %v2687 = vunpack.c.l.b16 %v1169
    %v2688 = vunpack.c.h.b16 %v1169
    %v2689 = vunpack.c.l.b16 %v1170
    %v2690 = vunpack.c.h.b16 %v1170
    %v2691 = vunpack.c.l.b16 %v1171
    %v2692 = vunpack.c.h.b16 %v1171
    %v2693 = vunpack.c.l.b16 %v1172
    %v2694 = vunpack.c.h.b16 %v1172
    %v2695 = vunpack.c.l.b16 %v1173
    %v2696 = vunpack.c.h.b16 %v1173
    %v2697 = vunpack.c.l.b16 %v1174
    %v2698 = vunpack.c.h.b16 %v1174
    %v2699 = vunpack.c.l.b16 %v1175
    %v2700 = vunpack.c.h.b16 %v1175
    %v2701 = vunpack.c.l.b16 %v1176
    %v2702 = vunpack.c.h.b16 %v1176
    %v2703 = vunpack.c.l.b16 %v1177
    %v2704 = vunpack.c.h.b16 %v1177
    %v2705 = vunpack.c.l.b16 %v1178
    %v2706 = vunpack.c.h.b16 %v1178
    %v2707 = vunpack.c.l.b16 %v1179
    %v2708 = vunpack.c.h.b16 %v1179
    %v2709 = vunpack.c.l.b16 %v1180
    %v2710 = vunpack.c.h.b16 %v1180
    %v2711 = vunpack.c.l.b16 %v1181
    %v2712 = vunpack.c.h.b16 %v1181
    %v2713 = vunpack.c.l.b16 %v1182
    %v2714 = vunpack.c.h.b16 %v1182
    %v2715 = vunpack.c.l.b16 %v1183
    %v2716 = vunpack.c.h.b16 %v1183
    %v2717 = vunpack.c.l.b16 %v1184
    %v2718 = vunpack.c.h.b16 %v1184
    %v2719 = vunpack.c.l.b16 %v1185
    %v2720 = vunpack.c.h.b16 %v1185
    %v2721 = vunpack.c.l.b16 %v1186
    %v2722 = vunpack.c.h.b16 %v1186
    %v2723 = vpack.c.b16 %v1707, %v1699
    %v2724 = vpack.c.b16 %v1708, %v1700
    %v2725 = vpack.c.b16 %v1709, %v1701
    %v2726 = vpack.c.b16 %v1710, %v1702
    %v2727 = vpack.c.b16 %v1711, %v1703
    %v2728 = vpack.c.b16 %v1712, %v1704
    %v2729 = vpack.c.b16 %v1713, %v1705
    %v2730 = vpack.c.b16 %v1714, %v1706
    %v2731 = vpack.c.b16 %v1723, %v1715
    %v2732 = vpack.c.b16 %v1724, %v1716
    %v2733 = vpack.c.b16 %v1725, %v1717
    %v2734 = vpack.c.b16 %v1726, %v1718
    %v2735 = vpack.c.b16 %v1727, %v1719
    %v2736 = vpack.c.b16 %v1728, %v1720
    %v2737 = vpack.c.b16 %v1729, %v1721
    %v2738 = vpack.c.b16 %v1730, %v1722
    %v2739 = vpack.c.b16 %v1739, %v1731
    %v2740 = vpack.c.b16 %v1740, %v1732
    %v2741 = vpack.c.b16 %v1741, %v1733
    %v2742 = vpack.c.b16 %v1742, %v1734
    %v2743 = vpack.c.b16 %v1743, %v1735
    %v2744 = vpack.c.b16 %v1744, %v1736
    %v2745 = vpack.c.b16 %v1745, %v1737
    %v2746 = vpack.c.b16 %v1746, %v1738
    %v2747 = vpack.c.b16 %v1755, %v1747
    %v2748 = vpack.c.b16 %v1756, %v1748
    %v2749 = vpack.c.b16 %v1757, %v1749
    %v2750 = vpack.c.b16 %v1758, %v1750
    %v2751 = vpack.c.b16 %v1759, %v1751
    %v2752 = vpack.c.b16 %v1760, %v1752
    %v2753 = vpack.c.b16 %v1761, %v1753
    %v2754 = vpack.c.b16 %v1762, %v1754
    %v2755 = vpack.c.b16 %v1771, %v1763
    %v2756 = vpack.c.b16 %v1772, %v1764
    %v2757 = vpack.c.b16 %v1773, %v1765
    %v2758 = vpack.c.b16 %v1774, %v1766
    %v2759 = vpack.c.b16 %v1775, %v1767
    %v2760 = vpack.c.b16 %v1776, %v1768
    %v2761 = vpack.c.b16 %v1777, %v1769
    %v2762 = vpack.c.b16 %v1778, %v1770
    %v2763 = vpack.c.b16 %v1787, %v1779
    %v2764 = vpack.c.b16 %v1788, %v1780
    %v2765 = vpack.c.b16 %v1789, %v1781
    %v2766 = vpack.c.b16 %v1790, %v1782
    %v2767 = vpack.c.b16 %v1791, %v1783
    %v2768 = vpack.c.b16 %v1792, %v1784
    %v2769 = vpack.c.b16 %v1793, %v1785
    %v2770 = vpack.c.b16 %v1794, %v1786
    %v2771 = vpack.c.b16 %v1803, %v1795
    %v2772 = vpack.c.b16 %v1804, %v1796
    %v2773 = vpack.c.b16 %v1805, %v1797
    %v2774 = vpack.c.b16 %v1806, %v1798
    %v2775 = vpack.c.b16 %v1807, %v1799
    %v2776 = vpack.c.b16 %v1808, %v1800
    %v2777 = vpack.c.b16 %v1809, %v1801
    %v2778 = vpack.c.b16 %v1810, %v1802
    %v2779 = vpack.c.b16 %v1819, %v1811
    %v2780 = vpack.c.b16 %v1820, %v1812
    %v2781 = vpack.c.b16 %v1821, %v1813
    %v2782 = vpack.c.b16 %v1822, %v1814
    %v2783 = vpack.c.b16 %v1823, %v1815
    %v2784 = vpack.c.b16 %v1824, %v1816
    %v2785 = vpack.c.b16 %v1825, %v1817
    %v2786 = vpack.c.b16 %v1826, %v1818
    %v2787 = vpack.c.b16 %v1835, %v1827
    %v2788 = vpack.c.b16 %v1836, %v1828
    %v2789 = vpack.c.b16 %v1837, %v1829
    %v2790 = vpack.c.b16 %v1838, %v1830
    %v2791 = vpack.c.b16 %v1839, %v1831
    %v2792 = vpack.c.b16 %v1840, %v1832
    %v2793 = vpack.c.b16 %v1841, %v1833
    %v2794 = vpack.c.b16 %v1842, %v1834
    %v2795 = vpack.c.b16 %v1851, %v1843
    %v2796 = vpack.c.b16 %v1852, %v1844
    %v2797 = vpack.c.b16 %v1853, %v1845
    %v2798 = vpack.c.b16 %v1854, %v1846
    %v2799 = vpack.c.b16 %v1855, %v1847
    %v2800 = vpack.c.b16 %v1856, %v1848
    %v2801 = vpack.c.b16 %v1857, %v1849
    %v2802 = vpack.c.b16 %v1858, %v1850
    %v2803 = vpack.c.b16 %v1867, %v1859
    %v2804 = vpack.c.b16 %v1868, %v1860
    %v2805 = vpack.c.b16 %v1869, %v1861
    %v2806 = vpack.c.b16 %v1870, %v1862
    %v2807 = vpack.c.b16 %v1871, %v1863
    %v2808 = vpack.c.b16 %v1872, %v1864
    %v2809 = vpack.c.b16 %v1873, %v1865
    %v2810 = vpack.c.b16 %v1874, %v1866
    %v2811 = vpack.c.b16 %v1883, %v1875
    %v2812 = vpack.c.b16 %v1884, %v1876
    %v2813 = vpack.c.b16 %v1885, %v1877
    %v2814 = vpack.c.b16 %v1886, %v1878
    %v2815 = vpack.c.b16 %v1887, %v1879
    %v2816 = vpack.c.b16 %v1888, %v1880
    %v2817 = vpack.c.b16 %v1889, %v1881
    %v2818 = vpack.c.b16 %v1890, %v1882
    %v2819 = vpack.c.b16 %v1899, %v1891
    %v2820 = vpack.c.b16 %v1900, %v1892
    %v2821 = vpack.c.b16 %v1901, %v1893
    %v2822 = vpack.c.b16 %v1902, %v1894
    %v2823 = vpack.c.b16 %v1903, %v1895
    %v2824 = vpack.c.b16 %v1904, %v1896
    %v2825 = vpack.c.b16 %v1905, %v1897
    %v2826 = vpack.c.b16 %v1906, %v1898
    %v2827 = vpack.c.b16 %v1915, %v1907
    %v2828 = vpack.c.b16 %v1916, %v1908
    %v2829 = vpack.c.b16 %v1917, %v1909
    %v2830 = vpack.c.b16 %v1918, %v1910
    %v2831 = vpack.c.b16 %v1919, %v1911
    %v2832 = vpack.c.b16 %v1920, %v1912
    %v2833 = vpack.c.b16 %v1921, %v1913
    %v2834 = vpack.c.b16 %v1922, %v1914
    %v2835 = vpack.c.b16 %v1931, %v1923
    %v2836 = vpack.c.b16 %v1932, %v1924
    %v2837 = vpack.c.b16 %v1933, %v1925
    %v2838 = vpack.c.b16 %v1934, %v1926
    %v2839 = vpack.c.b16 %v1935, %v1927
    %v2840 = vpack.c.b16 %v1936, %v1928
    %v2841 = vpack.c.b16 %v1937, %v1929
    %v2842 = vpack.c.b16 %v1938, %v1930
    %v2843 = vpack.c.b16 %v1947, %v1939
    %v2844 = vpack.c.b16 %v1948, %v1940
    %v2845 = vpack.c.b16 %v1949, %v1941
    %v2846 = vpack.c.b16 %v1950, %v1942
    %v2847 = vpack.c.b16 %v1951, %v1943
    %v2848 = vpack.c.b16 %v1952, %v1944
    %v2849 = vpack.c.b16 %v1953, %v1945
    %v2850 = vpack.c.b16 %v1954, %v1946
    %v2851 = vpack.c.b16 %v1963, %v1955
    %v2852 = vpack.c.b16 %v1964, %v1956
    %v2853 = vpack.c.b16 %v1965, %v1957
    %v2854 = vpack.c.b16 %v1966, %v1958
    %v2855 = vpack.c.b16 %v1967, %v1959
    %v2856 = vpack.c.b16 %v1968, %v1960
    %v2857 = vpack.c.b16 %v1969, %v1961
    %v2858 = vpack.c.b16 %v1970, %v1962
    %v2859 = vpack.c.b16 %v1979, %v1971
    %v2860 = vpack.c.b16 %v1980, %v1972
    %v2861 = vpack.c.b16 %v1981, %v1973
    %v2862 = vpack.c.b16 %v1982, %v1974
    %v2863 = vpack.c.b16 %v1983, %v1975
    %v2864 = vpack.c.b16 %v1984, %v1976
    %v2865 = vpack.c.b16 %v1985, %v1977
    %v2866 = vpack.c.b16 %v1986, %v1978
    %v2867 = vpack.c.b16 %v1995, %v1987
    %v2868 = vpack.c.b16 %v1996, %v1988
    %v2869 = vpack.c.b16 %v1997, %v1989
    %v2870 = vpack.c.b16 %v1998, %v1990
    %v2871 = vpack.c.b16 %v1999, %v1991
    %v2872 = vpack.c.b16 %v2000, %v1992
    %v2873 = vpack.c.b16 %v2001, %v1993
    %v2874 = vpack.c.b16 %v2002, %v1994
    %v2875 = vpack.c.b16 %v2011, %v2003
    %v2876 = vpack.c.b16 %v2012, %v2004
    %v2877 = vpack.c.b16 %v2013, %v2005
    %v2878 = vpack.c.b16 %v2014, %v2006
    %v2879 = vpack.c.b16 %v2015, %v2007
    %v2880 = vpack.c.b16 %v2016, %v2008
    %v2881 = vpack.c.b16 %v2017, %v2009
    %v2882 = vpack.c.b16 %v2018, %v2010
    %v2883 = vpack.c.b16 %v2027, %v2019
    %v2884 = vpack.c.b16 %v2028, %v2020
    %v2885 = vpack.c.b16 %v2029, %v2021
    %v2886 = vpack.c.b16 %v2030, %v2022
    %v2887 = vpack.c.b16 %v2031, %v2023
    %v2888 = vpack.c.b16 %v2032, %v2024
    %v2889 = vpack.c.b16 %v2033, %v2025
    %v2890 = vpack.c.b16 %v2034, %v2026
    %v2891 = vpack.c.b16 %v2043, %v2035
    %v2892 = vpack.c.b16 %v2044, %v2036
    %v2893 = vpack.c.b16 %v2045, %v2037
    %v2894 = vpack.c.b16 %v2046, %v2038
    %v2895 = vpack.c.b16 %v2047, %v2039
    %v2896 = vpack.c.b16 %v2048, %v2040
    %v2897 = vpack.c.b16 %v2049, %v2041
    %v2898 = vpack.c.b16 %v2050, %v2042
    %v2899 = vpack.c.b16 %v2059, %v2051
    %v2900 = vpack.c.b16 %v2060, %v2052
    %v2901 = vpack.c.b16 %v2061, %v2053
    %v2902 = vpack.c.b16 %v2062, %v2054
    %v2903 = vpack.c.b16 %v2063, %v2055
    %v2904 = vpack.c.b16 %v2064, %v2056
    %v2905 = vpack.c.b16 %v2065, %v2057
    %v2906 = vpack.c.b16 %v2066, %v2058
    %v2907 = vpack.c.b16 %v2075, %v2067
    %v2908 = vpack.c.b16 %v2076, %v2068
    %v2909 = vpack.c.b16 %v2077, %v2069
    %v2910 = vpack.c.b16 %v2078, %v2070
    %v2911 = vpack.c.b16 %v2079, %v2071
    %v2912 = vpack.c.b16 %v2080, %v2072
    %v2913 = vpack.c.b16 %v2081, %v2073
    %v2914 = vpack.c.b16 %v2082, %v2074
    %v2915 = vpack.c.b16 %v2091, %v2083
    %v2916 = vpack.c.b16 %v2092, %v2084
    %v2917 = vpack.c.b16 %v2093, %v2085
    %v2918 = vpack.c.b16 %v2094, %v2086
    %v2919 = vpack.c.b16 %v2095, %v2087
    %v2920 = vpack.c.b16 %v2096, %v2088
    %v2921 = vpack.c.b16 %v2097, %v2089
    %v2922 = vpack.c.b16 %v2098, %v2090
    %v2923 = vpack.c.b16 %v2107, %v2099
    %v2924 = vpack.c.b16 %v2108, %v2100
    %v2925 = vpack.c.b16 %v2109, %v2101
    %v2926 = vpack.c.b16 %v2110, %v2102
    %v2927 = vpack.c.b16 %v2111, %v2103
    %v2928 = vpack.c.b16 %v2112, %v2104
    %v2929 = vpack.c.b16 %v2113, %v2105
    %v2930 = vpack.c.b16 %v2114, %v2106
    %v2931 = vpack.c.b16 %v2123, %v2115
    %v2932 = vpack.c.b16 %v2124, %v2116
    %v2933 = vpack.c.b16 %v2125, %v2117
    %v2934 = vpack.c.b16 %v2126, %v2118
    %v2935 = vpack.c.b16 %v2127, %v2119
    %v2936 = vpack.c.b16 %v2128, %v2120
    %v2937 = vpack.c.b16 %v2129, %v2121
    %v2938 = vpack.c.b16 %v2130, %v2122
    %v2939 = vpack.c.b16 %v2139, %v2131
    %v2940 = vpack.c.b16 %v2140, %v2132
    %v2941 = vpack.c.b16 %v2141, %v2133
    %v2942 = vpack.c.b16 %v2142, %v2134
    %v2943 = vpack.c.b16 %v2143, %v2135
    %v2944 = vpack.c.b16 %v2144, %v2136
    %v2945 = vpack.c.b16 %v2145, %v2137
    %v2946 = vpack.c.b16 %v2146, %v2138
    %v2947 = vpack.c.b16 %v2155, %v2147
    %v2948 = vpack.c.b16 %v2156, %v2148
    %v2949 = vpack.c.b16 %v2157, %v2149
    %v2950 = vpack.c.b16 %v2158, %v2150
    %v2951 = vpack.c.b16 %v2159, %v2151
    %v2952 = vpack.c.b16 %v2160, %v2152
    %v2953 = vpack.c.b16 %v2161, %v2153
    %v2954 = vpack.c.b16 %v2162, %v2154
    %v2955 = vpack.c.b16 %v2171, %v2163
    %v2956 = vpack.c.b16 %v2172, %v2164
    %v2957 = vpack.c.b16 %v2173, %v2165
    %v2958 = vpack.c.b16 %v2174, %v2166
    %v2959 = vpack.c.b16 %v2175, %v2167
    %v2960 = vpack.c.b16 %v2176, %v2168
    %v2961 = vpack.c.b16 %v2177, %v2169
    %v2962 = vpack.c.b16 %v2178, %v2170
    %v2963 = vpack.c.b16 %v2187, %v2179
    %v2964 = vpack.c.b16 %v2188, %v2180
    %v2965 = vpack.c.b16 %v2189, %v2181
    %v2966 = vpack.c.b16 %v2190, %v2182
    %v2967 = vpack.c.b16 %v2191, %v2183
    %v2968 = vpack.c.b16 %v2192, %v2184
    %v2969 = vpack.c.b16 %v2193, %v2185
    %v2970 = vpack.c.b16 %v2194, %v2186
    %v2971 = vpack.c.b16 %v2203, %v2195
    %v2972 = vpack.c.b16 %v2204, %v2196
    %v2973 = vpack.c.b16 %v2205, %v2197
    %v2974 = vpack.c.b16 %v2206, %v2198
    %v2975 = vpack.c.b16 %v2207, %v2199
    %v2976 = vpack.c.b16 %v2208, %v2200
    %v2977 = vpack.c.b16 %v2209, %v2201
    %v2978 = vpack.c.b16 %v2210, %v2202
    %v2979 = vpack.c.b16 %v2219, %v2211
    %v2980 = vpack.c.b16 %v2220, %v2212
    %v2981 = vpack.c.b16 %v2221, %v2213
    %v2982 = vpack.c.b16 %v2222, %v2214
    %v2983 = vpack.c.b16 %v2223, %v2215
    %v2984 = vpack.c.b16 %v2224, %v2216
    %v2985 = vpack.c.b16 %v2225, %v2217
    %v2986 = vpack.c.b16 %v2226, %v2218
    %v2987 = vpack.c.b16 %v2235, %v2227
    %v2988 = vpack.c.b16 %v2236, %v2228
    %v2989 = vpack.c.b16 %v2237, %v2229
    %v2990 = vpack.c.b16 %v2238, %v2230
    %v2991 = vpack.c.b16 %v2239, %v2231
    %v2992 = vpack.c.b16 %v2240, %v2232
    %v2993 = vpack.c.b16 %v2241, %v2233
    %v2994 = vpack.c.b16 %v2242, %v2234
    %v2995 = vpack.c.b16 %v2251, %v2243
    %v2996 = vpack.c.b16 %v2252, %v2244
    %v2997 = vpack.c.b16 %v2253, %v2245
    %v2998 = vpack.c.b16 %v2254, %v2246
    %v2999 = vpack.c.b16 %v2255, %v2247
    %v3000 = vpack.c.b16 %v2256, %v2248
    %v3001 = vpack.c.b16 %v2257, %v2249
    %v3002 = vpack.c.b16 %v2258, %v2250
    %v3003 = vpack.c.b16 %v2267, %v2259
    %v3004 = vpack.c.b16 %v2268, %v2260
    %v3005 = vpack.c.b16 %v2269, %v2261
    %v3006 = vpack.c.b16 %v2270, %v2262
    %v3007 = vpack.c.b16 %v2271, %v2263
    %v3008 = vpack.c.b16 %v2272, %v2264
    %v3009 = vpack.c.b16 %v2273, %v2265
    %v3010 = vpack.c.b16 %v2274, %v2266
    %v3011 = vpack.c.b16 %v2283, %v2275
    %v3012 = vpack.c.b16 %v2284, %v2276
    %v3013 = vpack.c.b16 %v2285, %v2277
    %v3014 = vpack.c.b16 %v2286, %v2278
    %v3015 = vpack.c.b16 %v2287, %v2279
    %v3016 = vpack.c.b16 %v2288, %v2280
    %v3017 = vpack.c.b16 %v2289, %v2281
    %v3018 = vpack.c.b16 %v2290, %v2282
    %v3019 = vpack.c.b16 %v2299, %v2291
    %v3020 = vpack.c.b16 %v2300, %v2292
    %v3021 = vpack.c.b16 %v2301, %v2293
    %v3022 = vpack.c.b16 %v2302, %v2294
    %v3023 = vpack.c.b16 %v2303, %v2295
    %v3024 = vpack.c.b16 %v2304, %v2296
    %v3025 = vpack.c.b16 %v2305, %v2297
    %v3026 = vpack.c.b16 %v2306, %v2298
    %v3027 = vpack.c.b16 %v2315, %v2307
    %v3028 = vpack.c.b16 %v2316, %v2308
    %v3029 = vpack.c.b16 %v2317, %v2309
    %v3030 = vpack.c.b16 %v2318, %v2310
    %v3031 = vpack.c.b16 %v2319, %v2311
    %v3032 = vpack.c.b16 %v2320, %v2312
    %v3033 = vpack.c.b16 %v2321, %v2313
    %v3034 = vpack.c.b16 %v2322, %v2314
    %v3035 = vpack.c.b16 %v2331, %v2323
    %v3036 = vpack.c.b16 %v2332, %v2324
    %v3037 = vpack.c.b16 %v2333, %v2325
    %v3038 = vpack.c.b16 %v2334, %v2326
    %v3039 = vpack.c.b16 %v2335, %v2327
    %v3040 = vpack.c.b16 %v2336, %v2328
    %v3041 = vpack.c.b16 %v2337, %v2329
    %v3042 = vpack.c.b16 %v2338, %v2330
    %v3043 = vpack.c.b16 %v2347, %v2339
    %v3044 = vpack.c.b16 %v2348, %v2340
    %v3045 = vpack.c.b16 %v2349, %v2341
    %v3046 = vpack.c.b16 %v2350, %v2342
    %v3047 = vpack.c.b16 %v2351, %v2343
    %v3048 = vpack.c.b16 %v2352, %v2344
    %v3049 = vpack.c.b16 %v2353, %v2345
    %v3050 = vpack.c.b16 %v2354, %v2346
    %v3051 = vpack.c.b16 %v2363, %v2355
    %v3052 = vpack.c.b16 %v2364, %v2356
    %v3053 = vpack.c.b16 %v2365, %v2357
    %v3054 = vpack.c.b16 %v2366, %v2358
    %v3055 = vpack.c.b16 %v2367, %v2359
    %v3056 = vpack.c.b16 %v2368, %v2360
    %v3057 = vpack.c.b16 %v2369, %v2361
    %v3058 = vpack.c.b16 %v2370, %v2362
    %v3059 = vpack.c.b16 %v2379, %v2371
    %v3060 = vpack.c.b16 %v2380, %v2372
    %v3061 = vpack.c.b16 %v2381, %v2373
    %v3062 = vpack.c.b16 %v2382, %v2374
    %v3063 = vpack.c.b16 %v2383, %v2375
    %v3064 = vpack.c.b16 %v2384, %v2376
    %v3065 = vpack.c.b16 %v2385, %v2377
    %v3066 = vpack.c.b16 %v2386, %v2378
    %v3067 = vpack.c.b16 %v2395, %v2387
    %v3068 = vpack.c.b16 %v2396, %v2388
    %v3069 = vpack.c.b16 %v2397, %v2389
    %v3070 = vpack.c.b16 %v2398, %v2390
    %v3071 = vpack.c.b16 %v2399, %v2391
    %v3072 = vpack.c.b16 %v2400, %v2392
    %v3073 = vpack.c.b16 %v2401, %v2393
    %v3074 = vpack.c.b16 %v2402, %v2394
    %v3075 = vpack.c.b16 %v2411, %v2403
    %v3076 = vpack.c.b16 %v2412, %v2404
    %v3077 = vpack.c.b16 %v2413, %v2405
    %v3078 = vpack.c.b16 %v2414, %v2406
    %v3079 = vpack.c.b16 %v2415, %v2407
    %v3080 = vpack.c.b16 %v2416, %v2408
    %v3081 = vpack.c.b16 %v2417, %v2409
    %v3082 = vpack.c.b16 %v2418, %v2410
    %v3083 = vpack.c.b16 %v2427, %v2419
    %v3084 = vpack.c.b16 %v2428, %v2420
    %v3085 = vpack.c.b16 %v2429, %v2421
    %v3086 = vpack.c.b16 %v2430, %v2422
    %v3087 = vpack.c.b16 %v2431, %v2423
    %v3088 = vpack.c.b16 %v2432, %v2424
    %v3089 = vpack.c.b16 %v2433, %v2425
    %v3090 = vpack.c.b16 %v2434, %v2426
    %v3091 = vpack.c.b16 %v2443, %v2435
    %v3092 = vpack.c.b16 %v2444, %v2436
    %v3093 = vpack.c.b16 %v2445, %v2437
    %v3094 = vpack.c.b16 %v2446, %v2438
    %v3095 = vpack.c.b16 %v2447, %v2439
    %v3096 = vpack.c.b16 %v2448, %v2440
    %v3097 = vpack.c.b16 %v2449, %v2441
    %v3098 = vpack.c.b16 %v2450, %v2442
    %v3099 = vpack.c.b16 %v2459, %v2451
    %v3100 = vpack.c.b16 %v2460, %v2452
    %v3101 = vpack.c.b16 %v2461, %v2453
    %v3102 = vpack.c.b16 %v2462, %v2454
    %v3103 = vpack.c.b16 %v2463, %v2455
    %v3104 = vpack.c.b16 %v2464, %v2456
    %v3105 = vpack.c.b16 %v2465, %v2457
    %v3106 = vpack.c.b16 %v2466, %v2458
    %v3107 = vpack.c.b16 %v2475, %v2467
    %v3108 = vpack.c.b16 %v2476, %v2468
    %v3109 = vpack.c.b16 %v2477, %v2469
    %v3110 = vpack.c.b16 %v2478, %v2470
    %v3111 = vpack.c.b16 %v2479, %v2471
    %v3112 = vpack.c.b16 %v2480, %v2472
    %v3113 = vpack.c.b16 %v2481, %v2473
    %v3114 = vpack.c.b16 %v2482, %v2474
    %v3115 = vpack.c.b16 %v2491, %v2483
    %v3116 = vpack.c.b16 %v2492, %v2484
    %v3117 = vpack.c.b16 %v2493, %v2485
    %v3118 = vpack.c.b16 %v2494, %v2486
    %v3119 = vpack.c.b16 %v2495, %v2487
    %v3120 = vpack.c.b16 %v2496, %v2488
    %v3121 = vpack.c.b16 %v2497, %v2489
    %v3122 = vpack.c.b16 %v2498, %v2490
    %v3123 = vpack.c.b16 %v2507, %v2499
    %v3124 = vpack.c.b16 %v2508, %v2500
    %v3125 = vpack.c.b16 %v2509, %v2501
    %v3126 = vpack.c.b16 %v2510, %v2502
    %v3127 = vpack.c.b16 %v2511, %v2503
    %v3128 = vpack.c.b16 %v2512, %v2504
    %v3129 = vpack.c.b16 %v2513, %v2505
    %v3130 = vpack.c.b16 %v2514, %v2506
    %v3131 = vpack.c.b16 %v2523, %v2515
    %v3132 = vpack.c.b16 %v2524, %v2516
    %v3133 = vpack.c.b16 %v2525, %v2517
    %v3134 = vpack.c.b16 %v2526, %v2518
    %v3135 = vpack.c.b16 %v2527, %v2519
    %v3136 = vpack.c.b16 %v2528, %v2520
    %v3137 = vpack.c.b16 %v2529, %v2521
    %v3138 = vpack.c.b16 %v2530, %v2522
    %v3139 = vpack.c.b16 %v2539, %v2531
    %v3140 = vpack.c.b16 %v2540, %v2532
    %v3141 = vpack.c.b16 %v2541, %v2533
    %v3142 = vpack.c.b16 %v2542, %v2534
    %v3143 = vpack.c.b16 %v2543, %v2535
    %v3144 = vpack.c.b16 %v2544, %v2536
    %v3145 = vpack.c.b16 %v2545, %v2537
    %v3146 = vpack.c.b16 %v2546, %v2538
    %v3147 = vpack.c.b16 %v2555, %v2547
    %v3148 = vpack.c.b16 %v2556, %v2548
    %v3149 = vpack.c.b16 %v2557, %v2549
    %v3150 = vpack.c.b16 %v2558, %v2550
    %v3151 = vpack.c.b16 %v2559, %v2551
    %v3152 = vpack.c.b16 %v2560, %v2552
    %v3153 = vpack.c.b16 %v2561, %v2553
    %v3154 = vpack.c.b16 %v2562, %v2554
    %v3155 = vpack.c.b16 %v2571, %v2563
    %v3156 = vpack.c.b16 %v2572, %v2564
    %v3157 = vpack.c.b16 %v2573, %v2565
    %v3158 = vpack.c.b16 %v2574, %v2566
    %v3159 = vpack.c.b16 %v2575, %v2567
    %v3160 = vpack.c.b16 %v2576, %v2568
    %v3161 = vpack.c.b16 %v2577, %v2569
    %v3162 = vpack.c.b16 %v2578, %v2570
    %v3163 = vpack.c.b16 %v2587, %v2579
    %v3164 = vpack.c.b16 %v2588, %v2580
    %v3165 = vpack.c.b16 %v2589, %v2581
    %v3166 = vpack.c.b16 %v2590, %v2582
    %v3167 = vpack.c.b16 %v2591, %v2583
    %v3168 = vpack.c.b16 %v2592, %v2584
    %v3169 = vpack.c.b16 %v2593, %v2585
    %v3170 = vpack.c.b16 %v2594, %v2586
    %v3171 = vpack.c.b16 %v2603, %v2595
    %v3172 = vpack.c.b16 %v2604, %v2596
    %v3173 = vpack.c.b16 %v2605, %v2597
    %v3174 = vpack.c.b16 %v2606, %v2598
    %v3175 = vpack.c.b16 %v2607, %v2599
    %v3176 = vpack.c.b16 %v2608, %v2600
    %v3177 = vpack.c.b16 %v2609, %v2601
    %v3178 = vpack.c.b16 %v2610, %v2602
    %v3179 = vpack.c.b16 %v2619, %v2611
    %v3180 = vpack.c.b16 %v2620, %v2612
    %v3181 = vpack.c.b16 %v2621, %v2613
    %v3182 = vpack.c.b16 %v2622, %v2614
    %v3183 = vpack.c.b16 %v2623, %v2615
    %v3184 = vpack.c.b16 %v2624, %v2616
    %v3185 = vpack.c.b16 %v2625, %v2617
    %v3186 = vpack.c.b16 %v2626, %v2618
    %v3187 = vpack.c.b16 %v2635, %v2627
    %v3188 = vpack.c.b16 %v2636, %v2628
    %v3189 = vpack.c.b16 %v2637, %v2629
    %v3190 = vpack.c.b16 %v2638, %v2630
    %v3191 = vpack.c.b16 %v2639, %v2631
    %v3192 = vpack.c.b16 %v2640, %v2632
    %v3193 = vpack.c.b16 %v2641, %v2633
    %v3194 = vpack.c.b16 %v2642, %v2634
    %v3195 = vpack.c.b16 %v2651, %v2643
    %v3196 = vpack.c.b16 %v2652, %v2644
    %v3197 = vpack.c.b16 %v2653, %v2645
    %v3198 = vpack.c.b16 %v2654, %v2646
    %v3199 = vpack.c.b16 %v2655, %v2647
    %v3200 = vpack.c.b16 %v2656, %v2648
    %v3201 = vpack.c.b16 %v2657, %v2649
    %v3202 = vpack.c.b16 %v2658, %v2650
    %v3203 = vpack.c.b16 %v2667, %v2659
    %v3204 = vpack.c.b16 %v2668, %v2660
    %v3205 = vpack.c.b16 %v2669, %v2661
    %v3206 = vpack.c.b16 %v2670, %v2662
    %v3207 = vpack.c.b16 %v2671, %v2663
    %v3208 = vpack.c.b16 %v2672, %v2664
    %v3209 = vpack.c.b16 %v2673, %v2665
    %v3210 = vpack.c.b16 %v2674, %v2666
    %v3211 = vpack.c.b16 %v2683, %v2675
    %v3212 = vpack.c.b16 %v2684, %v2676
    %v3213 = vpack.c.b16 %v2685, %v2677
    %v3214 = vpack.c.b16 %v2686, %v2678
    %v3215 = vpack.c.b16 %v2687, %v2679
    %v3216 = vpack.c.b16 %v2688, %v2680
    %v3217 = vpack.c.b16 %v2689, %v2681
    %v3218 = vpack.c.b16 %v2690, %v2682
    %v3219 = vpack.c.b16 %v2699, %v2691
    %v3220 = vpack.c.b16 %v2700, %v2692
    %v3221 = vpack.c.b16 %v2701, %v2693
    %v3222 = vpack.c.b16 %v2702, %v2694
    %v3223 = vpack.c.b16 %v2703, %v2695
    %v3224 = vpack.c.b16 %v2704, %v2696
    %v3225 = vpack.c.b16 %v2705, %v2697
    %v3226 = vpack.c.b16 %v2706, %v2698
    %v3227 = vpack.c.b16 %v2715, %v2707
    %v3228 = vpack.c.b16 %v2716, %v2708
    %v3229 = vpack.c.b16 %v2717, %v2709
    %v3230 = vpack.c.b16 %v2718, %v2710
    %v3231 = vpack.c.b16 %v2719, %v2711
    %v3232 = vpack.c.b16 %v2720, %v2712
    %v3233 = vpack.c.b16 %v2721, %v2713
    %v3234 = vpack.c.b16 %v2722, %v2714
    %3747 = vmatpush.bf16.msra.mxu0 %v2779
    %3748 = vmatpush.bf16.msra.mxu0 %v2771
    %3749 = vmatpush.bf16.msra.mxu0 %v2763
    %3750 = vmatpush.bf16.msra.mxu0 %v2755
    %3751 = vmatpush.bf16.msra.mxu0 %v2747
    %3752 = vmatpush.bf16.msra.mxu0 %v2739
    %3753 = vmatpush.bf16.msra.mxu0 %v2731
    %3754 = vmatpush.bf16.msra.mxu0 %v2723
    %3755 = vmatmul.bf16.gmra.mxu0 %v667
    %v3756 = vpop.f32.mrf.mxu0
    %v3757 = vadd.f32 0.0, %v3756
    %v3758 = vpop.f32.mrf.mxu0
    %3759 = vdwg.mxu0
    %3760 = vmatpush.bf16.msra.mxu0 %v2843
    %3761 = vmatpush.bf16.msra.mxu0 %v2835
    %3762 = vmatpush.bf16.msra.mxu0 %v2827
    %3763 = vmatpush.bf16.msra.mxu0 %v2819
    %3764 = vmatpush.bf16.msra.mxu0 %v2811
    %3765 = vmatpush.bf16.msra.mxu0 %v2803
    %3766 = vmatpush.bf16.msra.mxu0 %v2795
    %3767 = vmatpush.bf16.msra.mxu0 %v2787
    %3768 = vmatmul.bf16.gmra.mxu0 %v668
    %v3769 = vpop.f32.mrf.mxu0
    %v3770 = vadd.f32 %v3757, %v3769
    %v3771 = vpop.f32.mrf.mxu0
    %3772 = vdwg.mxu0
    %3773 = vmatpush.bf16.msra.mxu0 %v2907
    %3774 = vmatpush.bf16.msra.mxu0 %v2899
    %3775 = vmatpush.bf16.msra.mxu0 %v2891
    %3776 = vmatpush.bf16.msra.mxu0 %v2883
    %3777 = vmatpush.bf16.msra.mxu0 %v2875
    %3778 = vmatpush.bf16.msra.mxu0 %v2867
    %3779 = vmatpush.bf16.msra.mxu0 %v2859
    %3780 = vmatpush.bf16.msra.mxu0 %v2851
    %3781 = vmatmul.bf16.gmra.mxu0 %v669
    %v3782 = vpop.f32.mrf.mxu0
    %v3783 = vadd.f32 %v3770, %v3782
    %v3784 = vpop.f32.mrf.mxu0
    %3785 = vdwg.mxu0
    %3786 = vmatpush.bf16.msra.mxu0 %v2971
    %3787 = vmatpush.bf16.msra.mxu0 %v2963
    %3788 = vmatpush.bf16.msra.mxu0 %v2955
    %3789 = vmatpush.bf16.msra.mxu0 %v2947
    %3790 = vmatpush.bf16.msra.mxu0 %v2939
    %3791 = vmatpush.bf16.msra.mxu0 %v2931
    %3792 = vmatpush.bf16.msra.mxu0 %v2923
    %3793 = vmatpush.bf16.msra.mxu0 %v2915
    %3794 = vmatmul.bf16.gmra.mxu0 %v670
    %v3795 = vpop.f32.mrf.mxu0
    %v3796 = vadd.f32 %v3783, %v3795
    %v3797 = vpop.f32.mrf.mxu0
    %3798 = vdwg.mxu0
    %3799 = vmatpush.bf16.msra.mxu0 %v3035
    %3800 = vmatpush.bf16.msra.mxu0 %v3027
    %3801 = vmatpush.bf16.msra.mxu0 %v3019
    %3802 = vmatpush.bf16.msra.mxu0 %v3011
    %3803 = vmatpush.bf16.msra.mxu0 %v3003
    %3804 = vmatpush.bf16.msra.mxu0 %v2995
    %3805 = vmatpush.bf16.msra.mxu0 %v2987
    %3806 = vmatpush.bf16.msra.mxu0 %v2979
    %3807 = vmatmul.bf16.gmra.mxu0 %v671
    %v3808 = vpop.f32.mrf.mxu0
    %v3809 = vadd.f32 %v3796, %v3808
    %v3810 = vpop.f32.mrf.mxu0
    %3811 = vdwg.mxu0
    %3812 = vmatpush.bf16.msra.mxu0 %v3099
    %3813 = vmatpush.bf16.msra.mxu0 %v3091
    %3814 = vmatpush.bf16.msra.mxu0 %v3083
    %3815 = vmatpush.bf16.msra.mxu0 %v3075
    %3816 = vmatpush.bf16.msra.mxu0 %v3067
    %3817 = vmatpush.bf16.msra.mxu0 %v3059
    %3818 = vmatpush.bf16.msra.mxu0 %v3051
    %3819 = vmatpush.bf16.msra.mxu0 %v3043
    %3820 = vmatmul.bf16.gmra.mxu0 %v672
    %v3821 = vpop.f32.mrf.mxu0
    %v3822 = vadd.f32 %v3809, %v3821
    %v3823 = vpop.f32.mrf.mxu0
    %3824 = vdwg.mxu0
    %3825 = vmatpush.bf16.msra.mxu0 %v3163
    %3826 = vmatpush.bf16.msra.mxu0 %v3155
    %3827 = vmatpush.bf16.msra.mxu0 %v3147
    %3828 = vmatpush.bf16.msra.mxu0 %v3139
    %3829 = vmatpush.bf16.msra.mxu0 %v3131
    %3830 = vmatpush.bf16.msra.mxu0 %v3123
    %3831 = vmatpush.bf16.msra.mxu0 %v3115
    %3832 = vmatpush.bf16.msra.mxu0 %v3107
    %3833 = vmatmul.bf16.gmra.mxu0 %v673
    %v3834 = vpop.f32.mrf.mxu0
    %v3835 = vadd.f32 %v3822, %v3834
    %v3836 = vpop.f32.mrf.mxu0
    %3837 = vdwg.mxu0
    %3838 = vmatpush.bf16.msra.mxu0 %v3227
    %3839 = vmatpush.bf16.msra.mxu0 %v3219
    %3840 = vmatpush.bf16.msra.mxu0 %v3211
    %3841 = vmatpush.bf16.msra.mxu0 %v3203
    %3842 = vmatpush.bf16.msra.mxu0 %v3195
    %3843 = vmatpush.bf16.msra.mxu0 %v3187
    %3844 = vmatpush.bf16.msra.mxu0 %v3179
    %3845 = vmatpush.bf16.msra.mxu0 %v3171
    %3846 = vmatmul.bf16.gmra.mxu0 %v674
    %v3847 = vpop.f32.mrf.mxu0
    %v3848 = vadd.f32 %v3835, %v3847
    %v3849 = vpop.f32.mrf.mxu0
    %3850 = vdwg.mxu0
    %3851 = vmatpush.bf16.msra.mxu0 %v2780
    %3852 = vmatpush.bf16.msra.mxu0 %v2772
    %3853 = vmatpush.bf16.msra.mxu0 %v2764
    %3854 = vmatpush.bf16.msra.mxu0 %v2756
    %3855 = vmatpush.bf16.msra.mxu0 %v2748
    %3856 = vmatpush.bf16.msra.mxu0 %v2740
    %3857 = vmatpush.bf16.msra.mxu0 %v2732
    %3858 = vmatpush.bf16.msra.mxu0 %v2724
    %3859 = vmatmul.bf16.gmra.mxu0 %v667
    %v3860 = vpop.f32.mrf.mxu0
    %v3861 = vadd.f32 0.0, %v3860
    %v3862 = vpop.f32.mrf.mxu0
    %3863 = vdwg.mxu0
    %3864 = vmatpush.bf16.msra.mxu0 %v2844
    %3865 = vmatpush.bf16.msra.mxu0 %v2836
    %3866 = vmatpush.bf16.msra.mxu0 %v2828
    %3867 = vmatpush.bf16.msra.mxu0 %v2820
    %3868 = vmatpush.bf16.msra.mxu0 %v2812
    %3869 = vmatpush.bf16.msra.mxu0 %v2804
    %3870 = vmatpush.bf16.msra.mxu0 %v2796
    %3871 = vmatpush.bf16.msra.mxu0 %v2788
    %3872 = vmatmul.bf16.gmra.mxu0 %v668
    %v3873 = vpop.f32.mrf.mxu0
    %v3874 = vadd.f32 %v3861, %v3873
    %v3875 = vpop.f32.mrf.mxu0
    %3876 = vdwg.mxu0
    %3877 = vmatpush.bf16.msra.mxu0 %v2908
    %3878 = vmatpush.bf16.msra.mxu0 %v2900
    %3879 = vmatpush.bf16.msra.mxu0 %v2892
    %3880 = vmatpush.bf16.msra.mxu0 %v2884
    %3881 = vmatpush.bf16.msra.mxu0 %v2876
    %3882 = vmatpush.bf16.msra.mxu0 %v2868
    %3883 = vmatpush.bf16.msra.mxu0 %v2860
    %3884 = vmatpush.bf16.msra.mxu0 %v2852
    %3885 = vmatmul.bf16.gmra.mxu0 %v669
    %v3886 = vpop.f32.mrf.mxu0
    %v3887 = vadd.f32 %v3874, %v3886
    %v3888 = vpop.f32.mrf.mxu0
    %3889 = vdwg.mxu0
    %3890 = vmatpush.bf16.msra.mxu0 %v2972
    %3891 = vmatpush.bf16.msra.mxu0 %v2964
    %3892 = vmatpush.bf16.msra.mxu0 %v2956
    %3893 = vmatpush.bf16.msra.mxu0 %v2948
    %3894 = vmatpush.bf16.msra.mxu0 %v2940
    %3895 = vmatpush.bf16.msra.mxu0 %v2932
    %3896 = vmatpush.bf16.msra.mxu0 %v2924
    %3897 = vmatpush.bf16.msra.mxu0 %v2916
    %3898 = vmatmul.bf16.gmra.mxu0 %v670
    %v3899 = vpop.f32.mrf.mxu0
    %v3900 = vadd.f32 %v3887, %v3899
    %v3901 = vpop.f32.mrf.mxu0
    %3902 = vdwg.mxu0
    %3903 = vmatpush.bf16.msra.mxu0 %v3036
    %3904 = vmatpush.bf16.msra.mxu0 %v3028
    %3905 = vmatpush.bf16.msra.mxu0 %v3020
    %3906 = vmatpush.bf16.msra.mxu0 %v3012
    %3907 = vmatpush.bf16.msra.mxu0 %v3004
    %3908 = vmatpush.bf16.msra.mxu0 %v2996
    %3909 = vmatpush.bf16.msra.mxu0 %v2988
    %3910 = vmatpush.bf16.msra.mxu0 %v2980
    %3911 = vmatmul.bf16.gmra.mxu0 %v671
    %v3912 = vpop.f32.mrf.mxu0
    %v3913 = vadd.f32 %v3900, %v3912
    %v3914 = vpop.f32.mrf.mxu0
    %3915 = vdwg.mxu0
    %3916 = vmatpush.bf16.msra.mxu0 %v3100
    %3917 = vmatpush.bf16.msra.mxu0 %v3092
    %3918 = vmatpush.bf16.msra.mxu0 %v3084
    %3919 = vmatpush.bf16.msra.mxu0 %v3076
    %3920 = vmatpush.bf16.msra.mxu0 %v3068
    %3921 = vmatpush.bf16.msra.mxu0 %v3060
    %3922 = vmatpush.bf16.msra.mxu0 %v3052
    %3923 = vmatpush.bf16.msra.mxu0 %v3044
    %3924 = vmatmul.bf16.gmra.mxu0 %v672
    %v3925 = vpop.f32.mrf.mxu0
    %v3926 = vadd.f32 %v3913, %v3925
    %v3927 = vpop.f32.mrf.mxu0
    %3928 = vdwg.mxu0
    %3929 = vmatpush.bf16.msra.mxu0 %v3164
    %3930 = vmatpush.bf16.msra.mxu0 %v3156
    %3931 = vmatpush.bf16.msra.mxu0 %v3148
    %3932 = vmatpush.bf16.msra.mxu0 %v3140
    %3933 = vmatpush.bf16.msra.mxu0 %v3132
    %3934 = vmatpush.bf16.msra.mxu0 %v3124
    %3935 = vmatpush.bf16.msra.mxu0 %v3116
    %3936 = vmatpush.bf16.msra.mxu0 %v3108
    %3937 = vmatmul.bf16.gmra.mxu0 %v673
    %v3938 = vpop.f32.mrf.mxu0
    %v3939 = vadd.f32 %v3926, %v3938
    %v3940 = vpop.f32.mrf.mxu0
    %3941 = vdwg.mxu0
    %3942 = vmatpush.bf16.msra.mxu0 %v3228
    %3943 = vmatpush.bf16.msra.mxu0 %v3220
    %3944 = vmatpush.bf16.msra.mxu0 %v3212
    %3945 = vmatpush.bf16.msra.mxu0 %v3204
    %3946 = vmatpush.bf16.msra.mxu0 %v3196
    %3947 = vmatpush.bf16.msra.mxu0 %v3188
    %3948 = vmatpush.bf16.msra.mxu0 %v3180
    %3949 = vmatpush.bf16.msra.mxu0 %v3172
    %3950 = vmatmul.bf16.gmra.mxu0 %v674
    %v3951 = vpop.f32.mrf.mxu0
    %v3952 = vadd.f32 %v3939, %v3951
    %v3953 = vpop.f32.mrf.mxu0
    %3954 = vdwg.mxu0
    %3955 = vmatpush.bf16.msra.mxu0 %v2781
    %3956 = vmatpush.bf16.msra.mxu0 %v2773
    %3957 = vmatpush.bf16.msra.mxu0 %v2765
    %3958 = vmatpush.bf16.msra.mxu0 %v2757
    %3959 = vmatpush.bf16.msra.mxu0 %v2749
    %3960 = vmatpush.bf16.msra.mxu0 %v2741
    %3961 = vmatpush.bf16.msra.mxu0 %v2733
    %3962 = vmatpush.bf16.msra.mxu0 %v2725
    %3963 = vmatmul.bf16.gmra.mxu0 %v667
    %v3964 = vpop.f32.mrf.mxu0
    %v3965 = vadd.f32 0.0, %v3964
    %v3966 = vpop.f32.mrf.mxu0
    %3967 = vdwg.mxu0
    %3968 = vmatpush.bf16.msra.mxu0 %v2845
    %3969 = vmatpush.bf16.msra.mxu0 %v2837
    %3970 = vmatpush.bf16.msra.mxu0 %v2829
    %3971 = vmatpush.bf16.msra.mxu0 %v2821
    %3972 = vmatpush.bf16.msra.mxu0 %v2813
    %3973 = vmatpush.bf16.msra.mxu0 %v2805
    %3974 = vmatpush.bf16.msra.mxu0 %v2797
    %3975 = vmatpush.bf16.msra.mxu0 %v2789
    %3976 = vmatmul.bf16.gmra.mxu0 %v668
    %v3977 = vpop.f32.mrf.mxu0
    %v3978 = vadd.f32 %v3965, %v3977
    %v3979 = vpop.f32.mrf.mxu0
    %3980 = vdwg.mxu0
    %3981 = vmatpush.bf16.msra.mxu0 %v2909
    %3982 = vmatpush.bf16.msra.mxu0 %v2901
    %3983 = vmatpush.bf16.msra.mxu0 %v2893
    %3984 = vmatpush.bf16.msra.mxu0 %v2885
    %3985 = vmatpush.bf16.msra.mxu0 %v2877
    %3986 = vmatpush.bf16.msra.mxu0 %v2869
    %3987 = vmatpush.bf16.msra.mxu0 %v2861
    %3988 = vmatpush.bf16.msra.mxu0 %v2853
    %3989 = vmatmul.bf16.gmra.mxu0 %v669
    %v3990 = vpop.f32.mrf.mxu0
    %v3991 = vadd.f32 %v3978, %v3990
    %v3992 = vpop.f32.mrf.mxu0
    %3993 = vdwg.mxu0
    %3994 = vmatpush.bf16.msra.mxu0 %v2973
    %3995 = vmatpush.bf16.msra.mxu0 %v2965
    %3996 = vmatpush.bf16.msra.mxu0 %v2957
    %3997 = vmatpush.bf16.msra.mxu0 %v2949
    %3998 = vmatpush.bf16.msra.mxu0 %v2941
    %3999 = vmatpush.bf16.msra.mxu0 %v2933
    %4000 = vmatpush.bf16.msra.mxu0 %v2925
    %4001 = vmatpush.bf16.msra.mxu0 %v2917
    %4002 = vmatmul.bf16.gmra.mxu0 %v670
    %v4003 = vpop.f32.mrf.mxu0
    %v4004 = vadd.f32 %v3991, %v4003
    %v4005 = vpop.f32.mrf.mxu0
    %4006 = vdwg.mxu0
    %4007 = vmatpush.bf16.msra.mxu0 %v3037
    %4008 = vmatpush.bf16.msra.mxu0 %v3029
    %4009 = vmatpush.bf16.msra.mxu0 %v3021
    %4010 = vmatpush.bf16.msra.mxu0 %v3013
    %4011 = vmatpush.bf16.msra.mxu0 %v3005
    %4012 = vmatpush.bf16.msra.mxu0 %v2997
    %4013 = vmatpush.bf16.msra.mxu0 %v2989
    %4014 = vmatpush.bf16.msra.mxu0 %v2981
    %4015 = vmatmul.bf16.gmra.mxu0 %v671
    %v4016 = vpop.f32.mrf.mxu0
    %v4017 = vadd.f32 %v4004, %v4016
    %v4018 = vpop.f32.mrf.mxu0
    %4019 = vdwg.mxu0
    %4020 = vmatpush.bf16.msra.mxu0 %v3101
    %4021 = vmatpush.bf16.msra.mxu0 %v3093
    %4022 = vmatpush.bf16.msra.mxu0 %v3085
    %4023 = vmatpush.bf16.msra.mxu0 %v3077
    %4024 = vmatpush.bf16.msra.mxu0 %v3069
    %4025 = vmatpush.bf16.msra.mxu0 %v3061
    %4026 = vmatpush.bf16.msra.mxu0 %v3053
    %4027 = vmatpush.bf16.msra.mxu0 %v3045
    %4028 = vmatmul.bf16.gmra.mxu0 %v672
    %v4029 = vpop.f32.mrf.mxu0
    %v4030 = vadd.f32 %v4017, %v4029
    %v4031 = vpop.f32.mrf.mxu0
    %4032 = vdwg.mxu0
    %4033 = vmatpush.bf16.msra.mxu0 %v3165
    %4034 = vmatpush.bf16.msra.mxu0 %v3157
    %4035 = vmatpush.bf16.msra.mxu0 %v3149
    %4036 = vmatpush.bf16.msra.mxu0 %v3141
    %4037 = vmatpush.bf16.msra.mxu0 %v3133
    %4038 = vmatpush.bf16.msra.mxu0 %v3125
    %4039 = vmatpush.bf16.msra.mxu0 %v3117
    %4040 = vmatpush.bf16.msra.mxu0 %v3109
    %4041 = vmatmul.bf16.gmra.mxu0 %v673
    %v4042 = vpop.f32.mrf.mxu0
    %v4043 = vadd.f32 %v4030, %v4042
    %v4044 = vpop.f32.mrf.mxu0
    %4045 = vdwg.mxu0
    %4046 = vmatpush.bf16.msra.mxu0 %v3229
    %4047 = vmatpush.bf16.msra.mxu0 %v3221
    %4048 = vmatpush.bf16.msra.mxu0 %v3213
    %4049 = vmatpush.bf16.msra.mxu0 %v3205
    %4050 = vmatpush.bf16.msra.mxu0 %v3197
    %4051 = vmatpush.bf16.msra.mxu0 %v3189
    %4052 = vmatpush.bf16.msra.mxu0 %v3181
    %4053 = vmatpush.bf16.msra.mxu0 %v3173
    %4054 = vmatmul.bf16.gmra.mxu0 %v674
    %v4055 = vpop.f32.mrf.mxu0
    %v4056 = vadd.f32 %v4043, %v4055
    %v4057 = vpop.f32.mrf.mxu0
    %4058 = vdwg.mxu0
    %4059 = vmatpush.bf16.msra.mxu0 %v2782
    %4060 = vmatpush.bf16.msra.mxu0 %v2774
    %4061 = vmatpush.bf16.msra.mxu0 %v2766
    %4062 = vmatpush.bf16.msra.mxu0 %v2758
    %4063 = vmatpush.bf16.msra.mxu0 %v2750
    %4064 = vmatpush.bf16.msra.mxu0 %v2742
    %4065 = vmatpush.bf16.msra.mxu0 %v2734
    %4066 = vmatpush.bf16.msra.mxu0 %v2726
    %4067 = vmatmul.bf16.gmra.mxu0 %v667
    %v4068 = vpop.f32.mrf.mxu0
    %v4069 = vadd.f32 0.0, %v4068
    %v4070 = vpop.f32.mrf.mxu0
    %4071 = vdwg.mxu0
    %4072 = vmatpush.bf16.msra.mxu0 %v2846
    %4073 = vmatpush.bf16.msra.mxu0 %v2838
    %4074 = vmatpush.bf16.msra.mxu0 %v2830
    %4075 = vmatpush.bf16.msra.mxu0 %v2822
    %4076 = vmatpush.bf16.msra.mxu0 %v2814
    %4077 = vmatpush.bf16.msra.mxu0 %v2806
    %4078 = vmatpush.bf16.msra.mxu0 %v2798
    %4079 = vmatpush.bf16.msra.mxu0 %v2790
    %4080 = vmatmul.bf16.gmra.mxu0 %v668
    %v4081 = vpop.f32.mrf.mxu0
    %v4082 = vadd.f32 %v4069, %v4081
    %v4083 = vpop.f32.mrf.mxu0
    %4084 = vdwg.mxu0
    %4085 = vmatpush.bf16.msra.mxu0 %v2910
    %4086 = vmatpush.bf16.msra.mxu0 %v2902
    %4087 = vmatpush.bf16.msra.mxu0 %v2894
    %4088 = vmatpush.bf16.msra.mxu0 %v2886
    %4089 = vmatpush.bf16.msra.mxu0 %v2878
    %4090 = vmatpush.bf16.msra.mxu0 %v2870
    %4091 = vmatpush.bf16.msra.mxu0 %v2862
    %4092 = vmatpush.bf16.msra.mxu0 %v2854
    %4093 = vmatmul.bf16.gmra.mxu0 %v669
    %v4094 = vpop.f32.mrf.mxu0
    %v4095 = vadd.f32 %v4082, %v4094
    %v4096 = vpop.f32.mrf.mxu0
    %4097 = vdwg.mxu0
    %4098 = vmatpush.bf16.msra.mxu0 %v2974
    %4099 = vmatpush.bf16.msra.mxu0 %v2966
    %4100 = vmatpush.bf16.msra.mxu0 %v2958
    %4101 = vmatpush.bf16.msra.mxu0 %v2950
    %4102 = vmatpush.bf16.msra.mxu0 %v2942
    %4103 = vmatpush.bf16.msra.mxu0 %v2934
    %4104 = vmatpush.bf16.msra.mxu0 %v2926
    %4105 = vmatpush.bf16.msra.mxu0 %v2918
    %4106 = vmatmul.bf16.gmra.mxu0 %v670
    %v4107 = vpop.f32.mrf.mxu0
    %v4108 = vadd.f32 %v4095, %v4107
    %v4109 = vpop.f32.mrf.mxu0
    %4110 = vdwg.mxu0
    %4111 = vmatpush.bf16.msra.mxu0 %v3038
    %4112 = vmatpush.bf16.msra.mxu0 %v3030
    %4113 = vmatpush.bf16.msra.mxu0 %v3022
    %4114 = vmatpush.bf16.msra.mxu0 %v3014
    %4115 = vmatpush.bf16.msra.mxu0 %v3006
    %4116 = vmatpush.bf16.msra.mxu0 %v2998
    %4117 = vmatpush.bf16.msra.mxu0 %v2990
    %4118 = vmatpush.bf16.msra.mxu0 %v2982
    %4119 = vmatmul.bf16.gmra.mxu0 %v671
    %v4120 = vpop.f32.mrf.mxu0
    %v4121 = vadd.f32 %v4108, %v4120
    %v4122 = vpop.f32.mrf.mxu0
    %4123 = vdwg.mxu0
    %4124 = vmatpush.bf16.msra.mxu0 %v3102
    %4125 = vmatpush.bf16.msra.mxu0 %v3094
    %4126 = vmatpush.bf16.msra.mxu0 %v3086
    %4127 = vmatpush.bf16.msra.mxu0 %v3078
    %4128 = vmatpush.bf16.msra.mxu0 %v3070
    %4129 = vmatpush.bf16.msra.mxu0 %v3062
    %4130 = vmatpush.bf16.msra.mxu0 %v3054
    %4131 = vmatpush.bf16.msra.mxu0 %v3046
    %4132 = vmatmul.bf16.gmra.mxu0 %v672
    %v4133 = vpop.f32.mrf.mxu0
    %v4134 = vadd.f32 %v4121, %v4133
    %v4135 = vpop.f32.mrf.mxu0
    %4136 = vdwg.mxu0
    %4137 = vmatpush.bf16.msra.mxu0 %v3166
    %4138 = vmatpush.bf16.msra.mxu0 %v3158
    %4139 = vmatpush.bf16.msra.mxu0 %v3150
    %4140 = vmatpush.bf16.msra.mxu0 %v3142
    %4141 = vmatpush.bf16.msra.mxu0 %v3134
    %4142 = vmatpush.bf16.msra.mxu0 %v3126
    %4143 = vmatpush.bf16.msra.mxu0 %v3118
    %4144 = vmatpush.bf16.msra.mxu0 %v3110
    %4145 = vmatmul.bf16.gmra.mxu0 %v673
    %v4146 = vpop.f32.mrf.mxu0
    %v4147 = vadd.f32 %v4134, %v4146
    %v4148 = vpop.f32.mrf.mxu0
    %4149 = vdwg.mxu0
    %4150 = vmatpush.bf16.msra.mxu0 %v3230
    %4151 = vmatpush.bf16.msra.mxu0 %v3222
    %4152 = vmatpush.bf16.msra.mxu0 %v3214
    %4153 = vmatpush.bf16.msra.mxu0 %v3206
    %4154 = vmatpush.bf16.msra.mxu0 %v3198
    %4155 = vmatpush.bf16.msra.mxu0 %v3190
    %4156 = vmatpush.bf16.msra.mxu0 %v3182
    %4157 = vmatpush.bf16.msra.mxu0 %v3174
    %4158 = vmatmul.bf16.gmra.mxu0 %v674
    %v4159 = vpop.f32.mrf.mxu0
    %v4160 = vadd.f32 %v4147, %v4159
    %v4161 = vpop.f32.mrf.mxu0
    %4162 = vdwg.mxu0
    %4163 = vmatpush.bf16.msra.mxu0 %v2783
    %4164 = vmatpush.bf16.msra.mxu0 %v2775
    %4165 = vmatpush.bf16.msra.mxu0 %v2767
    %4166 = vmatpush.bf16.msra.mxu0 %v2759
    %4167 = vmatpush.bf16.msra.mxu0 %v2751
    %4168 = vmatpush.bf16.msra.mxu0 %v2743
    %4169 = vmatpush.bf16.msra.mxu0 %v2735
    %4170 = vmatpush.bf16.msra.mxu0 %v2727
    %4171 = vmatmul.bf16.gmra.mxu0 %v667
    %v4172 = vpop.f32.mrf.mxu0
    %v4173 = vadd.f32 0.0, %v4172
    %v4174 = vpop.f32.mrf.mxu0
    %4175 = vdwg.mxu0
    %4176 = vmatpush.bf16.msra.mxu0 %v2847
    %4177 = vmatpush.bf16.msra.mxu0 %v2839
    %4178 = vmatpush.bf16.msra.mxu0 %v2831
    %4179 = vmatpush.bf16.msra.mxu0 %v2823
    %4180 = vmatpush.bf16.msra.mxu0 %v2815
    %4181 = vmatpush.bf16.msra.mxu0 %v2807
    %4182 = vmatpush.bf16.msra.mxu0 %v2799
    %4183 = vmatpush.bf16.msra.mxu0 %v2791
    %4184 = vmatmul.bf16.gmra.mxu0 %v668
    %v4185 = vpop.f32.mrf.mxu0
    %v4186 = vadd.f32 %v4173, %v4185
    %v4187 = vpop.f32.mrf.mxu0
    %4188 = vdwg.mxu0
    %4189 = vmatpush.bf16.msra.mxu0 %v2911
    %4190 = vmatpush.bf16.msra.mxu0 %v2903
    %4191 = vmatpush.bf16.msra.mxu0 %v2895
    %4192 = vmatpush.bf16.msra.mxu0 %v2887
    %4193 = vmatpush.bf16.msra.mxu0 %v2879
    %4194 = vmatpush.bf16.msra.mxu0 %v2871
    %4195 = vmatpush.bf16.msra.mxu0 %v2863
    %4196 = vmatpush.bf16.msra.mxu0 %v2855
    %4197 = vmatmul.bf16.gmra.mxu0 %v669
    %v4198 = vpop.f32.mrf.mxu0
    %v4199 = vadd.f32 %v4186, %v4198
    %v4200 = vpop.f32.mrf.mxu0
    %4201 = vdwg.mxu0
    %4202 = vmatpush.bf16.msra.mxu0 %v2975
    %4203 = vmatpush.bf16.msra.mxu0 %v2967
    %4204 = vmatpush.bf16.msra.mxu0 %v2959
    %4205 = vmatpush.bf16.msra.mxu0 %v2951
    %4206 = vmatpush.bf16.msra.mxu0 %v2943
    %4207 = vmatpush.bf16.msra.mxu0 %v2935
    %4208 = vmatpush.bf16.msra.mxu0 %v2927
    %4209 = vmatpush.bf16.msra.mxu0 %v2919
    %4210 = vmatmul.bf16.gmra.mxu0 %v670
    %v4211 = vpop.f32.mrf.mxu0
    %v4212 = vadd.f32 %v4199, %v4211
    %v4213 = vpop.f32.mrf.mxu0
    %4214 = vdwg.mxu0
    %4215 = vmatpush.bf16.msra.mxu0 %v3039
    %4216 = vmatpush.bf16.msra.mxu0 %v3031
    %4217 = vmatpush.bf16.msra.mxu0 %v3023
    %4218 = vmatpush.bf16.msra.mxu0 %v3015
    %4219 = vmatpush.bf16.msra.mxu0 %v3007
    %4220 = vmatpush.bf16.msra.mxu0 %v2999
    %4221 = vmatpush.bf16.msra.mxu0 %v2991
    %4222 = vmatpush.bf16.msra.mxu0 %v2983
    %4223 = vmatmul.bf16.gmra.mxu0 %v671
    %v4224 = vpop.f32.mrf.mxu0
    %v4225 = vadd.f32 %v4212, %v4224
    %v4226 = vpop.f32.mrf.mxu0
    %4227 = vdwg.mxu0
    %4228 = vmatpush.bf16.msra.mxu0 %v3103
    %4229 = vmatpush.bf16.msra.mxu0 %v3095
    %4230 = vmatpush.bf16.msra.mxu0 %v3087
    %4231 = vmatpush.bf16.msra.mxu0 %v3079
    %4232 = vmatpush.bf16.msra.mxu0 %v3071
    %4233 = vmatpush.bf16.msra.mxu0 %v3063
    %4234 = vmatpush.bf16.msra.mxu0 %v3055
    %4235 = vmatpush.bf16.msra.mxu0 %v3047
    %4236 = vmatmul.bf16.gmra.mxu0 %v672
    %v4237 = vpop.f32.mrf.mxu0
    %v4238 = vadd.f32 %v4225, %v4237
    %v4239 = vpop.f32.mrf.mxu0
    %4240 = vdwg.mxu0
    %4241 = vmatpush.bf16.msra.mxu0 %v3167
    %4242 = vmatpush.bf16.msra.mxu0 %v3159
    %4243 = vmatpush.bf16.msra.mxu0 %v3151
    %4244 = vmatpush.bf16.msra.mxu0 %v3143
    %4245 = vmatpush.bf16.msra.mxu0 %v3135
    %4246 = vmatpush.bf16.msra.mxu0 %v3127
    %4247 = vmatpush.bf16.msra.mxu0 %v3119
    %4248 = vmatpush.bf16.msra.mxu0 %v3111
    %4249 = vmatmul.bf16.gmra.mxu0 %v673
    %v4250 = vpop.f32.mrf.mxu0
    %v4251 = vadd.f32 %v4238, %v4250
    %v4252 = vpop.f32.mrf.mxu0
    %4253 = vdwg.mxu0
    %4254 = vmatpush.bf16.msra.mxu0 %v3231
    %4255 = vmatpush.bf16.msra.mxu0 %v3223
    %4256 = vmatpush.bf16.msra.mxu0 %v3215
    %4257 = vmatpush.bf16.msra.mxu0 %v3207
    %4258 = vmatpush.bf16.msra.mxu0 %v3199
    %4259 = vmatpush.bf16.msra.mxu0 %v3191
    %4260 = vmatpush.bf16.msra.mxu0 %v3183
    %4261 = vmatpush.bf16.msra.mxu0 %v3175
    %4262 = vmatmul.bf16.gmra.mxu0 %v674
    %v4263 = vpop.f32.mrf.mxu0
    %v4264 = vadd.f32 %v4251, %v4263
    %v4265 = vpop.f32.mrf.mxu0
    %4266 = vdwg.mxu0
    %4267 = vmatpush.bf16.msra.mxu0 %v2784
    %4268 = vmatpush.bf16.msra.mxu0 %v2776
    %4269 = vmatpush.bf16.msra.mxu0 %v2768
    %4270 = vmatpush.bf16.msra.mxu0 %v2760
    %4271 = vmatpush.bf16.msra.mxu0 %v2752
    %4272 = vmatpush.bf16.msra.mxu0 %v2744
    %4273 = vmatpush.bf16.msra.mxu0 %v2736
    %4274 = vmatpush.bf16.msra.mxu0 %v2728
    %4275 = vmatmul.bf16.gmra.mxu0 %v667
    %v4276 = vpop.f32.mrf.mxu0
    %v4277 = vadd.f32 0.0, %v4276
    %v4278 = vpop.f32.mrf.mxu0
    %4279 = vdwg.mxu0
    %4280 = vmatpush.bf16.msra.mxu0 %v2848
    %4281 = vmatpush.bf16.msra.mxu0 %v2840
    %4282 = vmatpush.bf16.msra.mxu0 %v2832
    %4283 = vmatpush.bf16.msra.mxu0 %v2824
    %4284 = vmatpush.bf16.msra.mxu0 %v2816
    %4285 = vmatpush.bf16.msra.mxu0 %v2808
    %4286 = vmatpush.bf16.msra.mxu0 %v2800
    %4287 = vmatpush.bf16.msra.mxu0 %v2792
    %4288 = vmatmul.bf16.gmra.mxu0 %v668
    %v4289 = vpop.f32.mrf.mxu0
    %v4290 = vadd.f32 %v4277, %v4289
    %v4291 = vpop.f32.mrf.mxu0
    %4292 = vdwg.mxu0
    %4293 = vmatpush.bf16.msra.mxu0 %v2912
    %4294 = vmatpush.bf16.msra.mxu0 %v2904
    %4295 = vmatpush.bf16.msra.mxu0 %v2896
    %4296 = vmatpush.bf16.msra.mxu0 %v2888
    %4297 = vmatpush.bf16.msra.mxu0 %v2880
    %4298 = vmatpush.bf16.msra.mxu0 %v2872
    %4299 = vmatpush.bf16.msra.mxu0 %v2864
    %4300 = vmatpush.bf16.msra.mxu0 %v2856
    %4301 = vmatmul.bf16.gmra.mxu0 %v669
    %v4302 = vpop.f32.mrf.mxu0
    %v4303 = vadd.f32 %v4290, %v4302
    %v4304 = vpop.f32.mrf.mxu0
    %4305 = vdwg.mxu0
    %4306 = vmatpush.bf16.msra.mxu0 %v2976
    %4307 = vmatpush.bf16.msra.mxu0 %v2968
    %4308 = vmatpush.bf16.msra.mxu0 %v2960
    %4309 = vmatpush.bf16.msra.mxu0 %v2952
    %4310 = vmatpush.bf16.msra.mxu0 %v2944
    %4311 = vmatpush.bf16.msra.mxu0 %v2936
    %4312 = vmatpush.bf16.msra.mxu0 %v2928
    %4313 = vmatpush.bf16.msra.mxu0 %v2920
    %4314 = vmatmul.bf16.gmra.mxu0 %v670
    %v4315 = vpop.f32.mrf.mxu0
    %v4316 = vadd.f32 %v4303, %v4315
    %v4317 = vpop.f32.mrf.mxu0
    %4318 = vdwg.mxu0
    %4319 = vmatpush.bf16.msra.mxu0 %v3040
    %4320 = vmatpush.bf16.msra.mxu0 %v3032
    %4321 = vmatpush.bf16.msra.mxu0 %v3024
    %4322 = vmatpush.bf16.msra.mxu0 %v3016
    %4323 = vmatpush.bf16.msra.mxu0 %v3008
    %4324 = vmatpush.bf16.msra.mxu0 %v3000
    %4325 = vmatpush.bf16.msra.mxu0 %v2992
    %4326 = vmatpush.bf16.msra.mxu0 %v2984
    %4327 = vmatmul.bf16.gmra.mxu0 %v671
    %v4328 = vpop.f32.mrf.mxu0
    %v4329 = vadd.f32 %v4316, %v4328
    %v4330 = vpop.f32.mrf.mxu0
    %4331 = vdwg.mxu0
    %4332 = vmatpush.bf16.msra.mxu0 %v3104
    %4333 = vmatpush.bf16.msra.mxu0 %v3096
    %4334 = vmatpush.bf16.msra.mxu0 %v3088
    %4335 = vmatpush.bf16.msra.mxu0 %v3080
    %4336 = vmatpush.bf16.msra.mxu0 %v3072
    %4337 = vmatpush.bf16.msra.mxu0 %v3064
    %4338 = vmatpush.bf16.msra.mxu0 %v3056
    %4339 = vmatpush.bf16.msra.mxu0 %v3048
    %4340 = vmatmul.bf16.gmra.mxu0 %v672
    %v4341 = vpop.f32.mrf.mxu0
    %v4342 = vadd.f32 %v4329, %v4341
    %v4343 = vpop.f32.mrf.mxu0
    %4344 = vdwg.mxu0
    %4345 = vmatpush.bf16.msra.mxu0 %v3168
    %4346 = vmatpush.bf16.msra.mxu0 %v3160
    %4347 = vmatpush.bf16.msra.mxu0 %v3152
    %4348 = vmatpush.bf16.msra.mxu0 %v3144
    %4349 = vmatpush.bf16.msra.mxu0 %v3136
    %4350 = vmatpush.bf16.msra.mxu0 %v3128
    %4351 = vmatpush.bf16.msra.mxu0 %v3120
    %4352 = vmatpush.bf16.msra.mxu0 %v3112
    %4353 = vmatmul.bf16.gmra.mxu0 %v673
    %v4354 = vpop.f32.mrf.mxu0
    %v4355 = vadd.f32 %v4342, %v4354
    %v4356 = vpop.f32.mrf.mxu0
    %4357 = vdwg.mxu0
    %4358 = vmatpush.bf16.msra.mxu0 %v3232
    %4359 = vmatpush.bf16.msra.mxu0 %v3224
    %4360 = vmatpush.bf16.msra.mxu0 %v3216
    %4361 = vmatpush.bf16.msra.mxu0 %v3208
    %4362 = vmatpush.bf16.msra.mxu0 %v3200
    %4363 = vmatpush.bf16.msra.mxu0 %v3192
    %4364 = vmatpush.bf16.msra.mxu0 %v3184
    %4365 = vmatpush.bf16.msra.mxu0 %v3176
    %4366 = vmatmul.bf16.gmra.mxu0 %v674
    %v4367 = vpop.f32.mrf.mxu0
    %v4368 = vadd.f32 %v4355, %v4367
    %v4369 = vpop.f32.mrf.mxu0
    %4370 = vdwg.mxu0
    %4371 = vmatpush.bf16.msra.mxu0 %v2785
    %4372 = vmatpush.bf16.msra.mxu0 %v2777
    %4373 = vmatpush.bf16.msra.mxu0 %v2769
    %4374 = vmatpush.bf16.msra.mxu0 %v2761
    %4375 = vmatpush.bf16.msra.mxu0 %v2753
    %4376 = vmatpush.bf16.msra.mxu0 %v2745
    %4377 = vmatpush.bf16.msra.mxu0 %v2737
    %4378 = vmatpush.bf16.msra.mxu0 %v2729
    %4379 = vmatmul.bf16.gmra.mxu0 %v667
    %v4380 = vpop.f32.mrf.mxu0
    %v4381 = vadd.f32 0.0, %v4380
    %v4382 = vpop.f32.mrf.mxu0
    %4383 = vdwg.mxu0
    %4384 = vmatpush.bf16.msra.mxu0 %v2849
    %4385 = vmatpush.bf16.msra.mxu0 %v2841
    %4386 = vmatpush.bf16.msra.mxu0 %v2833
    %4387 = vmatpush.bf16.msra.mxu0 %v2825
    %4388 = vmatpush.bf16.msra.mxu0 %v2817
    %4389 = vmatpush.bf16.msra.mxu0 %v2809
    %4390 = vmatpush.bf16.msra.mxu0 %v2801
    %4391 = vmatpush.bf16.msra.mxu0 %v2793
    %4392 = vmatmul.bf16.gmra.mxu0 %v668
    %v4393 = vpop.f32.mrf.mxu0
    %v4394 = vadd.f32 %v4381, %v4393
    %v4395 = vpop.f32.mrf.mxu0
    %4396 = vdwg.mxu0
    %4397 = vmatpush.bf16.msra.mxu0 %v2913
    %4398 = vmatpush.bf16.msra.mxu0 %v2905
    %4399 = vmatpush.bf16.msra.mxu0 %v2897
    %4400 = vmatpush.bf16.msra.mxu0 %v2889
    %4401 = vmatpush.bf16.msra.mxu0 %v2881
    %4402 = vmatpush.bf16.msra.mxu0 %v2873
    %4403 = vmatpush.bf16.msra.mxu0 %v2865
    %4404 = vmatpush.bf16.msra.mxu0 %v2857
    %4405 = vmatmul.bf16.gmra.mxu0 %v669
    %v4406 = vpop.f32.mrf.mxu0
    %v4407 = vadd.f32 %v4394, %v4406
    %v4408 = vpop.f32.mrf.mxu0
    %4409 = vdwg.mxu0
    %4410 = vmatpush.bf16.msra.mxu0 %v2977
    %4411 = vmatpush.bf16.msra.mxu0 %v2969
    %4412 = vmatpush.bf16.msra.mxu0 %v2961
    %4413 = vmatpush.bf16.msra.mxu0 %v2953
    %4414 = vmatpush.bf16.msra.mxu0 %v2945
    %4415 = vmatpush.bf16.msra.mxu0 %v2937
    %4416 = vmatpush.bf16.msra.mxu0 %v2929
    %4417 = vmatpush.bf16.msra.mxu0 %v2921
    %4418 = vmatmul.bf16.gmra.mxu0 %v670
    %v4419 = vpop.f32.mrf.mxu0
    %v4420 = vadd.f32 %v4407, %v4419
    %v4421 = vpop.f32.mrf.mxu0
    %4422 = vdwg.mxu0
    %4423 = vmatpush.bf16.msra.mxu0 %v3041
    %4424 = vmatpush.bf16.msra.mxu0 %v3033
    %4425 = vmatpush.bf16.msra.mxu0 %v3025
    %4426 = vmatpush.bf16.msra.mxu0 %v3017
    %4427 = vmatpush.bf16.msra.mxu0 %v3009
    %4428 = vmatpush.bf16.msra.mxu0 %v3001
    %4429 = vmatpush.bf16.msra.mxu0 %v2993
    %4430 = vmatpush.bf16.msra.mxu0 %v2985
    %4431 = vmatmul.bf16.gmra.mxu0 %v671
    %v4432 = vpop.f32.mrf.mxu0
    %v4433 = vadd.f32 %v4420, %v4432
    %v4434 = vpop.f32.mrf.mxu0
    %4435 = vdwg.mxu0
    %4436 = vmatpush.bf16.msra.mxu0 %v3105
    %4437 = vmatpush.bf16.msra.mxu0 %v3097
    %4438 = vmatpush.bf16.msra.mxu0 %v3089
    %4439 = vmatpush.bf16.msra.mxu0 %v3081
    %4440 = vmatpush.bf16.msra.mxu0 %v3073
    %4441 = vmatpush.bf16.msra.mxu0 %v3065
    %4442 = vmatpush.bf16.msra.mxu0 %v3057
    %4443 = vmatpush.bf16.msra.mxu0 %v3049
    %4444 = vmatmul.bf16.gmra.mxu0 %v672
    %v4445 = vpop.f32.mrf.mxu0
    %v4446 = vadd.f32 %v4433, %v4445
    %v4447 = vpop.f32.mrf.mxu0
    %4448 = vdwg.mxu0
    %4449 = vmatpush.bf16.msra.mxu0 %v3169
    %4450 = vmatpush.bf16.msra.mxu0 %v3161
    %4451 = vmatpush.bf16.msra.mxu0 %v3153
    %4452 = vmatpush.bf16.msra.mxu0 %v3145
    %4453 = vmatpush.bf16.msra.mxu0 %v3137
    %4454 = vmatpush.bf16.msra.mxu0 %v3129
    %4455 = vmatpush.bf16.msra.mxu0 %v3121
    %4456 = vmatpush.bf16.msra.mxu0 %v3113
    %4457 = vmatmul.bf16.gmra.mxu0 %v673
    %v4458 = vpop.f32.mrf.mxu0
    %v4459 = vadd.f32 %v4446, %v4458
    %v4460 = vpop.f32.mrf.mxu0
    %4461 = vdwg.mxu0
    %4462 = vmatpush.bf16.msra.mxu0 %v3233
    %4463 = vmatpush.bf16.msra.mxu0 %v3225
    %4464 = vmatpush.bf16.msra.mxu0 %v3217
    %4465 = vmatpush.bf16.msra.mxu0 %v3209
    %4466 = vmatpush.bf16.msra.mxu0 %v3201
    %4467 = vmatpush.bf16.msra.mxu0 %v3193
    %4468 = vmatpush.bf16.msra.mxu0 %v3185
    %4469 = vmatpush.bf16.msra.mxu0 %v3177
    %4470 = vmatmul.bf16.gmra.mxu0 %v674
    %v4471 = vpop.f32.mrf.mxu0
    %v4472 = vadd.f32 %v4459, %v4471
    %v4473 = vpop.f32.mrf.mxu0
    %4474 = vdwg.mxu0
    %4475 = vmatpush.bf16.msra.mxu0 %v2786
    %4476 = vmatpush.bf16.msra.mxu0 %v2778
    %4477 = vmatpush.bf16.msra.mxu0 %v2770
    %4478 = vmatpush.bf16.msra.mxu0 %v2762
    %4479 = vmatpush.bf16.msra.mxu0 %v2754
    %4480 = vmatpush.bf16.msra.mxu0 %v2746
    %4481 = vmatpush.bf16.msra.mxu0 %v2738
    %4482 = vmatpush.bf16.msra.mxu0 %v2730
    %4483 = vmatmul.bf16.gmra.mxu0 %v667
    %v4484 = vpop.f32.mrf.mxu0
    %v4485 = vadd.f32 0.0, %v4484
    %v4486 = vpop.f32.mrf.mxu0
    %4487 = vdwg.mxu0
    %4488 = vmatpush.bf16.msra.mxu0 %v2850
    %4489 = vmatpush.bf16.msra.mxu0 %v2842
    %4490 = vmatpush.bf16.msra.mxu0 %v2834
    %4491 = vmatpush.bf16.msra.mxu0 %v2826
    %4492 = vmatpush.bf16.msra.mxu0 %v2818
    %4493 = vmatpush.bf16.msra.mxu0 %v2810
    %4494 = vmatpush.bf16.msra.mxu0 %v2802
    %4495 = vmatpush.bf16.msra.mxu0 %v2794
    %4496 = vmatmul.bf16.gmra.mxu0 %v668
    %v4497 = vpop.f32.mrf.mxu0
    %v4498 = vadd.f32 %v4485, %v4497
    %v4499 = vpop.f32.mrf.mxu0
    %4500 = vdwg.mxu0
    %4501 = vmatpush.bf16.msra.mxu0 %v2914
    %4502 = vmatpush.bf16.msra.mxu0 %v2906
    %4503 = vmatpush.bf16.msra.mxu0 %v2898
    %4504 = vmatpush.bf16.msra.mxu0 %v2890
    %4505 = vmatpush.bf16.msra.mxu0 %v2882
    %4506 = vmatpush.bf16.msra.mxu0 %v2874
    %4507 = vmatpush.bf16.msra.mxu0 %v2866
    %4508 = vmatpush.bf16.msra.mxu0 %v2858
    %4509 = vmatmul.bf16.gmra.mxu0 %v669
    %v4510 = vpop.f32.mrf.mxu0
    %v4511 = vadd.f32 %v4498, %v4510
    %v4512 = vpop.f32.mrf.mxu0
    %4513 = vdwg.mxu0
    %4514 = vmatpush.bf16.msra.mxu0 %v2978
    %4515 = vmatpush.bf16.msra.mxu0 %v2970
    %4516 = vmatpush.bf16.msra.mxu0 %v2962
    %4517 = vmatpush.bf16.msra.mxu0 %v2954
    %4518 = vmatpush.bf16.msra.mxu0 %v2946
    %4519 = vmatpush.bf16.msra.mxu0 %v2938
    %4520 = vmatpush.bf16.msra.mxu0 %v2930
    %4521 = vmatpush.bf16.msra.mxu0 %v2922
    %4522 = vmatmul.bf16.gmra.mxu0 %v670
    %v4523 = vpop.f32.mrf.mxu0
    %v4524 = vadd.f32 %v4511, %v4523
    %v4525 = vpop.f32.mrf.mxu0
    %4526 = vdwg.mxu0
    %4527 = vmatpush.bf16.msra.mxu0 %v3042
    %4528 = vmatpush.bf16.msra.mxu0 %v3034
    %4529 = vmatpush.bf16.msra.mxu0 %v3026
    %4530 = vmatpush.bf16.msra.mxu0 %v3018
    %4531 = vmatpush.bf16.msra.mxu0 %v3010
    %4532 = vmatpush.bf16.msra.mxu0 %v3002
    %4533 = vmatpush.bf16.msra.mxu0 %v2994
    %4534 = vmatpush.bf16.msra.mxu0 %v2986
    %4535 = vmatmul.bf16.gmra.mxu0 %v671
    %v4536 = vpop.f32.mrf.mxu0
    %v4537 = vadd.f32 %v4524, %v4536
    %v4538 = vpop.f32.mrf.mxu0
    %4539 = vdwg.mxu0
    %4540 = vmatpush.bf16.msra.mxu0 %v3106
    %4541 = vmatpush.bf16.msra.mxu0 %v3098
    %4542 = vmatpush.bf16.msra.mxu0 %v3090
    %4543 = vmatpush.bf16.msra.mxu0 %v3082
    %4544 = vmatpush.bf16.msra.mxu0 %v3074
    %4545 = vmatpush.bf16.msra.mxu0 %v3066
    %4546 = vmatpush.bf16.msra.mxu0 %v3058
    %4547 = vmatpush.bf16.msra.mxu0 %v3050
    %4548 = vmatmul.bf16.gmra.mxu0 %v672
    %v4549 = vpop.f32.mrf.mxu0
    %v4550 = vadd.f32 %v4537, %v4549
    %v4551 = vpop.f32.mrf.mxu0
    %4552 = vdwg.mxu0
    %4553 = vmatpush.bf16.msra.mxu0 %v3170
    %4554 = vmatpush.bf16.msra.mxu0 %v3162
    %4555 = vmatpush.bf16.msra.mxu0 %v3154
    %4556 = vmatpush.bf16.msra.mxu0 %v3146
    %4557 = vmatpush.bf16.msra.mxu0 %v3138
    %4558 = vmatpush.bf16.msra.mxu0 %v3130
    %4559 = vmatpush.bf16.msra.mxu0 %v3122
    %4560 = vmatpush.bf16.msra.mxu0 %v3114
    %4561 = vmatmul.bf16.gmra.mxu0 %v673
    %v4562 = vpop.f32.mrf.mxu0
    %v4563 = vadd.f32 %v4550, %v4562
    %v4564 = vpop.f32.mrf.mxu0
    %4565 = vdwg.mxu0
    %4566 = vmatpush.bf16.msra.mxu0 %v3234
    %4567 = vmatpush.bf16.msra.mxu0 %v3226
    %4568 = vmatpush.bf16.msra.mxu0 %v3218
    %4569 = vmatpush.bf16.msra.mxu0 %v3210
    %4570 = vmatpush.bf16.msra.mxu0 %v3202
    %4571 = vmatpush.bf16.msra.mxu0 %v3194
    %4572 = vmatpush.bf16.msra.mxu0 %v3186
    %4573 = vmatpush.bf16.msra.mxu0 %v3178
    %4574 = vmatmul.bf16.gmra.mxu0 %v674
    %v4575 = vpop.f32.mrf.mxu0
    %v4576 = vadd.f32 %v4563, %v4575
    %v4577 = vpop.f32.mrf.mxu0
    %4578 = vdwg.mxu0
    %v5091 = vunpack.c.l.b16 %v155
    %v5092 = vunpack.c.h.b16 %v155
    %v5093 = vunpack.c.l.b16 %v156
    %v5094 = vunpack.c.h.b16 %v156
    %v5095 = vunpack.c.l.b16 %v157
    %v5096 = vunpack.c.h.b16 %v157
    %v5097 = vunpack.c.l.b16 %v158
    %v5098 = vunpack.c.h.b16 %v158
    %v5099 = vunpack.c.l.b16 %v159
    %v5100 = vunpack.c.h.b16 %v159
    %v5101 = vunpack.c.l.b16 %v160
    %v5102 = vunpack.c.h.b16 %v160
    %v5103 = vunpack.c.l.b16 %v161
    %v5104 = vunpack.c.h.b16 %v161
    %v5105 = vunpack.c.l.b16 %v162
    %v5106 = vunpack.c.h.b16 %v162
    %v5107 = vunpack.c.l.b16 %v163
    %v5108 = vunpack.c.h.b16 %v163
    %v5109 = vunpack.c.l.b16 %v164
    %v5110 = vunpack.c.h.b16 %v164
    %v5111 = vunpack.c.l.b16 %v165
    %v5112 = vunpack.c.h.b16 %v165
    %v5113 = vunpack.c.l.b16 %v166
    %v5114 = vunpack.c.h.b16 %v166
    %v5115 = vunpack.c.l.b16 %v167
    %v5116 = vunpack.c.h.b16 %v167
    %v5117 = vunpack.c.l.b16 %v168
    %v5118 = vunpack.c.h.b16 %v168
    %v5119 = vunpack.c.l.b16 %v169
    %v5120 = vunpack.c.h.b16 %v169
    %v5121 = vunpack.c.l.b16 %v170
    %v5122 = vunpack.c.h.b16 %v170
    %v5123 = vunpack.c.l.b16 %v171
    %v5124 = vunpack.c.h.b16 %v171
    %v5125 = vunpack.c.l.b16 %v172
    %v5126 = vunpack.c.h.b16 %v172
    %v5127 = vunpack.c.l.b16 %v173
    %v5128 = vunpack.c.h.b16 %v173
    %v5129 = vunpack.c.l.b16 %v174
    %v5130 = vunpack.c.h.b16 %v174
    %v5131 = vunpack.c.l.b16 %v175
    %v5132 = vunpack.c.h.b16 %v175
    %v5133 = vunpack.c.l.b16 %v176
    %v5134 = vunpack.c.h.b16 %v176
    %v5135 = vunpack.c.l.b16 %v177
    %v5136 = vunpack.c.h.b16 %v177
    %v5137 = vunpack.c.l.b16 %v178
    %v5138 = vunpack.c.h.b16 %v178
    %v5139 = vunpack.c.l.b16 %v179
    %v5140 = vunpack.c.h.b16 %v179
    %v5141 = vunpack.c.l.b16 %v180
    %v5142 = vunpack.c.h.b16 %v180
    %v5143 = vunpack.c.l.b16 %v181
    %v5144 = vunpack.c.h.b16 %v181
    %v5145 = vunpack.c.l.b16 %v182
    %v5146 = vunpack.c.h.b16 %v182
    %v5147 = vunpack.c.l.b16 %v183
    %v5148 = vunpack.c.h.b16 %v183
    %v5149 = vunpack.c.l.b16 %v184
    %v5150 = vunpack.c.h.b16 %v184
    %v5151 = vunpack.c.l.b16 %v185
    %v5152 = vunpack.c.h.b16 %v185
    %v5153 = vunpack.c.l.b16 %v186
    %v5154 = vunpack.c.h.b16 %v186
    %v5155 = vunpack.c.l.b16 %v187
    %v5156 = vunpack.c.h.b16 %v187
    %v5157 = vunpack.c.l.b16 %v188
    %v5158 = vunpack.c.h.b16 %v188
    %v5159 = vunpack.c.l.b16 %v189
    %v5160 = vunpack.c.h.b16 %v189
    %v5161 = vunpack.c.l.b16 %v190
    %v5162 = vunpack.c.h.b16 %v190
    %v5163 = vunpack.c.l.b16 %v191
    %v5164 = vunpack.c.h.b16 %v191
    %v5165 = vunpack.c.l.b16 %v192
    %v5166 = vunpack.c.h.b16 %v192
    %v5167 = vunpack.c.l.b16 %v193
    %v5168 = vunpack.c.h.b16 %v193
    %v5169 = vunpack.c.l.b16 %v194
    %v5170 = vunpack.c.h.b16 %v194
    %v5171 = vunpack.c.l.b16 %v195
    %v5172 = vunpack.c.h.b16 %v195
    %v5173 = vunpack.c.l.b16 %v196
    %v5174 = vunpack.c.h.b16 %v196
    %v5175 = vunpack.c.l.b16 %v197
    %v5176 = vunpack.c.h.b16 %v197
    %v5177 = vunpack.c.l.b16 %v198
    %v5178 = vunpack.c.h.b16 %v198
    %v5179 = vunpack.c.l.b16 %v199
    %v5180 = vunpack.c.h.b16 %v199
    %v5181 = vunpack.c.l.b16 %v200
    %v5182 = vunpack.c.h.b16 %v200
    %v5183 = vunpack.c.l.b16 %v201
    %v5184 = vunpack.c.h.b16 %v201
    %v5185 = vunpack.c.l.b16 %v202
    %v5186 = vunpack.c.h.b16 %v202
    %v5187 = vunpack.c.l.b16 %v203
    %v5188 = vunpack.c.h.b16 %v203
    %v5189 = vunpack.c.l.b16 %v204
    %v5190 = vunpack.c.h.b16 %v204
    %v5191 = vunpack.c.l.b16 %v205
    %v5192 = vunpack.c.h.b16 %v205
    %v5193 = vunpack.c.l.b16 %v206
    %v5194 = vunpack.c.h.b16 %v206
    %v5195 = vunpack.c.l.b16 %v207
    %v5196 = vunpack.c.h.b16 %v207
    %v5197 = vunpack.c.l.b16 %v208
    %v5198 = vunpack.c.h.b16 %v208
    %v5199 = vunpack.c.l.b16 %v209
    %v5200 = vunpack.c.h.b16 %v209
    %v5201 = vunpack.c.l.b16 %v210
    %v5202 = vunpack.c.h.b16 %v210
    %v5203 = vunpack.c.l.b16 %v211
    %v5204 = vunpack.c.h.b16 %v211
    %v5205 = vunpack.c.l.b16 %v212
    %v5206 = vunpack.c.h.b16 %v212
    %v5207 = vunpack.c.l.b16 %v213
    %v5208 = vunpack.c.h.b16 %v213
    %v5209 = vunpack.c.l.b16 %v214
    %v5210 = vunpack.c.h.b16 %v214
    %v5211 = vunpack.c.l.b16 %v215
    %v5212 = vunpack.c.h.b16 %v215
    %v5213 = vunpack.c.l.b16 %v216
    %v5214 = vunpack.c.h.b16 %v216
    %v5215 = vunpack.c.l.b16 %v217
    %v5216 = vunpack.c.h.b16 %v217
    %v5217 = vunpack.c.l.b16 %v218
    %v5218 = vunpack.c.h.b16 %v218
    %v5219 = vunpack.c.l.b16 %v219
    %v5220 = vunpack.c.h.b16 %v219
    %v5221 = vunpack.c.l.b16 %v220
    %v5222 = vunpack.c.h.b16 %v220
    %v5223 = vunpack.c.l.b16 %v221
    %v5224 = vunpack.c.h.b16 %v221
    %v5225 = vunpack.c.l.b16 %v222
    %v5226 = vunpack.c.h.b16 %v222
    %v5227 = vunpack.c.l.b16 %v223
    %v5228 = vunpack.c.h.b16 %v223
    %v5229 = vunpack.c.l.b16 %v224
    %v5230 = vunpack.c.h.b16 %v224
    %v5231 = vunpack.c.l.b16 %v225
    %v5232 = vunpack.c.h.b16 %v225
    %v5233 = vunpack.c.l.b16 %v226
    %v5234 = vunpack.c.h.b16 %v226
    %v5235 = vunpack.c.l.b16 %v227
    %v5236 = vunpack.c.h.b16 %v227
    %v5237 = vunpack.c.l.b16 %v228
    %v5238 = vunpack.c.h.b16 %v228
    %v5239 = vunpack.c.l.b16 %v229
    %v5240 = vunpack.c.h.b16 %v229
    %v5241 = vunpack.c.l.b16 %v230
    %v5242 = vunpack.c.h.b16 %v230
    %v5243 = vunpack.c.l.b16 %v231
    %v5244 = vunpack.c.h.b16 %v231
    %v5245 = vunpack.c.l.b16 %v232
    %v5246 = vunpack.c.h.b16 %v232
    %v5247 = vunpack.c.l.b16 %v233
    %v5248 = vunpack.c.h.b16 %v233
    %v5249 = vunpack.c.l.b16 %v234
    %v5250 = vunpack.c.h.b16 %v234
    %v5251 = vunpack.c.l.b16 %v235
    %v5252 = vunpack.c.h.b16 %v235
    %v5253 = vunpack.c.l.b16 %v236
    %v5254 = vunpack.c.h.b16 %v236
    %v5255 = vunpack.c.l.b16 %v237
    %v5256 = vunpack.c.h.b16 %v237
    %v5257 = vunpack.c.l.b16 %v238
    %v5258 = vunpack.c.h.b16 %v238
    %v5259 = vunpack.c.l.b16 %v239
    %v5260 = vunpack.c.h.b16 %v239
    %v5261 = vunpack.c.l.b16 %v240
    %v5262 = vunpack.c.h.b16 %v240
    %v5263 = vunpack.c.l.b16 %v241
    %v5264 = vunpack.c.h.b16 %v241
    %v5265 = vunpack.c.l.b16 %v242
    %v5266 = vunpack.c.h.b16 %v242
    %v5267 = vunpack.c.l.b16 %v243
    %v5268 = vunpack.c.h.b16 %v243
    %v5269 = vunpack.c.l.b16 %v244
    %v5270 = vunpack.c.h.b16 %v244
    %v5271 = vunpack.c.l.b16 %v245
    %v5272 = vunpack.c.h.b16 %v245
    %v5273 = vunpack.c.l.b16 %v246
    %v5274 = vunpack.c.h.b16 %v246
    %v5275 = vunpack.c.l.b16 %v247
    %v5276 = vunpack.c.h.b16 %v247
    %v5277 = vunpack.c.l.b16 %v248
    %v5278 = vunpack.c.h.b16 %v248
    %v5279 = vunpack.c.l.b16 %v249
    %v5280 = vunpack.c.h.b16 %v249
    %v5281 = vunpack.c.l.b16 %v250
    %v5282 = vunpack.c.h.b16 %v250
    %v5283 = vunpack.c.l.b16 %v251
    %v5284 = vunpack.c.h.b16 %v251
    %v5285 = vunpack.c.l.b16 %v252
    %v5286 = vunpack.c.h.b16 %v252
    %v5287 = vunpack.c.l.b16 %v253
    %v5288 = vunpack.c.h.b16 %v253
    %v5289 = vunpack.c.l.b16 %v254
    %v5290 = vunpack.c.h.b16 %v254
    %v5291 = vunpack.c.l.b16 %v255
    %v5292 = vunpack.c.h.b16 %v255
    %v5293 = vunpack.c.l.b16 %v256
    %v5294 = vunpack.c.h.b16 %v256
    %v5295 = vunpack.c.l.b16 %v257
    %v5296 = vunpack.c.h.b16 %v257
    %v5297 = vunpack.c.l.b16 %v258
    %v5298 = vunpack.c.h.b16 %v258
    %v5299 = vunpack.c.l.b16 %v259
    %v5300 = vunpack.c.h.b16 %v259
    %v5301 = vunpack.c.l.b16 %v260
    %v5302 = vunpack.c.h.b16 %v260
    %v5303 = vunpack.c.l.b16 %v261
    %v5304 = vunpack.c.h.b16 %v261
    %v5305 = vunpack.c.l.b16 %v262
    %v5306 = vunpack.c.h.b16 %v262
    %v5307 = vunpack.c.l.b16 %v263
    %v5308 = vunpack.c.h.b16 %v263
    %v5309 = vunpack.c.l.b16 %v264
    %v5310 = vunpack.c.h.b16 %v264
    %v5311 = vunpack.c.l.b16 %v265
    %v5312 = vunpack.c.h.b16 %v265
    %v5313 = vunpack.c.l.b16 %v266
    %v5314 = vunpack.c.h.b16 %v266
    %v5315 = vunpack.c.l.b16 %v267
    %v5316 = vunpack.c.h.b16 %v267
    %v5317 = vunpack.c.l.b16 %v268
    %v5318 = vunpack.c.h.b16 %v268
    %v5319 = vunpack.c.l.b16 %v269
    %v5320 = vunpack.c.h.b16 %v269
    %v5321 = vunpack.c.l.b16 %v270
    %v5322 = vunpack.c.h.b16 %v270
    %v5323 = vunpack.c.l.b16 %v271
    %v5324 = vunpack.c.h.b16 %v271
    %v5325 = vunpack.c.l.b16 %v272
    %v5326 = vunpack.c.h.b16 %v272
    %v5327 = vunpack.c.l.b16 %v273
    %v5328 = vunpack.c.h.b16 %v273
    %v5329 = vunpack.c.l.b16 %v274
    %v5330 = vunpack.c.h.b16 %v274
    %v5331 = vunpack.c.l.b16 %v275
    %v5332 = vunpack.c.h.b16 %v275
    %v5333 = vunpack.c.l.b16 %v276
    %v5334 = vunpack.c.h.b16 %v276
    %v5335 = vunpack.c.l.b16 %v277
    %v5336 = vunpack.c.h.b16 %v277
    %v5337 = vunpack.c.l.b16 %v278
    %v5338 = vunpack.c.h.b16 %v278
    %v5339 = vunpack.c.l.b16 %v279
    %v5340 = vunpack.c.h.b16 %v279
    %v5341 = vunpack.c.l.b16 %v280
    %v5342 = vunpack.c.h.b16 %v280
    %v5343 = vunpack.c.l.b16 %v281
    %v5344 = vunpack.c.h.b16 %v281
    %v5345 = vunpack.c.l.b16 %v282
    %v5346 = vunpack.c.h.b16 %v282
    %v5347 = vunpack.c.l.b16 %v283
    %v5348 = vunpack.c.h.b16 %v283
    %v5349 = vunpack.c.l.b16 %v284
    %v5350 = vunpack.c.h.b16 %v284
    %v5351 = vunpack.c.l.b16 %v285
    %v5352 = vunpack.c.h.b16 %v285
    %v5353 = vunpack.c.l.b16 %v286
    %v5354 = vunpack.c.h.b16 %v286
    %v5355 = vunpack.c.l.b16 %v287
    %v5356 = vunpack.c.h.b16 %v287
    %v5357 = vunpack.c.l.b16 %v288
    %v5358 = vunpack.c.h.b16 %v288
    %v5359 = vunpack.c.l.b16 %v289
    %v5360 = vunpack.c.h.b16 %v289
    %v5361 = vunpack.c.l.b16 %v290
    %v5362 = vunpack.c.h.b16 %v290
    %v5363 = vunpack.c.l.b16 %v291
    %v5364 = vunpack.c.h.b16 %v291
    %v5365 = vunpack.c.l.b16 %v292
    %v5366 = vunpack.c.h.b16 %v292
    %v5367 = vunpack.c.l.b16 %v293
    %v5368 = vunpack.c.h.b16 %v293
    %v5369 = vunpack.c.l.b16 %v294
    %v5370 = vunpack.c.h.b16 %v294
    %v5371 = vunpack.c.l.b16 %v295
    %v5372 = vunpack.c.h.b16 %v295
    %v5373 = vunpack.c.l.b16 %v296
    %v5374 = vunpack.c.h.b16 %v296
    %v5375 = vunpack.c.l.b16 %v297
    %v5376 = vunpack.c.h.b16 %v297
    %v5377 = vunpack.c.l.b16 %v298
    %v5378 = vunpack.c.h.b16 %v298
    %v5379 = vunpack.c.l.b16 %v299
    %v5380 = vunpack.c.h.b16 %v299
    %v5381 = vunpack.c.l.b16 %v300
    %v5382 = vunpack.c.h.b16 %v300
    %v5383 = vunpack.c.l.b16 %v301
    %v5384 = vunpack.c.h.b16 %v301
    %v5385 = vunpack.c.l.b16 %v302
    %v5386 = vunpack.c.h.b16 %v302
    %v5387 = vunpack.c.l.b16 %v303
    %v5388 = vunpack.c.h.b16 %v303
    %v5389 = vunpack.c.l.b16 %v304
    %v5390 = vunpack.c.h.b16 %v304
    %v5391 = vunpack.c.l.b16 %v305
    %v5392 = vunpack.c.h.b16 %v305
    %v5393 = vunpack.c.l.b16 %v306
    %v5394 = vunpack.c.h.b16 %v306
    %v5395 = vunpack.c.l.b16 %v307
    %v5396 = vunpack.c.h.b16 %v307
    %v5397 = vunpack.c.l.b16 %v308
    %v5398 = vunpack.c.h.b16 %v308
    %v5399 = vunpack.c.l.b16 %v309
    %v5400 = vunpack.c.h.b16 %v309
    %v5401 = vunpack.c.l.b16 %v310
    %v5402 = vunpack.c.h.b16 %v310
    %v5403 = vunpack.c.l.b16 %v311
    %v5404 = vunpack.c.h.b16 %v311
    %v5405 = vunpack.c.l.b16 %v312
    %v5406 = vunpack.c.h.b16 %v312
    %v5407 = vunpack.c.l.b16 %v313
    %v5408 = vunpack.c.h.b16 %v313
    %v5409 = vunpack.c.l.b16 %v314
    %v5410 = vunpack.c.h.b16 %v314
    %v5411 = vunpack.c.l.b16 %v315
    %v5412 = vunpack.c.h.b16 %v315
    %v5413 = vunpack.c.l.b16 %v316
    %v5414 = vunpack.c.h.b16 %v316
    %v5415 = vunpack.c.l.b16 %v317
    %v5416 = vunpack.c.h.b16 %v317
    %v5417 = vunpack.c.l.b16 %v318
    %v5418 = vunpack.c.h.b16 %v318
    %v5419 = vunpack.c.l.b16 %v319
    %v5420 = vunpack.c.h.b16 %v319
    %v5421 = vunpack.c.l.b16 %v320
    %v5422 = vunpack.c.h.b16 %v320
    %v5423 = vunpack.c.l.b16 %v321
    %v5424 = vunpack.c.h.b16 %v321
    %v5425 = vunpack.c.l.b16 %v322
    %v5426 = vunpack.c.h.b16 %v322
    %v5427 = vunpack.c.l.b16 %v323
    %v5428 = vunpack.c.h.b16 %v323
    %v5429 = vunpack.c.l.b16 %v324
    %v5430 = vunpack.c.h.b16 %v324
    %v5431 = vunpack.c.l.b16 %v325
    %v5432 = vunpack.c.h.b16 %v325
    %v5433 = vunpack.c.l.b16 %v326
    %v5434 = vunpack.c.h.b16 %v326
    %v5435 = vunpack.c.l.b16 %v327
    %v5436 = vunpack.c.h.b16 %v327
    %v5437 = vunpack.c.l.b16 %v328
    %v5438 = vunpack.c.h.b16 %v328
    %v5439 = vunpack.c.l.b16 %v329
    %v5440 = vunpack.c.h.b16 %v329
    %v5441 = vunpack.c.l.b16 %v330
    %v5442 = vunpack.c.h.b16 %v330
    %v5443 = vunpack.c.l.b16 %v331
    %v5444 = vunpack.c.h.b16 %v331
    %v5445 = vunpack.c.l.b16 %v332
    %v5446 = vunpack.c.h.b16 %v332
    %v5447 = vunpack.c.l.b16 %v333
    %v5448 = vunpack.c.h.b16 %v333
    %v5449 = vunpack.c.l.b16 %v334
    %v5450 = vunpack.c.h.b16 %v334
    %v5451 = vunpack.c.l.b16 %v335
    %v5452 = vunpack.c.h.b16 %v335
    %v5453 = vunpack.c.l.b16 %v336
    %v5454 = vunpack.c.h.b16 %v336
    %v5455 = vunpack.c.l.b16 %v337
    %v5456 = vunpack.c.h.b16 %v337
    %v5457 = vunpack.c.l.b16 %v338
    %v5458 = vunpack.c.h.b16 %v338
    %v5459 = vunpack.c.l.b16 %v339
    %v5460 = vunpack.c.h.b16 %v339
    %v5461 = vunpack.c.l.b16 %v340
    %v5462 = vunpack.c.h.b16 %v340
    %v5463 = vunpack.c.l.b16 %v341
    %v5464 = vunpack.c.h.b16 %v341
    %v5465 = vunpack.c.l.b16 %v342
    %v5466 = vunpack.c.h.b16 %v342
    %v5467 = vunpack.c.l.b16 %v343
    %v5468 = vunpack.c.h.b16 %v343
    %v5469 = vunpack.c.l.b16 %v344
    %v5470 = vunpack.c.h.b16 %v344
    %v5471 = vunpack.c.l.b16 %v345
    %v5472 = vunpack.c.h.b16 %v345
    %v5473 = vunpack.c.l.b16 %v346
    %v5474 = vunpack.c.h.b16 %v346
    %v5475 = vunpack.c.l.b16 %v347
    %v5476 = vunpack.c.h.b16 %v347
    %v5477 = vunpack.c.l.b16 %v348
    %v5478 = vunpack.c.h.b16 %v348
    %v5479 = vunpack.c.l.b16 %v349
    %v5480 = vunpack.c.h.b16 %v349
    %v5481 = vunpack.c.l.b16 %v350
    %v5482 = vunpack.c.h.b16 %v350
    %v5483 = vunpack.c.l.b16 %v351
    %v5484 = vunpack.c.h.b16 %v351
    %v5485 = vunpack.c.l.b16 %v352
    %v5486 = vunpack.c.h.b16 %v352
    %v5487 = vunpack.c.l.b16 %v353
    %v5488 = vunpack.c.h.b16 %v353
    %v5489 = vunpack.c.l.b16 %v354
    %v5490 = vunpack.c.h.b16 %v354
    %v5491 = vunpack.c.l.b16 %v355
    %v5492 = vunpack.c.h.b16 %v355
    %v5493 = vunpack.c.l.b16 %v356
    %v5494 = vunpack.c.h.b16 %v356
    %v5495 = vunpack.c.l.b16 %v357
    %v5496 = vunpack.c.h.b16 %v357
    %v5497 = vunpack.c.l.b16 %v358
    %v5498 = vunpack.c.h.b16 %v358
    %v5499 = vunpack.c.l.b16 %v359
    %v5500 = vunpack.c.h.b16 %v359
    %v5501 = vunpack.c.l.b16 %v360
    %v5502 = vunpack.c.h.b16 %v360
    %v5503 = vunpack.c.l.b16 %v361
    %v5504 = vunpack.c.h.b16 %v361
    %v5505 = vunpack.c.l.b16 %v362
    %v5506 = vunpack.c.h.b16 %v362
    %v5507 = vunpack.c.l.b16 %v363
    %v5508 = vunpack.c.h.b16 %v363
    %v5509 = vunpack.c.l.b16 %v364
    %v5510 = vunpack.c.h.b16 %v364
    %v5511 = vunpack.c.l.b16 %v365
    %v5512 = vunpack.c.h.b16 %v365
    %v5513 = vunpack.c.l.b16 %v366
    %v5514 = vunpack.c.h.b16 %v366
    %v5515 = vunpack.c.l.b16 %v367
    %v5516 = vunpack.c.h.b16 %v367
    %v5517 = vunpack.c.l.b16 %v368
    %v5518 = vunpack.c.h.b16 %v368
    %v5519 = vunpack.c.l.b16 %v369
    %v5520 = vunpack.c.h.b16 %v369
    %v5521 = vunpack.c.l.b16 %v370
    %v5522 = vunpack.c.h.b16 %v370
    %v5523 = vunpack.c.l.b16 %v371
    %v5524 = vunpack.c.h.b16 %v371
    %v5525 = vunpack.c.l.b16 %v372
    %v5526 = vunpack.c.h.b16 %v372
    %v5527 = vunpack.c.l.b16 %v373
    %v5528 = vunpack.c.h.b16 %v373
    %v5529 = vunpack.c.l.b16 %v374
    %v5530 = vunpack.c.h.b16 %v374
    %v5531 = vunpack.c.l.b16 %v375
    %v5532 = vunpack.c.h.b16 %v375
    %v5533 = vunpack.c.l.b16 %v376
    %v5534 = vunpack.c.h.b16 %v376
    %v5535 = vunpack.c.l.b16 %v377
    %v5536 = vunpack.c.h.b16 %v377
    %v5537 = vunpack.c.l.b16 %v378
    %v5538 = vunpack.c.h.b16 %v378
    %v5539 = vunpack.c.l.b16 %v379
    %v5540 = vunpack.c.h.b16 %v379
    %v5541 = vunpack.c.l.b16 %v380
    %v5542 = vunpack.c.h.b16 %v380
    %v5543 = vunpack.c.l.b16 %v381
    %v5544 = vunpack.c.h.b16 %v381
    %v5545 = vunpack.c.l.b16 %v382
    %v5546 = vunpack.c.h.b16 %v382
    %v5547 = vunpack.c.l.b16 %v383
    %v5548 = vunpack.c.h.b16 %v383
    %v5549 = vunpack.c.l.b16 %v384
    %v5550 = vunpack.c.h.b16 %v384
    %v5551 = vunpack.c.l.b16 %v385
    %v5552 = vunpack.c.h.b16 %v385
    %v5553 = vunpack.c.l.b16 %v386
    %v5554 = vunpack.c.h.b16 %v386
    %v5555 = vunpack.c.l.b16 %v387
    %v5556 = vunpack.c.h.b16 %v387
    %v5557 = vunpack.c.l.b16 %v388
    %v5558 = vunpack.c.h.b16 %v388
    %v5559 = vunpack.c.l.b16 %v389
    %v5560 = vunpack.c.h.b16 %v389
    %v5561 = vunpack.c.l.b16 %v390
    %v5562 = vunpack.c.h.b16 %v390
    %v5563 = vunpack.c.l.b16 %v391
    %v5564 = vunpack.c.h.b16 %v391
    %v5565 = vunpack.c.l.b16 %v392
    %v5566 = vunpack.c.h.b16 %v392
    %v5567 = vunpack.c.l.b16 %v393
    %v5568 = vunpack.c.h.b16 %v393
    %v5569 = vunpack.c.l.b16 %v394
    %v5570 = vunpack.c.h.b16 %v394
    %v5571 = vunpack.c.l.b16 %v395
    %v5572 = vunpack.c.h.b16 %v395
    %v5573 = vunpack.c.l.b16 %v396
    %v5574 = vunpack.c.h.b16 %v396
    %v5575 = vunpack.c.l.b16 %v397
    %v5576 = vunpack.c.h.b16 %v397
    %v5577 = vunpack.c.l.b16 %v398
    %v5578 = vunpack.c.h.b16 %v398
    %v5579 = vunpack.c.l.b16 %v399
    %v5580 = vunpack.c.h.b16 %v399
    %v5581 = vunpack.c.l.b16 %v400
    %v5582 = vunpack.c.h.b16 %v400
    %v5583 = vunpack.c.l.b16 %v401
    %v5584 = vunpack.c.h.b16 %v401
    %v5585 = vunpack.c.l.b16 %v402
    %v5586 = vunpack.c.h.b16 %v402
    %v5587 = vunpack.c.l.b16 %v403
    %v5588 = vunpack.c.h.b16 %v403
    %v5589 = vunpack.c.l.b16 %v404
    %v5590 = vunpack.c.h.b16 %v404
    %v5591 = vunpack.c.l.b16 %v405
    %v5592 = vunpack.c.h.b16 %v405
    %v5593 = vunpack.c.l.b16 %v406
    %v5594 = vunpack.c.h.b16 %v406
    %v5595 = vunpack.c.l.b16 %v407
    %v5596 = vunpack.c.h.b16 %v407
    %v5597 = vunpack.c.l.b16 %v408
    %v5598 = vunpack.c.h.b16 %v408
    %v5599 = vunpack.c.l.b16 %v409
    %v5600 = vunpack.c.h.b16 %v409
    %v5601 = vunpack.c.l.b16 %v410
    %v5602 = vunpack.c.h.b16 %v410
    %v5603 = vunpack.c.l.b16 %v411
    %v5604 = vunpack.c.h.b16 %v411
    %v5605 = vunpack.c.l.b16 %v412
    %v5606 = vunpack.c.h.b16 %v412
    %v5607 = vunpack.c.l.b16 %v413
    %v5608 = vunpack.c.h.b16 %v413
    %v5609 = vunpack.c.l.b16 %v414
    %v5610 = vunpack.c.h.b16 %v414
    %v5611 = vunpack.c.l.b16 %v415
    %v5612 = vunpack.c.h.b16 %v415
    %v5613 = vunpack.c.l.b16 %v416
    %v5614 = vunpack.c.h.b16 %v416
    %v5615 = vunpack.c.l.b16 %v417
    %v5616 = vunpack.c.h.b16 %v417
    %v5617 = vunpack.c.l.b16 %v418
    %v5618 = vunpack.c.h.b16 %v418
    %v5619 = vunpack.c.l.b16 %v419
    %v5620 = vunpack.c.h.b16 %v419
    %v5621 = vunpack.c.l.b16 %v420
    %v5622 = vunpack.c.h.b16 %v420
    %v5623 = vunpack.c.l.b16 %v421
    %v5624 = vunpack.c.h.b16 %v421
    %v5625 = vunpack.c.l.b16 %v422
    %v5626 = vunpack.c.h.b16 %v422
    %v5627 = vunpack.c.l.b16 %v423
    %v5628 = vunpack.c.h.b16 %v423
    %v5629 = vunpack.c.l.b16 %v424
    %v5630 = vunpack.c.h.b16 %v424
    %v5631 = vunpack.c.l.b16 %v425
    %v5632 = vunpack.c.h.b16 %v425
    %v5633 = vunpack.c.l.b16 %v426
    %v5634 = vunpack.c.h.b16 %v426
    %v5635 = vunpack.c.l.b16 %v427
    %v5636 = vunpack.c.h.b16 %v427
    %v5637 = vunpack.c.l.b16 %v428
    %v5638 = vunpack.c.h.b16 %v428
    %v5639 = vunpack.c.l.b16 %v429
    %v5640 = vunpack.c.h.b16 %v429
    %v5641 = vunpack.c.l.b16 %v430
    %v5642 = vunpack.c.h.b16 %v430
    %v5643 = vunpack.c.l.b16 %v431
    %v5644 = vunpack.c.h.b16 %v431
    %v5645 = vunpack.c.l.b16 %v432
    %v5646 = vunpack.c.h.b16 %v432
    %v5647 = vunpack.c.l.b16 %v433
    %v5648 = vunpack.c.h.b16 %v433
    %v5649 = vunpack.c.l.b16 %v434
    %v5650 = vunpack.c.h.b16 %v434
    %v5651 = vunpack.c.l.b16 %v435
    %v5652 = vunpack.c.h.b16 %v435
    %v5653 = vunpack.c.l.b16 %v436
    %v5654 = vunpack.c.h.b16 %v436
    %v5655 = vunpack.c.l.b16 %v437
    %v5656 = vunpack.c.h.b16 %v437
    %v5657 = vunpack.c.l.b16 %v438
    %v5658 = vunpack.c.h.b16 %v438
    %v5659 = vunpack.c.l.b16 %v439
    %v5660 = vunpack.c.h.b16 %v439
    %v5661 = vunpack.c.l.b16 %v440
    %v5662 = vunpack.c.h.b16 %v440
    %v5663 = vunpack.c.l.b16 %v441
    %v5664 = vunpack.c.h.b16 %v441
    %v5665 = vunpack.c.l.b16 %v442
    %v5666 = vunpack.c.h.b16 %v442
    %v5667 = vunpack.c.l.b16 %v443
    %v5668 = vunpack.c.h.b16 %v443
    %v5669 = vunpack.c.l.b16 %v444
    %v5670 = vunpack.c.h.b16 %v444
    %v5671 = vunpack.c.l.b16 %v445
    %v5672 = vunpack.c.h.b16 %v445
    %v5673 = vunpack.c.l.b16 %v446
    %v5674 = vunpack.c.h.b16 %v446
    %v5675 = vunpack.c.l.b16 %v447
    %v5676 = vunpack.c.h.b16 %v447
    %v5677 = vunpack.c.l.b16 %v448
    %v5678 = vunpack.c.h.b16 %v448
    %v5679 = vunpack.c.l.b16 %v449
    %v5680 = vunpack.c.h.b16 %v449
    %v5681 = vunpack.c.l.b16 %v450
    %v5682 = vunpack.c.h.b16 %v450
    %v5683 = vunpack.c.l.b16 %v451
    %v5684 = vunpack.c.h.b16 %v451
    %v5685 = vunpack.c.l.b16 %v452
    %v5686 = vunpack.c.h.b16 %v452
    %v5687 = vunpack.c.l.b16 %v453
    %v5688 = vunpack.c.h.b16 %v453
    %v5689 = vunpack.c.l.b16 %v454
    %v5690 = vunpack.c.h.b16 %v454
    %v5691 = vunpack.c.l.b16 %v455
    %v5692 = vunpack.c.h.b16 %v455
    %v5693 = vunpack.c.l.b16 %v456
    %v5694 = vunpack.c.h.b16 %v456
    %v5695 = vunpack.c.l.b16 %v457
    %v5696 = vunpack.c.h.b16 %v457
    %v5697 = vunpack.c.l.b16 %v458
    %v5698 = vunpack.c.h.b16 %v458
    %v5699 = vunpack.c.l.b16 %v459
    %v5700 = vunpack.c.h.b16 %v459
    %v5701 = vunpack.c.l.b16 %v460
    %v5702 = vunpack.c.h.b16 %v460
    %v5703 = vunpack.c.l.b16 %v461
    %v5704 = vunpack.c.h.b16 %v461
    %v5705 = vunpack.c.l.b16 %v462
    %v5706 = vunpack.c.h.b16 %v462
    %v5707 = vunpack.c.l.b16 %v463
    %v5708 = vunpack.c.h.b16 %v463
    %v5709 = vunpack.c.l.b16 %v464
    %v5710 = vunpack.c.h.b16 %v464
    %v5711 = vunpack.c.l.b16 %v465
    %v5712 = vunpack.c.h.b16 %v465
    %v5713 = vunpack.c.l.b16 %v466
    %v5714 = vunpack.c.h.b16 %v466
    %v5715 = vunpack.c.l.b16 %v467
    %v5716 = vunpack.c.h.b16 %v467
    %v5717 = vunpack.c.l.b16 %v468
    %v5718 = vunpack.c.h.b16 %v468
    %v5719 = vunpack.c.l.b16 %v469
    %v5720 = vunpack.c.h.b16 %v469
    %v5721 = vunpack.c.l.b16 %v470
    %v5722 = vunpack.c.h.b16 %v470
    %v5723 = vunpack.c.l.b16 %v471
    %v5724 = vunpack.c.h.b16 %v471
    %v5725 = vunpack.c.l.b16 %v472
    %v5726 = vunpack.c.h.b16 %v472
    %v5727 = vunpack.c.l.b16 %v473
    %v5728 = vunpack.c.h.b16 %v473
    %v5729 = vunpack.c.l.b16 %v474
    %v5730 = vunpack.c.h.b16 %v474
    %v5731 = vunpack.c.l.b16 %v475
    %v5732 = vunpack.c.h.b16 %v475
    %v5733 = vunpack.c.l.b16 %v476
    %v5734 = vunpack.c.h.b16 %v476
    %v5735 = vunpack.c.l.b16 %v477
    %v5736 = vunpack.c.h.b16 %v477
    %v5737 = vunpack.c.l.b16 %v478
    %v5738 = vunpack.c.h.b16 %v478
    %v5739 = vunpack.c.l.b16 %v479
    %v5740 = vunpack.c.h.b16 %v479
    %v5741 = vunpack.c.l.b16 %v480
    %v5742 = vunpack.c.h.b16 %v480
    %v5743 = vunpack.c.l.b16 %v481
    %v5744 = vunpack.c.h.b16 %v481
    %v5745 = vunpack.c.l.b16 %v482
    %v5746 = vunpack.c.h.b16 %v482
    %v5747 = vunpack.c.l.b16 %v483
    %v5748 = vunpack.c.h.b16 %v483
    %v5749 = vunpack.c.l.b16 %v484
    %v5750 = vunpack.c.h.b16 %v484
    %v5751 = vunpack.c.l.b16 %v485
    %v5752 = vunpack.c.h.b16 %v485
    %v5753 = vunpack.c.l.b16 %v486
    %v5754 = vunpack.c.h.b16 %v486
    %v5755 = vunpack.c.l.b16 %v487
    %v5756 = vunpack.c.h.b16 %v487
    %v5757 = vunpack.c.l.b16 %v488
    %v5758 = vunpack.c.h.b16 %v488
    %v5759 = vunpack.c.l.b16 %v489
    %v5760 = vunpack.c.h.b16 %v489
    %v5761 = vunpack.c.l.b16 %v490
    %v5762 = vunpack.c.h.b16 %v490
    %v5763 = vunpack.c.l.b16 %v491
    %v5764 = vunpack.c.h.b16 %v491
    %v5765 = vunpack.c.l.b16 %v492
    %v5766 = vunpack.c.h.b16 %v492
    %v5767 = vunpack.c.l.b16 %v493
    %v5768 = vunpack.c.h.b16 %v493
    %v5769 = vunpack.c.l.b16 %v494
    %v5770 = vunpack.c.h.b16 %v494
    %v5771 = vunpack.c.l.b16 %v495
    %v5772 = vunpack.c.h.b16 %v495
    %v5773 = vunpack.c.l.b16 %v496
    %v5774 = vunpack.c.h.b16 %v496
    %v5775 = vunpack.c.l.b16 %v497
    %v5776 = vunpack.c.h.b16 %v497
    %v5777 = vunpack.c.l.b16 %v498
    %v5778 = vunpack.c.h.b16 %v498
    %v5779 = vunpack.c.l.b16 %v499
    %v5780 = vunpack.c.h.b16 %v499
    %v5781 = vunpack.c.l.b16 %v500
    %v5782 = vunpack.c.h.b16 %v500
    %v5783 = vunpack.c.l.b16 %v501
    %v5784 = vunpack.c.h.b16 %v501
    %v5785 = vunpack.c.l.b16 %v502
    %v5786 = vunpack.c.h.b16 %v502
    %v5787 = vunpack.c.l.b16 %v503
    %v5788 = vunpack.c.h.b16 %v503
    %v5789 = vunpack.c.l.b16 %v504
    %v5790 = vunpack.c.h.b16 %v504
    %v5791 = vunpack.c.l.b16 %v505
    %v5792 = vunpack.c.h.b16 %v505
    %v5793 = vunpack.c.l.b16 %v506
    %v5794 = vunpack.c.h.b16 %v506
    %v5795 = vunpack.c.l.b16 %v507
    %v5796 = vunpack.c.h.b16 %v507
    %v5797 = vunpack.c.l.b16 %v508
    %v5798 = vunpack.c.h.b16 %v508
    %v5799 = vunpack.c.l.b16 %v509
    %v5800 = vunpack.c.h.b16 %v509
    %v5801 = vunpack.c.l.b16 %v510
    %v5802 = vunpack.c.h.b16 %v510
    %v5803 = vunpack.c.l.b16 %v511
    %v5804 = vunpack.c.h.b16 %v511
    %v5805 = vunpack.c.l.b16 %v512
    %v5806 = vunpack.c.h.b16 %v512
    %v5807 = vunpack.c.l.b16 %v513
    %v5808 = vunpack.c.h.b16 %v513
    %v5809 = vunpack.c.l.b16 %v514
    %v5810 = vunpack.c.h.b16 %v514
    %v5811 = vunpack.c.l.b16 %v515
    %v5812 = vunpack.c.h.b16 %v515
    %v5813 = vunpack.c.l.b16 %v516
    %v5814 = vunpack.c.h.b16 %v516
    %v5815 = vunpack.c.l.b16 %v517
    %v5816 = vunpack.c.h.b16 %v517
    %v5817 = vunpack.c.l.b16 %v518
    %v5818 = vunpack.c.h.b16 %v518
    %v5819 = vunpack.c.l.b16 %v519
    %v5820 = vunpack.c.h.b16 %v519
    %v5821 = vunpack.c.l.b16 %v520
    %v5822 = vunpack.c.h.b16 %v520
    %v5823 = vunpack.c.l.b16 %v521
    %v5824 = vunpack.c.h.b16 %v521
    %v5825 = vunpack.c.l.b16 %v522
    %v5826 = vunpack.c.h.b16 %v522
    %v5827 = vunpack.c.l.b16 %v523
    %v5828 = vunpack.c.h.b16 %v523
    %v5829 = vunpack.c.l.b16 %v524
    %v5830 = vunpack.c.h.b16 %v524
    %v5831 = vunpack.c.l.b16 %v525
    %v5832 = vunpack.c.h.b16 %v525
    %v5833 = vunpack.c.l.b16 %v526
    %v5834 = vunpack.c.h.b16 %v526
    %v5835 = vunpack.c.l.b16 %v527
    %v5836 = vunpack.c.h.b16 %v527
    %v5837 = vunpack.c.l.b16 %v528
    %v5838 = vunpack.c.h.b16 %v528
    %v5839 = vunpack.c.l.b16 %v529
    %v5840 = vunpack.c.h.b16 %v529
    %v5841 = vunpack.c.l.b16 %v530
    %v5842 = vunpack.c.h.b16 %v530
    %v5843 = vunpack.c.l.b16 %v531
    %v5844 = vunpack.c.h.b16 %v531
    %v5845 = vunpack.c.l.b16 %v532
    %v5846 = vunpack.c.h.b16 %v532
    %v5847 = vunpack.c.l.b16 %v533
    %v5848 = vunpack.c.h.b16 %v533
    %v5849 = vunpack.c.l.b16 %v534
    %v5850 = vunpack.c.h.b16 %v534
    %v5851 = vunpack.c.l.b16 %v535
    %v5852 = vunpack.c.h.b16 %v535
    %v5853 = vunpack.c.l.b16 %v536
    %v5854 = vunpack.c.h.b16 %v536
    %v5855 = vunpack.c.l.b16 %v537
    %v5856 = vunpack.c.h.b16 %v537
    %v5857 = vunpack.c.l.b16 %v538
    %v5858 = vunpack.c.h.b16 %v538
    %v5859 = vunpack.c.l.b16 %v539
    %v5860 = vunpack.c.h.b16 %v539
    %v5861 = vunpack.c.l.b16 %v540
    %v5862 = vunpack.c.h.b16 %v540
    %v5863 = vunpack.c.l.b16 %v541
    %v5864 = vunpack.c.h.b16 %v541
    %v5865 = vunpack.c.l.b16 %v542
    %v5866 = vunpack.c.h.b16 %v542
    %v5867 = vunpack.c.l.b16 %v543
    %v5868 = vunpack.c.h.b16 %v543
    %v5869 = vunpack.c.l.b16 %v544
    %v5870 = vunpack.c.h.b16 %v544
    %v5871 = vunpack.c.l.b16 %v545
    %v5872 = vunpack.c.h.b16 %v545
    %v5873 = vunpack.c.l.b16 %v546
    %v5874 = vunpack.c.h.b16 %v546
    %v5875 = vunpack.c.l.b16 %v547
    %v5876 = vunpack.c.h.b16 %v547
    %v5877 = vunpack.c.l.b16 %v548
    %v5878 = vunpack.c.h.b16 %v548
    %v5879 = vunpack.c.l.b16 %v549
    %v5880 = vunpack.c.h.b16 %v549
    %v5881 = vunpack.c.l.b16 %v550
    %v5882 = vunpack.c.h.b16 %v550
    %v5883 = vunpack.c.l.b16 %v551
    %v5884 = vunpack.c.h.b16 %v551
    %v5885 = vunpack.c.l.b16 %v552
    %v5886 = vunpack.c.h.b16 %v552
    %v5887 = vunpack.c.l.b16 %v553
    %v5888 = vunpack.c.h.b16 %v553
    %v5889 = vunpack.c.l.b16 %v554
    %v5890 = vunpack.c.h.b16 %v554
    %v5891 = vunpack.c.l.b16 %v555
    %v5892 = vunpack.c.h.b16 %v555
    %v5893 = vunpack.c.l.b16 %v556
    %v5894 = vunpack.c.h.b16 %v556
    %v5895 = vunpack.c.l.b16 %v557
    %v5896 = vunpack.c.h.b16 %v557
    %v5897 = vunpack.c.l.b16 %v558
    %v5898 = vunpack.c.h.b16 %v558
    %v5899 = vunpack.c.l.b16 %v559
    %v5900 = vunpack.c.h.b16 %v559
    %v5901 = vunpack.c.l.b16 %v560
    %v5902 = vunpack.c.h.b16 %v560
    %v5903 = vunpack.c.l.b16 %v561
    %v5904 = vunpack.c.h.b16 %v561
    %v5905 = vunpack.c.l.b16 %v562
    %v5906 = vunpack.c.h.b16 %v562
    %v5907 = vunpack.c.l.b16 %v563
    %v5908 = vunpack.c.h.b16 %v563
    %v5909 = vunpack.c.l.b16 %v564
    %v5910 = vunpack.c.h.b16 %v564
    %v5911 = vunpack.c.l.b16 %v565
    %v5912 = vunpack.c.h.b16 %v565
    %v5913 = vunpack.c.l.b16 %v566
    %v5914 = vunpack.c.h.b16 %v566
    %v5915 = vunpack.c.l.b16 %v567
    %v5916 = vunpack.c.h.b16 %v567
    %v5917 = vunpack.c.l.b16 %v568
    %v5918 = vunpack.c.h.b16 %v568
    %v5919 = vunpack.c.l.b16 %v569
    %v5920 = vunpack.c.h.b16 %v569
    %v5921 = vunpack.c.l.b16 %v570
    %v5922 = vunpack.c.h.b16 %v570
    %v5923 = vunpack.c.l.b16 %v571
    %v5924 = vunpack.c.h.b16 %v571
    %v5925 = vunpack.c.l.b16 %v572
    %v5926 = vunpack.c.h.b16 %v572
    %v5927 = vunpack.c.l.b16 %v573
    %v5928 = vunpack.c.h.b16 %v573
    %v5929 = vunpack.c.l.b16 %v574
    %v5930 = vunpack.c.h.b16 %v574
    %v5931 = vunpack.c.l.b16 %v575
    %v5932 = vunpack.c.h.b16 %v575
    %v5933 = vunpack.c.l.b16 %v576
    %v5934 = vunpack.c.h.b16 %v576
    %v5935 = vunpack.c.l.b16 %v577
    %v5936 = vunpack.c.h.b16 %v577
    %v5937 = vunpack.c.l.b16 %v578
    %v5938 = vunpack.c.h.b16 %v578
    %v5939 = vunpack.c.l.b16 %v579
    %v5940 = vunpack.c.h.b16 %v579
    %v5941 = vunpack.c.l.b16 %v580
    %v5942 = vunpack.c.h.b16 %v580
    %v5943 = vunpack.c.l.b16 %v581
    %v5944 = vunpack.c.h.b16 %v581
    %v5945 = vunpack.c.l.b16 %v582
    %v5946 = vunpack.c.h.b16 %v582
    %v5947 = vunpack.c.l.b16 %v583
    %v5948 = vunpack.c.h.b16 %v583
    %v5949 = vunpack.c.l.b16 %v584
    %v5950 = vunpack.c.h.b16 %v584
    %v5951 = vunpack.c.l.b16 %v585
    %v5952 = vunpack.c.h.b16 %v585
    %v5953 = vunpack.c.l.b16 %v586
    %v5954 = vunpack.c.h.b16 %v586
    %v5955 = vunpack.c.l.b16 %v587
    %v5956 = vunpack.c.h.b16 %v587
    %v5957 = vunpack.c.l.b16 %v588
    %v5958 = vunpack.c.h.b16 %v588
    %v5959 = vunpack.c.l.b16 %v589
    %v5960 = vunpack.c.h.b16 %v589
    %v5961 = vunpack.c.l.b16 %v590
    %v5962 = vunpack.c.h.b16 %v590
    %v5963 = vunpack.c.l.b16 %v591
    %v5964 = vunpack.c.h.b16 %v591
    %v5965 = vunpack.c.l.b16 %v592
    %v5966 = vunpack.c.h.b16 %v592
    %v5967 = vunpack.c.l.b16 %v593
    %v5968 = vunpack.c.h.b16 %v593
    %v5969 = vunpack.c.l.b16 %v594
    %v5970 = vunpack.c.h.b16 %v594
    %v5971 = vunpack.c.l.b16 %v595
    %v5972 = vunpack.c.h.b16 %v595
    %v5973 = vunpack.c.l.b16 %v596
    %v5974 = vunpack.c.h.b16 %v596
    %v5975 = vunpack.c.l.b16 %v597
    %v5976 = vunpack.c.h.b16 %v597
    %v5977 = vunpack.c.l.b16 %v598
    %v5978 = vunpack.c.h.b16 %v598
    %v5979 = vunpack.c.l.b16 %v599
    %v5980 = vunpack.c.h.b16 %v599
    %v5981 = vunpack.c.l.b16 %v600
    %v5982 = vunpack.c.h.b16 %v600
    %v5983 = vunpack.c.l.b16 %v601
    %v5984 = vunpack.c.h.b16 %v601
    %v5985 = vunpack.c.l.b16 %v602
    %v5986 = vunpack.c.h.b16 %v602
    %v5987 = vunpack.c.l.b16 %v603
    %v5988 = vunpack.c.h.b16 %v603
    %v5989 = vunpack.c.l.b16 %v604
    %v5990 = vunpack.c.h.b16 %v604
    %v5991 = vunpack.c.l.b16 %v605
    %v5992 = vunpack.c.h.b16 %v605
    %v5993 = vunpack.c.l.b16 %v606
    %v5994 = vunpack.c.h.b16 %v606
    %v5995 = vunpack.c.l.b16 %v607
    %v5996 = vunpack.c.h.b16 %v607
    %v5997 = vunpack.c.l.b16 %v608
    %v5998 = vunpack.c.h.b16 %v608
    %v5999 = vunpack.c.l.b16 %v609
    %v6000 = vunpack.c.h.b16 %v609
    %v6001 = vunpack.c.l.b16 %v610
    %v6002 = vunpack.c.h.b16 %v610
    %v6003 = vunpack.c.l.b16 %v611
    %v6004 = vunpack.c.h.b16 %v611
    %v6005 = vunpack.c.l.b16 %v612
    %v6006 = vunpack.c.h.b16 %v612
    %v6007 = vunpack.c.l.b16 %v613
    %v6008 = vunpack.c.h.b16 %v613
    %v6009 = vunpack.c.l.b16 %v614
    %v6010 = vunpack.c.h.b16 %v614
    %v6011 = vunpack.c.l.b16 %v615
    %v6012 = vunpack.c.h.b16 %v615
    %v6013 = vunpack.c.l.b16 %v616
    %v6014 = vunpack.c.h.b16 %v616
    %v6015 = vunpack.c.l.b16 %v617
    %v6016 = vunpack.c.h.b16 %v617
    %v6017 = vunpack.c.l.b16 %v618
    %v6018 = vunpack.c.h.b16 %v618
    %v6019 = vunpack.c.l.b16 %v619
    %v6020 = vunpack.c.h.b16 %v619
    %v6021 = vunpack.c.l.b16 %v620
    %v6022 = vunpack.c.h.b16 %v620
    %v6023 = vunpack.c.l.b16 %v621
    %v6024 = vunpack.c.h.b16 %v621
    %v6025 = vunpack.c.l.b16 %v622
    %v6026 = vunpack.c.h.b16 %v622
    %v6027 = vunpack.c.l.b16 %v623
    %v6028 = vunpack.c.h.b16 %v623
    %v6029 = vunpack.c.l.b16 %v624
    %v6030 = vunpack.c.h.b16 %v624
    %v6031 = vunpack.c.l.b16 %v625
    %v6032 = vunpack.c.h.b16 %v625
    %v6033 = vunpack.c.l.b16 %v626
    %v6034 = vunpack.c.h.b16 %v626
    %v6035 = vunpack.c.l.b16 %v627
    %v6036 = vunpack.c.h.b16 %v627
    %v6037 = vunpack.c.l.b16 %v628
    %v6038 = vunpack.c.h.b16 %v628
    %v6039 = vunpack.c.l.b16 %v629
    %v6040 = vunpack.c.h.b16 %v629
    %v6041 = vunpack.c.l.b16 %v630
    %v6042 = vunpack.c.h.b16 %v630
    %v6043 = vunpack.c.l.b16 %v631
    %v6044 = vunpack.c.h.b16 %v631
    %v6045 = vunpack.c.l.b16 %v632
    %v6046 = vunpack.c.h.b16 %v632
    %v6047 = vunpack.c.l.b16 %v633
    %v6048 = vunpack.c.h.b16 %v633
    %v6049 = vunpack.c.l.b16 %v634
    %v6050 = vunpack.c.h.b16 %v634
    %v6051 = vunpack.c.l.b16 %v635
    %v6052 = vunpack.c.h.b16 %v635
    %v6053 = vunpack.c.l.b16 %v636
    %v6054 = vunpack.c.h.b16 %v636
    %v6055 = vunpack.c.l.b16 %v637
    %v6056 = vunpack.c.h.b16 %v637
    %v6057 = vunpack.c.l.b16 %v638
    %v6058 = vunpack.c.h.b16 %v638
    %v6059 = vunpack.c.l.b16 %v639
    %v6060 = vunpack.c.h.b16 %v639
    %v6061 = vunpack.c.l.b16 %v640
    %v6062 = vunpack.c.h.b16 %v640
    %v6063 = vunpack.c.l.b16 %v641
    %v6064 = vunpack.c.h.b16 %v641
    %v6065 = vunpack.c.l.b16 %v642
    %v6066 = vunpack.c.h.b16 %v642
    %v6067 = vunpack.c.l.b16 %v643
    %v6068 = vunpack.c.h.b16 %v643
    %v6069 = vunpack.c.l.b16 %v644
    %v6070 = vunpack.c.h.b16 %v644
    %v6071 = vunpack.c.l.b16 %v645
    %v6072 = vunpack.c.h.b16 %v645
    %v6073 = vunpack.c.l.b16 %v646
    %v6074 = vunpack.c.h.b16 %v646
    %v6075 = vunpack.c.l.b16 %v647
    %v6076 = vunpack.c.h.b16 %v647
    %v6077 = vunpack.c.l.b16 %v648
    %v6078 = vunpack.c.h.b16 %v648
    %v6079 = vunpack.c.l.b16 %v649
    %v6080 = vunpack.c.h.b16 %v649
    %v6081 = vunpack.c.l.b16 %v650
    %v6082 = vunpack.c.h.b16 %v650
    %v6083 = vunpack.c.l.b16 %v651
    %v6084 = vunpack.c.h.b16 %v651
    %v6085 = vunpack.c.l.b16 %v652
    %v6086 = vunpack.c.h.b16 %v652
    %v6087 = vunpack.c.l.b16 %v653
    %v6088 = vunpack.c.h.b16 %v653
    %v6089 = vunpack.c.l.b16 %v654
    %v6090 = vunpack.c.h.b16 %v654
    %v6091 = vunpack.c.l.b16 %v655
    %v6092 = vunpack.c.h.b16 %v655
    %v6093 = vunpack.c.l.b16 %v656
    %v6094 = vunpack.c.h.b16 %v656
    %v6095 = vunpack.c.l.b16 %v657
    %v6096 = vunpack.c.h.b16 %v657
    %v6097 = vunpack.c.l.b16 %v658
    %v6098 = vunpack.c.h.b16 %v658
    %v6099 = vunpack.c.l.b16 %v659
    %v6100 = vunpack.c.h.b16 %v659
    %v6101 = vunpack.c.l.b16 %v660
    %v6102 = vunpack.c.h.b16 %v660
    %v6103 = vunpack.c.l.b16 %v661
    %v6104 = vunpack.c.h.b16 %v661
    %v6105 = vunpack.c.l.b16 %v662
    %v6106 = vunpack.c.h.b16 %v662
    %v6107 = vunpack.c.l.b16 %v663
    %v6108 = vunpack.c.h.b16 %v663
    %v6109 = vunpack.c.l.b16 %v664
    %v6110 = vunpack.c.h.b16 %v664
    %v6111 = vunpack.c.l.b16 %v665
    %v6112 = vunpack.c.h.b16 %v665
    %v6113 = vunpack.c.l.b16 %v666
    %v6114 = vunpack.c.h.b16 %v666
    %v6115 = vpack.c.b16 %v5099, %v5091
    %v6116 = vpack.c.b16 %v5100, %v5092
    %v6117 = vpack.c.b16 %v5101, %v5093
    %v6118 = vpack.c.b16 %v5102, %v5094
    %v6119 = vpack.c.b16 %v5103, %v5095
    %v6120 = vpack.c.b16 %v5104, %v5096
    %v6121 = vpack.c.b16 %v5105, %v5097
    %v6122 = vpack.c.b16 %v5106, %v5098
    %v6123 = vpack.c.b16 %v5115, %v5107
    %v6124 = vpack.c.b16 %v5116, %v5108
    %v6125 = vpack.c.b16 %v5117, %v5109
    %v6126 = vpack.c.b16 %v5118, %v5110
    %v6127 = vpack.c.b16 %v5119, %v5111
    %v6128 = vpack.c.b16 %v5120, %v5112
    %v6129 = vpack.c.b16 %v5121, %v5113
    %v6130 = vpack.c.b16 %v5122, %v5114
    %v6131 = vpack.c.b16 %v5131, %v5123
    %v6132 = vpack.c.b16 %v5132, %v5124
    %v6133 = vpack.c.b16 %v5133, %v5125
    %v6134 = vpack.c.b16 %v5134, %v5126
    %v6135 = vpack.c.b16 %v5135, %v5127
    %v6136 = vpack.c.b16 %v5136, %v5128
    %v6137 = vpack.c.b16 %v5137, %v5129
    %v6138 = vpack.c.b16 %v5138, %v5130
    %v6139 = vpack.c.b16 %v5147, %v5139
    %v6140 = vpack.c.b16 %v5148, %v5140
    %v6141 = vpack.c.b16 %v5149, %v5141
    %v6142 = vpack.c.b16 %v5150, %v5142
    %v6143 = vpack.c.b16 %v5151, %v5143
    %v6144 = vpack.c.b16 %v5152, %v5144
    %v6145 = vpack.c.b16 %v5153, %v5145
    %v6146 = vpack.c.b16 %v5154, %v5146
    %v6147 = vpack.c.b16 %v5163, %v5155
    %v6148 = vpack.c.b16 %v5164, %v5156
    %v6149 = vpack.c.b16 %v5165, %v5157
    %v6150 = vpack.c.b16 %v5166, %v5158
    %v6151 = vpack.c.b16 %v5167, %v5159
    %v6152 = vpack.c.b16 %v5168, %v5160
    %v6153 = vpack.c.b16 %v5169, %v5161
    %v6154 = vpack.c.b16 %v5170, %v5162
    %v6155 = vpack.c.b16 %v5179, %v5171
    %v6156 = vpack.c.b16 %v5180, %v5172
    %v6157 = vpack.c.b16 %v5181, %v5173
    %v6158 = vpack.c.b16 %v5182, %v5174
    %v6159 = vpack.c.b16 %v5183, %v5175
    %v6160 = vpack.c.b16 %v5184, %v5176
    %v6161 = vpack.c.b16 %v5185, %v5177
    %v6162 = vpack.c.b16 %v5186, %v5178
    %v6163 = vpack.c.b16 %v5195, %v5187
    %v6164 = vpack.c.b16 %v5196, %v5188
    %v6165 = vpack.c.b16 %v5197, %v5189
    %v6166 = vpack.c.b16 %v5198, %v5190
    %v6167 = vpack.c.b16 %v5199, %v5191
    %v6168 = vpack.c.b16 %v5200, %v5192
    %v6169 = vpack.c.b16 %v5201, %v5193
    %v6170 = vpack.c.b16 %v5202, %v5194
    %v6171 = vpack.c.b16 %v5211, %v5203
    %v6172 = vpack.c.b16 %v5212, %v5204
    %v6173 = vpack.c.b16 %v5213, %v5205
    %v6174 = vpack.c.b16 %v5214, %v5206
    %v6175 = vpack.c.b16 %v5215, %v5207
    %v6176 = vpack.c.b16 %v5216, %v5208
    %v6177 = vpack.c.b16 %v5217, %v5209
    %v6178 = vpack.c.b16 %v5218, %v5210
    %v6179 = vpack.c.b16 %v5227, %v5219
    %v6180 = vpack.c.b16 %v5228, %v5220
    %v6181 = vpack.c.b16 %v5229, %v5221
    %v6182 = vpack.c.b16 %v5230, %v5222
    %v6183 = vpack.c.b16 %v5231, %v5223
    %v6184 = vpack.c.b16 %v5232, %v5224
    %v6185 = vpack.c.b16 %v5233, %v5225
    %v6186 = vpack.c.b16 %v5234, %v5226
    %v6187 = vpack.c.b16 %v5243, %v5235
    %v6188 = vpack.c.b16 %v5244, %v5236
    %v6189 = vpack.c.b16 %v5245, %v5237
    %v6190 = vpack.c.b16 %v5246, %v5238
    %v6191 = vpack.c.b16 %v5247, %v5239
    %v6192 = vpack.c.b16 %v5248, %v5240
    %v6193 = vpack.c.b16 %v5249, %v5241
    %v6194 = vpack.c.b16 %v5250, %v5242
    %v6195 = vpack.c.b16 %v5259, %v5251
    %v6196 = vpack.c.b16 %v5260, %v5252
    %v6197 = vpack.c.b16 %v5261, %v5253
    %v6198 = vpack.c.b16 %v5262, %v5254
    %v6199 = vpack.c.b16 %v5263, %v5255
    %v6200 = vpack.c.b16 %v5264, %v5256
    %v6201 = vpack.c.b16 %v5265, %v5257
    %v6202 = vpack.c.b16 %v5266, %v5258
    %v6203 = vpack.c.b16 %v5275, %v5267
    %v6204 = vpack.c.b16 %v5276, %v5268
    %v6205 = vpack.c.b16 %v5277, %v5269
    %v6206 = vpack.c.b16 %v5278, %v5270
    %v6207 = vpack.c.b16 %v5279, %v5271
    %v6208 = vpack.c.b16 %v5280, %v5272
    %v6209 = vpack.c.b16 %v5281, %v5273
    %v6210 = vpack.c.b16 %v5282, %v5274
    %v6211 = vpack.c.b16 %v5291, %v5283
    %v6212 = vpack.c.b16 %v5292, %v5284
    %v6213 = vpack.c.b16 %v5293, %v5285
    %v6214 = vpack.c.b16 %v5294, %v5286
    %v6215 = vpack.c.b16 %v5295, %v5287
    %v6216 = vpack.c.b16 %v5296, %v5288
    %v6217 = vpack.c.b16 %v5297, %v5289
    %v6218 = vpack.c.b16 %v5298, %v5290
    %v6219 = vpack.c.b16 %v5307, %v5299
    %v6220 = vpack.c.b16 %v5308, %v5300
    %v6221 = vpack.c.b16 %v5309, %v5301
    %v6222 = vpack.c.b16 %v5310, %v5302
    %v6223 = vpack.c.b16 %v5311, %v5303
    %v6224 = vpack.c.b16 %v5312, %v5304
    %v6225 = vpack.c.b16 %v5313, %v5305
    %v6226 = vpack.c.b16 %v5314, %v5306
    %v6227 = vpack.c.b16 %v5323, %v5315
    %v6228 = vpack.c.b16 %v5324, %v5316
    %v6229 = vpack.c.b16 %v5325, %v5317
    %v6230 = vpack.c.b16 %v5326, %v5318
    %v6231 = vpack.c.b16 %v5327, %v5319
    %v6232 = vpack.c.b16 %v5328, %v5320
    %v6233 = vpack.c.b16 %v5329, %v5321
    %v6234 = vpack.c.b16 %v5330, %v5322
    %v6235 = vpack.c.b16 %v5339, %v5331
    %v6236 = vpack.c.b16 %v5340, %v5332
    %v6237 = vpack.c.b16 %v5341, %v5333
    %v6238 = vpack.c.b16 %v5342, %v5334
    %v6239 = vpack.c.b16 %v5343, %v5335
    %v6240 = vpack.c.b16 %v5344, %v5336
    %v6241 = vpack.c.b16 %v5345, %v5337
    %v6242 = vpack.c.b16 %v5346, %v5338
    %v6243 = vpack.c.b16 %v5355, %v5347
    %v6244 = vpack.c.b16 %v5356, %v5348
    %v6245 = vpack.c.b16 %v5357, %v5349
    %v6246 = vpack.c.b16 %v5358, %v5350
    %v6247 = vpack.c.b16 %v5359, %v5351
    %v6248 = vpack.c.b16 %v5360, %v5352
    %v6249 = vpack.c.b16 %v5361, %v5353
    %v6250 = vpack.c.b16 %v5362, %v5354
    %v6251 = vpack.c.b16 %v5371, %v5363
    %v6252 = vpack.c.b16 %v5372, %v5364
    %v6253 = vpack.c.b16 %v5373, %v5365
    %v6254 = vpack.c.b16 %v5374, %v5366
    %v6255 = vpack.c.b16 %v5375, %v5367
    %v6256 = vpack.c.b16 %v5376, %v5368
    %v6257 = vpack.c.b16 %v5377, %v5369
    %v6258 = vpack.c.b16 %v5378, %v5370
    %v6259 = vpack.c.b16 %v5387, %v5379
    %v6260 = vpack.c.b16 %v5388, %v5380
    %v6261 = vpack.c.b16 %v5389, %v5381
    %v6262 = vpack.c.b16 %v5390, %v5382
    %v6263 = vpack.c.b16 %v5391, %v5383
    %v6264 = vpack.c.b16 %v5392, %v5384
    %v6265 = vpack.c.b16 %v5393, %v5385
    %v6266 = vpack.c.b16 %v5394, %v5386
    %v6267 = vpack.c.b16 %v5403, %v5395
    %v6268 = vpack.c.b16 %v5404, %v5396
    %v6269 = vpack.c.b16 %v5405, %v5397
    %v6270 = vpack.c.b16 %v5406, %v5398
    %v6271 = vpack.c.b16 %v5407, %v5399
    %v6272 = vpack.c.b16 %v5408, %v5400
    %v6273 = vpack.c.b16 %v5409, %v5401
    %v6274 = vpack.c.b16 %v5410, %v5402
    %v6275 = vpack.c.b16 %v5419, %v5411
    %v6276 = vpack.c.b16 %v5420, %v5412
    %v6277 = vpack.c.b16 %v5421, %v5413
    %v6278 = vpack.c.b16 %v5422, %v5414
    %v6279 = vpack.c.b16 %v5423, %v5415
    %v6280 = vpack.c.b16 %v5424, %v5416
    %v6281 = vpack.c.b16 %v5425, %v5417
    %v6282 = vpack.c.b16 %v5426, %v5418
    %v6283 = vpack.c.b16 %v5435, %v5427
    %v6284 = vpack.c.b16 %v5436, %v5428
    %v6285 = vpack.c.b16 %v5437, %v5429
    %v6286 = vpack.c.b16 %v5438, %v5430
    %v6287 = vpack.c.b16 %v5439, %v5431
    %v6288 = vpack.c.b16 %v5440, %v5432
    %v6289 = vpack.c.b16 %v5441, %v5433
    %v6290 = vpack.c.b16 %v5442, %v5434
    %v6291 = vpack.c.b16 %v5451, %v5443
    %v6292 = vpack.c.b16 %v5452, %v5444
    %v6293 = vpack.c.b16 %v5453, %v5445
    %v6294 = vpack.c.b16 %v5454, %v5446
    %v6295 = vpack.c.b16 %v5455, %v5447
    %v6296 = vpack.c.b16 %v5456, %v5448
    %v6297 = vpack.c.b16 %v5457, %v5449
    %v6298 = vpack.c.b16 %v5458, %v5450
    %v6299 = vpack.c.b16 %v5467, %v5459
    %v6300 = vpack.c.b16 %v5468, %v5460
    %v6301 = vpack.c.b16 %v5469, %v5461
    %v6302 = vpack.c.b16 %v5470, %v5462
    %v6303 = vpack.c.b16 %v5471, %v5463
    %v6304 = vpack.c.b16 %v5472, %v5464
    %v6305 = vpack.c.b16 %v5473, %v5465
    %v6306 = vpack.c.b16 %v5474, %v5466
    %v6307 = vpack.c.b16 %v5483, %v5475
    %v6308 = vpack.c.b16 %v5484, %v5476
    %v6309 = vpack.c.b16 %v5485, %v5477
    %v6310 = vpack.c.b16 %v5486, %v5478
    %v6311 = vpack.c.b16 %v5487, %v5479
    %v6312 = vpack.c.b16 %v5488, %v5480
    %v6313 = vpack.c.b16 %v5489, %v5481
    %v6314 = vpack.c.b16 %v5490, %v5482
    %v6315 = vpack.c.b16 %v5499, %v5491
    %v6316 = vpack.c.b16 %v5500, %v5492
    %v6317 = vpack.c.b16 %v5501, %v5493
    %v6318 = vpack.c.b16 %v5502, %v5494
    %v6319 = vpack.c.b16 %v5503, %v5495
    %v6320 = vpack.c.b16 %v5504, %v5496
    %v6321 = vpack.c.b16 %v5505, %v5497
    %v6322 = vpack.c.b16 %v5506, %v5498
    %v6323 = vpack.c.b16 %v5515, %v5507
    %v6324 = vpack.c.b16 %v5516, %v5508
    %v6325 = vpack.c.b16 %v5517, %v5509
    %v6326 = vpack.c.b16 %v5518, %v5510
    %v6327 = vpack.c.b16 %v5519, %v5511
    %v6328 = vpack.c.b16 %v5520, %v5512
    %v6329 = vpack.c.b16 %v5521, %v5513
    %v6330 = vpack.c.b16 %v5522, %v5514
    %v6331 = vpack.c.b16 %v5531, %v5523
    %v6332 = vpack.c.b16 %v5532, %v5524
    %v6333 = vpack.c.b16 %v5533, %v5525
    %v6334 = vpack.c.b16 %v5534, %v5526
    %v6335 = vpack.c.b16 %v5535, %v5527
    %v6336 = vpack.c.b16 %v5536, %v5528
    %v6337 = vpack.c.b16 %v5537, %v5529
    %v6338 = vpack.c.b16 %v5538, %v5530
    %v6339 = vpack.c.b16 %v5547, %v5539
    %v6340 = vpack.c.b16 %v5548, %v5540
    %v6341 = vpack.c.b16 %v5549, %v5541
    %v6342 = vpack.c.b16 %v5550, %v5542
    %v6343 = vpack.c.b16 %v5551, %v5543
    %v6344 = vpack.c.b16 %v5552, %v5544
    %v6345 = vpack.c.b16 %v5553, %v5545
    %v6346 = vpack.c.b16 %v5554, %v5546
    %v6347 = vpack.c.b16 %v5563, %v5555
    %v6348 = vpack.c.b16 %v5564, %v5556
    %v6349 = vpack.c.b16 %v5565, %v5557
    %v6350 = vpack.c.b16 %v5566, %v5558
    %v6351 = vpack.c.b16 %v5567, %v5559
    %v6352 = vpack.c.b16 %v5568, %v5560
    %v6353 = vpack.c.b16 %v5569, %v5561
    %v6354 = vpack.c.b16 %v5570, %v5562
    %v6355 = vpack.c.b16 %v5579, %v5571
    %v6356 = vpack.c.b16 %v5580, %v5572
    %v6357 = vpack.c.b16 %v5581, %v5573
    %v6358 = vpack.c.b16 %v5582, %v5574
    %v6359 = vpack.c.b16 %v5583, %v5575
    %v6360 = vpack.c.b16 %v5584, %v5576
    %v6361 = vpack.c.b16 %v5585, %v5577
    %v6362 = vpack.c.b16 %v5586, %v5578
    %v6363 = vpack.c.b16 %v5595, %v5587
    %v6364 = vpack.c.b16 %v5596, %v5588
    %v6365 = vpack.c.b16 %v5597, %v5589
    %v6366 = vpack.c.b16 %v5598, %v5590
    %v6367 = vpack.c.b16 %v5599, %v5591
    %v6368 = vpack.c.b16 %v5600, %v5592
    %v6369 = vpack.c.b16 %v5601, %v5593
    %v6370 = vpack.c.b16 %v5602, %v5594
    %v6371 = vpack.c.b16 %v5611, %v5603
    %v6372 = vpack.c.b16 %v5612, %v5604
    %v6373 = vpack.c.b16 %v5613, %v5605
    %v6374 = vpack.c.b16 %v5614, %v5606
    %v6375 = vpack.c.b16 %v5615, %v5607
    %v6376 = vpack.c.b16 %v5616, %v5608
    %v6377 = vpack.c.b16 %v5617, %v5609
    %v6378 = vpack.c.b16 %v5618, %v5610
    %v6379 = vpack.c.b16 %v5627, %v5619
    %v6380 = vpack.c.b16 %v5628, %v5620
    %v6381 = vpack.c.b16 %v5629, %v5621
    %v6382 = vpack.c.b16 %v5630, %v5622
    %v6383 = vpack.c.b16 %v5631, %v5623
    %v6384 = vpack.c.b16 %v5632, %v5624
    %v6385 = vpack.c.b16 %v5633, %v5625
    %v6386 = vpack.c.b16 %v5634, %v5626
    %v6387 = vpack.c.b16 %v5643, %v5635
    %v6388 = vpack.c.b16 %v5644, %v5636
    %v6389 = vpack.c.b16 %v5645, %v5637
    %v6390 = vpack.c.b16 %v5646, %v5638
    %v6391 = vpack.c.b16 %v5647, %v5639
    %v6392 = vpack.c.b16 %v5648, %v5640
    %v6393 = vpack.c.b16 %v5649, %v5641
    %v6394 = vpack.c.b16 %v5650, %v5642
    %v6395 = vpack.c.b16 %v5659, %v5651
    %v6396 = vpack.c.b16 %v5660, %v5652
    %v6397 = vpack.c.b16 %v5661, %v5653
    %v6398 = vpack.c.b16 %v5662, %v5654
    %v6399 = vpack.c.b16 %v5663, %v5655
    %v6400 = vpack.c.b16 %v5664, %v5656
    %v6401 = vpack.c.b16 %v5665, %v5657
    %v6402 = vpack.c.b16 %v5666, %v5658
    %v6403 = vpack.c.b16 %v5675, %v5667
    %v6404 = vpack.c.b16 %v5676, %v5668
    %v6405 = vpack.c.b16 %v5677, %v5669
    %v6406 = vpack.c.b16 %v5678, %v5670
    %v6407 = vpack.c.b16 %v5679, %v5671
    %v6408 = vpack.c.b16 %v5680, %v5672
    %v6409 = vpack.c.b16 %v5681, %v5673
    %v6410 = vpack.c.b16 %v5682, %v5674
    %v6411 = vpack.c.b16 %v5691, %v5683
    %v6412 = vpack.c.b16 %v5692, %v5684
    %v6413 = vpack.c.b16 %v5693, %v5685
    %v6414 = vpack.c.b16 %v5694, %v5686
    %v6415 = vpack.c.b16 %v5695, %v5687
    %v6416 = vpack.c.b16 %v5696, %v5688
    %v6417 = vpack.c.b16 %v5697, %v5689
    %v6418 = vpack.c.b16 %v5698, %v5690
    %v6419 = vpack.c.b16 %v5707, %v5699
    %v6420 = vpack.c.b16 %v5708, %v5700
    %v6421 = vpack.c.b16 %v5709, %v5701
    %v6422 = vpack.c.b16 %v5710, %v5702
    %v6423 = vpack.c.b16 %v5711, %v5703
    %v6424 = vpack.c.b16 %v5712, %v5704
    %v6425 = vpack.c.b16 %v5713, %v5705
    %v6426 = vpack.c.b16 %v5714, %v5706
    %v6427 = vpack.c.b16 %v5723, %v5715
    %v6428 = vpack.c.b16 %v5724, %v5716
    %v6429 = vpack.c.b16 %v5725, %v5717
    %v6430 = vpack.c.b16 %v5726, %v5718
    %v6431 = vpack.c.b16 %v5727, %v5719
    %v6432 = vpack.c.b16 %v5728, %v5720
    %v6433 = vpack.c.b16 %v5729, %v5721
    %v6434 = vpack.c.b16 %v5730, %v5722
    %v6435 = vpack.c.b16 %v5739, %v5731
    %v6436 = vpack.c.b16 %v5740, %v5732
    %v6437 = vpack.c.b16 %v5741, %v5733
    %v6438 = vpack.c.b16 %v5742, %v5734
    %v6439 = vpack.c.b16 %v5743, %v5735
    %v6440 = vpack.c.b16 %v5744, %v5736
    %v6441 = vpack.c.b16 %v5745, %v5737
    %v6442 = vpack.c.b16 %v5746, %v5738
    %v6443 = vpack.c.b16 %v5755, %v5747
    %v6444 = vpack.c.b16 %v5756, %v5748
    %v6445 = vpack.c.b16 %v5757, %v5749
    %v6446 = vpack.c.b16 %v5758, %v5750
    %v6447 = vpack.c.b16 %v5759, %v5751
    %v6448 = vpack.c.b16 %v5760, %v5752
    %v6449 = vpack.c.b16 %v5761, %v5753
    %v6450 = vpack.c.b16 %v5762, %v5754
    %v6451 = vpack.c.b16 %v5771, %v5763
    %v6452 = vpack.c.b16 %v5772, %v5764
    %v6453 = vpack.c.b16 %v5773, %v5765
    %v6454 = vpack.c.b16 %v5774, %v5766
    %v6455 = vpack.c.b16 %v5775, %v5767
    %v6456 = vpack.c.b16 %v5776, %v5768
    %v6457 = vpack.c.b16 %v5777, %v5769
    %v6458 = vpack.c.b16 %v5778, %v5770
    %v6459 = vpack.c.b16 %v5787, %v5779
    %v6460 = vpack.c.b16 %v5788, %v5780
    %v6461 = vpack.c.b16 %v5789, %v5781
    %v6462 = vpack.c.b16 %v5790, %v5782
    %v6463 = vpack.c.b16 %v5791, %v5783
    %v6464 = vpack.c.b16 %v5792, %v5784
    %v6465 = vpack.c.b16 %v5793, %v5785
    %v6466 = vpack.c.b16 %v5794, %v5786
    %v6467 = vpack.c.b16 %v5803, %v5795
    %v6468 = vpack.c.b16 %v5804, %v5796
    %v6469 = vpack.c.b16 %v5805, %v5797
    %v6470 = vpack.c.b16 %v5806, %v5798
    %v6471 = vpack.c.b16 %v5807, %v5799
    %v6472 = vpack.c.b16 %v5808, %v5800
    %v6473 = vpack.c.b16 %v5809, %v5801
    %v6474 = vpack.c.b16 %v5810, %v5802
    %v6475 = vpack.c.b16 %v5819, %v5811
    %v6476 = vpack.c.b16 %v5820, %v5812
    %v6477 = vpack.c.b16 %v5821, %v5813
    %v6478 = vpack.c.b16 %v5822, %v5814
    %v6479 = vpack.c.b16 %v5823, %v5815
    %v6480 = vpack.c.b16 %v5824, %v5816
    %v6481 = vpack.c.b16 %v5825, %v5817
    %v6482 = vpack.c.b16 %v5826, %v5818
    %v6483 = vpack.c.b16 %v5835, %v5827
    %v6484 = vpack.c.b16 %v5836, %v5828
    %v6485 = vpack.c.b16 %v5837, %v5829
    %v6486 = vpack.c.b16 %v5838, %v5830
    %v6487 = vpack.c.b16 %v5839, %v5831
    %v6488 = vpack.c.b16 %v5840, %v5832
    %v6489 = vpack.c.b16 %v5841, %v5833
    %v6490 = vpack.c.b16 %v5842, %v5834
    %v6491 = vpack.c.b16 %v5851, %v5843
    %v6492 = vpack.c.b16 %v5852, %v5844
    %v6493 = vpack.c.b16 %v5853, %v5845
    %v6494 = vpack.c.b16 %v5854, %v5846
    %v6495 = vpack.c.b16 %v5855, %v5847
    %v6496 = vpack.c.b16 %v5856, %v5848
    %v6497 = vpack.c.b16 %v5857, %v5849
    %v6498 = vpack.c.b16 %v5858, %v5850
    %v6499 = vpack.c.b16 %v5867, %v5859
    %v6500 = vpack.c.b16 %v5868, %v5860
    %v6501 = vpack.c.b16 %v5869, %v5861
    %v6502 = vpack.c.b16 %v5870, %v5862
    %v6503 = vpack.c.b16 %v5871, %v5863
    %v6504 = vpack.c.b16 %v5872, %v5864
    %v6505 = vpack.c.b16 %v5873, %v5865
    %v6506 = vpack.c.b16 %v5874, %v5866
    %v6507 = vpack.c.b16 %v5883, %v5875
    %v6508 = vpack.c.b16 %v5884, %v5876
    %v6509 = vpack.c.b16 %v5885, %v5877
    %v6510 = vpack.c.b16 %v5886, %v5878
    %v6511 = vpack.c.b16 %v5887, %v5879
    %v6512 = vpack.c.b16 %v5888, %v5880
    %v6513 = vpack.c.b16 %v5889, %v5881
    %v6514 = vpack.c.b16 %v5890, %v5882
    %v6515 = vpack.c.b16 %v5899, %v5891
    %v6516 = vpack.c.b16 %v5900, %v5892
    %v6517 = vpack.c.b16 %v5901, %v5893
    %v6518 = vpack.c.b16 %v5902, %v5894
    %v6519 = vpack.c.b16 %v5903, %v5895
    %v6520 = vpack.c.b16 %v5904, %v5896
    %v6521 = vpack.c.b16 %v5905, %v5897
    %v6522 = vpack.c.b16 %v5906, %v5898
    %v6523 = vpack.c.b16 %v5915, %v5907
    %v6524 = vpack.c.b16 %v5916, %v5908
    %v6525 = vpack.c.b16 %v5917, %v5909
    %v6526 = vpack.c.b16 %v5918, %v5910
    %v6527 = vpack.c.b16 %v5919, %v5911
    %v6528 = vpack.c.b16 %v5920, %v5912
    %v6529 = vpack.c.b16 %v5921, %v5913
    %v6530 = vpack.c.b16 %v5922, %v5914
    %v6531 = vpack.c.b16 %v5931, %v5923
    %v6532 = vpack.c.b16 %v5932, %v5924
    %v6533 = vpack.c.b16 %v5933, %v5925
    %v6534 = vpack.c.b16 %v5934, %v5926
    %v6535 = vpack.c.b16 %v5935, %v5927
    %v6536 = vpack.c.b16 %v5936, %v5928
    %v6537 = vpack.c.b16 %v5937, %v5929
    %v6538 = vpack.c.b16 %v5938, %v5930
    %v6539 = vpack.c.b16 %v5947, %v5939
    %v6540 = vpack.c.b16 %v5948, %v5940
    %v6541 = vpack.c.b16 %v5949, %v5941
    %v6542 = vpack.c.b16 %v5950, %v5942
    %v6543 = vpack.c.b16 %v5951, %v5943
    %v6544 = vpack.c.b16 %v5952, %v5944
    %v6545 = vpack.c.b16 %v5953, %v5945
    %v6546 = vpack.c.b16 %v5954, %v5946
    %v6547 = vpack.c.b16 %v5963, %v5955
    %v6548 = vpack.c.b16 %v5964, %v5956
    %v6549 = vpack.c.b16 %v5965, %v5957
    %v6550 = vpack.c.b16 %v5966, %v5958
    %v6551 = vpack.c.b16 %v5967, %v5959
    %v6552 = vpack.c.b16 %v5968, %v5960
    %v6553 = vpack.c.b16 %v5969, %v5961
    %v6554 = vpack.c.b16 %v5970, %v5962
    %v6555 = vpack.c.b16 %v5979, %v5971
    %v6556 = vpack.c.b16 %v5980, %v5972
    %v6557 = vpack.c.b16 %v5981, %v5973
    %v6558 = vpack.c.b16 %v5982, %v5974
    %v6559 = vpack.c.b16 %v5983, %v5975
    %v6560 = vpack.c.b16 %v5984, %v5976
    %v6561 = vpack.c.b16 %v5985, %v5977
    %v6562 = vpack.c.b16 %v5986, %v5978
    %v6563 = vpack.c.b16 %v5995, %v5987
    %v6564 = vpack.c.b16 %v5996, %v5988
    %v6565 = vpack.c.b16 %v5997, %v5989
    %v6566 = vpack.c.b16 %v5998, %v5990
    %v6567 = vpack.c.b16 %v5999, %v5991
    %v6568 = vpack.c.b16 %v6000, %v5992
    %v6569 = vpack.c.b16 %v6001, %v5993
    %v6570 = vpack.c.b16 %v6002, %v5994
    %v6571 = vpack.c.b16 %v6011, %v6003
    %v6572 = vpack.c.b16 %v6012, %v6004
    %v6573 = vpack.c.b16 %v6013, %v6005
    %v6574 = vpack.c.b16 %v6014, %v6006
    %v6575 = vpack.c.b16 %v6015, %v6007
    %v6576 = vpack.c.b16 %v6016, %v6008
    %v6577 = vpack.c.b16 %v6017, %v6009
    %v6578 = vpack.c.b16 %v6018, %v6010
    %v6579 = vpack.c.b16 %v6027, %v6019
    %v6580 = vpack.c.b16 %v6028, %v6020
    %v6581 = vpack.c.b16 %v6029, %v6021
    %v6582 = vpack.c.b16 %v6030, %v6022
    %v6583 = vpack.c.b16 %v6031, %v6023
    %v6584 = vpack.c.b16 %v6032, %v6024
    %v6585 = vpack.c.b16 %v6033, %v6025
    %v6586 = vpack.c.b16 %v6034, %v6026
    %v6587 = vpack.c.b16 %v6043, %v6035
    %v6588 = vpack.c.b16 %v6044, %v6036
    %v6589 = vpack.c.b16 %v6045, %v6037
    %v6590 = vpack.c.b16 %v6046, %v6038
    %v6591 = vpack.c.b16 %v6047, %v6039
    %v6592 = vpack.c.b16 %v6048, %v6040
    %v6593 = vpack.c.b16 %v6049, %v6041
    %v6594 = vpack.c.b16 %v6050, %v6042
    %v6595 = vpack.c.b16 %v6059, %v6051
    %v6596 = vpack.c.b16 %v6060, %v6052
    %v6597 = vpack.c.b16 %v6061, %v6053
    %v6598 = vpack.c.b16 %v6062, %v6054
    %v6599 = vpack.c.b16 %v6063, %v6055
    %v6600 = vpack.c.b16 %v6064, %v6056
    %v6601 = vpack.c.b16 %v6065, %v6057
    %v6602 = vpack.c.b16 %v6066, %v6058
    %v6603 = vpack.c.b16 %v6075, %v6067
    %v6604 = vpack.c.b16 %v6076, %v6068
    %v6605 = vpack.c.b16 %v6077, %v6069
    %v6606 = vpack.c.b16 %v6078, %v6070
    %v6607 = vpack.c.b16 %v6079, %v6071
    %v6608 = vpack.c.b16 %v6080, %v6072
    %v6609 = vpack.c.b16 %v6081, %v6073
    %v6610 = vpack.c.b16 %v6082, %v6074
    %v6611 = vpack.c.b16 %v6091, %v6083
    %v6612 = vpack.c.b16 %v6092, %v6084
    %v6613 = vpack.c.b16 %v6093, %v6085
    %v6614 = vpack.c.b16 %v6094, %v6086
    %v6615 = vpack.c.b16 %v6095, %v6087
    %v6616 = vpack.c.b16 %v6096, %v6088
    %v6617 = vpack.c.b16 %v6097, %v6089
    %v6618 = vpack.c.b16 %v6098, %v6090
    %v6619 = vpack.c.b16 %v6107, %v6099
    %v6620 = vpack.c.b16 %v6108, %v6100
    %v6621 = vpack.c.b16 %v6109, %v6101
    %v6622 = vpack.c.b16 %v6110, %v6102
    %v6623 = vpack.c.b16 %v6111, %v6103
    %v6624 = vpack.c.b16 %v6112, %v6104
    %v6625 = vpack.c.b16 %v6113, %v6105
    %v6626 = vpack.c.b16 %v6114, %v6106
    %7139 = vmatpush.bf16.msra.mxu0 %v6171
    %7140 = vmatpush.bf16.msra.mxu0 %v6163
    %7141 = vmatpush.bf16.msra.mxu0 %v6155
    %7142 = vmatpush.bf16.msra.mxu0 %v6147
    %7143 = vmatpush.bf16.msra.mxu0 %v6139
    %7144 = vmatpush.bf16.msra.mxu0 %v6131
    %7145 = vmatpush.bf16.msra.mxu0 %v6123
    %7146 = vmatpush.bf16.msra.mxu0 %v6115
    %7147 = vmatmul.bf16.gmra.mxu0 %v147
    %v7148 = vpop.f32.mrf.mxu0
    %v7149 = vadd.f32 %v3848, %v7148
    %v7150 = vpop.f32.mrf.mxu0
    %7151 = vdwg.mxu0
    %7152 = vmatpush.bf16.msra.mxu0 %v6235
    %7153 = vmatpush.bf16.msra.mxu0 %v6227
    %7154 = vmatpush.bf16.msra.mxu0 %v6219
    %7155 = vmatpush.bf16.msra.mxu0 %v6211
    %7156 = vmatpush.bf16.msra.mxu0 %v6203
    %7157 = vmatpush.bf16.msra.mxu0 %v6195
    %7158 = vmatpush.bf16.msra.mxu0 %v6187
    %7159 = vmatpush.bf16.msra.mxu0 %v6179
    %7160 = vmatmul.bf16.gmra.mxu0 %v148
    %v7161 = vpop.f32.mrf.mxu0
    %v7162 = vadd.f32 %v7149, %v7161
    %v7163 = vpop.f32.mrf.mxu0
    %7164 = vdwg.mxu0
    %7165 = vmatpush.bf16.msra.mxu0 %v6299
    %7166 = vmatpush.bf16.msra.mxu0 %v6291
    %7167 = vmatpush.bf16.msra.mxu0 %v6283
    %7168 = vmatpush.bf16.msra.mxu0 %v6275
    %7169 = vmatpush.bf16.msra.mxu0 %v6267
    %7170 = vmatpush.bf16.msra.mxu0 %v6259
    %7171 = vmatpush.bf16.msra.mxu0 %v6251
    %7172 = vmatpush.bf16.msra.mxu0 %v6243
    %7173 = vmatmul.bf16.gmra.mxu0 %v149
    %v7174 = vpop.f32.mrf.mxu0
    %v7175 = vadd.f32 %v7162, %v7174
    %v7176 = vpop.f32.mrf.mxu0
    %7177 = vdwg.mxu0
    %7178 = vmatpush.bf16.msra.mxu0 %v6363
    %7179 = vmatpush.bf16.msra.mxu0 %v6355
    %7180 = vmatpush.bf16.msra.mxu0 %v6347
    %7181 = vmatpush.bf16.msra.mxu0 %v6339
    %7182 = vmatpush.bf16.msra.mxu0 %v6331
    %7183 = vmatpush.bf16.msra.mxu0 %v6323
    %7184 = vmatpush.bf16.msra.mxu0 %v6315
    %7185 = vmatpush.bf16.msra.mxu0 %v6307
    %7186 = vmatmul.bf16.gmra.mxu0 %v150
    %v7187 = vpop.f32.mrf.mxu0
    %v7188 = vadd.f32 %v7175, %v7187
    %v7189 = vpop.f32.mrf.mxu0
    %7190 = vdwg.mxu0
    %7191 = vmatpush.bf16.msra.mxu0 %v6427
    %7192 = vmatpush.bf16.msra.mxu0 %v6419
    %7193 = vmatpush.bf16.msra.mxu0 %v6411
    %7194 = vmatpush.bf16.msra.mxu0 %v6403
    %7195 = vmatpush.bf16.msra.mxu0 %v6395
    %7196 = vmatpush.bf16.msra.mxu0 %v6387
    %7197 = vmatpush.bf16.msra.mxu0 %v6379
    %7198 = vmatpush.bf16.msra.mxu0 %v6371
    %7199 = vmatmul.bf16.gmra.mxu0 %v151
    %v7200 = vpop.f32.mrf.mxu0
    %v7201 = vadd.f32 %v7188, %v7200
    %v7202 = vpop.f32.mrf.mxu0
    %7203 = vdwg.mxu0
    %7204 = vmatpush.bf16.msra.mxu0 %v6491
    %7205 = vmatpush.bf16.msra.mxu0 %v6483
    %7206 = vmatpush.bf16.msra.mxu0 %v6475
    %7207 = vmatpush.bf16.msra.mxu0 %v6467
    %7208 = vmatpush.bf16.msra.mxu0 %v6459
    %7209 = vmatpush.bf16.msra.mxu0 %v6451
    %7210 = vmatpush.bf16.msra.mxu0 %v6443
    %7211 = vmatpush.bf16.msra.mxu0 %v6435
    %7212 = vmatmul.bf16.gmra.mxu0 %v152
    %v7213 = vpop.f32.mrf.mxu0
    %v7214 = vadd.f32 %v7201, %v7213
    %v7215 = vpop.f32.mrf.mxu0
    %7216 = vdwg.mxu0
    %7217 = vmatpush.bf16.msra.mxu0 %v6555
    %7218 = vmatpush.bf16.msra.mxu0 %v6547
    %7219 = vmatpush.bf16.msra.mxu0 %v6539
    %7220 = vmatpush.bf16.msra.mxu0 %v6531
    %7221 = vmatpush.bf16.msra.mxu0 %v6523
    %7222 = vmatpush.bf16.msra.mxu0 %v6515
    %7223 = vmatpush.bf16.msra.mxu0 %v6507
    %7224 = vmatpush.bf16.msra.mxu0 %v6499
    %7225 = vmatmul.bf16.gmra.mxu0 %v153
    %v7226 = vpop.f32.mrf.mxu0
    %v7227 = vadd.f32 %v7214, %v7226
    %v7228 = vpop.f32.mrf.mxu0
    %7229 = vdwg.mxu0
    %7230 = vmatpush.bf16.msra.mxu0 %v6619
    %7231 = vmatpush.bf16.msra.mxu0 %v6611
    %7232 = vmatpush.bf16.msra.mxu0 %v6603
    %7233 = vmatpush.bf16.msra.mxu0 %v6595
    %7234 = vmatpush.bf16.msra.mxu0 %v6587
    %7235 = vmatpush.bf16.msra.mxu0 %v6579
    %7236 = vmatpush.bf16.msra.mxu0 %v6571
    %7237 = vmatpush.bf16.msra.mxu0 %v6563
    %7238 = vmatmul.bf16.gmra.mxu0 %v154
    %v7239 = vpop.f32.mrf.mxu0
    %v7240 = vadd.f32 %v7227, %v7239
    %v7241 = vpop.f32.mrf.mxu0
    %7242 = vdwg.mxu0
    %7243 = vmatpush.bf16.msra.mxu0 %v6172
    %7244 = vmatpush.bf16.msra.mxu0 %v6164
    %7245 = vmatpush.bf16.msra.mxu0 %v6156
    %7246 = vmatpush.bf16.msra.mxu0 %v6148
    %7247 = vmatpush.bf16.msra.mxu0 %v6140
    %7248 = vmatpush.bf16.msra.mxu0 %v6132
    %7249 = vmatpush.bf16.msra.mxu0 %v6124
    %7250 = vmatpush.bf16.msra.mxu0 %v6116
    %7251 = vmatmul.bf16.gmra.mxu0 %v147
    %v7252 = vpop.f32.mrf.mxu0
    %v7253 = vadd.f32 %v3952, %v7252
    %v7254 = vpop.f32.mrf.mxu0
    %7255 = vdwg.mxu0
    %7256 = vmatpush.bf16.msra.mxu0 %v6236
    %7257 = vmatpush.bf16.msra.mxu0 %v6228
    %7258 = vmatpush.bf16.msra.mxu0 %v6220
    %7259 = vmatpush.bf16.msra.mxu0 %v6212
    %7260 = vmatpush.bf16.msra.mxu0 %v6204
    %7261 = vmatpush.bf16.msra.mxu0 %v6196
    %7262 = vmatpush.bf16.msra.mxu0 %v6188
    %7263 = vmatpush.bf16.msra.mxu0 %v6180
    %7264 = vmatmul.bf16.gmra.mxu0 %v148
    %v7265 = vpop.f32.mrf.mxu0
    %v7266 = vadd.f32 %v7253, %v7265
    %v7267 = vpop.f32.mrf.mxu0
    %7268 = vdwg.mxu0
    %7269 = vmatpush.bf16.msra.mxu0 %v6300
    %7270 = vmatpush.bf16.msra.mxu0 %v6292
    %7271 = vmatpush.bf16.msra.mxu0 %v6284
    %7272 = vmatpush.bf16.msra.mxu0 %v6276
    %7273 = vmatpush.bf16.msra.mxu0 %v6268
    %7274 = vmatpush.bf16.msra.mxu0 %v6260
    %7275 = vmatpush.bf16.msra.mxu0 %v6252
    %7276 = vmatpush.bf16.msra.mxu0 %v6244
    %7277 = vmatmul.bf16.gmra.mxu0 %v149
    %v7278 = vpop.f32.mrf.mxu0
    %v7279 = vadd.f32 %v7266, %v7278
    %v7280 = vpop.f32.mrf.mxu0
    %7281 = vdwg.mxu0
    %7282 = vmatpush.bf16.msra.mxu0 %v6364
    %7283 = vmatpush.bf16.msra.mxu0 %v6356
    %7284 = vmatpush.bf16.msra.mxu0 %v6348
    %7285 = vmatpush.bf16.msra.mxu0 %v6340
    %7286 = vmatpush.bf16.msra.mxu0 %v6332
    %7287 = vmatpush.bf16.msra.mxu0 %v6324
    %7288 = vmatpush.bf16.msra.mxu0 %v6316
    %7289 = vmatpush.bf16.msra.mxu0 %v6308
    %7290 = vmatmul.bf16.gmra.mxu0 %v150
    %v7291 = vpop.f32.mrf.mxu0
    %v7292 = vadd.f32 %v7279, %v7291
    %v7293 = vpop.f32.mrf.mxu0
    %7294 = vdwg.mxu0
    %7295 = vmatpush.bf16.msra.mxu0 %v6428
    %7296 = vmatpush.bf16.msra.mxu0 %v6420
    %7297 = vmatpush.bf16.msra.mxu0 %v6412
    %7298 = vmatpush.bf16.msra.mxu0 %v6404
    %7299 = vmatpush.bf16.msra.mxu0 %v6396
    %7300 = vmatpush.bf16.msra.mxu0 %v6388
    %7301 = vmatpush.bf16.msra.mxu0 %v6380
    %7302 = vmatpush.bf16.msra.mxu0 %v6372
    %7303 = vmatmul.bf16.gmra.mxu0 %v151
    %v7304 = vpop.f32.mrf.mxu0
    %v7305 = vadd.f32 %v7292, %v7304
    %v7306 = vpop.f32.mrf.mxu0
    %7307 = vdwg.mxu0
    %7308 = vmatpush.bf16.msra.mxu0 %v6492
    %7309 = vmatpush.bf16.msra.mxu0 %v6484
    %7310 = vmatpush.bf16.msra.mxu0 %v6476
    %7311 = vmatpush.bf16.msra.mxu0 %v6468
    %7312 = vmatpush.bf16.msra.mxu0 %v6460
    %7313 = vmatpush.bf16.msra.mxu0 %v6452
    %7314 = vmatpush.bf16.msra.mxu0 %v6444
    %7315 = vmatpush.bf16.msra.mxu0 %v6436
    %7316 = vmatmul.bf16.gmra.mxu0 %v152
    %v7317 = vpop.f32.mrf.mxu0
    %v7318 = vadd.f32 %v7305, %v7317
    %v7319 = vpop.f32.mrf.mxu0
    %7320 = vdwg.mxu0
    %7321 = vmatpush.bf16.msra.mxu0 %v6556
    %7322 = vmatpush.bf16.msra.mxu0 %v6548
    %7323 = vmatpush.bf16.msra.mxu0 %v6540
    %7324 = vmatpush.bf16.msra.mxu0 %v6532
    %7325 = vmatpush.bf16.msra.mxu0 %v6524
    %7326 = vmatpush.bf16.msra.mxu0 %v6516
    %7327 = vmatpush.bf16.msra.mxu0 %v6508
    %7328 = vmatpush.bf16.msra.mxu0 %v6500
    %7329 = vmatmul.bf16.gmra.mxu0 %v153
    %v7330 = vpop.f32.mrf.mxu0
    %v7331 = vadd.f32 %v7318, %v7330
    %v7332 = vpop.f32.mrf.mxu0
    %7333 = vdwg.mxu0
    %7334 = vmatpush.bf16.msra.mxu0 %v6620
    %7335 = vmatpush.bf16.msra.mxu0 %v6612
    %7336 = vmatpush.bf16.msra.mxu0 %v6604
    %7337 = vmatpush.bf16.msra.mxu0 %v6596
    %7338 = vmatpush.bf16.msra.mxu0 %v6588
    %7339 = vmatpush.bf16.msra.mxu0 %v6580
    %7340 = vmatpush.bf16.msra.mxu0 %v6572
    %7341 = vmatpush.bf16.msra.mxu0 %v6564
    %7342 = vmatmul.bf16.gmra.mxu0 %v154
    %v7343 = vpop.f32.mrf.mxu0
    %v7344 = vadd.f32 %v7331, %v7343
    %v7345 = vpop.f32.mrf.mxu0
    %7346 = vdwg.mxu0
    %7347 = vmatpush.bf16.msra.mxu0 %v6173
    %7348 = vmatpush.bf16.msra.mxu0 %v6165
    %7349 = vmatpush.bf16.msra.mxu0 %v6157
    %7350 = vmatpush.bf16.msra.mxu0 %v6149
    %7351 = vmatpush.bf16.msra.mxu0 %v6141
    %7352 = vmatpush.bf16.msra.mxu0 %v6133
    %7353 = vmatpush.bf16.msra.mxu0 %v6125
    %7354 = vmatpush.bf16.msra.mxu0 %v6117
    %7355 = vmatmul.bf16.gmra.mxu0 %v147
    %v7356 = vpop.f32.mrf.mxu0
    %v7357 = vadd.f32 %v4056, %v7356
    %v7358 = vpop.f32.mrf.mxu0
    %7359 = vdwg.mxu0
    %7360 = vmatpush.bf16.msra.mxu0 %v6237
    %7361 = vmatpush.bf16.msra.mxu0 %v6229
    %7362 = vmatpush.bf16.msra.mxu0 %v6221
    %7363 = vmatpush.bf16.msra.mxu0 %v6213
    %7364 = vmatpush.bf16.msra.mxu0 %v6205
    %7365 = vmatpush.bf16.msra.mxu0 %v6197
    %7366 = vmatpush.bf16.msra.mxu0 %v6189
    %7367 = vmatpush.bf16.msra.mxu0 %v6181
    %7368 = vmatmul.bf16.gmra.mxu0 %v148
    %v7369 = vpop.f32.mrf.mxu0
    %v7370 = vadd.f32 %v7357, %v7369
    %v7371 = vpop.f32.mrf.mxu0
    %7372 = vdwg.mxu0
    %7373 = vmatpush.bf16.msra.mxu0 %v6301
    %7374 = vmatpush.bf16.msra.mxu0 %v6293
    %7375 = vmatpush.bf16.msra.mxu0 %v6285
    %7376 = vmatpush.bf16.msra.mxu0 %v6277
    %7377 = vmatpush.bf16.msra.mxu0 %v6269
    %7378 = vmatpush.bf16.msra.mxu0 %v6261
    %7379 = vmatpush.bf16.msra.mxu0 %v6253
    %7380 = vmatpush.bf16.msra.mxu0 %v6245
    %7381 = vmatmul.bf16.gmra.mxu0 %v149
    %v7382 = vpop.f32.mrf.mxu0
    %v7383 = vadd.f32 %v7370, %v7382
    %v7384 = vpop.f32.mrf.mxu0
    %7385 = vdwg.mxu0
    %7386 = vmatpush.bf16.msra.mxu0 %v6365
    %7387 = vmatpush.bf16.msra.mxu0 %v6357
    %7388 = vmatpush.bf16.msra.mxu0 %v6349
    %7389 = vmatpush.bf16.msra.mxu0 %v6341
    %7390 = vmatpush.bf16.msra.mxu0 %v6333
    %7391 = vmatpush.bf16.msra.mxu0 %v6325
    %7392 = vmatpush.bf16.msra.mxu0 %v6317
    %7393 = vmatpush.bf16.msra.mxu0 %v6309
    %7394 = vmatmul.bf16.gmra.mxu0 %v150
    %v7395 = vpop.f32.mrf.mxu0
    %v7396 = vadd.f32 %v7383, %v7395
    %v7397 = vpop.f32.mrf.mxu0
    %7398 = vdwg.mxu0
    %7399 = vmatpush.bf16.msra.mxu0 %v6429
    %7400 = vmatpush.bf16.msra.mxu0 %v6421
    %7401 = vmatpush.bf16.msra.mxu0 %v6413
    %7402 = vmatpush.bf16.msra.mxu0 %v6405
    %7403 = vmatpush.bf16.msra.mxu0 %v6397
    %7404 = vmatpush.bf16.msra.mxu0 %v6389
    %7405 = vmatpush.bf16.msra.mxu0 %v6381
    %7406 = vmatpush.bf16.msra.mxu0 %v6373
    %7407 = vmatmul.bf16.gmra.mxu0 %v151
    %v7408 = vpop.f32.mrf.mxu0
    %v7409 = vadd.f32 %v7396, %v7408
    %v7410 = vpop.f32.mrf.mxu0
    %7411 = vdwg.mxu0
    %7412 = vmatpush.bf16.msra.mxu0 %v6493
    %7413 = vmatpush.bf16.msra.mxu0 %v6485
    %7414 = vmatpush.bf16.msra.mxu0 %v6477
    %7415 = vmatpush.bf16.msra.mxu0 %v6469
    %7416 = vmatpush.bf16.msra.mxu0 %v6461
    %7417 = vmatpush.bf16.msra.mxu0 %v6453
    %7418 = vmatpush.bf16.msra.mxu0 %v6445
    %7419 = vmatpush.bf16.msra.mxu0 %v6437
    %7420 = vmatmul.bf16.gmra.mxu0 %v152
    %v7421 = vpop.f32.mrf.mxu0
    %v7422 = vadd.f32 %v7409, %v7421
    %v7423 = vpop.f32.mrf.mxu0
    %7424 = vdwg.mxu0
    %7425 = vmatpush.bf16.msra.mxu0 %v6557
    %7426 = vmatpush.bf16.msra.mxu0 %v6549
    %7427 = vmatpush.bf16.msra.mxu0 %v6541
    %7428 = vmatpush.bf16.msra.mxu0 %v6533
    %7429 = vmatpush.bf16.msra.mxu0 %v6525
    %7430 = vmatpush.bf16.msra.mxu0 %v6517
    %7431 = vmatpush.bf16.msra.mxu0 %v6509
    %7432 = vmatpush.bf16.msra.mxu0 %v6501
    %7433 = vmatmul.bf16.gmra.mxu0 %v153
    %v7434 = vpop.f32.mrf.mxu0
    %v7435 = vadd.f32 %v7422, %v7434
    %v7436 = vpop.f32.mrf.mxu0
    %7437 = vdwg.mxu0
    %7438 = vmatpush.bf16.msra.mxu0 %v6621
    %7439 = vmatpush.bf16.msra.mxu0 %v6613
    %7440 = vmatpush.bf16.msra.mxu0 %v6605
    %7441 = vmatpush.bf16.msra.mxu0 %v6597
    %7442 = vmatpush.bf16.msra.mxu0 %v6589
    %7443 = vmatpush.bf16.msra.mxu0 %v6581
    %7444 = vmatpush.bf16.msra.mxu0 %v6573
    %7445 = vmatpush.bf16.msra.mxu0 %v6565
    %7446 = vmatmul.bf16.gmra.mxu0 %v154
    %v7447 = vpop.f32.mrf.mxu0
    %v7448 = vadd.f32 %v7435, %v7447
    %v7449 = vpop.f32.mrf.mxu0
    %7450 = vdwg.mxu0
    %7451 = vmatpush.bf16.msra.mxu0 %v6174
    %7452 = vmatpush.bf16.msra.mxu0 %v6166
    %7453 = vmatpush.bf16.msra.mxu0 %v6158
    %7454 = vmatpush.bf16.msra.mxu0 %v6150
    %7455 = vmatpush.bf16.msra.mxu0 %v6142
    %7456 = vmatpush.bf16.msra.mxu0 %v6134
    %7457 = vmatpush.bf16.msra.mxu0 %v6126
    %7458 = vmatpush.bf16.msra.mxu0 %v6118
    %7459 = vmatmul.bf16.gmra.mxu0 %v147
    %v7460 = vpop.f32.mrf.mxu0
    %v7461 = vadd.f32 %v4160, %v7460
    %v7462 = vpop.f32.mrf.mxu0
    %7463 = vdwg.mxu0
    %7464 = vmatpush.bf16.msra.mxu0 %v6238
    %7465 = vmatpush.bf16.msra.mxu0 %v6230
    %7466 = vmatpush.bf16.msra.mxu0 %v6222
    %7467 = vmatpush.bf16.msra.mxu0 %v6214
    %7468 = vmatpush.bf16.msra.mxu0 %v6206
    %7469 = vmatpush.bf16.msra.mxu0 %v6198
    %7470 = vmatpush.bf16.msra.mxu0 %v6190
    %7471 = vmatpush.bf16.msra.mxu0 %v6182
    %7472 = vmatmul.bf16.gmra.mxu0 %v148
    %v7473 = vpop.f32.mrf.mxu0
    %v7474 = vadd.f32 %v7461, %v7473
    %v7475 = vpop.f32.mrf.mxu0
    %7476 = vdwg.mxu0
    %7477 = vmatpush.bf16.msra.mxu0 %v6302
    %7478 = vmatpush.bf16.msra.mxu0 %v6294
    %7479 = vmatpush.bf16.msra.mxu0 %v6286
    %7480 = vmatpush.bf16.msra.mxu0 %v6278
    %7481 = vmatpush.bf16.msra.mxu0 %v6270
    %7482 = vmatpush.bf16.msra.mxu0 %v6262
    %7483 = vmatpush.bf16.msra.mxu0 %v6254
    %7484 = vmatpush.bf16.msra.mxu0 %v6246
    %7485 = vmatmul.bf16.gmra.mxu0 %v149
    %v7486 = vpop.f32.mrf.mxu0
    %v7487 = vadd.f32 %v7474, %v7486
    %v7488 = vpop.f32.mrf.mxu0
    %7489 = vdwg.mxu0
    %7490 = vmatpush.bf16.msra.mxu0 %v6366
    %7491 = vmatpush.bf16.msra.mxu0 %v6358
    %7492 = vmatpush.bf16.msra.mxu0 %v6350
    %7493 = vmatpush.bf16.msra.mxu0 %v6342
    %7494 = vmatpush.bf16.msra.mxu0 %v6334
    %7495 = vmatpush.bf16.msra.mxu0 %v6326
    %7496 = vmatpush.bf16.msra.mxu0 %v6318
    %7497 = vmatpush.bf16.msra.mxu0 %v6310
    %7498 = vmatmul.bf16.gmra.mxu0 %v150
    %v7499 = vpop.f32.mrf.mxu0
    %v7500 = vadd.f32 %v7487, %v7499
    %v7501 = vpop.f32.mrf.mxu0
    %7502 = vdwg.mxu0
    %7503 = vmatpush.bf16.msra.mxu0 %v6430
    %7504 = vmatpush.bf16.msra.mxu0 %v6422
    %7505 = vmatpush.bf16.msra.mxu0 %v6414
    %7506 = vmatpush.bf16.msra.mxu0 %v6406
    %7507 = vmatpush.bf16.msra.mxu0 %v6398
    %7508 = vmatpush.bf16.msra.mxu0 %v6390
    %7509 = vmatpush.bf16.msra.mxu0 %v6382
    %7510 = vmatpush.bf16.msra.mxu0 %v6374
    %7511 = vmatmul.bf16.gmra.mxu0 %v151
    %v7512 = vpop.f32.mrf.mxu0
    %v7513 = vadd.f32 %v7500, %v7512
    %v7514 = vpop.f32.mrf.mxu0
    %7515 = vdwg.mxu0
    %7516 = vmatpush.bf16.msra.mxu0 %v6494
    %7517 = vmatpush.bf16.msra.mxu0 %v6486
    %7518 = vmatpush.bf16.msra.mxu0 %v6478
    %7519 = vmatpush.bf16.msra.mxu0 %v6470
    %7520 = vmatpush.bf16.msra.mxu0 %v6462
    %7521 = vmatpush.bf16.msra.mxu0 %v6454
    %7522 = vmatpush.bf16.msra.mxu0 %v6446
    %7523 = vmatpush.bf16.msra.mxu0 %v6438
    %7524 = vmatmul.bf16.gmra.mxu0 %v152
    %v7525 = vpop.f32.mrf.mxu0
    %v7526 = vadd.f32 %v7513, %v7525
    %v7527 = vpop.f32.mrf.mxu0
    %7528 = vdwg.mxu0
    %7529 = vmatpush.bf16.msra.mxu0 %v6558
    %7530 = vmatpush.bf16.msra.mxu0 %v6550
    %7531 = vmatpush.bf16.msra.mxu0 %v6542
    %7532 = vmatpush.bf16.msra.mxu0 %v6534
    %7533 = vmatpush.bf16.msra.mxu0 %v6526
    %7534 = vmatpush.bf16.msra.mxu0 %v6518
    %7535 = vmatpush.bf16.msra.mxu0 %v6510
    %7536 = vmatpush.bf16.msra.mxu0 %v6502
    %7537 = vmatmul.bf16.gmra.mxu0 %v153
    %v7538 = vpop.f32.mrf.mxu0
    %v7539 = vadd.f32 %v7526, %v7538
    %v7540 = vpop.f32.mrf.mxu0
    %7541 = vdwg.mxu0
    %7542 = vmatpush.bf16.msra.mxu0 %v6622
    %7543 = vmatpush.bf16.msra.mxu0 %v6614
    %7544 = vmatpush.bf16.msra.mxu0 %v6606
    %7545 = vmatpush.bf16.msra.mxu0 %v6598
    %7546 = vmatpush.bf16.msra.mxu0 %v6590
    %7547 = vmatpush.bf16.msra.mxu0 %v6582
    %7548 = vmatpush.bf16.msra.mxu0 %v6574
    %7549 = vmatpush.bf16.msra.mxu0 %v6566
    %7550 = vmatmul.bf16.gmra.mxu0 %v154
    %v7551 = vpop.f32.mrf.mxu0
    %v7552 = vadd.f32 %v7539, %v7551
    %v7553 = vpop.f32.mrf.mxu0
    %7554 = vdwg.mxu0
    %7555 = vmatpush.bf16.msra.mxu0 %v6175
    %7556 = vmatpush.bf16.msra.mxu0 %v6167
    %7557 = vmatpush.bf16.msra.mxu0 %v6159
    %7558 = vmatpush.bf16.msra.mxu0 %v6151
    %7559 = vmatpush.bf16.msra.mxu0 %v6143
    %7560 = vmatpush.bf16.msra.mxu0 %v6135
    %7561 = vmatpush.bf16.msra.mxu0 %v6127
    %7562 = vmatpush.bf16.msra.mxu0 %v6119
    %7563 = vmatmul.bf16.gmra.mxu0 %v147
    %v7564 = vpop.f32.mrf.mxu0
    %v7565 = vadd.f32 %v4264, %v7564
    %v7566 = vpop.f32.mrf.mxu0
    %7567 = vdwg.mxu0
    %7568 = vmatpush.bf16.msra.mxu0 %v6239
    %7569 = vmatpush.bf16.msra.mxu0 %v6231
    %7570 = vmatpush.bf16.msra.mxu0 %v6223
    %7571 = vmatpush.bf16.msra.mxu0 %v6215
    %7572 = vmatpush.bf16.msra.mxu0 %v6207
    %7573 = vmatpush.bf16.msra.mxu0 %v6199
    %7574 = vmatpush.bf16.msra.mxu0 %v6191
    %7575 = vmatpush.bf16.msra.mxu0 %v6183
    %7576 = vmatmul.bf16.gmra.mxu0 %v148
    %v7577 = vpop.f32.mrf.mxu0
    %v7578 = vadd.f32 %v7565, %v7577
    %v7579 = vpop.f32.mrf.mxu0
    %7580 = vdwg.mxu0
    %7581 = vmatpush.bf16.msra.mxu0 %v6303
    %7582 = vmatpush.bf16.msra.mxu0 %v6295
    %7583 = vmatpush.bf16.msra.mxu0 %v6287
    %7584 = vmatpush.bf16.msra.mxu0 %v6279
    %7585 = vmatpush.bf16.msra.mxu0 %v6271
    %7586 = vmatpush.bf16.msra.mxu0 %v6263
    %7587 = vmatpush.bf16.msra.mxu0 %v6255
    %7588 = vmatpush.bf16.msra.mxu0 %v6247
    %7589 = vmatmul.bf16.gmra.mxu0 %v149
    %v7590 = vpop.f32.mrf.mxu0
    %v7591 = vadd.f32 %v7578, %v7590
    %v7592 = vpop.f32.mrf.mxu0
    %7593 = vdwg.mxu0
    %7594 = vmatpush.bf16.msra.mxu0 %v6367
    %7595 = vmatpush.bf16.msra.mxu0 %v6359
    %7596 = vmatpush.bf16.msra.mxu0 %v6351
    %7597 = vmatpush.bf16.msra.mxu0 %v6343
    %7598 = vmatpush.bf16.msra.mxu0 %v6335
    %7599 = vmatpush.bf16.msra.mxu0 %v6327
    %7600 = vmatpush.bf16.msra.mxu0 %v6319
    %7601 = vmatpush.bf16.msra.mxu0 %v6311
    %7602 = vmatmul.bf16.gmra.mxu0 %v150
    %v7603 = vpop.f32.mrf.mxu0
    %v7604 = vadd.f32 %v7591, %v7603
    %v7605 = vpop.f32.mrf.mxu0
    %7606 = vdwg.mxu0
    %7607 = vmatpush.bf16.msra.mxu0 %v6431
    %7608 = vmatpush.bf16.msra.mxu0 %v6423
    %7609 = vmatpush.bf16.msra.mxu0 %v6415
    %7610 = vmatpush.bf16.msra.mxu0 %v6407
    %7611 = vmatpush.bf16.msra.mxu0 %v6399
    %7612 = vmatpush.bf16.msra.mxu0 %v6391
    %7613 = vmatpush.bf16.msra.mxu0 %v6383
    %7614 = vmatpush.bf16.msra.mxu0 %v6375
    %7615 = vmatmul.bf16.gmra.mxu0 %v151
    %v7616 = vpop.f32.mrf.mxu0
    %v7617 = vadd.f32 %v7604, %v7616
    %v7618 = vpop.f32.mrf.mxu0
    %7619 = vdwg.mxu0
    %7620 = vmatpush.bf16.msra.mxu0 %v6495
    %7621 = vmatpush.bf16.msra.mxu0 %v6487
    %7622 = vmatpush.bf16.msra.mxu0 %v6479
    %7623 = vmatpush.bf16.msra.mxu0 %v6471
    %7624 = vmatpush.bf16.msra.mxu0 %v6463
    %7625 = vmatpush.bf16.msra.mxu0 %v6455
    %7626 = vmatpush.bf16.msra.mxu0 %v6447
    %7627 = vmatpush.bf16.msra.mxu0 %v6439
    %7628 = vmatmul.bf16.gmra.mxu0 %v152
    %v7629 = vpop.f32.mrf.mxu0
    %v7630 = vadd.f32 %v7617, %v7629
    %v7631 = vpop.f32.mrf.mxu0
    %7632 = vdwg.mxu0
    %7633 = vmatpush.bf16.msra.mxu0 %v6559
    %7634 = vmatpush.bf16.msra.mxu0 %v6551
    %7635 = vmatpush.bf16.msra.mxu0 %v6543
    %7636 = vmatpush.bf16.msra.mxu0 %v6535
    %7637 = vmatpush.bf16.msra.mxu0 %v6527
    %7638 = vmatpush.bf16.msra.mxu0 %v6519
    %7639 = vmatpush.bf16.msra.mxu0 %v6511
    %7640 = vmatpush.bf16.msra.mxu0 %v6503
    %7641 = vmatmul.bf16.gmra.mxu0 %v153
    %v7642 = vpop.f32.mrf.mxu0
    %v7643 = vadd.f32 %v7630, %v7642
    %v7644 = vpop.f32.mrf.mxu0
    %7645 = vdwg.mxu0
    %7646 = vmatpush.bf16.msra.mxu0 %v6623
    %7647 = vmatpush.bf16.msra.mxu0 %v6615
    %7648 = vmatpush.bf16.msra.mxu0 %v6607
    %7649 = vmatpush.bf16.msra.mxu0 %v6599
    %7650 = vmatpush.bf16.msra.mxu0 %v6591
    %7651 = vmatpush.bf16.msra.mxu0 %v6583
    %7652 = vmatpush.bf16.msra.mxu0 %v6575
    %7653 = vmatpush.bf16.msra.mxu0 %v6567
    %7654 = vmatmul.bf16.gmra.mxu0 %v154
    %v7655 = vpop.f32.mrf.mxu0
    %v7656 = vadd.f32 %v7643, %v7655
    %v7657 = vpop.f32.mrf.mxu0
    %7658 = vdwg.mxu0
    %7659 = vmatpush.bf16.msra.mxu0 %v6176
    %7660 = vmatpush.bf16.msra.mxu0 %v6168
    %7661 = vmatpush.bf16.msra.mxu0 %v6160
    %7662 = vmatpush.bf16.msra.mxu0 %v6152
    %7663 = vmatpush.bf16.msra.mxu0 %v6144
    %7664 = vmatpush.bf16.msra.mxu0 %v6136
    %7665 = vmatpush.bf16.msra.mxu0 %v6128
    %7666 = vmatpush.bf16.msra.mxu0 %v6120
    %7667 = vmatmul.bf16.gmra.mxu0 %v147
    %v7668 = vpop.f32.mrf.mxu0
    %v7669 = vadd.f32 %v4368, %v7668
    %v7670 = vpop.f32.mrf.mxu0
    %7671 = vdwg.mxu0
    %7672 = vmatpush.bf16.msra.mxu0 %v6240
    %7673 = vmatpush.bf16.msra.mxu0 %v6232
    %7674 = vmatpush.bf16.msra.mxu0 %v6224
    %7675 = vmatpush.bf16.msra.mxu0 %v6216
    %7676 = vmatpush.bf16.msra.mxu0 %v6208
    %7677 = vmatpush.bf16.msra.mxu0 %v6200
    %7678 = vmatpush.bf16.msra.mxu0 %v6192
    %7679 = vmatpush.bf16.msra.mxu0 %v6184
    %7680 = vmatmul.bf16.gmra.mxu0 %v148
    %v7681 = vpop.f32.mrf.mxu0
    %v7682 = vadd.f32 %v7669, %v7681
    %v7683 = vpop.f32.mrf.mxu0
    %7684 = vdwg.mxu0
    %7685 = vmatpush.bf16.msra.mxu0 %v6304
    %7686 = vmatpush.bf16.msra.mxu0 %v6296
    %7687 = vmatpush.bf16.msra.mxu0 %v6288
    %7688 = vmatpush.bf16.msra.mxu0 %v6280
    %7689 = vmatpush.bf16.msra.mxu0 %v6272
    %7690 = vmatpush.bf16.msra.mxu0 %v6264
    %7691 = vmatpush.bf16.msra.mxu0 %v6256
    %7692 = vmatpush.bf16.msra.mxu0 %v6248
    %7693 = vmatmul.bf16.gmra.mxu0 %v149
    %v7694 = vpop.f32.mrf.mxu0
    %v7695 = vadd.f32 %v7682, %v7694
    %v7696 = vpop.f32.mrf.mxu0
    %7697 = vdwg.mxu0
    %7698 = vmatpush.bf16.msra.mxu0 %v6368
    %7699 = vmatpush.bf16.msra.mxu0 %v6360
    %7700 = vmatpush.bf16.msra.mxu0 %v6352
    %7701 = vmatpush.bf16.msra.mxu0 %v6344
    %7702 = vmatpush.bf16.msra.mxu0 %v6336
    %7703 = vmatpush.bf16.msra.mxu0 %v6328
    %7704 = vmatpush.bf16.msra.mxu0 %v6320
    %7705 = vmatpush.bf16.msra.mxu0 %v6312
    %7706 = vmatmul.bf16.gmra.mxu0 %v150
    %v7707 = vpop.f32.mrf.mxu0
    %v7708 = vadd.f32 %v7695, %v7707
    %v7709 = vpop.f32.mrf.mxu0
    %7710 = vdwg.mxu0
    %7711 = vmatpush.bf16.msra.mxu0 %v6432
    %7712 = vmatpush.bf16.msra.mxu0 %v6424
    %7713 = vmatpush.bf16.msra.mxu0 %v6416
    %7714 = vmatpush.bf16.msra.mxu0 %v6408
    %7715 = vmatpush.bf16.msra.mxu0 %v6400
    %7716 = vmatpush.bf16.msra.mxu0 %v6392
    %7717 = vmatpush.bf16.msra.mxu0 %v6384
    %7718 = vmatpush.bf16.msra.mxu0 %v6376
    %7719 = vmatmul.bf16.gmra.mxu0 %v151
    %v7720 = vpop.f32.mrf.mxu0
    %v7721 = vadd.f32 %v7708, %v7720
    %v7722 = vpop.f32.mrf.mxu0
    %7723 = vdwg.mxu0
    %7724 = vmatpush.bf16.msra.mxu0 %v6496
    %7725 = vmatpush.bf16.msra.mxu0 %v6488
    %7726 = vmatpush.bf16.msra.mxu0 %v6480
    %7727 = vmatpush.bf16.msra.mxu0 %v6472
    %7728 = vmatpush.bf16.msra.mxu0 %v6464
    %7729 = vmatpush.bf16.msra.mxu0 %v6456
    %7730 = vmatpush.bf16.msra.mxu0 %v6448
    %7731 = vmatpush.bf16.msra.mxu0 %v6440
    %7732 = vmatmul.bf16.gmra.mxu0 %v152
    %v7733 = vpop.f32.mrf.mxu0
    %v7734 = vadd.f32 %v7721, %v7733
    %v7735 = vpop.f32.mrf.mxu0
    %7736 = vdwg.mxu0
    %7737 = vmatpush.bf16.msra.mxu0 %v6560
    %7738 = vmatpush.bf16.msra.mxu0 %v6552
    %7739 = vmatpush.bf16.msra.mxu0 %v6544
    %7740 = vmatpush.bf16.msra.mxu0 %v6536
    %7741 = vmatpush.bf16.msra.mxu0 %v6528
    %7742 = vmatpush.bf16.msra.mxu0 %v6520
    %7743 = vmatpush.bf16.msra.mxu0 %v6512
    %7744 = vmatpush.bf16.msra.mxu0 %v6504
    %7745 = vmatmul.bf16.gmra.mxu0 %v153
    %v7746 = vpop.f32.mrf.mxu0
    %v7747 = vadd.f32 %v7734, %v7746
    %v7748 = vpop.f32.mrf.mxu0
    %7749 = vdwg.mxu0
    %7750 = vmatpush.bf16.msra.mxu0 %v6624
    %7751 = vmatpush.bf16.msra.mxu0 %v6616
    %7752 = vmatpush.bf16.msra.mxu0 %v6608
    %7753 = vmatpush.bf16.msra.mxu0 %v6600
    %7754 = vmatpush.bf16.msra.mxu0 %v6592
    %7755 = vmatpush.bf16.msra.mxu0 %v6584
    %7756 = vmatpush.bf16.msra.mxu0 %v6576
    %7757 = vmatpush.bf16.msra.mxu0 %v6568
    %7758 = vmatmul.bf16.gmra.mxu0 %v154
    %v7759 = vpop.f32.mrf.mxu0
    %v7760 = vadd.f32 %v7747, %v7759
    %v7761 = vpop.f32.mrf.mxu0
    %7762 = vdwg.mxu0
    %7763 = vmatpush.bf16.msra.mxu0 %v6177
    %7764 = vmatpush.bf16.msra.mxu0 %v6169
    %7765 = vmatpush.bf16.msra.mxu0 %v6161
    %7766 = vmatpush.bf16.msra.mxu0 %v6153
    %7767 = vmatpush.bf16.msra.mxu0 %v6145
    %7768 = vmatpush.bf16.msra.mxu0 %v6137
    %7769 = vmatpush.bf16.msra.mxu0 %v6129
    %7770 = vmatpush.bf16.msra.mxu0 %v6121
    %7771 = vmatmul.bf16.gmra.mxu0 %v147
    %v7772 = vpop.f32.mrf.mxu0
    %v7773 = vadd.f32 %v4472, %v7772
    %v7774 = vpop.f32.mrf.mxu0
    %7775 = vdwg.mxu0
    %7776 = vmatpush.bf16.msra.mxu0 %v6241
    %7777 = vmatpush.bf16.msra.mxu0 %v6233
    %7778 = vmatpush.bf16.msra.mxu0 %v6225
    %7779 = vmatpush.bf16.msra.mxu0 %v6217
    %7780 = vmatpush.bf16.msra.mxu0 %v6209
    %7781 = vmatpush.bf16.msra.mxu0 %v6201
    %7782 = vmatpush.bf16.msra.mxu0 %v6193
    %7783 = vmatpush.bf16.msra.mxu0 %v6185
    %7784 = vmatmul.bf16.gmra.mxu0 %v148
    %v7785 = vpop.f32.mrf.mxu0
    %v7786 = vadd.f32 %v7773, %v7785
    %v7787 = vpop.f32.mrf.mxu0
    %7788 = vdwg.mxu0
    %7789 = vmatpush.bf16.msra.mxu0 %v6305
    %7790 = vmatpush.bf16.msra.mxu0 %v6297
    %7791 = vmatpush.bf16.msra.mxu0 %v6289
    %7792 = vmatpush.bf16.msra.mxu0 %v6281
    %7793 = vmatpush.bf16.msra.mxu0 %v6273
    %7794 = vmatpush.bf16.msra.mxu0 %v6265
    %7795 = vmatpush.bf16.msra.mxu0 %v6257
    %7796 = vmatpush.bf16.msra.mxu0 %v6249
    %7797 = vmatmul.bf16.gmra.mxu0 %v149
    %v7798 = vpop.f32.mrf.mxu0
    %v7799 = vadd.f32 %v7786, %v7798
    %v7800 = vpop.f32.mrf.mxu0
    %7801 = vdwg.mxu0
    %7802 = vmatpush.bf16.msra.mxu0 %v6369
    %7803 = vmatpush.bf16.msra.mxu0 %v6361
    %7804 = vmatpush.bf16.msra.mxu0 %v6353
    %7805 = vmatpush.bf16.msra.mxu0 %v6345
    %7806 = vmatpush.bf16.msra.mxu0 %v6337
    %7807 = vmatpush.bf16.msra.mxu0 %v6329
    %7808 = vmatpush.bf16.msra.mxu0 %v6321
    %7809 = vmatpush.bf16.msra.mxu0 %v6313
    %7810 = vmatmul.bf16.gmra.mxu0 %v150
    %v7811 = vpop.f32.mrf.mxu0
    %v7812 = vadd.f32 %v7799, %v7811
    %v7813 = vpop.f32.mrf.mxu0
    %7814 = vdwg.mxu0
    %7815 = vmatpush.bf16.msra.mxu0 %v6433
    %7816 = vmatpush.bf16.msra.mxu0 %v6425
    %7817 = vmatpush.bf16.msra.mxu0 %v6417
    %7818 = vmatpush.bf16.msra.mxu0 %v6409
    %7819 = vmatpush.bf16.msra.mxu0 %v6401
    %7820 = vmatpush.bf16.msra.mxu0 %v6393
    %7821 = vmatpush.bf16.msra.mxu0 %v6385
    %7822 = vmatpush.bf16.msra.mxu0 %v6377
    %7823 = vmatmul.bf16.gmra.mxu0 %v151
    %v7824 = vpop.f32.mrf.mxu0
    %v7825 = vadd.f32 %v7812, %v7824
    %v7826 = vpop.f32.mrf.mxu0
    %7827 = vdwg.mxu0
    %7828 = vmatpush.bf16.msra.mxu0 %v6497
    %7829 = vmatpush.bf16.msra.mxu0 %v6489
    %7830 = vmatpush.bf16.msra.mxu0 %v6481
    %7831 = vmatpush.bf16.msra.mxu0 %v6473
    %7832 = vmatpush.bf16.msra.mxu0 %v6465
    %7833 = vmatpush.bf16.msra.mxu0 %v6457
    %7834 = vmatpush.bf16.msra.mxu0 %v6449
    %7835 = vmatpush.bf16.msra.mxu0 %v6441
    %7836 = vmatmul.bf16.gmra.mxu0 %v152
    %v7837 = vpop.f32.mrf.mxu0
    %v7838 = vadd.f32 %v7825, %v7837
    %v7839 = vpop.f32.mrf.mxu0
    %7840 = vdwg.mxu0
    %7841 = vmatpush.bf16.msra.mxu0 %v6561
    %7842 = vmatpush.bf16.msra.mxu0 %v6553
    %7843 = vmatpush.bf16.msra.mxu0 %v6545
    %7844 = vmatpush.bf16.msra.mxu0 %v6537
    %7845 = vmatpush.bf16.msra.mxu0 %v6529
    %7846 = vmatpush.bf16.msra.mxu0 %v6521
    %7847 = vmatpush.bf16.msra.mxu0 %v6513
    %7848 = vmatpush.bf16.msra.mxu0 %v6505
    %7849 = vmatmul.bf16.gmra.mxu0 %v153
    %v7850 = vpop.f32.mrf.mxu0
    %v7851 = vadd.f32 %v7838, %v7850
    %v7852 = vpop.f32.mrf.mxu0
    %7853 = vdwg.mxu0
    %7854 = vmatpush.bf16.msra.mxu0 %v6625
    %7855 = vmatpush.bf16.msra.mxu0 %v6617
    %7856 = vmatpush.bf16.msra.mxu0 %v6609
    %7857 = vmatpush.bf16.msra.mxu0 %v6601
    %7858 = vmatpush.bf16.msra.mxu0 %v6593
    %7859 = vmatpush.bf16.msra.mxu0 %v6585
    %7860 = vmatpush.bf16.msra.mxu0 %v6577
    %7861 = vmatpush.bf16.msra.mxu0 %v6569
    %7862 = vmatmul.bf16.gmra.mxu0 %v154
    %v7863 = vpop.f32.mrf.mxu0
    %v7864 = vadd.f32 %v7851, %v7863
    %v7865 = vpop.f32.mrf.mxu0
    %7866 = vdwg.mxu0
    %7867 = vmatpush.bf16.msra.mxu0 %v6178
    %7868 = vmatpush.bf16.msra.mxu0 %v6170
    %7869 = vmatpush.bf16.msra.mxu0 %v6162
    %7870 = vmatpush.bf16.msra.mxu0 %v6154
    %7871 = vmatpush.bf16.msra.mxu0 %v6146
    %7872 = vmatpush.bf16.msra.mxu0 %v6138
    %7873 = vmatpush.bf16.msra.mxu0 %v6130
    %7874 = vmatpush.bf16.msra.mxu0 %v6122
    %7875 = vmatmul.bf16.gmra.mxu0 %v147
    %v7876 = vpop.f32.mrf.mxu0
    %v7877 = vadd.f32 %v4576, %v7876
    %v7878 = vpop.f32.mrf.mxu0
    %7879 = vdwg.mxu0
    %7880 = vmatpush.bf16.msra.mxu0 %v6242
    %7881 = vmatpush.bf16.msra.mxu0 %v6234
    %7882 = vmatpush.bf16.msra.mxu0 %v6226
    %7883 = vmatpush.bf16.msra.mxu0 %v6218
    %7884 = vmatpush.bf16.msra.mxu0 %v6210
    %7885 = vmatpush.bf16.msra.mxu0 %v6202
    %7886 = vmatpush.bf16.msra.mxu0 %v6194
    %7887 = vmatpush.bf16.msra.mxu0 %v6186
    %7888 = vmatmul.bf16.gmra.mxu0 %v148
    %v7889 = vpop.f32.mrf.mxu0
    %v7890 = vadd.f32 %v7877, %v7889
    %v7891 = vpop.f32.mrf.mxu0
    %7892 = vdwg.mxu0
    %7893 = vmatpush.bf16.msra.mxu0 %v6306
    %7894 = vmatpush.bf16.msra.mxu0 %v6298
    %7895 = vmatpush.bf16.msra.mxu0 %v6290
    %7896 = vmatpush.bf16.msra.mxu0 %v6282
    %7897 = vmatpush.bf16.msra.mxu0 %v6274
    %7898 = vmatpush.bf16.msra.mxu0 %v6266
    %7899 = vmatpush.bf16.msra.mxu0 %v6258
    %7900 = vmatpush.bf16.msra.mxu0 %v6250
    %7901 = vmatmul.bf16.gmra.mxu0 %v149
    %v7902 = vpop.f32.mrf.mxu0
    %v7903 = vadd.f32 %v7890, %v7902
    %v7904 = vpop.f32.mrf.mxu0
    %7905 = vdwg.mxu0
    %7906 = vmatpush.bf16.msra.mxu0 %v6370
    %7907 = vmatpush.bf16.msra.mxu0 %v6362
    %7908 = vmatpush.bf16.msra.mxu0 %v6354
    %7909 = vmatpush.bf16.msra.mxu0 %v6346
    %7910 = vmatpush.bf16.msra.mxu0 %v6338
    %7911 = vmatpush.bf16.msra.mxu0 %v6330
    %7912 = vmatpush.bf16.msra.mxu0 %v6322
    %7913 = vmatpush.bf16.msra.mxu0 %v6314
    %7914 = vmatmul.bf16.gmra.mxu0 %v150
    %v7915 = vpop.f32.mrf.mxu0
    %v7916 = vadd.f32 %v7903, %v7915
    %v7917 = vpop.f32.mrf.mxu0
    %7918 = vdwg.mxu0
    %7919 = vmatpush.bf16.msra.mxu0 %v6434
    %7920 = vmatpush.bf16.msra.mxu0 %v6426
    %7921 = vmatpush.bf16.msra.mxu0 %v6418
    %7922 = vmatpush.bf16.msra.mxu0 %v6410
    %7923 = vmatpush.bf16.msra.mxu0 %v6402
    %7924 = vmatpush.bf16.msra.mxu0 %v6394
    %7925 = vmatpush.bf16.msra.mxu0 %v6386
    %7926 = vmatpush.bf16.msra.mxu0 %v6378
    %7927 = vmatmul.bf16.gmra.mxu0 %v151
    %v7928 = vpop.f32.mrf.mxu0
    %v7929 = vadd.f32 %v7916, %v7928
    %v7930 = vpop.f32.mrf.mxu0
    %7931 = vdwg.mxu0
    %7932 = vmatpush.bf16.msra.mxu0 %v6498
    %7933 = vmatpush.bf16.msra.mxu0 %v6490
    %7934 = vmatpush.bf16.msra.mxu0 %v6482
    %7935 = vmatpush.bf16.msra.mxu0 %v6474
    %7936 = vmatpush.bf16.msra.mxu0 %v6466
    %7937 = vmatpush.bf16.msra.mxu0 %v6458
    %7938 = vmatpush.bf16.msra.mxu0 %v6450
    %7939 = vmatpush.bf16.msra.mxu0 %v6442
    %7940 = vmatmul.bf16.gmra.mxu0 %v152
    %v7941 = vpop.f32.mrf.mxu0
    %v7942 = vadd.f32 %v7929, %v7941
    %v7943 = vpop.f32.mrf.mxu0
    %7944 = vdwg.mxu0
    %7945 = vmatpush.bf16.msra.mxu0 %v6562
    %7946 = vmatpush.bf16.msra.mxu0 %v6554
    %7947 = vmatpush.bf16.msra.mxu0 %v6546
    %7948 = vmatpush.bf16.msra.mxu0 %v6538
    %7949 = vmatpush.bf16.msra.mxu0 %v6530
    %7950 = vmatpush.bf16.msra.mxu0 %v6522
    %7951 = vmatpush.bf16.msra.mxu0 %v6514
    %7952 = vmatpush.bf16.msra.mxu0 %v6506
    %7953 = vmatmul.bf16.gmra.mxu0 %v153
    %v7954 = vpop.f32.mrf.mxu0
    %v7955 = vadd.f32 %v7942, %v7954
    %v7956 = vpop.f32.mrf.mxu0
    %7957 = vdwg.mxu0
    %7958 = vmatpush.bf16.msra.mxu0 %v6626
    %7959 = vmatpush.bf16.msra.mxu0 %v6618
    %7960 = vmatpush.bf16.msra.mxu0 %v6610
    %7961 = vmatpush.bf16.msra.mxu0 %v6602
    %7962 = vmatpush.bf16.msra.mxu0 %v6594
    %7963 = vmatpush.bf16.msra.mxu0 %v6586
    %7964 = vmatpush.bf16.msra.mxu0 %v6578
    %7965 = vmatpush.bf16.msra.mxu0 %v6570
    %7966 = vmatmul.bf16.gmra.mxu0 %v154
    %v7967 = vpop.f32.mrf.mxu0
    %v7968 = vadd.f32 %v7955, %v7967
    %v7969 = vpop.f32.mrf.mxu0
    %7970 = vdwg.mxu0
    %v7971 = vld [vmem:[#allocation11] sm:$0xff]
    %v7973 = vperm.slane %v7971, 0
    %v7974 = vperm.slane %v7971, 1
    %v7975 = vperm.slane %v7971, 2
    %v7976 = vperm.slane %v7971, 3
    %v7977 = vperm.slane %v7971, 4
    %v7978 = vperm.slane %v7971, 5
    %v7979 = vperm.slane %v7971, 6
    %v7980 = vperm.slane %v7971, 7
    %v7989 = vadd.f32 %v7240, %v7973
    %v7990 = vadd.f32 %v7344, %v7974
    %v7991 = vadd.f32 %v7448, %v7975
    %v7992 = vadd.f32 %v7552, %v7976
    %v7993 = vadd.f32 %v7656, %v7977
    %v7994 = vadd.f32 %v7760, %v7978
    %v7995 = vadd.f32 %v7864, %v7979
    %v7996 = vadd.f32 %v7968, %v7980
    %v7997 = vtanh.pop %v7989
    %v7998 = vtanh.pop %v7990
    %v7999 = vtanh.pop %v7991
    %v8000 = vtanh.pop %v7992
    %v8001 = vtanh.pop %v7993
    %v8002 = vtanh.pop %v7994
    %v8003 = vtanh.pop %v7995
    %v8004 = vtanh.pop %v7996
    %v8005 = vmul.f32 %v7997, %v131
    %v8006 = vmul.f32 %v7998, %v132
    %v8007 = vmul.f32 %v7999, %v133
    %v8008 = vmul.f32 %v8000, %v134
    %v8009 = vmul.f32 %v8001, %v135
    %v8010 = vmul.f32 %v8002, %v136
    %v8011 = vmul.f32 %v8003, %v137
    %v8012 = vmul.f32 %v8004, %v138
    %v8013 = vld [vmem:[#allocation13] sm:$0xff]
    %v8014 = vrot.slane %v8005, 4
    %v8015 = vadd.f32 %v8005, %v8014
    %v8016 = vrot.slane %v8015, 2
    %v8017 = vadd.f32 %v8015, %v8016
    %v8018 = vrot.slane %v8017, 1
    %v8019 = vadd.f32 %v8017, %v8018
    %v8020 = vrot.slane %v8006, 4
    %v8021 = vadd.f32 %v8006, %v8020
    %v8022 = vrot.slane %v8021, 2
    %v8023 = vadd.f32 %v8021, %v8022
    %v8024 = vrot.slane %v8023, 1
    %v8025 = vadd.f32 %v8023, %v8024
    %v8026 = vrot.slane %v8007, 4
    %v8027 = vadd.f32 %v8007, %v8026
    %v8028 = vrot.slane %v8027, 2
    %v8029 = vadd.f32 %v8027, %v8028
    %v8030 = vrot.slane %v8029, 1
    %v8031 = vadd.f32 %v8029, %v8030
    %v8032 = vrot.slane %v8008, 4
    %v8033 = vadd.f32 %v8008, %v8032
    %v8034 = vrot.slane %v8033, 2
    %v8035 = vadd.f32 %v8033, %v8034
    %v8036 = vrot.slane %v8035, 1
    %v8037 = vadd.f32 %v8035, %v8036
    %v8038 = vrot.slane %v8009, 4
    %v8039 = vadd.f32 %v8009, %v8038
    %v8040 = vrot.slane %v8039, 2
    %v8041 = vadd.f32 %v8039, %v8040
    %v8042 = vrot.slane %v8041, 1
    %v8043 = vadd.f32 %v8041, %v8042
    %v8044 = vrot.slane %v8010, 4
    %v8045 = vadd.f32 %v8010, %v8044
    %v8046 = vrot.slane %v8045, 2
    %v8047 = vadd.f32 %v8045, %v8046
    %v8048 = vrot.slane %v8047, 1
    %v8049 = vadd.f32 %v8047, %v8048
    %v8050 = vrot.slane %v8011, 4
    %v8051 = vadd.f32 %v8011, %v8050
    %v8052 = vrot.slane %v8051, 2
    %v8053 = vadd.f32 %v8051, %v8052
    %v8054 = vrot.slane %v8053, 1
    %v8055 = vadd.f32 %v8053, %v8054
    %v8056 = vrot.slane %v8012, 4
    %v8057 = vadd.f32 %v8012, %v8056
    %v8058 = vrot.slane %v8057, 2
    %v8059 = vadd.f32 %v8057, %v8058
    %v8060 = vrot.slane %v8059, 1
    %v8061 = vadd.f32 %v8059, %v8060
    %v8070 = vrot.slane %v8025, 7
    %v8071 = vrot.slane %v8031, 6
    %v8072 = vrot.slane %v8037, 5
    %v8073 = vrot.slane %v8043, 4
    %v8074 = vrot.slane %v8049, 3
    %v8075 = vrot.slane %v8055, 2
    %v8076 = vrot.slane %v8061, 1
    %vm8077 = vcmask 1040384
    %v8078 = vsel %vm8077, %v8019, %v8070
    %vm8079 = vcmask 1042434
    %v8080 = vsel %vm8079, %v8071, %v8072
    %vm8081 = vcmask 1041408
    %v8082 = vsel %vm8081, %v8078, %v8080
    %vm8083 = vcmask 1044484
    %v8084 = vsel %vm8083, %v8073, %v8074
    %vm8085 = vcmask 1046534
    %v8086 = vsel %vm8085, %v8075, %v8076
    %vm8087 = vcmask 1045508
    %v8088 = vsel %vm8087, %v8084, %v8086
    %vm8089 = vcmask 1043456
    %v8090 = vsel %vm8089, %v8082, %v8088
    %v8092 = vadd.f32 %v8013, %v8090
    %8093 = vst [vmem:[#allocation13] sm:$0xff] %v8092
    // Predicated region
    $region54: #{tpu_custom_call.1} parent=1 // pred_check
      _
    $region55: #{tpu_custom_call.1} parent=1 // pred_check_branch
      %8095 = sbr.rel (0) target = $region57
    $region56: #{tpu_custom_call.1} parent=1 // pred_region
      %8097 = vsyncadd [#allocation4], 0
      %s8099 = sshll.u32 [#allocation13], 4
      %s8100 = int_to_ptr.vmem [resolvable:$true] %s8099
      %s8101 = sshll.u32 %s6, 4
      %s8102 = int_to_ptr.hbm [resolvable:$true] %s8101
      %8104 = dma.vmem_to_hbm [thread:$0]  %s8100, 128, %s8102, [#allocation4]
    $region57: #{tpu_custom_call.1} parent=1 // pred_fallthru
      _
    // Predicated region
    $region58: #{tpu_custom_call.1} parent=1 // pred_check
      _
    $region59: #{tpu_custom_call.1} parent=1 // pred_check_branch
      %8106 = sbr.rel (0) target = $region61
    $region60: #{tpu_custom_call.1} parent=1 // pred_region
      %8108 = dma.done [#allocation4], 128
    $region61: #{tpu_custom_call.1} parent=1 // pred_fallthru
      _
    %8109 = vsyncpa [#allocation3], 1
    %8110 = vsyncpa [#allocation6], 1
    %8111 = vsyncpa [#allocation9], 1
    %8112 = vsyncpa [#allocation12], 1
    %8113 = vsyncpa [#allocation4], 1

</llo_original>
